<compile_context>
chip_gen: v7x
topology: tpu7x:2x2x1
jax: 0.10.0
libtpu: 0.0.40
codegen_flags: <defaults>
</compile_context>

<pallas_src>
import functools
import math

import jax
import jax.numpy as jnp
from jax import lax
from jax.experimental import pallas as pl
from jax.experimental.pallas import tpu as pltpu


_VMEM_LIMIT = 32 * 1024 * 1024      # explicit scoped-VMEM cap, safe on v5e/v6e/v7x
_COMPUTE_DTYPE = jnp.bfloat16       # MXU-native single-pass dtype; accumulate in f32


def _round_up(x, m):
    return ((x + m - 1) // m) * m


# ---------------------------------------------------------------------------
# Kernel 1: M-tiled GEMM + bias  (drives ConvTranspose2d(k=2, s=2)).
# ---------------------------------------------------------------------------
def _matmul_bias_kernel(x_ref, w_ref, b_ref, o_ref):
    acc = jnp.dot(x_ref[...], w_ref[...], preferred_element_type=jnp.float32)
    o_ref[...] = (acc + b_ref[...]).astype(o_ref.dtype)


def _matmul_bias(x, w, b, *, out_dtype, block_m=256):
    """x: (M, K) bf16, w: (K, N) bf16, b: (1, N) f32 -> (M, N) out_dtype."""
    m, k = x.shape
    n = w.shape[1]
    bm = _round_up(min(block_m, _round_up(m, 8)), 8)
    mp = _round_up(m, bm)
    if mp != m:
        x = jnp.pad(x, ((0, mp - m), (0, 0)))
    cost = pl.CostEstimate(
        flops=2 * mp * k * n,
        transcendentals=0,
        bytes_accessed=int(mp * k * x.dtype.itemsize + k * n * w.dtype.itemsize
                           + 4 * n + mp * n * jnp.dtype(out_dtype).itemsize))
    out = pl.pallas_call(
        _matmul_bias_kernel,
        out_shape=jax.ShapeDtypeStruct((mp, n), out_dtype),
        grid_spec=pltpu.PrefetchScalarGridSpec(
            num_scalar_prefetch=0,
            grid=(mp // bm,),
            in_specs=[pl.BlockSpec((bm, k), lambda i: (i, 0)),
                      pl.BlockSpec((k, n), lambda i: (0, 0)),
                      pl.BlockSpec((1, n), lambda i: (0, 0))],
            out_specs=pl.BlockSpec((bm, n), lambda i: (i, 0))),
        compiler_params=pltpu.CompilerParams(
            dimension_semantics=("parallel",),
            vmem_limit_bytes=_VMEM_LIMIT),
        cost_estimate=cost,
    )(x, w, b)
    return out[:m] if mp != m else out


def conv_transpose_2x2(x_nhwc, wt, b, *, block_m=256):
    """PyTorch ConvTranspose2d(C, C, 2, stride=2). x: (N,H,W,C), wt: (Cin,Cout,2,2)."""
    n, h, w, cin = x_nhwc.shape
    cout = wt.shape[1]
    # columns ordered (di, dj, cout)
    w2 = jnp.transpose(wt, (0, 2, 3, 1)).reshape(cin, 4 * cout).astype(_COMPUTE_DTYPE)
    b2 = jnp.tile(b, 4).reshape(1, 4 * cout).astype(jnp.float32)
    x2d = x_nhwc.reshape(n * h * w, cin).astype(_COMPUTE_DTYPE)
    yf = _matmul_bias(x2d, w2, b2, out_dtype=_COMPUTE_DTYPE, block_m=block_m)
    y = yf.reshape(n, h, w, 2, 2, cout)
    y = jnp.transpose(y, (0, 1, 3, 2, 4, 5)).reshape(n, 2 * h, 2 * w, cout)
    return y


# ---------------------------------------------------------------------------
# Kernel 2: fused 3x3 same-conv (+ fused channel-concat of several inputs)
#           + folded BatchNorm (scale/bias) + ReLU, row-tiled with a 3-row halo.
#
# Each input is a zero-padded image row-flattened to (N, hp*wp, Ci) with
# wp = W + 2 and hp >= (padded rows).  For output tile t the kernel receives
# the contiguous block of th*wp rows plus a 3*wp-row halo (the next 3 padded
# rows), so every 3x3 tap is a contiguous slice of the concatenated window,
# and the conv is 9 accumulated GEMMs per input.
# ---------------------------------------------------------------------------
def _conv3x3_bn_relu_kernel(*refs, n_in, wp, lw):
    x_refs = refs[:n_in]
    h_refs = refs[n_in:2 * n_in]
    w_refs = refs[2 * n_in:3 * n_in]
    scale_ref = refs[3 * n_in]
    bias_ref = refs[3 * n_in + 1]
    o_ref = refs[3 * n_in + 2]

    cout = o_ref.shape[-1]
    acc = jnp.zeros((lw, cout), jnp.float32)
    for i in range(n_in):
        # (lw + 3*wp, Ci) window: main row-tile block + 3-row halo.
        win = jnp.concatenate([x_refs[i][0], h_refs[i][0, 0]], axis=0)
        for k in range(9):
            dy, dx = divmod(k, 3)
            off = dy * wp + dx
            acc = acc + jnp.dot(win[off:off + lw, :], w_refs[i][k],
                                preferred_element_type=jnp.float32)
    y = jnp.maximum(acc * scale_ref[...] + bias_ref[...], 0.0)
    o_ref[0] = y.astype(o_ref.dtype)


def _row_tiling(h, wp, row_tile):
    # th*wp must be a multiple of 8 (sublane tiling constraint on the blocks).
    align = 8 // math.gcd(wp, 8)
    th = max(align, min(row_tile, h))
    th = _round_up(th, align)
    t = -(-h // th)
    ht = t * th
    hp = ht + th * (-(-3 // th))          # >= ht + 3 rows, multiple of th
    return th, t, ht, hp


def _pad_flat(x_nhwc, top_extra, left_extra, *, out_w, hp, dtype):
    """Place x into a zero (hp, out_w+2) canvas at (1+top_extra, 1+left_extra),
    cast to `dtype`, and row-flatten to (N, hp*(out_w+2), C)."""
    n, h, w, c = x_nhwc.shape
    wp = out_w + 2
    top = 1 + top_extra
    left = 1 + left_extra
    bottom = hp - top - h
    right = wp - left - w
    xp = jnp.pad(x_nhwc.astype(dtype),
                 ((0, 0), (top, bottom), (left, right), (0, 0)))
    return xp.reshape(n, hp * wp, c)


def _make_halo(x_flat, th, t, wp):
    """Halo rows (t+1)*th .. (t+1)*th+2 of the padded canvas for each tile t."""
    n, l, c = x_flat.shape
    xr = x_flat.reshape(n, l // wp, wp, c)
    rows = ((jnp.arange(t)[:, None] + 1) * th + jnp.arange(3)[None, :]).reshape(-1)
    hal = xr[:, rows]                      # (n, 3*t, wp, c)
    return hal.reshape(n, t, 3 * wp, c)


def conv3x3_bn_relu(inputs, w_oihw, conv_b, gamma, beta, mean, var, *,
                    out_h, out_w, row_tile=32, out_dtype=jnp.float32, eps=1e-5):
    """inputs: list of (x_nhwc, (top_extra, left_extra)).  The channel concat of
    the inputs is fused into the conv (split weight stacks, 9 GEMMs per input)."""
    wp = out_w + 2
    th, t, ht, hp = _row_tiling(out_h, wp, row_tile)
    lw = th * wp
    nb = inputs[0][0].shape[0]
    cout = w_oihw.shape[0]
    cins = [x.shape[-1] for x, _ in inputs]
    assert sum(cins) == w_oihw.shape[1]
    n_in = len(inputs)

    x_flats = [_pad_flat(x, te, le, out_w=out_w, hp=hp, dtype=_COMPUTE_DTYPE)
               for x, (te, le) in inputs]
    halos = [_make_halo(xf, th, t, wp) for xf in x_flats]

    # (Cout, Cin, 3, 3) OIHW -> (9, Cin, Cout), tap-major (dy, dx), split per input.
    w_t = jnp.transpose(w_oihw, (2, 3, 1, 0)).reshape(9, sum(cins), cout)
    w_parts, off = [], 0
    for ci in cins:
        w_parts.append(w_t[:, off:off + ci, :].astype(_COMPUTE_DTYPE))
        off += ci

    # Folded inference-mode BN + conv bias, kept in float32.
    scale = (gamma / jnp.sqrt(var + eps)).astype(jnp.float32)
    bias = (beta + (conv_b - mean) * scale).astype(jnp.float32)
    scale2 = scale.reshape(1, cout)
    bias2 = bias.reshape(1, cout)

    kern = functools.partial(_conv3x3_bn_relu_kernel, n_in=n_in, wp=wp, lw=lw)

    in_specs = (
        [pl.BlockSpec((1, lw, ci), lambda n_, t_: (n_, t_, 0)) for ci in cins]
        + [pl.BlockSpec((1, 1, 3 * wp, ci), lambda n_, t_: (n_, t_, 0, 0))
           for ci in cins]
        + [pl.BlockSpec((9, ci, cout), lambda n_, t_: (0, 0, 0)) for ci in cins]
        + [pl.BlockSpec((1, cout), lambda n_, t_: (0, 0)),
           pl.BlockSpec((1, cout), lambda n_, t_: (0, 0))]
    )

    cin_total = sum(cins)
    cost = pl.CostEstimate(
        flops=2 * nb * t * lw * 9 * cin_total * cout,
        transcendentals=0,
        bytes_accessed=int(
            sum(x.size * x.dtype.itemsize for x in x_flats)
            + sum(hh.size * hh.dtype.itemsize for hh in halos)
            + sum(wpt.size * wpt.dtype.itemsize for wpt in w_parts)
            + 8 * cout
            + nb * ht * wp * cout * jnp.dtype(out_dtype).itemsize))

    out_wide = pl.pallas_call(
        kern,
        out_shape=jax.ShapeDtypeStruct((nb, ht * wp, cout), out_dtype),
        grid_spec=pltpu.PrefetchScalarGridSpec(
            num_scalar_prefetch=0,
            grid=(nb, t),
            in_specs=in_specs,
            out_specs=pl.BlockSpec((1, lw, cout), lambda n_, t_: (n_, t_, 0))),
        compiler_params=pltpu.CompilerParams(
            dimension_semantics=("parallel", "parallel"),
            vmem_limit_bytes=_VMEM_LIMIT),
        cost_estimate=cost,
    )(*x_flats, *halos, *w_parts, scale2, bias2)

    # Strip the 2 junk columns per row and any extended rows.
    return out_wide.reshape(nb, ht, wp, cout)[:, :out_h, :out_w, :]


# ---------------------------------------------------------------------------
# Full `up` forward (NCHW in / NCHW out, matching the PyTorch module).
# ---------------------------------------------------------------------------
def up_forward(x1_nchw, x2_nchw, params, *, row_tile=32, deconv_block_m=256):
    x1 = jnp.transpose(x1_nchw, (0, 2, 3, 1))
    x2 = jnp.transpose(x2_nchw, (0, 2, 3, 1))

    # self.up = ConvTranspose2d(in_ch//2, in_ch//2, 2, stride=2)
    x1u = conv_transpose_2x2(x1, params["up_w"], params["up_b"],
                             block_m=deconv_block_m)

    hh, ww = x2.shape[1], x2.shape[2]
    dy = hh - x1u.shape[1]
    dx = ww - x1u.shape[2]

    # Stage 1: F.pad(x1u) and torch.cat([x2, x1u], dim=1) are fused into the
    # conv via per-input placement offsets and split weight stacks.
    y1 = conv3x3_bn_relu(
        [(x2, (0, 0)), (x1u, (dy // 2, dx // 2))],
        params["c1_w"], params["c1_b"], params["bn1_gamma"], params["bn1_beta"],
        params["bn1_mean"], params["bn1_var"],
        out_h=hh, out_w=ww, row_tile=row_tile, out_dtype=_COMPUTE_DTYPE)

    # Stage 2.
    y2 = conv3x3_bn_relu(
        [(y1, (0, 0))],
        params["c2_w"], params["c2_b"], params["bn2_gamma"], params["bn2_beta"],
        params["bn2_mean"], params["bn2_var"],
        out_h=hh, out_w=ww, row_tile=row_tile, out_dtype=jnp.float32)

    return jnp.transpose(y2, (0, 3, 1, 2))


# ---------------------------------------------------------------------------
# Pure-JAX reference (XLA convs, f32 HIGHEST) for verification.
# ---------------------------------------------------------------------------
def up_reference(x1, x2, params, eps=1e-5):
    wt = params["up_w"]  # (Cin, Cout, 2, 2)
    t = jnp.einsum("nchw,cokl->nohkwl", x1, wt, precision=lax.Precision.HIGHEST)
    n, c, h, _, w, _ = t.shape
    x1u = t.reshape(n, c, 2 * h, 2 * w) + params["up_b"][None, :, None, None]

    dy = x2.shape[2] - x1u.shape[2]
    dx = x2.shape[3] - x1u.shape[3]
    x1u = jnp.pad(
        x1u, ((0, 0), (0, 0), (dy // 2, dy - dy // 2), (dx // 2, dx - dx // 2)))
    x = jnp.concatenate([x2, x1u], axis=1)

    def conv_bn_relu(x, wc, bc, gamma, beta, mean, var):
        y = lax.conv_general_dilated(
            x, wc, window_strides=(1, 1), padding=((1, 1), (1, 1)),
            dimension_numbers=("NCHW", "OIHW", "NCHW"),
            precision=lax.Precision.HIGHEST)
        y = y + bc[None, :, None, None]
        y = (y - mean[None, :, None, None]) / jnp.sqrt(var[None, :, None, None] + eps)
        y = y * gamma[None, :, None, None] + beta[None, :, None, None]
        return jnp.maximum(y, 0.0)

    x = conv_bn_relu(x, params["c1_w"], params["c1_b"], params["bn1_gamma"],
                     params["bn1_beta"], params["bn1_mean"], params["bn1_var"])
    x = conv_bn_relu(x, params["c2_w"], params["c2_b"], params["bn2_gamma"],
                     params["bn2_beta"], params["bn2_mean"], params["bn2_var"])
    return x


if __name__ == "__main__":
    key = jax.random.PRNGKey(0)
    in_ch, out_ch = 8, 4
    N = 2
    H1 = W1 = 7      # deep feature map (pre-upsample) -> 14x14 after deconv
    H2 = W2 = 16     # skip-connection feature map (forces the F.pad path)
    c_half = in_ch // 2

    keys = jax.random.split(key, 18)
    x1 = jax.random.normal(keys[0], (N, c_half, H1, W1), jnp.float32)
    x2 = jax.random.normal(keys[1], (N, c_half, H2, W2), jnp.float32)

    params = {
        "up_w": 0.2 * jax.random.normal(keys[2], (c_half, c_half, 2, 2), jnp.float32),
        "up_b": 0.1 * jax.random.normal(keys[3], (c_half,), jnp.float32),
        "c1_w": 0.2 * jax.random.normal(keys[4], (out_ch, in_ch, 3, 3), jnp.float32),
        "c1_b": 0.1 * jax.random.normal(keys[5], (out_ch,), jnp.float32),
        "bn1_gamma": 1.0 + 0.1 * jax.random.normal(keys[6], (out_ch,), jnp.float32),
        "bn1_beta": 0.1 * jax.random.normal(keys[7], (out_ch,), jnp.float32),
        "bn1_mean": 0.1 * jax.random.normal(keys[8], (out_ch,), jnp.float32),
        "bn1_var": jnp.abs(1.0 + 0.1 * jax.random.normal(keys[9], (out_ch,), jnp.float32)),
        "c2_w": 0.2 * jax.random.normal(keys[10], (out_ch, out_ch, 3, 3), jnp.float32),
        "c2_b": 0.1 * jax.random.normal(keys[11], (out_ch,), jnp.float32),
        "bn2_gamma": 1.0 + 0.1 * jax.random.normal(keys[12], (out_ch,), jnp.float32),
        "bn2_beta": 0.1 * jax.random.normal(keys[13], (out_ch,), jnp.float32),
        "bn2_mean": 0.1 * jax.random.normal(keys[14], (out_ch,), jnp.float32),
        "bn2_var": jnp.abs(1.0 + 0.1 * jax.random.normal(keys[15], (out_ch,), jnp.float32)),
    }

    # row_tile=8 -> 2 row tiles per image (exercises the halo'd row-tiled grid);
    # deconv_block_m=64 -> 2 M-tiles in the deconv GEMM.
    fwd = jax.jit(functools.partial(up_forward, row_tile=8, deconv_block_m=64))
    y = jax.block_until_ready(fwd(x1, x2, params))

    y_ref = jax.block_until_ready(jax.jit(up_reference)(x1, x2, params))
    assert y.shape == (N, out_ch, H2, W2), y.shape
    # bf16-in / f32-accumulate MXU path vs. f32 HIGHEST reference.
    max_err = float(jnp.max(jnp.abs(y - y_ref)))
    assert jnp.allclose(y, y_ref, atol=3e-2, rtol=3e-2), max_err

    print("KERNEL_OK")
</pallas_src>

<mosaic_0001>
module attributes {stable_mosaic.version = 11 : i64} {
  func.func @_matmul_bias_kernel(%arg0: i32, %arg1: memref<64x4xbf16, #tpu.memory_space<vmem>>, %arg2: memref<4x16xbf16, #tpu.memory_space<vmem>>, %arg3: memref<1x16xf32, #tpu.memory_space<vmem>>, %arg4: memref<64x16xbf16, #tpu.memory_space<vmem>>) attributes {dimension_semantics = [#tpu.dimension_semantics<parallel>], iteration_bounds = array<i64: 2>, scalar_prefetch = 0 : i64, scratch_operands = 0 : i64, tpu.core_type = #tpu.core_type<tc>, window_params = [{transform_indices = @transform_0, window_bounds = array<i64: 64, 4>}, {pipeline_mode = #tpu.pipeline_mode<synchronous>, transform_indices = @transform_1, window_bounds = array<i64: 4, 16>}, {pipeline_mode = #tpu.pipeline_mode<synchronous>, transform_indices = @transform_2, window_bounds = array<i64: 1, 16>}, {transform_indices = @transform_3, window_bounds = array<i64: 64, 16>}]} {
    %c0 = arith.constant 0 : index
    %c0_0 = arith.constant 0 : index
    %0 = vector.load %arg1[%c0, %c0_0] : memref<64x4xbf16, #tpu.memory_space<vmem>>, vector<64x4xbf16>
    %c0_1 = arith.constant 0 : index
    %c0_2 = arith.constant 0 : index
    %1 = vector.load %arg2[%c0_1, %c0_2] : memref<4x16xbf16, #tpu.memory_space<vmem>>, vector<4x16xbf16>
    %cst = arith.constant dense<0.000000e+00> : vector<64x16xf32>
    %2 = tpu.matmul %0, %1, %cst {dimension_numbers = #tpu.dot_dimension_numbers<[1], [0], [0], [1], [0, 0, 1, 1], [], []>} : vector<64x4xbf16>, vector<4x16xbf16>, vector<64x16xf32> -> vector<64x16xf32>
    %c0_3 = arith.constant 0 : index
    %c0_4 = arith.constant 0 : index
    %3 = vector.load %arg3[%c0_3, %c0_4] : memref<1x16xf32, #tpu.memory_space<vmem>>, vector<1x16xf32>
    %4 = vector.broadcast %3 : vector<1x16xf32> to vector<64x16xf32>
    %5 = arith.addf %2, %4 : vector<64x16xf32>
    %6 = arith.truncf %5 : vector<64x16xf32> to vector<64x16xbf16>
    %c0_5 = arith.constant 0 : index
    %c0_6 = arith.constant 0 : index
    %7 = vector.load %arg4[%c0_5, %c0_6] : memref<64x16xbf16, #tpu.memory_space<vmem>>, vector<64x16xbf16>
    tpu.vector_store %arg4[%c0_5, %c0_6], %6 {strides = array<i32>} : memref<64x16xbf16, #tpu.memory_space<vmem>>, vector<64x16xbf16>,
    return
  }
  func.func @transform_0(%arg0: i32) -> (i32, i32) {
    %c0_i32 = arith.constant 0 : i32
    %c0_i32_0 = arith.constant 0 : i32
    return %arg0, %c0_i32 : i32, i32
  }
  func.func @transform_1(%arg0: i32) -> (i32, i32) {
    %c0_i32 = arith.constant 0 : i32
    %c0_i32_0 = arith.constant 0 : i32
    %c0_i32_1 = arith.constant 0 : i32
    return %c0_i32, %c0_i32_0 : i32, i32
  }
  func.func @transform_2(%arg0: i32) -> (i32, i32) {
    %c0_i32 = arith.constant 0 : i32
    %c0_i32_0 = arith.constant 0 : i32
    %c0_i32_1 = arith.constant 0 : i32
    return %c0_i32, %c0_i32_0 : i32, i32
  }
  func.func @transform_3(%arg0: i32) -> (i32, i32) {
    %c0_i32 = arith.constant 0 : i32
    %c0_i32_0 = arith.constant 0 : i32
    return %arg0, %c0_i32 : i32, i32
  }
}

module attributes {stable_mosaic.version = 11 : i64} {
  func.func @_conv3x3_bn_relu_kernel(%arg0: i32, %arg1: i32, %arg2: memref<1x144x4xbf16, #tpu.memory_space<vmem>>, %arg3: memref<1x144x4xbf16, #tpu.memory_space<vmem>>, %arg4: memref<1x1x54x4xbf16, #tpu.memory_space<vmem>>, %arg5: memref<1x1x54x4xbf16, #tpu.memory_space<vmem>>, %arg6: memref<9x4x4xbf16, #tpu.memory_space<vmem>>, %arg7: memref<9x4x4xbf16, #tpu.memory_space<vmem>>, %arg8: memref<1x4xf32, #tpu.memory_space<vmem>>, %arg9: memref<1x4xf32, #tpu.memory_space<vmem>>, %arg10: memref<1x144x4xbf16, #tpu.memory_space<vmem>>) attributes {dimension_semantics = [#tpu.dimension_semantics<parallel>, #tpu.dimension_semantics<parallel>], iteration_bounds = array<i64: 2, 2>, scalar_prefetch = 0 : i64, scratch_operands = 0 : i64, tpu.core_type = #tpu.core_type<tc>, window_params = [{transform_indices = @transform_0, window_bounds = array<i64: 1, 144, 4>}, {transform_indices = @transform_1, window_bounds = array<i64: 1, 144, 4>}, {transform_indices = @transform_2, window_bounds = array<i64: 1, 1, 54, 4>}, {transform_indices = @transform_3, window_bounds = array<i64: 1, 1, 54, 4>}, {pipeline_mode = #tpu.pipeline_mode<synchronous>, transform_indices = @transform_4, window_bounds = array<i64: 9, 4, 4>}, {pipeline_mode = #tpu.pipeline_mode<synchronous>, transform_indices = @transform_5, window_bounds = array<i64: 9, 4, 4>}, {pipeline_mode = #tpu.pipeline_mode<synchronous>, transform_indices = @transform_6, window_bounds = array<i64: 1, 4>}, {pipeline_mode = #tpu.pipeline_mode<synchronous>, transform_indices = @transform_7, window_bounds = array<i64: 1, 4>}, {transform_indices = @transform_8, window_bounds = array<i64: 1, 144, 4>}]} {
    %cst = arith.constant 0.000000e+00 : f32
    %0 = vector.broadcast %cst : f32 to vector<144x4xf32>
    %c0 = arith.constant 0 : index
    %c0_0 = arith.constant 0 : index
    %c0_1 = arith.constant 0 : index
    %1 = vector.load %arg2[%c0, %c0_0, %c0_1] : memref<1x144x4xbf16, #tpu.memory_space<vmem>>, vector<1x144x4xbf16>
    %2 = vector.shape_cast %1 : vector<1x144x4xbf16> to vector<144x4xbf16>
    %c0_2 = arith.constant 0 : index
    %c0_3 = arith.constant 0 : index
    %c0_4 = arith.constant 0 : index
    %c0_5 = arith.constant 0 : index
    %3 = vector.load %arg4[%c0_2, %c0_3, %c0_4, %c0_5] : memref<1x1x54x4xbf16, #tpu.memory_space<vmem>>, vector<1x1x54x4xbf16>
    %4 = vector.shape_cast %3 : vector<1x1x54x4xbf16> to vector<54x4xbf16>
    %5 = tpu.concatenate %2, %4 in 0 : vector<144x4xbf16>, vector<54x4xbf16> -> vector<198x4xbf16>
    %6 = vector.extract_strided_slice %5 {offsets = [0, 0], sizes = [144, 4], strides = [1, 1]} : vector<198x4xbf16> to vector<144x4xbf16>
    %c0_6 = arith.constant 0 : index
    %c0_7 = arith.constant 0 : index
    %c0_8 = arith.constant 0 : index
    %7 = vector.load %arg6[%c0_6, %c0_7, %c0_8] : memref<9x4x4xbf16, #tpu.memory_space<vmem>>, vector<1x4x4xbf16>
    %8 = vector.shape_cast %7 : vector<1x4x4xbf16> to vector<4x4xbf16>
    %cst_9 = arith.constant dense<0.000000e+00> : vector<144x4xf32>
    %9 = tpu.matmul %6, %8, %cst_9 {dimension_numbers = #tpu.dot_dimension_numbers<[1], [0], [0], [1], [0, 0, 1, 1], [], []>} : vector<144x4xbf16>, vector<4x4xbf16>, vector<144x4xf32> -> vector<144x4xf32>
    %10 = arith.addf %0, %9 : vector<144x4xf32>
    %11 = vector.extract_strided_slice %5 {offsets = [1, 0], sizes = [144, 4], strides = [1, 1]} : vector<198x4xbf16> to vector<144x4xbf16>
    %c1 = arith.constant 1 : index
    %c0_10 = arith.constant 0 : index
    %c0_11 = arith.constant 0 : index
    %12 = vector.load %arg6[%c1, %c0_10, %c0_11] : memref<9x4x4xbf16, #tpu.memory_space<vmem>>, vector<1x4x4xbf16>
    %13 = vector.shape_cast %12 : vector<1x4x4xbf16> to vector<4x4xbf16>
    %cst_12 = arith.constant dense<0.000000e+00> : vector<144x4xf32>
    %14 = tpu.matmul %11, %13, %cst_12 {dimension_numbers = #tpu.dot_dimension_numbers<[1], [0], [0], [1], [0, 0, 1, 1], [], []>} : vector<144x4xbf16>, vector<4x4xbf16>, vector<144x4xf32> -> vector<144x4xf32>
    %15 = arith.addf %10, %14 : vector<144x4xf32>
    %16 = vector.extract_strided_slice %5 {offsets = [2, 0], sizes = [144, 4], strides = [1, 1]} : vector<198x4xbf16> to vector<144x4xbf16>
    %c2 = arith.constant 2 : index
    %c0_13 = arith.constant 0 : index
    %c0_14 = arith.constant 0 : index
    %17 = vector.load %arg6[%c2, %c0_13, %c0_14] : memref<9x4x4xbf16, #tpu.memory_space<vmem>>, vector<1x4x4xbf16>
    %18 = vector.shape_cast %17 : vector<1x4x4xbf16> to vector<4x4xbf16>
    %cst_15 = arith.constant dense<0.000000e+00> : vector<144x4xf32>
    %19 = tpu.matmul %16, %18, %cst_15 {dimension_numbers = #tpu.dot_dimension_numbers<[1], [0], [0], [1], [0, 0, 1, 1], [], []>} : vector<144x4xbf16>, vector<4x4xbf16>, vector<144x4xf32> -> vector<144x4xf32>
    %20 = arith.addf %15, %19 : vector<144x4xf32>
    %21 = vector.extract_strided_slice %5 {offsets = [18, 0], sizes = [144, 4], strides = [1, 1]} : vector<198x4xbf16> to vector<144x4xbf16>
    %c3 = arith.constant 3 : index
    %c0_16 = arith.constant 0 : index
    %c0_17 = arith.constant 0 : index
    %22 = vector.load %arg6[%c3, %c0_16, %c0_17] : memref<9x4x4xbf16, #tpu.memory_space<vmem>>, vector<1x4x4xbf16>
    %23 = vector.shape_cast %22 : vector<1x4x4xbf16> to vector<4x4xbf16>
    %cst_18 = arith.constant dense<0.000000e+00> : vector<144x4xf32>
    %24 = tpu.matmul %21, %23, %cst_18 {dimension_numbers = #tpu.dot_dimension_numbers<[1], [0], [0], [1], [0, 0, 1, 1], [], []>} : vector<144x4xbf16>, vector<4x4xbf16>, vector<144x4xf32> -> vector<144x4xf32>
    %25 = arith.addf %20, %24 : vector<144x4xf32>
    %26 = vector.extract_strided_slice %5 {offsets = [19, 0], sizes = [144, 4], strides = [1, 1]} : vector<198x4xbf16> to vector<144x4xbf16>
    %c4 = arith.constant 4 : index
    %c0_19 = arith.constant 0 : index
    %c0_20 = arith.constant 0 : index
    %27 = vector.load %arg6[%c4, %c0_19, %c0_20] : memref<9x4x4xbf16, #tpu.memory_space<vmem>>, vector<1x4x4xbf16>
    %28 = vector.shape_cast %27 : vector<1x4x4xbf16> to vector<4x4xbf16>
    %cst_21 = arith.constant dense<0.000000e+00> : vector<144x4xf32>
    %29 = tpu.matmul %26, %28, %cst_21 {dimension_numbers = #tpu.dot_dimension_numbers<[1], [0], [0], [1], [0, 0, 1, 1], [], []>} : vector<144x4xbf16>, vector<4x4xbf16>, vector<144x4xf32> -> vector<144x4xf32>
    %30 = arith.addf %25, %29 : vector<144x4xf32>
    %31 = vector.extract_strided_slice %5 {offsets = [20, 0], sizes = [144, 4], strides = [1, 1]} : vector<198x4xbf16> to vector<144x4xbf16>
    %c5 = arith.constant 5 : index
    %c0_22 = arith.constant 0 : index
    %c0_23 = arith.constant 0 : index
    %32 = vector.load %arg6[%c5, %c0_22, %c0_23] : memref<9x4x4xbf16, #tpu.memory_space<vmem>>, vector<1x4x4xbf16>
    %33 = vector.shape_cast %32 : vector<1x4x4xbf16> to vector<4x4xbf16>
    %cst_24 = arith.constant dense<0.000000e+00> : vector<144x4xf32>
    %34 = tpu.matmul %31, %33, %cst_24 {dimension_numbers = #tpu.dot_dimension_numbers<[1], [0], [0], [1], [0, 0, 1, 1], [], []>} : vector<144x4xbf16>, vector<4x4xbf16>, vector<144x4xf32> -> vector<144x4xf32>
    %35 = arith.addf %30, %34 : vector<144x4xf32>
    %36 = vector.extract_strided_slice %5 {offsets = [36, 0], sizes = [144, 4], strides = [1, 1]} : vector<198x4xbf16> to vector<144x4xbf16>
    %c6 = arith.constant 6 : index
    %c0_25 = arith.constant 0 : index
    %c0_26 = arith.constant 0 : index
    %37 = vector.load %arg6[%c6, %c0_25, %c0_26] : memref<9x4x4xbf16, #tpu.memory_space<vmem>>, vector<1x4x4xbf16>
    %38 = vector.shape_cast %37 : vector<1x4x4xbf16> to vector<4x4xbf16>
    %cst_27 = arith.constant dense<0.000000e+00> : vector<144x4xf32>
    %39 = tpu.matmul %36, %38, %cst_27 {dimension_numbers = #tpu.dot_dimension_numbers<[1], [0], [0], [1], [0, 0, 1, 1], [], []>} : vector<144x4xbf16>, vector<4x4xbf16>, vector<144x4xf32> -> vector<144x4xf32>
    %40 = arith.addf %35, %39 : vector<144x4xf32>
    %41 = vector.extract_strided_slice %5 {offsets = [37, 0], sizes = [144, 4], strides = [1, 1]} : vector<198x4xbf16> to vector<144x4xbf16>
    %c7 = arith.constant 7 : index
    %c0_28 = arith.constant 0 : index
    %c0_29 = arith.constant 0 : index
    %42 = vector.load %arg6[%c7, %c0_28, %c0_29] : memref<9x4x4xbf16, #tpu.memory_space<vmem>>, vector<1x4x4xbf16>
    %43 = vector.shape_cast %42 : vector<1x4x4xbf16> to vector<4x4xbf16>
    %cst_30 = arith.constant dense<0.000000e+00> : vector<144x4xf32>
    %44 = tpu.matmul %41, %43, %cst_30 {dimension_numbers = #tpu.dot_dimension_numbers<[1], [0], [0], [1], [0, 0, 1, 1], [], []>} : vector<144x4xbf16>, vector<4x4xbf16>, vector<144x4xf32> -> vector<144x4xf32>
    %45 = arith.addf %40, %44 : vector<144x4xf32>
    %46 = vector.extract_strided_slice %5 {offsets = [38, 0], sizes = [144, 4], strides = [1, 1]} : vector<198x4xbf16> to vector<144x4xbf16>
    %c8 = arith.constant 8 : index
    %c0_31 = arith.constant 0 : index
    %c0_32 = arith.constant 0 : index
    %47 = vector.load %arg6[%c8, %c0_31, %c0_32] : memref<9x4x4xbf16, #tpu.memory_space<vmem>>, vector<1x4x4xbf16>
    %48 = vector.shape_cast %47 : vector<1x4x4xbf16> to vector<4x4xbf16>
    %cst_33 = arith.constant dense<0.000000e+00> : vector<144x4xf32>
    %49 = tpu.matmul %46, %48, %cst_33 {dimension_numbers = #tpu.dot_dimension_numbers<[1], [0], [0], [1], [0, 0, 1, 1], [], []>} : vector<144x4xbf16>, vector<4x4xbf16>, vector<144x4xf32> -> vector<144x4xf32>
    %50 = arith.addf %45, %49 : vector<144x4xf32>
    %c0_34 = arith.constant 0 : index
    %c0_35 = arith.constant 0 : index
    %c0_36 = arith.constant 0 : index
    %51 = vector.load %arg3[%c0_34, %c0_35, %c0_36] : memref<1x144x4xbf16, #tpu.memory_space<vmem>>, vector<1x144x4xbf16>
    %52 = vector.shape_cast %51 : vector<1x144x4xbf16> to vector<144x4xbf16>
    %c0_37 = arith.constant 0 : index
    %c0_38 = arith.constant 0 : index
    %c0_39 = arith.constant 0 : index
    %c0_40 = arith.constant 0 : index
    %53 = vector.load %arg5[%c0_37, %c0_38, %c0_39, %c0_40] : memref<1x1x54x4xbf16, #tpu.memory_space<vmem>>, vector<1x1x54x4xbf16>
    %54 = vector.shape_cast %53 : vector<1x1x54x4xbf16> to vector<54x4xbf16>
    %55 = tpu.concatenate %52, %54 in 0 : vector<144x4xbf16>, vector<54x4xbf16> -> vector<198x4xbf16>
    %56 = vector.extract_strided_slice %55 {offsets = [0, 0], sizes = [144, 4], strides = [1, 1]} : vector<198x4xbf16> to vector<144x4xbf16>
    %c0_41 = arith.constant 0 : index
    %c0_42 = arith.constant 0 : index
    %c0_43 = arith.constant 0 : index
    %57 = vector.load %arg7[%c0_41, %c0_42, %c0_43] : memref<9x4x4xbf16, #tpu.memory_space<vmem>>, vector<1x4x4xbf16>
    %58 = vector.shape_cast %57 : vector<1x4x4xbf16> to vector<4x4xbf16>
    %cst_44 = arith.constant dense<0.000000e+00> : vector<144x4xf32>
    %59 = tpu.matmul %56, %58, %cst_44 {dimension_numbers = #tpu.dot_dimension_numbers<[1], [0], [0], [1], [0, 0, 1, 1], [], []>} : vector<144x4xbf16>, vector<4x4xbf16>, vector<144x4xf32> -> vector<144x4xf32>
    %60 = arith.addf %50, %59 : vector<144x4xf32>
    %61 = vector.extract_strided_slice %55 {offsets = [1, 0], sizes = [144, 4], strides = [1, 1]} : vector<198x4xbf16> to vector<144x4xbf16>
    %c1_45 = arith.constant 1 : index
    %c0_46 = arith.constant 0 : index
    %c0_47 = arith.constant 0 : index
    %62 = vector.load %arg7[%c1_45, %c0_46, %c0_47] : memref<9x4x4xbf16, #tpu.memory_space<vmem>>, vector<1x4x4xbf16>
    %63 = vector.shape_cast %62 : vector<1x4x4xbf16> to vector<4x4xbf16>
    %cst_48 = arith.constant dense<0.000000e+00> : vector<144x4xf32>
    %64 = tpu.matmul %61, %63, %cst_48 {dimension_numbers = #tpu.dot_dimension_numbers<[1], [0], [0], [1], [0, 0, 1, 1], [], []>} : vector<144x4xbf16>, vector<4x4xbf16>, vector<144x4xf32> -> vector<144x4xf32>
    %65 = arith.addf %60, %64 : vector<144x4xf32>
    %66 = vector.extract_strided_slice %55 {offsets = [2, 0], sizes = [144, 4], strides = [1, 1]} : vector<198x4xbf16> to vector<144x4xbf16>
    %c2_49 = arith.constant 2 : index
    %c0_50 = arith.constant 0 : index
    %c0_51 = arith.constant 0 : index
    %67 = vector.load %arg7[%c2_49, %c0_50, %c0_51] : memref<9x4x4xbf16, #tpu.memory_space<vmem>>, vector<1x4x4xbf16>
    %68 = vector.shape_cast %67 : vector<1x4x4xbf16> to vector<4x4xbf16>
    %cst_52 = arith.constant dense<0.000000e+00> : vector<144x4xf32>
    %69 = tpu.matmul %66, %68, %cst_52 {dimension_numbers = #tpu.dot_dimension_numbers<[1], [0], [0], [1], [0, 0, 1, 1], [], []>} : vector<144x4xbf16>, vector<4x4xbf16>, vector<144x4xf32> -> vector<144x4xf32>
    %70 = arith.addf %65, %69 : vector<144x4xf32>
    %71 = vector.extract_strided_slice %55 {offsets = [18, 0], sizes = [144, 4], strides = [1, 1]} : vector<198x4xbf16> to vector<144x4xbf16>
    %c3_53 = arith.constant 3 : index
    %c0_54 = arith.constant 0 : index
    %c0_55 = arith.constant 0 : index
    %72 = vector.load %arg7[%c3_53, %c0_54, %c0_55] : memref<9x4x4xbf16, #tpu.memory_space<vmem>>, vector<1x4x4xbf16>
    %73 = vector.shape_cast %72 : vector<1x4x4xbf16> to vector<4x4xbf16>
    %cst_56 = arith.constant dense<0.000000e+00> : vector<144x4xf32>
    %74 = tpu.matmul %71, %73, %cst_56 {dimension_numbers = #tpu.dot_dimension_numbers<[1], [0], [0], [1], [0, 0, 1, 1], [], []>} : vector<144x4xbf16>, vector<4x4xbf16>, vector<144x4xf32> -> vector<144x4xf32>
    %75 = arith.addf %70, %74 : vector<144x4xf32>
    %76 = vector.extract_strided_slice %55 {offsets = [19, 0], sizes = [144, 4], strides = [1, 1]} : vector<198x4xbf16> to vector<144x4xbf16>
    %c4_57 = arith.constant 4 : index
    %c0_58 = arith.constant 0 : index
    %c0_59 = arith.constant 0 : index
    %77 = vector.load %arg7[%c4_57, %c0_58, %c0_59] : memref<9x4x4xbf16, #tpu.memory_space<vmem>>, vector<1x4x4xbf16>
    %78 = vector.shape_cast %77 : vector<1x4x4xbf16> to vector<4x4xbf16>
    %cst_60 = arith.constant dense<0.000000e+00> : vector<144x4xf32>
    %79 = tpu.matmul %76, %78, %cst_60 {dimension_numbers = #tpu.dot_dimension_numbers<[1], [0], [0], [1], [0, 0, 1, 1], [], []>} : vector<144x4xbf16>, vector<4x4xbf16>, vector<144x4xf32> -> vector<144x4xf32>
    %80 = arith.addf %75, %79 : vector<144x4xf32>
    %81 = vector.extract_strided_slice %55 {offsets = [20, 0], sizes = [144, 4], strides = [1, 1]} : vector<198x4xbf16> to vector<144x4xbf16>
    %c5_61 = arith.constant 5 : index
    %c0_62 = arith.constant 0 : index
    %c0_63 = arith.constant 0 : index
    %82 = vector.load %arg7[%c5_61, %c0_62, %c0_63] : memref<9x4x4xbf16, #tpu.memory_space<vmem>>, vector<1x4x4xbf16>
    %83 = vector.shape_cast %82 : vector<1x4x4xbf16> to vector<4x4xbf16>
    %cst_64 = arith.constant dense<0.000000e+00> : vector<144x4xf32>
    %84 = tpu.matmul %81, %83, %cst_64 {dimension_numbers = #tpu.dot_dimension_numbers<[1], [0], [0], [1], [0, 0, 1, 1], [], []>} : vector<144x4xbf16>, vector<4x4xbf16>, vector<144x4xf32> -> vector<144x4xf32>
    %85 = arith.addf %80, %84 : vector<144x4xf32>
    %86 = vector.extract_strided_slice %55 {offsets = [36, 0], sizes = [144, 4], strides = [1, 1]} : vector<198x4xbf16> to vector<144x4xbf16>
    %c6_65 = arith.constant 6 : index
    %c0_66 = arith.constant 0 : index
    %c0_67 = arith.constant 0 : index
    %87 = vector.load %arg7[%c6_65, %c0_66, %c0_67] : memref<9x4x4xbf16, #tpu.memory_space<vmem>>, vector<1x4x4xbf16>
    %88 = vector.shape_cast %87 : vector<1x4x4xbf16> to vector<4x4xbf16>
    %cst_68 = arith.constant dense<0.000000e+00> : vector<144x4xf32>
    %89 = tpu.matmul %86, %88, %cst_68 {dimension_numbers = #tpu.dot_dimension_numbers<[1], [0], [0], [1], [0, 0, 1, 1], [], []>} : vector<144x4xbf16>, vector<4x4xbf16>, vector<144x4xf32> -> vector<144x4xf32>
    %90 = arith.addf %85, %89 : vector<144x4xf32>
    %91 = vector.extract_strided_slice %55 {offsets = [37, 0], sizes = [144, 4], strides = [1, 1]} : vector<198x4xbf16> to vector<144x4xbf16>
    %c7_69 = arith.constant 7 : index
    %c0_70 = arith.constant 0 : index
    %c0_71 = arith.constant 0 : index
    %92 = vector.load %arg7[%c7_69, %c0_70, %c0_71] : memref<9x4x4xbf16, #tpu.memory_space<vmem>>, vector<1x4x4xbf16>
    %93 = vector.shape_cast %92 : vector<1x4x4xbf16> to vector<4x4xbf16>
    %cst_72 = arith.constant dense<0.000000e+00> : vector<144x4xf32>
    %94 = tpu.matmul %91, %93, %cst_72 {dimension_numbers = #tpu.dot_dimension_numbers<[1], [0], [0], [1], [0, 0, 1, 1], [], []>} : vector<144x4xbf16>, vector<4x4xbf16>, vector<144x4xf32> -> vector<144x4xf32>
    %95 = arith.addf %90, %94 : vector<144x4xf32>
    %96 = vector.extract_strided_slice %55 {offsets = [38, 0], sizes = [144, 4], strides = [1, 1]} : vector<198x4xbf16> to vector<144x4xbf16>
    %c8_73 = arith.constant 8 : index
    %c0_74 = arith.constant 0 : index
    %c0_75 = arith.constant 0 : index
    %97 = vector.load %arg7[%c8_73, %c0_74, %c0_75] : memref<9x4x4xbf16, #tpu.memory_space<vmem>>, vector<1x4x4xbf16>
    %98 = vector.shape_cast %97 : vector<1x4x4xbf16> to vector<4x4xbf16>
    %cst_76 = arith.constant dense<0.000000e+00> : vector<144x4xf32>
    %99 = tpu.matmul %96, %98, %cst_76 {dimension_numbers = #tpu.dot_dimension_numbers<[1], [0], [0], [1], [0, 0, 1, 1], [], []>} : vector<144x4xbf16>, vector<4x4xbf16>, vector<144x4xf32> -> vector<144x4xf32>
    %100 = arith.addf %95, %99 : vector<144x4xf32>
    %c0_77 = arith.constant 0 : index
    %c0_78 = arith.constant 0 : index
    %101 = vector.load %arg8[%c0_77, %c0_78] : memref<1x4xf32, #tpu.memory_space<vmem>>, vector<1x4xf32>
    %102 = vector.broadcast %101 : vector<1x4xf32> to vector<144x4xf32>
    %103 = arith.mulf %100, %102 : vector<144x4xf32>
    %c0_79 = arith.constant 0 : index
    %c0_80 = arith.constant 0 : index
    %104 = vector.load %arg9[%c0_79, %c0_80] : memref<1x4xf32, #tpu.memory_space<vmem>>, vector<1x4xf32>
    %105 = vector.broadcast %104 : vector<1x4xf32> to vector<144x4xf32>
    %106 = arith.addf %103, %105 : vector<144x4xf32>
    %cst_81 = arith.constant 0.000000e+00 : f32
    %107 = vector.broadcast %cst_81 : f32 to vector<144x4xf32>
    %108 = arith.maximumf %106, %107 : vector<144x4xf32>
    %109 = arith.truncf %108 : vector<144x4xf32> to vector<144x4xbf16>
    %c0_82 = arith.constant 0 : index
    %c0_83 = arith.constant 0 : index
    %c0_84 = arith.constant 0 : index
    %110 = vector.load %arg10[%c0_82, %c0_83, %c0_84] : memref<1x144x4xbf16, #tpu.memory_space<vmem>>, vector<1x144x4xbf16>
    %111 = vector.shape_cast %110 : vector<1x144x4xbf16> to vector<144x4xbf16>
    %112 = vector.shape_cast %109 : vector<144x4xbf16> to vector<1x144x4xbf16>
    tpu.vector_store %arg10[%c0_82, %c0_83, %c0_84], %112 {strides = array<i32>} : memref<1x144x4xbf16, #tpu.memory_space<vmem>>, vector<1x144x4xbf16>,
    return
  }
  func.func @transform_0(%arg0: i32, %arg1: i32) -> (i32, i32, i32) {
    %c0_i32 = arith.constant 0 : i32
    %c0_i32_0 = arith.constant 0 : i32
    return %arg0, %arg1, %c0_i32 : i32, i32, i32
  }
  func.func @transform_1(%arg0: i32, %arg1: i32) -> (i32, i32, i32) {
    %c0_i32 = arith.constant 0 : i32
    %c0_i32_0 = arith.constant 0 : i32
    return %arg0, %arg1, %c0_i32 : i32, i32, i32
  }
  func.func @transform_2(%arg0: i32, %arg1: i32) -> (i32, i32, i32, i32) {
    %c0_i32 = arith.constant 0 : i32
    %c0_i32_0 = arith.constant 0 : i32
    %c0_i32_1 = arith.constant 0 : i32
    return %arg0, %arg1, %c0_i32, %c0_i32_0 : i32, i32, i32, i32
  }
  func.func @transform_3(%arg0: i32, %arg1: i32) -> (i32, i32, i32, i32) {
    %c0_i32 = arith.constant 0 : i32
    %c0_i32_0 = arith.constant 0 : i32
    %c0_i32_1 = arith.constant 0 : i32
    return %arg0, %arg1, %c0_i32, %c0_i32_0 : i32, i32, i32, i32
  }
  func.func @transform_4(%arg0: i32, %arg1: i32) -> (i32, i32, i32) {
    %c0_i32 = arith.constant 0 : i32
    %c0_i32_0 = arith.constant 0 : i32
    %c0_i32_1 = arith.constant 0 : i32
    %c0_i32_2 = arith.constant 0 : i32
    return %c0_i32, %c0_i32_0, %c0_i32_1 : i32, i32, i32
  }
  func.func @transform_5(%arg0: i32, %arg1: i32) -> (i32, i32, i32) {
    %c0_i32 = arith.constant 0 : i32
    %c0_i32_0 = arith.constant 0 : i32
    %c0_i32_1 = arith.constant 0 : i32
    %c0_i32_2 = arith.constant 0 : i32
    return %c0_i32, %c0_i32_0, %c0_i32_1 : i32, i32, i32
  }
  func.func @transform_6(%arg0: i32, %arg1: i32) -> (i32, i32) {
    %c0_i32 = arith.constant 0 : i32
    %c0_i32_0 = arith.constant 0 : i32
    %c0_i32_1 = arith.constant 0 : i32
    return %c0_i32, %c0_i32_0 : i32, i32
  }
  func.func @transform_7(%arg0: i32, %arg1: i32) -> (i32, i32) {
    %c0_i32 = arith.constant 0 : i32
    %c0_i32_0 = arith.constant 0 : i32
    %c0_i32_1 = arith.constant 0 : i32
    return %c0_i32, %c0_i32_0 : i32, i32
  }
  func.func @transform_8(%arg0: i32, %arg1: i32) -> (i32, i32, i32) {
    %c0_i32 = arith.constant 0 : i32
    %c0_i32_0 = arith.constant 0 : i32
    return %arg0, %arg1, %c0_i32 : i32, i32, i32
  }
}

module attributes {stable_mosaic.version = 11 : i64} {
  func.func @_conv3x3_bn_relu_kernel(%arg0: i32, %arg1: i32, %arg2: memref<1x144x4xbf16, #tpu.memory_space<vmem>>, %arg3: memref<1x1x54x4xbf16, #tpu.memory_space<vmem>>, %arg4: memref<9x4x4xbf16, #tpu.memory_space<vmem>>, %arg5: memref<1x4xf32, #tpu.memory_space<vmem>>, %arg6: memref<1x4xf32, #tpu.memory_space<vmem>>, %arg7: memref<1x144x4xf32, #tpu.memory_space<vmem>>) attributes {dimension_semantics = [#tpu.dimension_semantics<parallel>, #tpu.dimension_semantics<parallel>], iteration_bounds = array<i64: 2, 2>, scalar_prefetch = 0 : i64, scratch_operands = 0 : i64, tpu.core_type = #tpu.core_type<tc>, window_params = [{transform_indices = @transform_0, window_bounds = array<i64: 1, 144, 4>}, {transform_indices = @transform_1, window_bounds = array<i64: 1, 1, 54, 4>}, {pipeline_mode = #tpu.pipeline_mode<synchronous>, transform_indices = @transform_2, window_bounds = array<i64: 9, 4, 4>}, {pipeline_mode = #tpu.pipeline_mode<synchronous>, transform_indices = @transform_3, window_bounds = array<i64: 1, 4>}, {pipeline_mode = #tpu.pipeline_mode<synchronous>, transform_indices = @transform_4, window_bounds = array<i64: 1, 4>}, {transform_indices = @transform_5, window_bounds = array<i64: 1, 144, 4>}]} {
    %cst = arith.constant 0.000000e+00 : f32
    %0 = vector.broadcast %cst : f32 to vector<144x4xf32>
    %c0 = arith.constant 0 : index
    %c0_0 = arith.constant 0 : index
    %c0_1 = arith.constant 0 : index
    %1 = vector.load %arg2[%c0, %c0_0, %c0_1] : memref<1x144x4xbf16, #tpu.memory_space<vmem>>, vector<1x144x4xbf16>
    %2 = vector.shape_cast %1 : vector<1x144x4xbf16> to vector<144x4xbf16>
    %c0_2 = arith.constant 0 : index
    %c0_3 = arith.constant 0 : index
    %c0_4 = arith.constant 0 : index
    %c0_5 = arith.constant 0 : index
    %3 = vector.load %arg3[%c0_2, %c0_3, %c0_4, %c0_5] : memref<1x1x54x4xbf16, #tpu.memory_space<vmem>>, vector<1x1x54x4xbf16>
    %4 = vector.shape_cast %3 : vector<1x1x54x4xbf16> to vector<54x4xbf16>
    %5 = tpu.concatenate %2, %4 in 0 : vector<144x4xbf16>, vector<54x4xbf16> -> vector<198x4xbf16>
    %6 = vector.extract_strided_slice %5 {offsets = [0, 0], sizes = [144, 4], strides = [1, 1]} : vector<198x4xbf16> to vector<144x4xbf16>
    %c0_6 = arith.constant 0 : index
    %c0_7 = arith.constant 0 : index
    %c0_8 = arith.constant 0 : index
    %7 = vector.load %arg4[%c0_6, %c0_7, %c0_8] : memref<9x4x4xbf16, #tpu.memory_space<vmem>>, vector<1x4x4xbf16>
    %8 = vector.shape_cast %7 : vector<1x4x4xbf16> to vector<4x4xbf16>
    %cst_9 = arith.constant dense<0.000000e+00> : vector<144x4xf32>
    %9 = tpu.matmul %6, %8, %cst_9 {dimension_numbers = #tpu.dot_dimension_numbers<[1], [0], [0], [1], [0, 0, 1, 1], [], []>} : vector<144x4xbf16>, vector<4x4xbf16>, vector<144x4xf32> -> vector<144x4xf32>
    %10 = arith.addf %0, %9 : vector<144x4xf32>
    %11 = vector.extract_strided_slice %5 {offsets = [1, 0], sizes = [144, 4], strides = [1, 1]} : vector<198x4xbf16> to vector<144x4xbf16>
    %c1 = arith.constant 1 : index
    %c0_10 = arith.constant 0 : index
    %c0_11 = arith.constant 0 : index
    %12 = vector.load %arg4[%c1, %c0_10, %c0_11] : memref<9x4x4xbf16, #tpu.memory_space<vmem>>, vector<1x4x4xbf16>
    %13 = vector.shape_cast %12 : vector<1x4x4xbf16> to vector<4x4xbf16>
    %cst_12 = arith.constant dense<0.000000e+00> : vector<144x4xf32>
    %14 = tpu.matmul %11, %13, %cst_12 {dimension_numbers = #tpu.dot_dimension_numbers<[1], [0], [0], [1], [0, 0, 1, 1], [], []>} : vector<144x4xbf16>, vector<4x4xbf16>, vector<144x4xf32> -> vector<144x4xf32>
    %15 = arith.addf %10, %14 : vector<144x4xf32>
    %16 = vector.extract_strided_slice %5 {offsets = [2, 0], sizes = [144, 4], strides = [1, 1]} : vector<198x4xbf16> to vector<144x4xbf16>
    %c2 = arith.constant 2 : index
    %c0_13 = arith.constant 0 : index
    %c0_14 = arith.constant 0 : index
    %17 = vector.load %arg4[%c2, %c0_13, %c0_14] : memref<9x4x4xbf16, #tpu.memory_space<vmem>>, vector<1x4x4xbf16>
    %18 = vector.shape_cast %17 : vector<1x4x4xbf16> to vector<4x4xbf16>
    %cst_15 = arith.constant dense<0.000000e+00> : vector<144x4xf32>
    %19 = tpu.matmul %16, %18, %cst_15 {dimension_numbers = #tpu.dot_dimension_numbers<[1], [0], [0], [1], [0, 0, 1, 1], [], []>} : vector<144x4xbf16>, vector<4x4xbf16>, vector<144x4xf32> -> vector<144x4xf32>
    %20 = arith.addf %15, %19 : vector<144x4xf32>
    %21 = vector.extract_strided_slice %5 {offsets = [18, 0], sizes = [144, 4], strides = [1, 1]} : vector<198x4xbf16> to vector<144x4xbf16>
    %c3 = arith.constant 3 : index
    %c0_16 = arith.constant 0 : index
    %c0_17 = arith.constant 0 : index
    %22 = vector.load %arg4[%c3, %c0_16, %c0_17] : memref<9x4x4xbf16, #tpu.memory_space<vmem>>, vector<1x4x4xbf16>
    %23 = vector.shape_cast %22 : vector<1x4x4xbf16> to vector<4x4xbf16>
    %cst_18 = arith.constant dense<0.000000e+00> : vector<144x4xf32>
    %24 = tpu.matmul %21, %23, %cst_18 {dimension_numbers = #tpu.dot_dimension_numbers<[1], [0], [0], [1], [0, 0, 1, 1], [], []>} : vector<144x4xbf16>, vector<4x4xbf16>, vector<144x4xf32> -> vector<144x4xf32>
    %25 = arith.addf %20, %24 : vector<144x4xf32>
    %26 = vector.extract_strided_slice %5 {offsets = [19, 0], sizes = [144, 4], strides = [1, 1]} : vector<198x4xbf16> to vector<144x4xbf16>
    %c4 = arith.constant 4 : index
    %c0_19 = arith.constant 0 : index
    %c0_20 = arith.constant 0 : index
    %27 = vector.load %arg4[%c4, %c0_19, %c0_20] : memref<9x4x4xbf16, #tpu.memory_space<vmem>>, vector<1x4x4xbf16>
    %28 = vector.shape_cast %27 : vector<1x4x4xbf16> to vector<4x4xbf16>
    %cst_21 = arith.constant dense<0.000000e+00> : vector<144x4xf32>
    %29 = tpu.matmul %26, %28, %cst_21 {dimension_numbers = #tpu.dot_dimension_numbers<[1], [0], [0], [1], [0, 0, 1, 1], [], []>} : vector<144x4xbf16>, vector<4x4xbf16>, vector<144x4xf32> -> vector<144x4xf32>
    %30 = arith.addf %25, %29 : vector<144x4xf32>
    %31 = vector.extract_strided_slice %5 {offsets = [20, 0], sizes = [144, 4], strides = [1, 1]} : vector<198x4xbf16> to vector<144x4xbf16>
    %c5 = arith.constant 5 : index
    %c0_22 = arith.constant 0 : index
    %c0_23 = arith.constant 0 : index
    %32 = vector.load %arg4[%c5, %c0_22, %c0_23] : memref<9x4x4xbf16, #tpu.memory_space<vmem>>, vector<1x4x4xbf16>
    %33 = vector.shape_cast %32 : vector<1x4x4xbf16> to vector<4x4xbf16>
    %cst_24 = arith.constant dense<0.000000e+00> : vector<144x4xf32>
    %34 = tpu.matmul %31, %33, %cst_24 {dimension_numbers = #tpu.dot_dimension_numbers<[1], [0], [0], [1], [0, 0, 1, 1], [], []>} : vector<144x4xbf16>, vector<4x4xbf16>, vector<144x4xf32> -> vector<144x4xf32>
    %35 = arith.addf %30, %34 : vector<144x4xf32>
    %36 = vector.extract_strided_slice %5 {offsets = [36, 0], sizes = [144, 4], strides = [1, 1]} : vector<198x4xbf16> to vector<144x4xbf16>
    %c6 = arith.constant 6 : index
    %c0_25 = arith.constant 0 : index
    %c0_26 = arith.constant 0 : index
    %37 = vector.load %arg4[%c6, %c0_25, %c0_26] : memref<9x4x4xbf16, #tpu.memory_space<vmem>>, vector<1x4x4xbf16>
    %38 = vector.shape_cast %37 : vector<1x4x4xbf16> to vector<4x4xbf16>
    %cst_27 = arith.constant dense<0.000000e+00> : vector<144x4xf32>
    %39 = tpu.matmul %36, %38, %cst_27 {dimension_numbers = #tpu.dot_dimension_numbers<[1], [0], [0], [1], [0, 0, 1, 1], [], []>} : vector<144x4xbf16>, vector<4x4xbf16>, vector<144x4xf32> -> vector<144x4xf32>
    %40 = arith.addf %35, %39 : vector<144x4xf32>
    %41 = vector.extract_strided_slice %5 {offsets = [37, 0], sizes = [144, 4], strides = [1, 1]} : vector<198x4xbf16> to vector<144x4xbf16>
    %c7 = arith.constant 7 : index
    %c0_28 = arith.constant 0 : index
    %c0_29 = arith.constant 0 : index
    %42 = vector.load %arg4[%c7, %c0_28, %c0_29] : memref<9x4x4xbf16, #tpu.memory_space<vmem>>, vector<1x4x4xbf16>
    %43 = vector.shape_cast %42 : vector<1x4x4xbf16> to vector<4x4xbf16>
    %cst_30 = arith.constant dense<0.000000e+00> : vector<144x4xf32>
    %44 = tpu.matmul %41, %43, %cst_30 {dimension_numbers = #tpu.dot_dimension_numbers<[1], [0], [0], [1], [0, 0, 1, 1], [], []>} : vector<144x4xbf16>, vector<4x4xbf16>, vector<144x4xf32> -> vector<144x4xf32>
    %45 = arith.addf %40, %44 : vector<144x4xf32>
    %46 = vector.extract_strided_slice %5 {offsets = [38, 0], sizes = [144, 4], strides = [1, 1]} : vector<198x4xbf16> to vector<144x4xbf16>
    %c8 = arith.constant 8 : index
    %c0_31 = arith.constant 0 : index
    %c0_32 = arith.constant 0 : index
    %47 = vector.load %arg4[%c8, %c0_31, %c0_32] : memref<9x4x4xbf16, #tpu.memory_space<vmem>>, vector<1x4x4xbf16>
    %48 = vector.shape_cast %47 : vector<1x4x4xbf16> to vector<4x4xbf16>
    %cst_33 = arith.constant dense<0.000000e+00> : vector<144x4xf32>
    %49 = tpu.matmul %46, %48, %cst_33 {dimension_numbers = #tpu.dot_dimension_numbers<[1], [0], [0], [1], [0, 0, 1, 1], [], []>} : vector<144x4xbf16>, vector<4x4xbf16>, vector<144x4xf32> -> vector<144x4xf32>
    %50 = arith.addf %45, %49 : vector<144x4xf32>
    %c0_34 = arith.constant 0 : index
    %c0_35 = arith.constant 0 : index
    %51 = vector.load %arg5[%c0_34, %c0_35] : memref<1x4xf32, #tpu.memory_space<vmem>>, vector<1x4xf32>
    %52 = vector.broadcast %51 : vector<1x4xf32> to vector<144x4xf32>
    %53 = arith.mulf %50, %52 : vector<144x4xf32>
    %c0_36 = arith.constant 0 : index
    %c0_37 = arith.constant 0 : index
    %54 = vector.load %arg6[%c0_36, %c0_37] : memref<1x4xf32, #tpu.memory_space<vmem>>, vector<1x4xf32>
    %55 = vector.broadcast %54 : vector<1x4xf32> to vector<144x4xf32>
    %56 = arith.addf %53, %55 : vector<144x4xf32>
    %cst_38 = arith.constant 0.000000e+00 : f32
    %57 = vector.broadcast %cst_38 : f32 to vector<144x4xf32>
    %58 = arith.maximumf %56, %57 : vector<144x4xf32>
    %c0_39 = arith.constant 0 : index
    %c0_40 = arith.constant 0 : index
    %c0_41 = arith.constant 0 : index
    %59 = vector.load %arg7[%c0_39, %c0_40, %c0_41] : memref<1x144x4xf32, #tpu.memory_space<vmem>>, vector<1x144x4xf32>
    %60 = vector.shape_cast %59 : vector<1x144x4xf32> to vector<144x4xf32>
    %61 = vector.shape_cast %58 : vector<144x4xf32> to vector<1x144x4xf32>
    tpu.vector_store %arg7[%c0_39, %c0_40, %c0_41], %61 {strides = array<i32>} : memref<1x144x4xf32, #tpu.memory_space<vmem>>, vector<1x144x4xf32>,
    return
  }
  func.func @transform_0(%arg0: i32, %arg1: i32) -> (i32, i32, i32) {
    %c0_i32 = arith.constant 0 : i32
    %c0_i32_0 = arith.constant 0 : i32
    return %arg0, %arg1, %c0_i32 : i32, i32, i32
  }
  func.func @transform_1(%arg0: i32, %arg1: i32) -> (i32, i32, i32, i32) {
    %c0_i32 = arith.constant 0 : i32
    %c0_i32_0 = arith.constant 0 : i32
    %c0_i32_1 = arith.constant 0 : i32
    return %arg0, %arg1, %c0_i32, %c0_i32_0 : i32, i32, i32, i32
  }
  func.func @transform_2(%arg0: i32, %arg1: i32) -> (i32, i32, i32) {
    %c0_i32 = arith.constant 0 : i32
    %c0_i32_0 = arith.constant 0 : i32
    %c0_i32_1 = arith.constant 0 : i32
    %c0_i32_2 = arith.constant 0 : i32
    return %c0_i32, %c0_i32_0, %c0_i32_1 : i32, i32, i32
  }
  func.func @transform_3(%arg0: i32, %arg1: i32) -> (i32, i32) {
    %c0_i32 = arith.constant 0 : i32
    %c0_i32_0 = arith.constant 0 : i32
    %c0_i32_1 = arith.constant 0 : i32
    return %c0_i32, %c0_i32_0 : i32, i32
  }
  func.func @transform_4(%arg0: i32, %arg1: i32) -> (i32, i32) {
    %c0_i32 = arith.constant 0 : i32
    %c0_i32_0 = arith.constant 0 : i32
    %c0_i32_1 = arith.constant 0 : i32
    return %c0_i32, %c0_i32_0 : i32, i32
  }
  func.func @transform_5(%arg0: i32, %arg1: i32) -> (i32, i32, i32) {
    %c0_i32 = arith.constant 0 : i32
    %c0_i32_0 = arith.constant 0 : i32
    return %arg0, %arg1, %c0_i32 : i32, i32, i32
  }
}

</mosaic_0001>

<llo_original>
// kernel: tile.8
$region0: #{tile.8}
  #allocation0 [shape = 's32[1]{0}', space=sflag, size = 0x4, scoped, tag = 'scoped memory for tile.8']
  %s0 = inlined_call_operand.vmem [shape: f32[4], index: 0, kind: input, shape index: {}]
  %s1 = inlined_call_operand.vmem [shape: f32[4,4], index: 1, kind: output, shape index: {}]
  // Predicated region
  $region2: #{tile.8} parent=0 // pred_check
    _
  $region3: #{tile.8} parent=0 // pred_check_branch
    %3 = sbr.rel (0) target = $region5
  $region4: #{tile.8} parent=0 // pred_region
    _
  $region5: #{tile.8} parent=0 // pred_fallthru
    _
  %v4 = vld [vmem:[%s0] ss:$0 sm:$0xff]
  %5 = vst [vmem:[%s1] sm:$0xf] %v4

// kernel: tile.9
$region0: #{tile.9}
  %s0 = inlined_call_operand.vmem [shape: f32[4,4], index: 0, kind: input, shape index: {}]
  %s1 = inlined_call_operand.vmem [shape: f32[1,16], index: 1, kind: output, shape index: {}]
  $region1: #{tile.9} parent=0
    #allocation0 [shape = 'u8[4096]{0}', space=vmem, size = 0x1000, scoped, tag = 'scoped mem for output reshape']
    #allocation1 [shape = 'u8[4096]{0}', space=vmem, size = 0x1000, scoped, tag = 'scoped mem for input reshape']
    %s3 = sshllo.u32 0, 4
    %v4 = vld [vmem:[%s0] sm:%s3]
    %5 = vst [vmem:[#allocation1] sm:%s3] %v4
    %v6 = vld [vmem:[#allocation1] sm:$0x1]
    %vm7 = vcmask 31744
    %8 = vst.msk [vmem:[#allocation0] sm:$0x1] %vm7, %v6
    %s9 = scalar_lea.vmem [#allocation1], 3
    %v10 = vld [vmem:[%s9] sm:$0x1]
    %11 = vrot.lane.b32.xlu0 %v10, 12
    %v12 = vpop.permute.xlu0 %11
    %vm13 = vcmask 130144
    %14 = vst.msk [vmem:[#allocation0] sm:$0x1] %vm13, %v12
    %s15 = scalar_lea.vmem [#allocation1], 2
    %v16 = vld [vmem:[%s15] sm:$0x1]
    %17 = vrot.lane.b32.xlu0 %v16, 8
    %v18 = vpop.permute.xlu0 %17
    %vm19 = vcmask 97344
    %20 = vst.msk [vmem:[#allocation0] sm:$0x1] %vm19, %v18
    %s21 = scalar_lea.vmem [#allocation1], 1
    %v22 = vld [vmem:[%s21] sm:$0x1]
    %23 = vrot.lane.b32.xlu0 %v22, 4
    %v24 = vpop.permute.xlu0 %23
    %vm25 = vcmask 64544
    %26 = vst.msk [vmem:[#allocation0] sm:$0x1] %vm25, %v24
    %s28 = sshllo.u32 0, 1
    %v30 = vld [vmem:[#allocation0] sm:%s28]
    %s31 = sshllo.u32 0, 1
    %32 = vst [vmem:[%s1] sm:%s31] %v30

// kernel: up_forward.3
$region0: #{up_forward.3}
  #allocation0 [shape = 'u32[]', space=smem, size = 0x4, offset = 0x4, fixed_abs, tag = 'smem constant byte address 0x4 - core index']
  #allocation1 [shape = 'u32[144,128]{1,0:T(1,128)}', space=vmem, size = 0x12000, scoped, tag = 'internal scratch']
  %s0 = inlined_call_operand.vmem [shape: bf16[128,4], index: 0, kind: input, shape index: {}]
  %s1 = inlined_call_operand.vmem [shape: bf16[4,16], index: 1, kind: input, shape index: {}]
  %s2 = inlined_call_operand.vmem [shape: f32[1,16], index: 2, kind: input, shape index: {}]
  %s3 = inlined_call_operand.vmem [shape: bf16[128,16], index: 3, kind: output, shape index: {}]
  %s4 = sld [smem:[#allocation0]]
  $region45: #{up_forward.3} parent=0
    _
  %s6 = ssub.s32 1, %s4
  %s7 = scalar_select 0, %s6, %s4
  loop: start=0, step=1, limit=4
  $region2: #{up_forward.3} parent=0 // loop_pre_header
    _
  $region3: #{up_forward.3} parent=0 // loop_header
    %s9 = sphi 0, %s13
    %p10 = scmp.ge.s32.totalorder %s9, 4
    %s19 = sphi 0, %s21
    %s22 = sphi 0, %s19
    %s23 = sphi 0, %s22
    %s39 = sphi 0, %s23
    %s43 = sphi 0, %s43
    %s45 = sphi 0, %s43
    %s46 = sphi 0, %s45
    %s60 = sphi 0, %s46
    %s64 = sphi 0, %s64
    %s66 = sphi 0, %s64
    %s67 = sphi 0, %s66
    %s81 = sphi 0, %s67
    %s87 = sphi 0, %s89
    %s90 = sphi 0, %s87
    %s91 = sphi 0, %s90
    %s107 = sphi 0, %s91
  $region4: #{up_forward.3} parent=0 // loop_header_branch
    %12 = sbr.rel (%p10) target = $region8
  $region5: #{up_forward.3} parent=0 // loop_body
    %s14 = ssub.s32 %s9, 1
    %s15 = ssub.s32 %s9, 2
    %s16 = sadd.s32 %s9, 1
    %s17 = ssub.s32 %s9, %s16
    %p18 = scmp.eq.s32.totalorder %s17, 0
    %s20 = sadd.s32 %s19, 1
    %s21 = scalar_select %p18, %s19, %s20
    %p24 = pneg %p18
    %p25 = scmp.eq.s32.totalorder %s9, 1
    %p26 = por %p24, %p25
    %p27 = scmp.ne.s32.totalorder %s19, %s22
    %p28 = scmp.eq.s32.totalorder %s9, 0
    %p29 = por %p27, %p28
    %p30 = scmp.ne.s32.totalorder %s19, %s22
    %p31 = scmp.eq.s32.totalorder %s14, 1
    %p32 = por %p30, %p31
    %p33 = scmp.ne.s32.totalorder %s22, %s23
    %p34 = scmp.eq.s32.totalorder %s14, 0
    %p35 = por %p33, %p34
    %p36 = scmp.ne.s32.totalorder %s22, %s23
    %p37 = scmp.eq.s32.totalorder %s15, 1
    %p38 = por %p36, %p37
    %p40 = scmp.ne.s32.totalorder %s23, %s39
    %p41 = scmp.eq.s32.totalorder %s15, 0
    %p42 = por %p40, %p41
    %s44 = sadd.s32 %s43, 1
    %p47 = scmp.eq.s32.totalorder %s9, 1
    %p48 = scmp.ne.s32.totalorder %s43, %s45
    %p49 = scmp.eq.s32.totalorder %s9, 0
    %p50 = por %p48, %p49
    %p51 = scmp.ne.s32.totalorder %s43, %s45
    %p52 = scmp.eq.s32.totalorder %s14, 1
    %p53 = por %p51, %p52
    %p54 = scmp.ne.s32.totalorder %s45, %s46
    %p55 = scmp.eq.s32.totalorder %s14, 0
    %p56 = por %p54, %p55
    %p57 = scmp.ne.s32.totalorder %s45, %s46
    %p58 = scmp.eq.s32.totalorder %s15, 1
    %p59 = por %p57, %p58
    %p61 = scmp.ne.s32.totalorder %s46, %s60
    %p62 = scmp.eq.s32.totalorder %s15, 0
    %p63 = por %p61, %p62
    %s65 = sadd.s32 %s64, 1
    %p68 = scmp.eq.s32.totalorder %s9, 1
    %p69 = scmp.ne.s32.totalorder %s64, %s66
    %p70 = scmp.eq.s32.totalorder %s9, 0
    %p71 = por %p69, %p70
    %p72 = scmp.ne.s32.totalorder %s64, %s66
    %p73 = scmp.eq.s32.totalorder %s14, 1
    %p74 = por %p72, %p73
    %p75 = scmp.ne.s32.totalorder %s66, %s67
    %p76 = scmp.eq.s32.totalorder %s14, 0
    %p77 = por %p75, %p76
    %p78 = scmp.ne.s32.totalorder %s66, %s67
    %p79 = scmp.eq.s32.totalorder %s15, 1
    %p80 = por %p78, %p79
    %p82 = scmp.ne.s32.totalorder %s67, %s81
    %p83 = scmp.eq.s32.totalorder %s15, 0
    %p84 = por %p82, %p83
    %s85 = ssub.s32 %s9, %s16
    %p86 = scmp.eq.s32.totalorder %s85, 0
    %s88 = sadd.s32 %s87, 1
    %s89 = scalar_select %p86, %s87, %s88
    %p92 = pneg %p86
    %p93 = scmp.eq.s32.totalorder %s9, 1
    %p94 = por %p92, %p93
    %p95 = scmp.ne.s32.totalorder %s87, %s90
    %p96 = scmp.eq.s32.totalorder %s9, 0
    %p97 = por %p95, %p96
    %p98 = scmp.ne.s32.totalorder %s87, %s90
    %p99 = scmp.eq.s32.totalorder %s14, 1
    %p100 = por %p98, %p99
    %p101 = scmp.ne.s32.totalorder %s90, %s91
    %p102 = scmp.eq.s32.totalorder %s14, 0
    %p103 = por %p101, %p102
    %p104 = scmp.ne.s32.totalorder %s90, %s91
    %p105 = scmp.eq.s32.totalorder %s15, 1
    %p106 = por %p104, %p105
    %p108 = scmp.ne.s32.totalorder %s91, %s107
    %p109 = scmp.eq.s32.totalorder %s15, 0
    %p110 = por %p108, %p109
    %p111 = scmp.le.s32.totalorder 1, %s9
    %p112 = scmp.lt.s32.totalorder %s9, 3
    %p113 = pnand %p111, %p112
    %p114 = pneg %p113
    // Predicated region
    $region9: #{up_forward.3} parent=5 // pred_check
      _
    $region10: #{up_forward.3} parent=5 // pred_check_branch
      %116 = sbr.rel (%p113) target = $region12
    $region11: #{up_forward.3} parent=5 // pred_region
      %s117 = ssub.s32 %s9, 1
      // Predicated region
      $region13: #{up_forward.3} parent=11 // pred_check
        %p118 = pneg %p56
      $region14: #{up_forward.3} parent=11 // pred_check_branch
        %120 = sbr.rel (%p118) target = $region16
      $region15: #{up_forward.3} parent=11 // pred_region
        _
      $region16: #{up_forward.3} parent=11 // pred_fallthru
        _
      // Predicated region
      $region17: #{up_forward.3} parent=11 // pred_check
        %p121 = pneg %p77
      $region18: #{up_forward.3} parent=11 // pred_check_branch
        %123 = sbr.rel (%p121) target = $region20
      $region19: #{up_forward.3} parent=11 // pred_region
        _
      $region20: #{up_forward.3} parent=11 // pred_fallthru
        _
    $region12: #{up_forward.3} parent=5 // pred_fallthru
      _
    %p124 = scmp.lt.s32.totalorder %s9, 2
    // Predicated region
    $region21: #{up_forward.3} parent=5 // pred_check
      %p125 = pneg %p124
    $region22: #{up_forward.3} parent=5 // pred_check_branch
      %127 = sbr.rel (%p125) target = $region24
    $region23: #{up_forward.3} parent=5 // pred_region
      // Predicated region
      $region25: #{up_forward.3} parent=23 // pred_check
        %p128 = pneg %p29
      $region26: #{up_forward.3} parent=23 // pred_check_branch
        %130 = sbr.rel (%p128) target = $region28
      $region27: #{up_forward.3} parent=23 // pred_region
        %s131 = smul.u32 8, %s9
        %p132 = scmp.lt.s32.totalorder %s131, 15
        %s133 = scalar_select %p132, %s131, 15
        %s134 = smul.addr %s133, 4
        %s135 = scalar_lea.vmem %s0, %s134
        %s136 = smul.u32 8, %s9
      $region28: #{up_forward.3} parent=23 // pred_fallthru
        _
    $region24: #{up_forward.3} parent=5 // pred_fallthru
      _
    %p137 = scmp.le.s32.totalorder 1, %s9
    %p138 = scmp.lt.s32.totalorder %s9, 3
    %p139 = pnand %p137, %p138
    %p140 = pneg %p139
    // Predicated region
    $region29: #{up_forward.3} parent=5 // pred_check
      _
    $region30: #{up_forward.3} parent=5 // pred_check_branch
      %142 = sbr.rel (%p139) target = $region32
    $region31: #{up_forward.3} parent=5 // pred_region
      %s143 = ssub.s32 %s9, 1
      %s144 = smul.u32 8, %s14
      %p145 = scmp.lt.s32.totalorder %s144, 15
      %s146 = scalar_select %p145, %s144, 15
      %s147 = smul.addr %s146, 4
      %s148 = scalar_lea.vmem %s0, %s147
      %p149 = pneg %p35
      %p150 = pneg %p32
      %p151 = pneg %p56
      %p152 = pneg %p53
      %p153 = pneg %p77
      %p154 = pneg %p74
      %p155 = pneg %p103
      %p156 = pneg %p100
      %s157 = smul.u32 8, %s14
      %p158 = scmp.lt.s32.totalorder %s157, 15
      %s159 = scalar_select %p158, %s157, 15
      %s160 = smul.addr %s159, 4
      %s161 = scalar_lea.vmem %s3, %s160
      %s162 = smul.u32 8, %s14
      %p163 = scmp.lt.s32.totalorder %s162, 15
      %s164 = scalar_select %p163, %s162, 15
      %s165 = smul.addr %s164, 4
      %s166 = scalar_lea.vmem %s0, %s165
      %s167 = smul.u32 8, %s14
      %s168 = smul.u32 8, %s14
      %p169 = scmp.lt.s32.totalorder %s168, 15
      %s170 = scalar_select %p169, %s168, 15
      %s171 = smul.addr %s170, 4
      %s172 = scalar_lea.vmem %s3, %s171
      %s173 = smul.u32 8, %s14
      %v175 = vld [vmem:[%s166] sm:$0xf]
      %v176 = vld [vmem:[%s166 + $0x4] sm:$0xf]
      %v177 = vld [vmem:[%s166 + $0x8] sm:$0xf]
      %v178 = vld [vmem:[%s166 + $0xc] sm:$0xf]
      %v179 = vld [vmem:[%s166 + $0x10] sm:$0xf]
      %v180 = vld [vmem:[%s166 + $0x14] sm:$0xf]
      %v181 = vld [vmem:[%s166 + $0x18] sm:$0xf]
      %v182 = vld [vmem:[%s166 + $0x1c] sm:$0xf]
      %v183 = vld [vmem:[%s1] sm:$0x3]
      %v184 = vld [vmem:[%s2] sm:$0x1]
      %v186 = vlaneseq
      %v187 = vshrl.u32 %v186, 7
      %v188 = vsub.s32 0, %v187
      %v189 = vrot.slane %v184, %v188
      %v199 = vunpack.c.l.b16 %v175
      %v200 = vunpack.c.l.b16 %v176
      %v201 = vunpack.c.l.b16 %v177
      %v202 = vunpack.c.l.b16 %v178
      %v203 = vunpack.c.l.b16 %v179
      %v204 = vunpack.c.l.b16 %v180
      %v205 = vunpack.c.l.b16 %v181
      %v206 = vunpack.c.l.b16 %v182
      %v207 = vpack.c.b16 %v200, %v199
      %v208 = vpack.c.b16 %v202, %v201
      %v209 = vpack.c.b16 %v204, %v203
      %v210 = vpack.c.b16 %v206, %v205
      %vm211 = vcmask 31744
      %v213 = vsel %vm211, %v207, 0
      %v216 = vsel %vm211, %v208, 0
      %v219 = vsel %vm211, %v209, 0
      %v222 = vsel %vm211, %v210, 0
      %vm224 = vcmask 1041408
      %v226 = vsel %vm224, %v183, 0
      %228 = vmatprep.subr.bf16.mxu0 0
      %229 = vmatpush1.bf16.msra.mxu0 %v226
      %230 = vmatprep.subr.bf16.mxu0 0
      %231 = vmatpush1.bf16.msra.mxu0 0
      %232 = vmatprep.subr.bf16.mxu0 0
      %233 = vmatpush1.bf16.msra.mxu0 0
      %234 = vmatprep.subr.bf16.mxu0 0
      %235 = vmatpush1.bf16.msra.mxu0 0
      %236 = vmatprep.subr.bf16.mxu0 0
      %237 = vmatpush1.bf16.msra.mxu0 0
      %238 = vmatprep.subr.bf16.mxu0 0
      %239 = vmatpush1.bf16.msra.mxu0 0
      %240 = vmatprep.subr.bf16.mxu0 0
      %241 = vmatpush1.bf16.msra.mxu0 0
      %242 = vmatprep.subr.bf16.mxu0 0
      %243 = vmatpush1.bf16.msra.mxu0 0
      %244 = vmatprep.subr.bf16.mxu0 0
      %245 = vmatpush1.bf16.msra.mxu0 0
      %246 = vmatprep.subr.bf16.mxu0 0
      %247 = vmatpush1.bf16.msra.mxu0 0
      %248 = vmatprep.subr.bf16.mxu0 0
      %249 = vmatpush1.bf16.msra.mxu0 0
      %250 = vmatprep.subr.bf16.mxu0 0
      %251 = vmatpush1.bf16.msra.mxu0 0
      %252 = vmatprep.subr.bf16.mxu0 0
      %253 = vmatpush1.bf16.msra.mxu0 0
      %254 = vmatprep.subr.bf16.mxu0 0
      %255 = vmatpush1.bf16.msra.mxu0 0
      %256 = vmatprep.subr.bf16.mxu0 0
      %257 = vmatpush1.bf16.msra.mxu0 0
      %258 = vmatprep.subr.bf16.mxu0 0
      %259 = vmatpush1.bf16.msra.mxu0 0
      %260 = vmatprep.mubr.bf16.mxu0 0
      %261 = vmatmul.mubr.bf16.gmra.mrb[0].mxu0 %v213
      %v262 = vpop.f32.mrb[0].mxu0
      %v263 = vadd.f32 %v189, %v262
      %v264 = vpop.f32.mrb[0].mxu0
      %v265 = vpop.f32.mrb[0].mxu0
      %v266 = vadd.f32 %v189, %v265
      %v267 = vpop.f32.mrb[0].mxu0
      %268 = vmatprep.mubr.bf16.mxu0 0
      %269 = vmatmul.mubr.bf16.gmra.mrb[0].mxu0 %v216
      %v270 = vpop.f32.mrb[0].mxu0
      %v271 = vadd.f32 %v189, %v270
      %v272 = vpop.f32.mrb[0].mxu0
      %v273 = vpop.f32.mrb[0].mxu0
      %v274 = vadd.f32 %v189, %v273
      %v275 = vpop.f32.mrb[0].mxu0
      %276 = vmatprep.mubr.bf16.mxu0 0
      %277 = vmatmul.mubr.bf16.gmra.mrb[0].mxu0 %v219
      %v278 = vpop.f32.mrb[0].mxu0
      %v279 = vadd.f32 %v189, %v278
      %v280 = vpop.f32.mrb[0].mxu0
      %v281 = vpop.f32.mrb[0].mxu0
      %v282 = vadd.f32 %v189, %v281
      %v283 = vpop.f32.mrb[0].mxu0
      %284 = vmatprep.mubr.bf16.mxu0 0
      %285 = vmatmul.mubr.bf16.gmra.mrb[0].mxu0 %v222
      %v286 = vpop.f32.mrb[0].mxu0
      %v287 = vadd.f32 %v189, %v286
      %v288 = vpop.f32.mrb[0].mxu0
      %v289 = vpop.f32.mrb[0].mxu0
      %v290 = vadd.f32 %v189, %v289
      %v291 = vpop.f32.mrb[0].mxu0
      %292 = vdwg.mxu0
      %v293 = vpack.c.bf16 %v266, %v263
      %v294 = vpack.c.bf16 %v274, %v271
      %v295 = vpack.c.bf16 %v282, %v279
      %v296 = vpack.c.bf16 %v290, %v287
      %v301 = vunpack.c.l.b16 %v293
      %v302 = vunpack.c.h.b16 %v293
      %v303 = vunpack.c.l.b16 %v294
      %v304 = vunpack.c.h.b16 %v294
      %v305 = vunpack.c.l.b16 %v295
      %v306 = vunpack.c.h.b16 %v295
      %v307 = vunpack.c.l.b16 %v296
      %v308 = vunpack.c.h.b16 %v296
      %v309 = vpack.c.b16 %v301, %v301
      %v310 = vpack.c.b16 %v302, %v302
      %v311 = vpack.c.b16 %v303, %v303
      %v312 = vpack.c.b16 %v304, %v304
      %v313 = vpack.c.b16 %v305, %v305
      %v314 = vpack.c.b16 %v306, %v306
      %v315 = vpack.c.b16 %v307, %v307
      %v316 = vpack.c.b16 %v308, %v308
      %vm325 = vcmask 125952
      %326 = vst.msk [vmem:[%s172] sm:$0xf] %vm325, %v309
      %327 = vst.msk [vmem:[%s172 + $0x4] sm:$0xf] %vm325, %v310
      %328 = vst.msk [vmem:[%s172 + $0x8] sm:$0xf] %vm325, %v311
      %329 = vst.msk [vmem:[%s172 + $0xc] sm:$0xf] %vm325, %v312
      %330 = vst.msk [vmem:[%s172 + $0x10] sm:$0xf] %vm325, %v313
      %331 = vst.msk [vmem:[%s172 + $0x14] sm:$0xf] %vm325, %v314
      %332 = vst.msk [vmem:[%s172 + $0x18] sm:$0xf] %vm325, %v315
      %333 = vst.msk [vmem:[%s172 + $0x1c] sm:$0xf] %vm325, %v316
      %s334 = smul.u32 8, %s14
      %p335 = scmp.lt.s32.totalorder %s334, 15
      %s336 = scalar_select %p335, %s334, 15
      %s337 = smul.addr %s336, 4
      %s338 = scalar_lea.vmem %s3, %s337
      // Predicated region
      $region33: #{up_forward.3} parent=31 // pred_check
        %p339 = pneg %p100
      $region34: #{up_forward.3} parent=31 // pred_check_branch
        %341 = sbr.rel (%p339) target = $region36
      $region35: #{up_forward.3} parent=31 // pred_region
        %s342 = smul.u32 8, %s14
      $region36: #{up_forward.3} parent=31 // pred_fallthru
        _
    $region32: #{up_forward.3} parent=5 // pred_fallthru
      _
    %p343 = scmp.le.s32.totalorder 2, %s9
    // Predicated region
    $region37: #{up_forward.3} parent=5 // pred_check
      %p344 = pneg %p343
    $region38: #{up_forward.3} parent=5 // pred_check_branch
      %346 = sbr.rel (%p344) target = $region40
    $region39: #{up_forward.3} parent=5 // pred_region
      %s347 = ssub.s32 %s9, 2
      // Predicated region
      $region41: #{up_forward.3} parent=39 // pred_check
        %p348 = pneg %p106
      $region42: #{up_forward.3} parent=39 // pred_check_branch
        %350 = sbr.rel (%p348) target = $region44
      $region43: #{up_forward.3} parent=39 // pred_region
        %s351 = smul.u32 8, %s15
        %p352 = scmp.lt.s32.totalorder %s351, 15
        %s353 = scalar_select %p352, %s351, 15
        %s354 = smul.addr %s353, 4
        %s355 = scalar_lea.vmem %s3, %s354
      $region44: #{up_forward.3} parent=39 // pred_fallthru
        _
    $region40: #{up_forward.3} parent=5 // pred_fallthru
      _
  $region6: #{up_forward.3} parent=0 // loop_footer
    %s13 = sadd.s32 1, %s9
  $region7: #{up_forward.3} parent=0 // loop_footer_branch
    %8 = sbr.rel target = $region3
  $region8: #{up_forward.3} parent=0 // loop_exit
    _

// kernel: up_forward.5
$region0: #{up_forward.5}
  #allocation0 [shape = 'u32[]', space=smem, size = 0x4, offset = 0x4, fixed_abs, tag = 'smem constant byte address 0x4 - core index']
  #allocation1 [shape = 'u32[144,128]{1,0:T(1,128)}', space=vmem, size = 0x12000, scoped, tag = 'internal scratch']
  %s0 = inlined_call_operand.vmem [shape: bf16[2,432,4], index: 0, kind: input, shape index: {}]
  %s1 = inlined_call_operand.vmem [shape: bf16[2,2,54,4], index: 1, kind: input, shape index: {}]
  %s2 = inlined_call_operand.vmem [shape: bf16[9,4,4], index: 2, kind: input, shape index: {}]
  %s3 = inlined_call_operand.vmem [shape: f32[1,4], index: 3, kind: input, shape index: {}]
  %s4 = inlined_call_operand.vmem [shape: f32[1,4], index: 4, kind: input, shape index: {}]
  %s5 = inlined_call_operand.vmem [shape: f32[2,288,4], index: 5, kind: output, shape index: {}]
  %s6 = sld [smem:[#allocation0]]
  $region53: #{up_forward.5} parent=0
    _
  %s8 = ssub.s32 1, %s6
  %s9 = scalar_select 0, %s8, %s6
  loop: start=0, step=1, limit=6
  $region2: #{up_forward.5} parent=0 // loop_pre_header
    _
  $region3: #{up_forward.5} parent=0 // loop_header
    %s11 = sphi 0, %s15
    %p12 = scmp.ge.s32.totalorder %s11, 6
    %s18 = sphi 0, %s30
    %s19 = sphi 0, %s26
    %s20 = sphi 0, %s18
    %s21 = sphi 0, %s19
    %s22 = sphi 0, %s20
    %s23 = sphi 0, %s21
    %s35 = sphi 0, %s37
    %s38 = sphi 0, %s35
    %s39 = sphi 0, %s38
    %s55 = sphi 0, %s39
    %s63 = sphi 0, %s65
    %s66 = sphi 0, %s63
    %s67 = sphi 0, %s66
    %s83 = sphi 0, %s67
    %s87 = sphi 0, %s87
    %s89 = sphi 0, %s87
    %s90 = sphi 0, %s89
    %s104 = sphi 0, %s90
    %s108 = sphi 0, %s108
    %s110 = sphi 0, %s108
    %s111 = sphi 0, %s110
    %s125 = sphi 0, %s111
    %s129 = sphi 0, %s129
    %s131 = sphi 0, %s129
    %s132 = sphi 0, %s131
    %s146 = sphi 0, %s132
    %s154 = sphi 0, %s156
    %s157 = sphi 0, %s154
    %s158 = sphi 0, %s157
    %s174 = sphi 0, %s158
  $region4: #{up_forward.5} parent=0 // loop_header_branch
    %14 = sbr.rel (%p12) target = $region8
  $region5: #{up_forward.5} parent=0 // loop_body
    %s16 = ssub.s32 %s11, 1
    %s17 = ssub.s32 %s11, 2
    %s24 = sadd.s32 1, %s19
    %p25 = scmp.ge.s32.totalorder %s24, 2
    %s26 = scalar_select %p25, 0, %s24
    %s27 = sadd.s32 1, %s18
    %s28 = scalar_select %p25, %s27, %s18
    %p29 = scmp.ge.s32.totalorder %s28, 2
    %s30 = scalar_select %p29, 0, %s28
    %s31 = ssub.s32 %s18, %s30
    %s32 = ssub.s32 %s19, %s26
    %s33 = sor.u32 %s31, %s32
    %p34 = scmp.eq.s32.totalorder %s33, 0
    %s36 = sadd.s32 %s35, 1
    %s37 = scalar_select %p34, %s35, %s36
    %p40 = pneg %p34
    %p41 = scmp.eq.s32.totalorder %s11, 3
    %p42 = por %p40, %p41
    %p43 = scmp.ne.s32.totalorder %s35, %s38
    %p44 = scmp.eq.s32.totalorder %s11, 0
    %p45 = por %p43, %p44
    %p46 = scmp.ne.s32.totalorder %s35, %s38
    %p47 = scmp.eq.s32.totalorder %s16, 3
    %p48 = por %p46, %p47
    %p49 = scmp.ne.s32.totalorder %s38, %s39
    %p50 = scmp.eq.s32.totalorder %s16, 0
    %p51 = por %p49, %p50
    %p52 = scmp.ne.s32.totalorder %s38, %s39
    %p53 = scmp.eq.s32.totalorder %s17, 3
    %p54 = por %p52, %p53
    %p56 = scmp.ne.s32.totalorder %s39, %s55
    %p57 = scmp.eq.s32.totalorder %s17, 0
    %p58 = por %p56, %p57
    %s59 = ssub.s32 %s18, %s30
    %s60 = ssub.s32 %s19, %s26
    %s61 = sor.u32 %s59, %s60
    %p62 = scmp.eq.s32.totalorder %s61, 0
    %s64 = sadd.s32 %s63, 1
    %s65 = scalar_select %p62, %s63, %s64
    %p68 = pneg %p62
    %p69 = scmp.eq.s32.totalorder %s11, 3
    %p70 = por %p68, %p69
    %p71 = scmp.ne.s32.totalorder %s63, %s66
    %p72 = scmp.eq.s32.totalorder %s11, 0
    %p73 = por %p71, %p72
    %p74 = scmp.ne.s32.totalorder %s63, %s66
    %p75 = scmp.eq.s32.totalorder %s16, 3
    %p76 = por %p74, %p75
    %p77 = scmp.ne.s32.totalorder %s66, %s67
    %p78 = scmp.eq.s32.totalorder %s16, 0
    %p79 = por %p77, %p78
    %p80 = scmp.ne.s32.totalorder %s66, %s67
    %p81 = scmp.eq.s32.totalorder %s17, 3
    %p82 = por %p80, %p81
    %p84 = scmp.ne.s32.totalorder %s67, %s83
    %p85 = scmp.eq.s32.totalorder %s17, 0
    %p86 = por %p84, %p85
    %s88 = sadd.s32 %s87, 1
    %p91 = scmp.eq.s32.totalorder %s11, 3
    %p92 = scmp.ne.s32.totalorder %s87, %s89
    %p93 = scmp.eq.s32.totalorder %s11, 0
    %p94 = por %p92, %p93
    %p95 = scmp.ne.s32.totalorder %s87, %s89
    %p96 = scmp.eq.s32.totalorder %s16, 3
    %p97 = por %p95, %p96
    %p98 = scmp.ne.s32.totalorder %s89, %s90
    %p99 = scmp.eq.s32.totalorder %s16, 0
    %p100 = por %p98, %p99
    %p101 = scmp.ne.s32.totalorder %s89, %s90
    %p102 = scmp.eq.s32.totalorder %s17, 3
    %p103 = por %p101, %p102
    %p105 = scmp.ne.s32.totalorder %s90, %s104
    %p106 = scmp.eq.s32.totalorder %s17, 0
    %p107 = por %p105, %p106
    %s109 = sadd.s32 %s108, 1
    %p112 = scmp.eq.s32.totalorder %s11, 3
    %p113 = scmp.ne.s32.totalorder %s108, %s110
    %p114 = scmp.eq.s32.totalorder %s11, 0
    %p115 = por %p113, %p114
    %p116 = scmp.ne.s32.totalorder %s108, %s110
    %p117 = scmp.eq.s32.totalorder %s16, 3
    %p118 = por %p116, %p117
    %p119 = scmp.ne.s32.totalorder %s110, %s111
    %p120 = scmp.eq.s32.totalorder %s16, 0
    %p121 = por %p119, %p120
    %p122 = scmp.ne.s32.totalorder %s110, %s111
    %p123 = scmp.eq.s32.totalorder %s17, 3
    %p124 = por %p122, %p123
    %p126 = scmp.ne.s32.totalorder %s111, %s125
    %p127 = scmp.eq.s32.totalorder %s17, 0
    %p128 = por %p126, %p127
    %s130 = sadd.s32 %s129, 1
    %p133 = scmp.eq.s32.totalorder %s11, 3
    %p134 = scmp.ne.s32.totalorder %s129, %s131
    %p135 = scmp.eq.s32.totalorder %s11, 0
    %p136 = por %p134, %p135
    %p137 = scmp.ne.s32.totalorder %s129, %s131
    %p138 = scmp.eq.s32.totalorder %s16, 3
    %p139 = por %p137, %p138
    %p140 = scmp.ne.s32.totalorder %s131, %s132
    %p141 = scmp.eq.s32.totalorder %s16, 0
    %p142 = por %p140, %p141
    %p143 = scmp.ne.s32.totalorder %s131, %s132
    %p144 = scmp.eq.s32.totalorder %s17, 3
    %p145 = por %p143, %p144
    %p147 = scmp.ne.s32.totalorder %s132, %s146
    %p148 = scmp.eq.s32.totalorder %s17, 0
    %p149 = por %p147, %p148
    %s150 = ssub.s32 %s18, %s30
    %s151 = ssub.s32 %s19, %s26
    %s152 = sor.u32 %s150, %s151
    %p153 = scmp.eq.s32.totalorder %s152, 0
    %s155 = sadd.s32 %s154, 1
    %s156 = scalar_select %p153, %s154, %s155
    %p159 = pneg %p153
    %p160 = scmp.eq.s32.totalorder %s11, 3
    %p161 = por %p159, %p160
    %p162 = scmp.ne.s32.totalorder %s154, %s157
    %p163 = scmp.eq.s32.totalorder %s11, 0
    %p164 = por %p162, %p163
    %p165 = scmp.ne.s32.totalorder %s154, %s157
    %p166 = scmp.eq.s32.totalorder %s16, 3
    %p167 = por %p165, %p166
    %p168 = scmp.ne.s32.totalorder %s157, %s158
    %p169 = scmp.eq.s32.totalorder %s16, 0
    %p170 = por %p168, %p169
    %p171 = scmp.ne.s32.totalorder %s157, %s158
    %p172 = scmp.eq.s32.totalorder %s17, 3
    %p173 = por %p171, %p172
    %p175 = scmp.ne.s32.totalorder %s158, %s174
    %p176 = scmp.eq.s32.totalorder %s17, 0
    %p177 = por %p175, %p176
    %p178 = scmp.le.s32.totalorder 1, %s11
    %p179 = scmp.lt.s32.totalorder %s11, 5
    %p180 = pnand %p178, %p179
    %p181 = pneg %p180
    // Predicated region
    $region9: #{up_forward.5} parent=5 // pred_check
      _
    $region10: #{up_forward.5} parent=5 // pred_check_branch
      %183 = sbr.rel (%p180) target = $region12
    $region11: #{up_forward.5} parent=5 // pred_region
      %s184 = ssub.s32 %s11, 1
      // Predicated region
      $region13: #{up_forward.5} parent=11 // pred_check
        %p185 = pneg %p100
      $region14: #{up_forward.5} parent=11 // pred_check_branch
        %187 = sbr.rel (%p185) target = $region16
      $region15: #{up_forward.5} parent=11 // pred_region
        _
      $region16: #{up_forward.5} parent=11 // pred_fallthru
        _
      // Predicated region
      $region17: #{up_forward.5} parent=11 // pred_check
        %p188 = pneg %p121
      $region18: #{up_forward.5} parent=11 // pred_check_branch
        %190 = sbr.rel (%p188) target = $region20
      $region19: #{up_forward.5} parent=11 // pred_region
        _
      $region20: #{up_forward.5} parent=11 // pred_fallthru
        _
      // Predicated region
      $region21: #{up_forward.5} parent=11 // pred_check
        %p191 = pneg %p142
      $region22: #{up_forward.5} parent=11 // pred_check_branch
        %193 = sbr.rel (%p191) target = $region24
      $region23: #{up_forward.5} parent=11 // pred_region
        _
      $region24: #{up_forward.5} parent=11 // pred_fallthru
        _
    $region12: #{up_forward.5} parent=5 // pred_fallthru
      _
    %p194 = scmp.lt.s32.totalorder %s11, 4
    // Predicated region
    $region25: #{up_forward.5} parent=5 // pred_check
      %p195 = pneg %p194
    $region26: #{up_forward.5} parent=5 // pred_check_branch
      %197 = sbr.rel (%p195) target = $region28
    $region27: #{up_forward.5} parent=5 // pred_region
      // Predicated region
      $region29: #{up_forward.5} parent=27 // pred_check
        %p198 = pneg %p45
      $region30: #{up_forward.5} parent=27 // pred_check_branch
        %200 = sbr.rel (%p198) target = $region32
      $region31: #{up_forward.5} parent=27 // pred_region
        %s201 = smul.u32 18, %s19
        %p202 = scmp.lt.s32.totalorder %s18, 1
        %s203 = scalar_select %p202, %s18, 1
        %p204 = scmp.lt.s32.totalorder %s201, 53
        %s205 = scalar_select %p204, %s201, 53
        %s206 = smul.addr %s203, 54
        %s207 = sadd.s32 %s205, %s206
        %s208 = smul.addr %s207, 4
        %s209 = scalar_lea.vmem %s0, %s208
        %s210 = smul.u32 18, %s19
      $region32: #{up_forward.5} parent=27 // pred_fallthru
        _
      // Predicated region
      $region33: #{up_forward.5} parent=27 // pred_check
        %p211 = pneg %p73
      $region34: #{up_forward.5} parent=27 // pred_check_branch
        %213 = sbr.rel (%p211) target = $region36
      $region35: #{up_forward.5} parent=27 // pred_region
        %p214 = scmp.lt.s32.totalorder %s18, 1
        %s215 = scalar_select %p214, %s18, 1
        %p216 = scmp.lt.s32.totalorder %s19, 1
        %s217 = scalar_select %p216, %s19, 1
        %s218 = smul.addr %s217, 7
        %s219 = smul.addr %s215, 14
        %s220 = sadd.s32 %s218, %s219
        %s221 = smul.addr %s220, 4
        %s222 = scalar_lea.vmem %s1, %s221
      $region36: #{up_forward.5} parent=27 // pred_fallthru
        _
    $region28: #{up_forward.5} parent=5 // pred_fallthru
      _
    %p223 = scmp.le.s32.totalorder 1, %s11
    %p224 = scmp.lt.s32.totalorder %s11, 5
    %p225 = pnand %p223, %p224
    %p226 = pneg %p225
    // Predicated region
    $region37: #{up_forward.5} parent=5 // pred_check
      _
    $region38: #{up_forward.5} parent=5 // pred_check_branch
      %228 = sbr.rel (%p225) target = $region40
    $region39: #{up_forward.5} parent=5 // pred_region
      %s229 = ssub.s32 %s11, 1
      %s230 = smul.u32 18, %s21
      %p231 = scmp.lt.s32.totalorder %s20, 1
      %s232 = scalar_select %p231, %s20, 1
      %p233 = scmp.lt.s32.totalorder %s230, 53
      %s234 = scalar_select %p233, %s230, 53
      %s235 = smul.addr %s232, 54
      %s236 = sadd.s32 %s234, %s235
      %s237 = smul.addr %s236, 4
      %s238 = scalar_lea.vmem %s0, %s237
      %p239 = pneg %p51
      %p240 = pneg %p48
      %p241 = scmp.lt.s32.totalorder %s20, 1
      %s242 = scalar_select %p241, %s20, 1
      %p243 = scmp.lt.s32.totalorder %s21, 1
      %s244 = scalar_select %p243, %s21, 1
      %s245 = smul.addr %s244, 7
      %s246 = smul.addr %s242, 14
      %s247 = sadd.s32 %s245, %s246
      %s248 = smul.addr %s247, 4
      %s249 = scalar_lea.vmem %s1, %s248
      %p250 = pneg %p79
      %p251 = pneg %p76
      %p252 = pneg %p100
      %p253 = pneg %p97
      %p254 = pneg %p121
      %p255 = pneg %p118
      %p256 = pneg %p142
      %p257 = pneg %p139
      %p258 = pneg %p170
      %p259 = pneg %p167
      %s260 = smul.u32 18, %s21
      %p261 = scmp.lt.s32.totalorder %s20, 1
      %s262 = scalar_select %p261, %s20, 1
      %p263 = scmp.lt.s32.totalorder %s260, 35
      %s264 = scalar_select %p263, %s260, 35
      %s265 = smul.addr %s262, 36
      %s266 = sadd.s32 %s264, %s265
      %s267 = smul.addr %s266, 8
      %s268 = scalar_lea.vmem %s5, %s267
      %s269 = smul.u32 18, %s21
      %p270 = scmp.lt.s32.totalorder %s20, 1
      %s271 = scalar_select %p270, %s20, 1
      %p272 = scmp.lt.s32.totalorder %s269, 53
      %s273 = scalar_select %p272, %s269, 53
      %s274 = smul.addr %s271, 54
      %s275 = sadd.s32 %s273, %s274
      %s276 = smul.addr %s275, 4
      %s277 = scalar_lea.vmem %s0, %s276
      %s278 = smul.u32 18, %s21
      %p279 = scmp.lt.s32.totalorder %s20, 1
      %s280 = scalar_select %p279, %s20, 1
      %p281 = scmp.lt.s32.totalorder %s21, 1
      %s282 = scalar_select %p281, %s21, 1
      %s283 = smul.addr %s282, 7
      %s284 = smul.addr %s280, 14
      %s285 = sadd.s32 %s283, %s284
      %s286 = smul.addr %s285, 4
      %s287 = scalar_lea.vmem %s1, %s286
      %s288 = smul.u32 18, %s21
      %p289 = scmp.lt.s32.totalorder %s20, 1
      %s290 = scalar_select %p289, %s20, 1
      %p291 = scmp.lt.s32.totalorder %s288, 35
      %s292 = scalar_select %p291, %s288, 35
      %s293 = smul.addr %s290, 36
      %s294 = sadd.s32 %s292, %s293
      %s295 = smul.addr %s294, 8
      %s296 = scalar_lea.vmem %s5, %s295
      %s297 = smul.u32 18, %s21
      %v299 = vld [vmem:[%s277] sm:$0xf]
      %v300 = vld [vmem:[%s277 + $0x4] sm:$0xf]
      %v301 = vld [vmem:[%s277 + $0x8] sm:$0xf]
      %v302 = vld [vmem:[%s277 + $0xc] sm:$0xf]
      %v303 = vld [vmem:[%s277 + $0x10] sm:$0xf]
      %v304 = vld [vmem:[%s277 + $0x14] sm:$0xf]
      %v305 = vld [vmem:[%s277 + $0x18] sm:$0xf]
      %v306 = vld [vmem:[%s277 + $0x1c] sm:$0xf]
      %v307 = vld [vmem:[%s277 + $0x20] sm:$0xf]
      %v308 = vld [vmem:[%s277 + $0x24] sm:$0xf]
      %v309 = vld [vmem:[%s277 + $0x28] sm:$0xf]
      %v310 = vld [vmem:[%s277 + $0x2c] sm:$0xf]
      %v311 = vld [vmem:[%s277 + $0x30] sm:$0xf]
      %v312 = vld [vmem:[%s277 + $0x34] sm:$0xf]
      %v313 = vld [vmem:[%s277 + $0x38] sm:$0xf]
      %v314 = vld [vmem:[%s277 + $0x3c] sm:$0xf]
      %v315 = vld [vmem:[%s277 + $0x40] sm:$0xf]
      %v316 = vld [vmem:[%s277 + $0x44] sm:$0xf]
      %v317 = vld [vmem:[%s287] sm:$0xf]
      %v318 = vld [vmem:[%s287 + $0x4] sm:$0xf]
      %v319 = vld [vmem:[%s287 + $0x8] sm:$0xf]
      %v320 = vld [vmem:[%s287 + $0xc] sm:$0xf]
      %v321 = vld [vmem:[%s287 + $0x10] sm:$0xf]
      %v322 = vld [vmem:[%s287 + $0x14] sm:$0xf]
      %v341 = vunpack.c.l.b16 %v299
      %v342 = vunpack.c.l.b16 %v300
      %v343 = vunpack.c.l.b16 %v301
      %v344 = vunpack.c.l.b16 %v302
      %v345 = vunpack.c.l.b16 %v303
      %v346 = vunpack.c.l.b16 %v304
      %v347 = vunpack.c.l.b16 %v305
      %v348 = vunpack.c.l.b16 %v306
      %v349 = vunpack.c.l.b16 %v307
      %v350 = vunpack.c.l.b16 %v308
      %v351 = vunpack.c.l.b16 %v309
      %v352 = vunpack.c.l.b16 %v310
      %v353 = vunpack.c.l.b16 %v311
      %v354 = vunpack.c.l.b16 %v312
      %v355 = vunpack.c.l.b16 %v313
      %v356 = vunpack.c.l.b16 %v314
      %v357 = vunpack.c.l.b16 %v315
      %v358 = vunpack.c.l.b16 %v316
      %v359 = vpack.c.b16 %v342, %v341
      %v360 = vpack.c.b16 %v344, %v343
      %v361 = vpack.c.b16 %v346, %v345
      %v362 = vpack.c.b16 %v348, %v347
      %v363 = vpack.c.b16 %v350, %v349
      %v364 = vpack.c.b16 %v352, %v351
      %v365 = vpack.c.b16 %v354, %v353
      %v366 = vpack.c.b16 %v356, %v355
      %v367 = vpack.c.b16 %v358, %v357
      %v374 = vunpack.c.l.b16 %v317
      %v375 = vunpack.c.l.b16 %v318
      %v376 = vunpack.c.l.b16 %v319
      %v377 = vunpack.c.l.b16 %v320
      %v378 = vunpack.c.l.b16 %v321
      %v379 = vunpack.c.l.b16 %v322
      %v380 = vpack.c.b16 %v375, %v374
      %v381 = vpack.c.b16 %v377, %v376
      %v382 = vpack.c.b16 %v379, %v378
      %v383 = vld [vmem:[%s2] sm:$0x3]
      %s384 = scalar_lea.vmem %s2, 2
      %v385 = vld [vmem:[%s384] sm:$0x3]
      %vm386 = vsmask.f32 7424
      %v388 = vshrl.u32 %v359, 16
      %v390 = vshll.u32 %v359, 16
      %v392 = vrot.slane %v390, 1
      %v393 = vor.u32 %v388, %v392
      %v395 = vshll.u32 %v360, 16
      %v397 = vrot.slane %v395, 1
      %v398 = vsel %vm386, %v393, %v397
      %v399 = vshrl.u32 %v360, 16
      %v401 = vor.u32 %v399, %v397
      %v403 = vshll.u32 %v361, 16
      %v405 = vrot.slane %v403, 1
      %v406 = vsel %vm386, %v401, %v405
      %v407 = vshrl.u32 %v361, 16
      %v409 = vor.u32 %v407, %v405
      %v411 = vshll.u32 %v362, 16
      %v413 = vrot.slane %v411, 1
      %v414 = vsel %vm386, %v409, %v413
      %v415 = vshrl.u32 %v362, 16
      %v417 = vor.u32 %v415, %v413
      %v419 = vshll.u32 %v363, 16
      %v421 = vrot.slane %v419, 1
      %v422 = vsel %vm386, %v417, %v421
      %v423 = vshrl.u32 %v363, 16
      %v425 = vor.u32 %v423, %v421
      %v427 = vshll.u32 %v364, 16
      %v429 = vrot.slane %v427, 1
      %v430 = vsel %vm386, %v425, %v429
      %v431 = vshrl.u32 %v364, 16
      %v433 = vor.u32 %v431, %v429
      %v435 = vshll.u32 %v365, 16
      %v437 = vrot.slane %v435, 1
      %v438 = vsel %vm386, %v433, %v437
      %v439 = vshrl.u32 %v365, 16
      %v441 = vor.u32 %v439, %v437
      %v443 = vshll.u32 %v366, 16
      %v445 = vrot.slane %v443, 1
      %v446 = vsel %vm386, %v441, %v445
      %v447 = vshrl.u32 %v366, 16
      %v449 = vor.u32 %v447, %v445
      %v451 = vshll.u32 %v367, 16
      %v453 = vrot.slane %v451, 1
      %v454 = vsel %vm386, %v449, %v453
      %v455 = vshrl.u32 %v367, 16
      %v457 = vor.u32 %v455, %v453
      %v459 = vshll.u32 %v380, 16
      %v461 = vrot.slane %v459, 1
      %v462 = vsel %vm386, %v457, %v461
      %vm463 = vcmask 31744
      %v465 = vsel %vm463, %v398, 0
      %v468 = vsel %vm463, %v406, 0
      %v471 = vsel %vm463, %v414, 0
      %v474 = vsel %vm463, %v422, 0
      %v477 = vsel %vm463, %v430, 0
      %v480 = vsel %vm463, %v438, 0
      %v483 = vsel %vm463, %v446, 0
      %v486 = vsel %vm463, %v454, 0
      %v489 = vsel %vm463, %v462, 0
      %vm491 = vcmask 1041408
      %v493 = vsel %vm491, %v385, 0
      %495 = vmatprep.subr.bf16.mxu0 0
      %496 = vmatpush1.bf16.msra.mxu0 %v493
      %497 = vmatprep.subr.bf16.mxu0 0
      %498 = vmatpush1.bf16.msra.mxu0 0
      %499 = vmatprep.subr.bf16.mxu0 0
      %500 = vmatpush1.bf16.msra.mxu0 0
      %501 = vmatprep.subr.bf16.mxu0 0
      %502 = vmatpush1.bf16.msra.mxu0 0
      %503 = vmatprep.subr.bf16.mxu0 0
      %504 = vmatpush1.bf16.msra.mxu0 0
      %505 = vmatprep.subr.bf16.mxu0 0
      %506 = vmatpush1.bf16.msra.mxu0 0
      %507 = vmatprep.subr.bf16.mxu0 0
      %508 = vmatpush1.bf16.msra.mxu0 0
      %509 = vmatprep.subr.bf16.mxu0 0
      %510 = vmatpush1.bf16.msra.mxu0 0
      %511 = vmatprep.subr.bf16.mxu0 0
      %512 = vmatpush1.bf16.msra.mxu0 0
      %513 = vmatprep.subr.bf16.mxu0 0
      %514 = vmatpush1.bf16.msra.mxu0 0
      %515 = vmatprep.subr.bf16.mxu0 0
      %516 = vmatpush1.bf16.msra.mxu0 0
      %517 = vmatprep.subr.bf16.mxu0 0
      %518 = vmatpush1.bf16.msra.mxu0 0
      %519 = vmatprep.subr.bf16.mxu0 0
      %520 = vmatpush1.bf16.msra.mxu0 0
      %521 = vmatprep.subr.bf16.mxu0 0
      %522 = vmatpush1.bf16.msra.mxu0 0
      %523 = vmatprep.subr.bf16.mxu0 0
      %524 = vmatpush1.bf16.msra.mxu0 0
      %525 = vmatprep.subr.bf16.mxu0 0
      %526 = vmatpush1.bf16.msra.mxu0 0
      %527 = vmatprep.mubr.bf16.mxu0 0
      %528 = vmatmul.mubr.bf16.gmra.mrb[0].mxu0 %v465
      %v529 = vpop.f32.mrb[0].mxu0
      %v530 = vadd.f32 0.0, %v529
      %v531 = vpop.f32.mrb[0].mxu0
      %v532 = vpop.f32.mrb[0].mxu0
      %v533 = vadd.f32 0.0, %v532
      %v534 = vpop.f32.mrb[0].mxu0
      %535 = vmatprep.mubr.bf16.mxu0 0
      %536 = vmatmul.mubr.bf16.gmra.mrb[0].mxu0 %v468
      %v537 = vpop.f32.mrb[0].mxu0
      %v538 = vadd.f32 0.0, %v537
      %v539 = vpop.f32.mrb[0].mxu0
      %v540 = vpop.f32.mrb[0].mxu0
      %v541 = vadd.f32 0.0, %v540
      %v542 = vpop.f32.mrb[0].mxu0
      %543 = vmatprep.mubr.bf16.mxu0 0
      %544 = vmatmul.mubr.bf16.gmra.mrb[0].mxu0 %v471
      %v545 = vpop.f32.mrb[0].mxu0
      %v546 = vadd.f32 0.0, %v545
      %v547 = vpop.f32.mrb[0].mxu0
      %v548 = vpop.f32.mrb[0].mxu0
      %v549 = vadd.f32 0.0, %v548
      %v550 = vpop.f32.mrb[0].mxu0
      %551 = vmatprep.mubr.bf16.mxu0 0
      %552 = vmatmul.mubr.bf16.gmra.mrb[0].mxu0 %v474
      %v553 = vpop.f32.mrb[0].mxu0
      %v554 = vadd.f32 0.0, %v553
      %v555 = vpop.f32.mrb[0].mxu0
      %v556 = vpop.f32.mrb[0].mxu0
      %v557 = vadd.f32 0.0, %v556
      %v558 = vpop.f32.mrb[0].mxu0
      %559 = vmatprep.mubr.bf16.mxu0 0
      %560 = vmatmul.mubr.bf16.gmra.mrb[0].mxu0 %v477
      %v561 = vpop.f32.mrb[0].mxu0
      %v562 = vadd.f32 0.0, %v561
      %v563 = vpop.f32.mrb[0].mxu0
      %v564 = vpop.f32.mrb[0].mxu0
      %v565 = vadd.f32 0.0, %v564
      %v566 = vpop.f32.mrb[0].mxu0
      %567 = vmatprep.mubr.bf16.mxu0 0
      %568 = vmatmul.mubr.bf16.gmra.mrb[0].mxu0 %v480
      %v569 = vpop.f32.mrb[0].mxu0
      %v570 = vadd.f32 0.0, %v569
      %v571 = vpop.f32.mrb[0].mxu0
      %v572 = vpop.f32.mrb[0].mxu0
      %v573 = vadd.f32 0.0, %v572
      %v574 = vpop.f32.mrb[0].mxu0
      %575 = vmatprep.mubr.bf16.mxu0 0
      %576 = vmatmul.mubr.bf16.gmra.mrb[0].mxu0 %v483
      %v577 = vpop.f32.mrb[0].mxu0
      %v578 = vadd.f32 0.0, %v577
      %v579 = vpop.f32.mrb[0].mxu0
      %v580 = vpop.f32.mrb[0].mxu0
      %v581 = vadd.f32 0.0, %v580
      %v582 = vpop.f32.mrb[0].mxu0
      %583 = vmatprep.mubr.bf16.mxu0 0
      %584 = vmatmul.mubr.bf16.gmra.mrb[0].mxu0 %v486
      %v585 = vpop.f32.mrb[0].mxu0
      %v586 = vadd.f32 0.0, %v585
      %v587 = vpop.f32.mrb[0].mxu0
      %v588 = vpop.f32.mrb[0].mxu0
      %v589 = vadd.f32 0.0, %v588
      %v590 = vpop.f32.mrb[0].mxu0
      %591 = vmatprep.mubr.bf16.mxu0 0
      %592 = vmatmul.mubr.bf16.gmra.mrb[0].mxu0 %v489
      %v593 = vpop.f32.mrb[0].mxu0
      %v594 = vadd.f32 0.0, %v593
      %v595 = vpop.f32.mrb[0].mxu0
      %v596 = vpop.f32.mrb[0].mxu0
      %v597 = vadd.f32 0.0, %v596
      %v598 = vpop.f32.mrb[0].mxu0
      %599 = vdwg.mxu0
      %v600 = vsel %vm463, %v359, 0
      %v602 = vsel %vm463, %v360, 0
      %v604 = vsel %vm463, %v361, 0
      %v606 = vsel %vm463, %v362, 0
      %v608 = vsel %vm463, %v363, 0
      %v610 = vsel %vm463, %v364, 0
      %v612 = vsel %vm463, %v365, 0
      %v614 = vsel %vm463, %v366, 0
      %v616 = vsel %vm463, %v367, 0
      %v619 = vsel %vm491, %v383, 0
      %621 = vmatprep.subr.bf16.mxu0 0
      %622 = vmatpush1.bf16.msra.mxu0 %v619
      %623 = vmatprep.subr.bf16.mxu0 0
      %624 = vmatpush1.bf16.msra.mxu0 0
      %625 = vmatprep.subr.bf16.mxu0 0
      %626 = vmatpush1.bf16.msra.mxu0 0
      %627 = vmatprep.subr.bf16.mxu0 0
      %628 = vmatpush1.bf16.msra.mxu0 0
      %629 = vmatprep.subr.bf16.mxu0 0
      %630 = vmatpush1.bf16.msra.mxu0 0
      %631 = vmatprep.subr.bf16.mxu0 0
      %632 = vmatpush1.bf16.msra.mxu0 0
      %633 = vmatprep.subr.bf16.mxu0 0
      %634 = vmatpush1.bf16.msra.mxu0 0
      %635 = vmatprep.subr.bf16.mxu0 0
      %636 = vmatpush1.bf16.msra.mxu0 0
      %637 = vmatprep.subr.bf16.mxu0 0
      %638 = vmatpush1.bf16.msra.mxu0 0
      %639 = vmatprep.subr.bf16.mxu0 0
      %640 = vmatpush1.bf16.msra.mxu0 0
      %641 = vmatprep.subr.bf16.mxu0 0
      %642 = vmatpush1.bf16.msra.mxu0 0
      %643 = vmatprep.subr.bf16.mxu0 0
      %644 = vmatpush1.bf16.msra.mxu0 0
      %645 = vmatprep.subr.bf16.mxu0 0
      %646 = vmatpush1.bf16.msra.mxu0 0
      %647 = vmatprep.subr.bf16.mxu0 0
      %648 = vmatpush1.bf16.msra.mxu0 0
      %649 = vmatprep.subr.bf16.mxu0 0
      %650 = vmatpush1.bf16.msra.mxu0 0
      %651 = vmatprep.subr.bf16.mxu0 0
      %652 = vmatpush1.bf16.msra.mxu0 0
      %653 = vmatprep.mubr.bf16.mxu0 0
      %654 = vmatmul.mubr.bf16.gmra.mrb[0].mxu0 %v600
      %v655 = vpop.f32.mrb[0].mxu0
      %v656 = vadd.f32 %v530, %v655
      %v657 = vpop.f32.mrb[0].mxu0
      %v658 = vpop.f32.mrb[0].mxu0
      %v659 = vadd.f32 %v533, %v658
      %v660 = vpop.f32.mrb[0].mxu0
      %661 = vmatprep.mubr.bf16.mxu0 0
      %662 = vmatmul.mubr.bf16.gmra.mrb[0].mxu0 %v602
      %v663 = vpop.f32.mrb[0].mxu0
      %v664 = vadd.f32 %v538, %v663
      %v665 = vpop.f32.mrb[0].mxu0
      %v666 = vpop.f32.mrb[0].mxu0
      %v667 = vadd.f32 %v541, %v666
      %v668 = vpop.f32.mrb[0].mxu0
      %669 = vmatprep.mubr.bf16.mxu0 0
      %670 = vmatmul.mubr.bf16.gmra.mrb[0].mxu0 %v604
      %v671 = vpop.f32.mrb[0].mxu0
      %v672 = vadd.f32 %v546, %v671
      %v673 = vpop.f32.mrb[0].mxu0
      %v674 = vpop.f32.mrb[0].mxu0
      %v675 = vadd.f32 %v549, %v674
      %v676 = vpop.f32.mrb[0].mxu0
      %677 = vmatprep.mubr.bf16.mxu0 0
      %678 = vmatmul.mubr.bf16.gmra.mrb[0].mxu0 %v606
      %v679 = vpop.f32.mrb[0].mxu0
      %v680 = vadd.f32 %v554, %v679
      %v681 = vpop.f32.mrb[0].mxu0
      %v682 = vpop.f32.mrb[0].mxu0
      %v683 = vadd.f32 %v557, %v682
      %v684 = vpop.f32.mrb[0].mxu0
      %685 = vmatprep.mubr.bf16.mxu0 0
      %686 = vmatmul.mubr.bf16.gmra.mrb[0].mxu0 %v608
      %v687 = vpop.f32.mrb[0].mxu0
      %v688 = vadd.f32 %v562, %v687
      %v689 = vpop.f32.mrb[0].mxu0
      %v690 = vpop.f32.mrb[0].mxu0
      %v691 = vadd.f32 %v565, %v690
      %v692 = vpop.f32.mrb[0].mxu0
      %693 = vmatprep.mubr.bf16.mxu0 0
      %694 = vmatmul.mubr.bf16.gmra.mrb[0].mxu0 %v610
      %v695 = vpop.f32.mrb[0].mxu0
      %v696 = vadd.f32 %v570, %v695
      %v697 = vpop.f32.mrb[0].mxu0
      %v698 = vpop.f32.mrb[0].mxu0
      %v699 = vadd.f32 %v573, %v698
      %v700 = vpop.f32.mrb[0].mxu0
      %701 = vmatprep.mubr.bf16.mxu0 0
      %702 = vmatmul.mubr.bf16.gmra.mrb[0].mxu0 %v612
      %v703 = vpop.f32.mrb[0].mxu0
      %v704 = vadd.f32 %v578, %v703
      %v705 = vpop.f32.mrb[0].mxu0
      %v706 = vpop.f32.mrb[0].mxu0
      %v707 = vadd.f32 %v581, %v706
      %v708 = vpop.f32.mrb[0].mxu0
      %709 = vmatprep.mubr.bf16.mxu0 0
      %710 = vmatmul.mubr.bf16.gmra.mrb[0].mxu0 %v614
      %v711 = vpop.f32.mrb[0].mxu0
      %v712 = vadd.f32 %v586, %v711
      %v713 = vpop.f32.mrb[0].mxu0
      %v714 = vpop.f32.mrb[0].mxu0
      %v715 = vadd.f32 %v589, %v714
      %v716 = vpop.f32.mrb[0].mxu0
      %717 = vmatprep.mubr.bf16.mxu0 0
      %718 = vmatmul.mubr.bf16.gmra.mrb[0].mxu0 %v616
      %v719 = vpop.f32.mrb[0].mxu0
      %v720 = vadd.f32 %v594, %v719
      %v721 = vpop.f32.mrb[0].mxu0
      %v722 = vpop.f32.mrb[0].mxu0
      %v723 = vadd.f32 %v597, %v722
      %v724 = vpop.f32.mrb[0].mxu0
      %725 = vdwg.mxu0
      %s726 = scalar_lea.vmem %s2, 4
      %v727 = vld [vmem:[%s726] sm:$0x3]
      %vm728 = vcmask 1046528
      %v729 = vrot.slane %v359, 1
      %v730 = vrot.slane %v360, 1
      %v731 = vsel %vm728, %v729, %v730
      %v732 = vrot.slane %v361, 1
      %v733 = vsel %vm728, %v730, %v732
      %v734 = vrot.slane %v362, 1
      %v735 = vsel %vm728, %v732, %v734
      %v736 = vrot.slane %v363, 1
      %v737 = vsel %vm728, %v734, %v736
      %v738 = vrot.slane %v364, 1
      %v739 = vsel %vm728, %v736, %v738
      %v740 = vrot.slane %v365, 1
      %v741 = vsel %vm728, %v738, %v740
      %v742 = vrot.slane %v366, 1
      %v743 = vsel %vm728, %v740, %v742
      %v744 = vrot.slane %v367, 1
      %v745 = vsel %vm728, %v742, %v744
      %v746 = vrot.slane %v380, 1
      %v747 = vsel %vm728, %v744, %v746
      %v749 = vsel %vm463, %v731, 0
      %v752 = vsel %vm463, %v733, 0
      %v755 = vsel %vm463, %v735, 0
      %v758 = vsel %vm463, %v737, 0
      %v761 = vsel %vm463, %v739, 0
      %v764 = vsel %vm463, %v741, 0
      %v767 = vsel %vm463, %v743, 0
      %v770 = vsel %vm463, %v745, 0
      %v773 = vsel %vm463, %v747, 0
      %v776 = vsel %vm491, %v727, 0
      %778 = vmatprep.subr.bf16.mxu0 0
      %779 = vmatpush1.bf16.msra.mxu0 %v776
      %780 = vmatprep.subr.bf16.mxu0 0
      %781 = vmatpush1.bf16.msra.mxu0 0
      %782 = vmatprep.subr.bf16.mxu0 0
      %783 = vmatpush1.bf16.msra.mxu0 0
      %784 = vmatprep.subr.bf16.mxu0 0
      %785 = vmatpush1.bf16.msra.mxu0 0
      %786 = vmatprep.subr.bf16.mxu0 0
      %787 = vmatpush1.bf16.msra.mxu0 0
      %788 = vmatprep.subr.bf16.mxu0 0
      %789 = vmatpush1.bf16.msra.mxu0 0
      %790 = vmatprep.subr.bf16.mxu0 0
      %791 = vmatpush1.bf16.msra.mxu0 0
      %792 = vmatprep.subr.bf16.mxu0 0
      %793 = vmatpush1.bf16.msra.mxu0 0
      %794 = vmatprep.subr.bf16.mxu0 0
      %795 = vmatpush1.bf16.msra.mxu0 0
      %796 = vmatprep.subr.bf16.mxu0 0
      %797 = vmatpush1.bf16.msra.mxu0 0
      %798 = vmatprep.subr.bf16.mxu0 0
      %799 = vmatpush1.bf16.msra.mxu0 0
      %800 = vmatprep.subr.bf16.mxu0 0
      %801 = vmatpush1.bf16.msra.mxu0 0
      %802 = vmatprep.subr.bf16.mxu0 0
      %803 = vmatpush1.bf16.msra.mxu0 0
      %804 = vmatprep.subr.bf16.mxu0 0
      %805 = vmatpush1.bf16.msra.mxu0 0
      %806 = vmatprep.subr.bf16.mxu0 0
      %807 = vmatpush1.bf16.msra.mxu0 0
      %808 = vmatprep.subr.bf16.mxu0 0
      %809 = vmatpush1.bf16.msra.mxu0 0
      %810 = vmatprep.mubr.bf16.mxu0 0
      %811 = vmatmul.mubr.bf16.gmra.mrb[0].mxu0 %v749
      %v812 = vpop.f32.mrb[0].mxu0
      %v813 = vadd.f32 0.0, %v812
      %v814 = vpop.f32.mrb[0].mxu0
      %v815 = vpop.f32.mrb[0].mxu0
      %v816 = vadd.f32 0.0, %v815
      %v817 = vpop.f32.mrb[0].mxu0
      %818 = vmatprep.mubr.bf16.mxu0 0
      %819 = vmatmul.mubr.bf16.gmra.mrb[0].mxu0 %v752
      %v820 = vpop.f32.mrb[0].mxu0
      %v821 = vadd.f32 0.0, %v820
      %v822 = vpop.f32.mrb[0].mxu0
      %v823 = vpop.f32.mrb[0].mxu0
      %v824 = vadd.f32 0.0, %v823
      %v825 = vpop.f32.mrb[0].mxu0
      %826 = vmatprep.mubr.bf16.mxu0 0
      %827 = vmatmul.mubr.bf16.gmra.mrb[0].mxu0 %v755
      %v828 = vpop.f32.mrb[0].mxu0
      %v829 = vadd.f32 0.0, %v828
      %v830 = vpop.f32.mrb[0].mxu0
      %v831 = vpop.f32.mrb[0].mxu0
      %v832 = vadd.f32 0.0, %v831
      %v833 = vpop.f32.mrb[0].mxu0
      %834 = vmatprep.mubr.bf16.mxu0 0
      %835 = vmatmul.mubr.bf16.gmra.mrb[0].mxu0 %v758
      %v836 = vpop.f32.mrb[0].mxu0
      %v837 = vadd.f32 0.0, %v836
      %v838 = vpop.f32.mrb[0].mxu0
      %v839 = vpop.f32.mrb[0].mxu0
      %v840 = vadd.f32 0.0, %v839
      %v841 = vpop.f32.mrb[0].mxu0
      %842 = vmatprep.mubr.bf16.mxu0 0
      %843 = vmatmul.mubr.bf16.gmra.mrb[0].mxu0 %v761
      %v844 = vpop.f32.mrb[0].mxu0
      %v845 = vadd.f32 0.0, %v844
      %v846 = vpop.f32.mrb[0].mxu0
      %v847 = vpop.f32.mrb[0].mxu0
      %v848 = vadd.f32 0.0, %v847
      %v849 = vpop.f32.mrb[0].mxu0
      %850 = vmatprep.mubr.bf16.mxu0 0
      %851 = vmatmul.mubr.bf16.gmra.mrb[0].mxu0 %v764
      %v852 = vpop.f32.mrb[0].mxu0
      %v853 = vadd.f32 0.0, %v852
      %v854 = vpop.f32.mrb[0].mxu0
      %v855 = vpop.f32.mrb[0].mxu0
      %v856 = vadd.f32 0.0, %v855
      %v857 = vpop.f32.mrb[0].mxu0
      %858 = vmatprep.mubr.bf16.mxu0 0
      %859 = vmatmul.mubr.bf16.gmra.mrb[0].mxu0 %v767
      %v860 = vpop.f32.mrb[0].mxu0
      %v861 = vadd.f32 0.0, %v860
      %v862 = vpop.f32.mrb[0].mxu0
      %v863 = vpop.f32.mrb[0].mxu0
      %v864 = vadd.f32 0.0, %v863
      %v865 = vpop.f32.mrb[0].mxu0
      %866 = vmatprep.mubr.bf16.mxu0 0
      %867 = vmatmul.mubr.bf16.gmra.mrb[0].mxu0 %v770
      %v868 = vpop.f32.mrb[0].mxu0
      %v869 = vadd.f32 0.0, %v868
      %v870 = vpop.f32.mrb[0].mxu0
      %v871 = vpop.f32.mrb[0].mxu0
      %v872 = vadd.f32 0.0, %v871
      %v873 = vpop.f32.mrb[0].mxu0
      %874 = vmatprep.mubr.bf16.mxu0 0
      %875 = vmatmul.mubr.bf16.gmra.mrb[0].mxu0 %v773
      %v876 = vpop.f32.mrb[0].mxu0
      %v877 = vadd.f32 0.0, %v876
      %v878 = vpop.f32.mrb[0].mxu0
      %v879 = vpop.f32.mrb[0].mxu0
      %v880 = vadd.f32 0.0, %v879
      %v881 = vpop.f32.mrb[0].mxu0
      %882 = vdwg.mxu0
      %v883 = vadd.f32 %v656, %v813
      %v884 = vadd.f32 %v659, %v816
      %v885 = vadd.f32 %v664, %v821
      %v886 = vadd.f32 %v667, %v824
      %v887 = vadd.f32 %v672, %v829
      %v888 = vadd.f32 %v675, %v832
      %v889 = vadd.f32 %v680, %v837
      %v890 = vadd.f32 %v683, %v840
      %v891 = vadd.f32 %v688, %v845
      %v892 = vadd.f32 %v691, %v848
      %v893 = vadd.f32 %v696, %v853
      %v894 = vadd.f32 %v699, %v856
      %v895 = vadd.f32 %v704, %v861
      %v896 = vadd.f32 %v707, %v864
      %v897 = vadd.f32 %v712, %v869
      %v898 = vadd.f32 %v715, %v872
      %v899 = vadd.f32 %v720, %v877
      %v900 = vadd.f32 %v723, %v880
      %s901 = scalar_lea.vmem %s2, 6
      %v902 = vld [vmem:[%s901] sm:$0x3]
      %v903 = vrot.slane %v381, 1
      %v904 = vsel %vm728, %v746, %v903
      %v906 = vsel %vm463, %v904, 0
      %v909 = vsel %vm491, %v902, 0
      %911 = vmatprep.subr.bf16.mxu0 0
      %912 = vmatpush1.bf16.msra.mxu0 %v909
      %913 = vmatprep.subr.bf16.mxu0 0
      %914 = vmatpush1.bf16.msra.mxu0 0
      %915 = vmatprep.subr.bf16.mxu0 0
      %916 = vmatpush1.bf16.msra.mxu0 0
      %917 = vmatprep.subr.bf16.mxu0 0
      %918 = vmatpush1.bf16.msra.mxu0 0
      %919 = vmatprep.subr.bf16.mxu0 0
      %920 = vmatpush1.bf16.msra.mxu0 0
      %921 = vmatprep.subr.bf16.mxu0 0
      %922 = vmatpush1.bf16.msra.mxu0 0
      %923 = vmatprep.subr.bf16.mxu0 0
      %924 = vmatpush1.bf16.msra.mxu0 0
      %925 = vmatprep.subr.bf16.mxu0 0
      %926 = vmatpush1.bf16.msra.mxu0 0
      %927 = vmatprep.subr.bf16.mxu0 0
      %928 = vmatpush1.bf16.msra.mxu0 0
      %929 = vmatprep.subr.bf16.mxu0 0
      %930 = vmatpush1.bf16.msra.mxu0 0
      %931 = vmatprep.subr.bf16.mxu0 0
      %932 = vmatpush1.bf16.msra.mxu0 0
      %933 = vmatprep.subr.bf16.mxu0 0
      %934 = vmatpush1.bf16.msra.mxu0 0
      %935 = vmatprep.subr.bf16.mxu0 0
      %936 = vmatpush1.bf16.msra.mxu0 0
      %937 = vmatprep.subr.bf16.mxu0 0
      %938 = vmatpush1.bf16.msra.mxu0 0
      %939 = vmatprep.subr.bf16.mxu0 0
      %940 = vmatpush1.bf16.msra.mxu0 0
      %941 = vmatprep.subr.bf16.mxu0 0
      %942 = vmatpush1.bf16.msra.mxu0 0
      %943 = vmatprep.mubr.bf16.mxu0 0
      %944 = vmatmul.mubr.bf16.gmra.mrb[0].mxu0 %v752
      %v945 = vpop.f32.mrb[0].mxu0
      %v946 = vadd.f32 0.0, %v945
      %v947 = vpop.f32.mrb[0].mxu0
      %v948 = vpop.f32.mrb[0].mxu0
      %v949 = vadd.f32 0.0, %v948
      %v950 = vpop.f32.mrb[0].mxu0
      %951 = vmatprep.mubr.bf16.mxu0 0
      %952 = vmatmul.mubr.bf16.gmra.mrb[0].mxu0 %v755
      %v953 = vpop.f32.mrb[0].mxu0
      %v954 = vadd.f32 0.0, %v953
      %v955 = vpop.f32.mrb[0].mxu0
      %v956 = vpop.f32.mrb[0].mxu0
      %v957 = vadd.f32 0.0, %v956
      %v958 = vpop.f32.mrb[0].mxu0
      %959 = vmatprep.mubr.bf16.mxu0 0
      %960 = vmatmul.mubr.bf16.gmra.mrb[0].mxu0 %v758
      %v961 = vpop.f32.mrb[0].mxu0
      %v962 = vadd.f32 0.0, %v961
      %v963 = vpop.f32.mrb[0].mxu0
      %v964 = vpop.f32.mrb[0].mxu0
      %v965 = vadd.f32 0.0, %v964
      %v966 = vpop.f32.mrb[0].mxu0
      %967 = vmatprep.mubr.bf16.mxu0 0
      %968 = vmatmul.mubr.bf16.gmra.mrb[0].mxu0 %v761
      %v969 = vpop.f32.mrb[0].mxu0
      %v970 = vadd.f32 0.0, %v969
      %v971 = vpop.f32.mrb[0].mxu0
      %v972 = vpop.f32.mrb[0].mxu0
      %v973 = vadd.f32 0.0, %v972
      %v974 = vpop.f32.mrb[0].mxu0
      %975 = vmatprep.mubr.bf16.mxu0 0
      %976 = vmatmul.mubr.bf16.gmra.mrb[0].mxu0 %v764
      %v977 = vpop.f32.mrb[0].mxu0
      %v978 = vadd.f32 0.0, %v977
      %v979 = vpop.f32.mrb[0].mxu0
      %v980 = vpop.f32.mrb[0].mxu0
      %v981 = vadd.f32 0.0, %v980
      %v982 = vpop.f32.mrb[0].mxu0
      %983 = vmatprep.mubr.bf16.mxu0 0
      %984 = vmatmul.mubr.bf16.gmra.mrb[0].mxu0 %v767
      %v985 = vpop.f32.mrb[0].mxu0
      %v986 = vadd.f32 0.0, %v985
      %v987 = vpop.f32.mrb[0].mxu0
      %v988 = vpop.f32.mrb[0].mxu0
      %v989 = vadd.f32 0.0, %v988
      %v990 = vpop.f32.mrb[0].mxu0
      %991 = vmatprep.mubr.bf16.mxu0 0
      %992 = vmatmul.mubr.bf16.gmra.mrb[0].mxu0 %v770
      %v993 = vpop.f32.mrb[0].mxu0
      %v994 = vadd.f32 0.0, %v993
      %v995 = vpop.f32.mrb[0].mxu0
      %v996 = vpop.f32.mrb[0].mxu0
      %v997 = vadd.f32 0.0, %v996
      %v998 = vpop.f32.mrb[0].mxu0
      %999 = vmatprep.mubr.bf16.mxu0 0
      %1000 = vmatmul.mubr.bf16.gmra.mrb[0].mxu0 %v773
      %v1001 = vpop.f32.mrb[0].mxu0
      %v1002 = vadd.f32 0.0, %v1001
      %v1003 = vpop.f32.mrb[0].mxu0
      %v1004 = vpop.f32.mrb[0].mxu0
      %v1005 = vadd.f32 0.0, %v1004
      %v1006 = vpop.f32.mrb[0].mxu0
      %1007 = vmatprep.mubr.bf16.mxu0 0
      %1008 = vmatmul.mubr.bf16.gmra.mrb[0].mxu0 %v906
      %v1009 = vpop.f32.mrb[0].mxu0
      %v1010 = vadd.f32 0.0, %v1009
      %v1011 = vpop.f32.mrb[0].mxu0
      %v1012 = vpop.f32.mrb[0].mxu0
      %v1013 = vadd.f32 0.0, %v1012
      %v1014 = vpop.f32.mrb[0].mxu0
      %1015 = vdwg.mxu0
      %v1016 = vadd.f32 %v883, %v946
      %v1017 = vadd.f32 %v884, %v949
      %v1018 = vadd.f32 %v885, %v954
      %v1019 = vadd.f32 %v886, %v957
      %v1020 = vadd.f32 %v887, %v962
      %v1021 = vadd.f32 %v888, %v965
      %v1022 = vadd.f32 %v889, %v970
      %v1023 = vadd.f32 %v890, %v973
      %v1024 = vadd.f32 %v891, %v978
      %v1025 = vadd.f32 %v892, %v981
      %v1026 = vadd.f32 %v893, %v986
      %v1027 = vadd.f32 %v894, %v989
      %v1028 = vadd.f32 %v895, %v994
      %v1029 = vadd.f32 %v896, %v997
      %v1030 = vadd.f32 %v897, %v1002
      %v1031 = vadd.f32 %v898, %v1005
      %v1032 = vadd.f32 %v899, %v1010
      %v1033 = vadd.f32 %v900, %v1013
      %s1034 = scalar_lea.vmem %s2, 8
      %v1035 = vld [vmem:[%s1034] sm:$0x3]
      %vm1036 = vsmask.f32 6400
      %v1037 = vrot.slane %v399, 1
      %v1038 = vrot.slane %v395, 2
      %v1039 = vor.u32 %v1037, %v1038
      %v1040 = vrot.slane %v407, 1
      %v1041 = vrot.slane %v403, 2
      %v1042 = vor.u32 %v1040, %v1041
      %v1043 = vsel %vm1036, %v1039, %v1042
      %v1044 = vrot.slane %v415, 1
      %v1045 = vrot.slane %v411, 2
      %v1046 = vor.u32 %v1044, %v1045
      %v1047 = vsel %vm1036, %v1042, %v1046
      %v1048 = vrot.slane %v423, 1
      %v1049 = vrot.slane %v419, 2
      %v1050 = vor.u32 %v1048, %v1049
      %v1051 = vsel %vm1036, %v1046, %v1050
      %v1052 = vrot.slane %v431, 1
      %v1053 = vrot.slane %v427, 2
      %v1054 = vor.u32 %v1052, %v1053
      %v1055 = vsel %vm1036, %v1050, %v1054
      %v1056 = vrot.slane %v439, 1
      %v1057 = vrot.slane %v435, 2
      %v1058 = vor.u32 %v1056, %v1057
      %v1059 = vsel %vm1036, %v1054, %v1058
      %v1060 = vrot.slane %v447, 1
      %v1061 = vrot.slane %v443, 2
      %v1062 = vor.u32 %v1060, %v1061
      %v1063 = vsel %vm1036, %v1058, %v1062
      %v1064 = vrot.slane %v455, 1
      %v1065 = vrot.slane %v451, 2
      %v1066 = vor.u32 %v1064, %v1065
      %v1067 = vsel %vm1036, %v1062, %v1066
      %v1068 = vshrl.u32 %v380, 16
      %v1070 = vrot.slane %v1068, 1
      %v1071 = vrot.slane %v459, 2
      %v1072 = vor.u32 %v1070, %v1071
      %v1073 = vsel %vm1036, %v1066, %v1072
      %v1075 = vshrl.u32 %v381, 16
      %v1077 = vrot.slane %v1075, 1
      %v1078 = vshll.u32 %v381, 16
      %v1080 = vrot.slane %v1078, 2
      %v1081 = vor.u32 %v1077, %v1080
      %v1082 = vsel %vm1036, %v1072, %v1081
      %v1084 = vsel %vm463, %v1043, 0
      %v1087 = vsel %vm463, %v1047, 0
      %v1090 = vsel %vm463, %v1051, 0
      %v1093 = vsel %vm463, %v1055, 0
      %v1096 = vsel %vm463, %v1059, 0
      %v1099 = vsel %vm463, %v1063, 0
      %v1102 = vsel %vm463, %v1067, 0
      %v1105 = vsel %vm463, %v1073, 0
      %v1108 = vsel %vm463, %v1082, 0
      %v1111 = vsel %vm491, %v1035, 0
      %1113 = vmatprep.subr.bf16.mxu0 0
      %1114 = vmatpush1.bf16.msra.mxu0 %v1111
      %1115 = vmatprep.subr.bf16.mxu0 0
      %1116 = vmatpush1.bf16.msra.mxu0 0
      %1117 = vmatprep.subr.bf16.mxu0 0
      %1118 = vmatpush1.bf16.msra.mxu0 0
      %1119 = vmatprep.subr.bf16.mxu0 0
      %1120 = vmatpush1.bf16.msra.mxu0 0
      %1121 = vmatprep.subr.bf16.mxu0 0
      %1122 = vmatpush1.bf16.msra.mxu0 0
      %1123 = vmatprep.subr.bf16.mxu0 0
      %1124 = vmatpush1.bf16.msra.mxu0 0
      %1125 = vmatprep.subr.bf16.mxu0 0
      %1126 = vmatpush1.bf16.msra.mxu0 0
      %1127 = vmatprep.subr.bf16.mxu0 0
      %1128 = vmatpush1.bf16.msra.mxu0 0
      %1129 = vmatprep.subr.bf16.mxu0 0
      %1130 = vmatpush1.bf16.msra.mxu0 0
      %1131 = vmatprep.subr.bf16.mxu0 0
      %1132 = vmatpush1.bf16.msra.mxu0 0
      %1133 = vmatprep.subr.bf16.mxu0 0
      %1134 = vmatpush1.bf16.msra.mxu0 0
      %1135 = vmatprep.subr.bf16.mxu0 0
      %1136 = vmatpush1.bf16.msra.mxu0 0
      %1137 = vmatprep.subr.bf16.mxu0 0
      %1138 = vmatpush1.bf16.msra.mxu0 0
      %1139 = vmatprep.subr.bf16.mxu0 0
      %1140 = vmatpush1.bf16.msra.mxu0 0
      %1141 = vmatprep.subr.bf16.mxu0 0
      %1142 = vmatpush1.bf16.msra.mxu0 0
      %1143 = vmatprep.subr.bf16.mxu0 0
      %1144 = vmatpush1.bf16.msra.mxu0 0
      %1145 = vmatprep.mubr.bf16.mxu0 0
      %1146 = vmatmul.mubr.bf16.gmra.mrb[0].mxu0 %v1084
      %v1147 = vpop.f32.mrb[0].mxu0
      %v1148 = vadd.f32 0.0, %v1147
      %v1149 = vpop.f32.mrb[0].mxu0
      %v1150 = vpop.f32.mrb[0].mxu0
      %v1151 = vadd.f32 0.0, %v1150
      %v1152 = vpop.f32.mrb[0].mxu0
      %1153 = vmatprep.mubr.bf16.mxu0 0
      %1154 = vmatmul.mubr.bf16.gmra.mrb[0].mxu0 %v1087
      %v1155 = vpop.f32.mrb[0].mxu0
      %v1156 = vadd.f32 0.0, %v1155
      %v1157 = vpop.f32.mrb[0].mxu0
      %v1158 = vpop.f32.mrb[0].mxu0
      %v1159 = vadd.f32 0.0, %v1158
      %v1160 = vpop.f32.mrb[0].mxu0
      %1161 = vmatprep.mubr.bf16.mxu0 0
      %1162 = vmatmul.mubr.bf16.gmra.mrb[0].mxu0 %v1090
      %v1163 = vpop.f32.mrb[0].mxu0
      %v1164 = vadd.f32 0.0, %v1163
      %v1165 = vpop.f32.mrb[0].mxu0
      %v1166 = vpop.f32.mrb[0].mxu0
      %v1167 = vadd.f32 0.0, %v1166
      %v1168 = vpop.f32.mrb[0].mxu0
      %1169 = vmatprep.mubr.bf16.mxu0 0
      %1170 = vmatmul.mubr.bf16.gmra.mrb[0].mxu0 %v1093
      %v1171 = vpop.f32.mrb[0].mxu0
      %v1172 = vadd.f32 0.0, %v1171
      %v1173 = vpop.f32.mrb[0].mxu0
      %v1174 = vpop.f32.mrb[0].mxu0
      %v1175 = vadd.f32 0.0, %v1174
      %v1176 = vpop.f32.mrb[0].mxu0
      %1177 = vmatprep.mubr.bf16.mxu0 0
      %1178 = vmatmul.mubr.bf16.gmra.mrb[0].mxu0 %v1096
      %v1179 = vpop.f32.mrb[0].mxu0
      %v1180 = vadd.f32 0.0, %v1179
      %v1181 = vpop.f32.mrb[0].mxu0
      %v1182 = vpop.f32.mrb[0].mxu0
      %v1183 = vadd.f32 0.0, %v1182
      %v1184 = vpop.f32.mrb[0].mxu0
      %1185 = vmatprep.mubr.bf16.mxu0 0
      %1186 = vmatmul.mubr.bf16.gmra.mrb[0].mxu0 %v1099
      %v1187 = vpop.f32.mrb[0].mxu0
      %v1188 = vadd.f32 0.0, %v1187
      %v1189 = vpop.f32.mrb[0].mxu0
      %v1190 = vpop.f32.mrb[0].mxu0
      %v1191 = vadd.f32 0.0, %v1190
      %v1192 = vpop.f32.mrb[0].mxu0
      %1193 = vmatprep.mubr.bf16.mxu0 0
      %1194 = vmatmul.mubr.bf16.gmra.mrb[0].mxu0 %v1102
      %v1195 = vpop.f32.mrb[0].mxu0
      %v1196 = vadd.f32 0.0, %v1195
      %v1197 = vpop.f32.mrb[0].mxu0
      %v1198 = vpop.f32.mrb[0].mxu0
      %v1199 = vadd.f32 0.0, %v1198
      %v1200 = vpop.f32.mrb[0].mxu0
      %1201 = vmatprep.mubr.bf16.mxu0 0
      %1202 = vmatmul.mubr.bf16.gmra.mrb[0].mxu0 %v1105
      %v1203 = vpop.f32.mrb[0].mxu0
      %v1204 = vadd.f32 0.0, %v1203
      %v1205 = vpop.f32.mrb[0].mxu0
      %v1206 = vpop.f32.mrb[0].mxu0
      %v1207 = vadd.f32 0.0, %v1206
      %v1208 = vpop.f32.mrb[0].mxu0
      %1209 = vmatprep.mubr.bf16.mxu0 0
      %1210 = vmatmul.mubr.bf16.gmra.mrb[0].mxu0 %v1108
      %v1211 = vpop.f32.mrb[0].mxu0
      %v1212 = vadd.f32 0.0, %v1211
      %v1213 = vpop.f32.mrb[0].mxu0
      %v1214 = vpop.f32.mrb[0].mxu0
      %v1215 = vadd.f32 0.0, %v1214
      %v1216 = vpop.f32.mrb[0].mxu0
      %1217 = vdwg.mxu0
      %v1218 = vadd.f32 %v1016, %v1148
      %v1219 = vadd.f32 %v1017, %v1151
      %v1220 = vadd.f32 %v1018, %v1156
      %v1221 = vadd.f32 %v1019, %v1159
      %v1222 = vadd.f32 %v1020, %v1164
      %v1223 = vadd.f32 %v1021, %v1167
      %v1224 = vadd.f32 %v1022, %v1172
      %v1225 = vadd.f32 %v1023, %v1175
      %v1226 = vadd.f32 %v1024, %v1180
      %v1227 = vadd.f32 %v1025, %v1183
      %v1228 = vadd.f32 %v1026, %v1188
      %v1229 = vadd.f32 %v1027, %v1191
      %v1230 = vadd.f32 %v1028, %v1196
      %v1231 = vadd.f32 %v1029, %v1199
      %v1232 = vadd.f32 %v1030, %v1204
      %v1233 = vadd.f32 %v1031, %v1207
      %v1234 = vadd.f32 %v1032, %v1212
      %v1235 = vadd.f32 %v1033, %v1215
      %s1236 = scalar_lea.vmem %s2, 10
      %v1237 = vld [vmem:[%s1236] sm:$0x3]
      %vm1238 = vcmask 1045504
      %v1239 = vrot.slane %v360, 2
      %v1240 = vrot.slane %v361, 2
      %v1241 = vsel %vm1238, %v1239, %v1240
      %v1242 = vrot.slane %v362, 2
      %v1243 = vsel %vm1238, %v1240, %v1242
      %v1244 = vrot.slane %v363, 2
      %v1245 = vsel %vm1238, %v1242, %v1244
      %v1246 = vrot.slane %v364, 2
      %v1247 = vsel %vm1238, %v1244, %v1246
      %v1248 = vrot.slane %v365, 2
      %v1249 = vsel %vm1238, %v1246, %v1248
      %v1250 = vrot.slane %v366, 2
      %v1251 = vsel %vm1238, %v1248, %v1250
      %v1252 = vrot.slane %v367, 2
      %v1253 = vsel %vm1238, %v1250, %v1252
      %v1254 = vrot.slane %v380, 2
      %v1255 = vsel %vm1238, %v1252, %v1254
      %v1256 = vrot.slane %v381, 2
      %v1257 = vsel %vm1238, %v1254, %v1256
      %v1259 = vsel %vm463, %v1241, 0
      %v1262 = vsel %vm463, %v1243, 0
      %v1265 = vsel %vm463, %v1245, 0
      %v1268 = vsel %vm463, %v1247, 0
      %v1271 = vsel %vm463, %v1249, 0
      %v1274 = vsel %vm463, %v1251, 0
      %v1277 = vsel %vm463, %v1253, 0
      %v1280 = vsel %vm463, %v1255, 0
      %v1283 = vsel %vm463, %v1257, 0
      %v1286 = vsel %vm491, %v1237, 0
      %1288 = vmatprep.subr.bf16.mxu0 0
      %1289 = vmatpush1.bf16.msra.mxu0 %v1286
      %1290 = vmatprep.subr.bf16.mxu0 0
      %1291 = vmatpush1.bf16.msra.mxu0 0
      %1292 = vmatprep.subr.bf16.mxu0 0
      %1293 = vmatpush1.bf16.msra.mxu0 0
      %1294 = vmatprep.subr.bf16.mxu0 0
      %1295 = vmatpush1.bf16.msra.mxu0 0
      %1296 = vmatprep.subr.bf16.mxu0 0
      %1297 = vmatpush1.bf16.msra.mxu0 0
      %1298 = vmatprep.subr.bf16.mxu0 0
      %1299 = vmatpush1.bf16.msra.mxu0 0
      %1300 = vmatprep.subr.bf16.mxu0 0
      %1301 = vmatpush1.bf16.msra.mxu0 0
      %1302 = vmatprep.subr.bf16.mxu0 0
      %1303 = vmatpush1.bf16.msra.mxu0 0
      %1304 = vmatprep.subr.bf16.mxu0 0
      %1305 = vmatpush1.bf16.msra.mxu0 0
      %1306 = vmatprep.subr.bf16.mxu0 0
      %1307 = vmatpush1.bf16.msra.mxu0 0
      %1308 = vmatprep.subr.bf16.mxu0 0
      %1309 = vmatpush1.bf16.msra.mxu0 0
      %1310 = vmatprep.subr.bf16.mxu0 0
      %1311 = vmatpush1.bf16.msra.mxu0 0
      %1312 = vmatprep.subr.bf16.mxu0 0
      %1313 = vmatpush1.bf16.msra.mxu0 0
      %1314 = vmatprep.subr.bf16.mxu0 0
      %1315 = vmatpush1.bf16.msra.mxu0 0
      %1316 = vmatprep.subr.bf16.mxu0 0
      %1317 = vmatpush1.bf16.msra.mxu0 0
      %1318 = vmatprep.subr.bf16.mxu0 0
      %1319 = vmatpush1.bf16.msra.mxu0 0
      %1320 = vmatprep.mubr.bf16.mxu0 0
      %1321 = vmatmul.mubr.bf16.gmra.mrb[0].mxu0 %v1259
      %v1322 = vpop.f32.mrb[0].mxu0
      %v1323 = vadd.f32 0.0, %v1322
      %v1324 = vpop.f32.mrb[0].mxu0
      %v1325 = vpop.f32.mrb[0].mxu0
      %v1326 = vadd.f32 0.0, %v1325
      %v1327 = vpop.f32.mrb[0].mxu0
      %1328 = vmatprep.mubr.bf16.mxu0 0
      %1329 = vmatmul.mubr.bf16.gmra.mrb[0].mxu0 %v1262
      %v1330 = vpop.f32.mrb[0].mxu0
      %v1331 = vadd.f32 0.0, %v1330
      %v1332 = vpop.f32.mrb[0].mxu0
      %v1333 = vpop.f32.mrb[0].mxu0
      %v1334 = vadd.f32 0.0, %v1333
      %v1335 = vpop.f32.mrb[0].mxu0
      %1336 = vmatprep.mubr.bf16.mxu0 0
      %1337 = vmatmul.mubr.bf16.gmra.mrb[0].mxu0 %v1265
      %v1338 = vpop.f32.mrb[0].mxu0
      %v1339 = vadd.f32 0.0, %v1338
      %v1340 = vpop.f32.mrb[0].mxu0
      %v1341 = vpop.f32.mrb[0].mxu0
      %v1342 = vadd.f32 0.0, %v1341
      %v1343 = vpop.f32.mrb[0].mxu0
      %1344 = vmatprep.mubr.bf16.mxu0 0
      %1345 = vmatmul.mubr.bf16.gmra.mrb[0].mxu0 %v1268
      %v1346 = vpop.f32.mrb[0].mxu0
      %v1347 = vadd.f32 0.0, %v1346
      %v1348 = vpop.f32.mrb[0].mxu0
      %v1349 = vpop.f32.mrb[0].mxu0
      %v1350 = vadd.f32 0.0, %v1349
      %v1351 = vpop.f32.mrb[0].mxu0
      %1352 = vmatprep.mubr.bf16.mxu0 0
      %1353 = vmatmul.mubr.bf16.gmra.mrb[0].mxu0 %v1271
      %v1354 = vpop.f32.mrb[0].mxu0
      %v1355 = vadd.f32 0.0, %v1354
      %v1356 = vpop.f32.mrb[0].mxu0
      %v1357 = vpop.f32.mrb[0].mxu0
      %v1358 = vadd.f32 0.0, %v1357
      %v1359 = vpop.f32.mrb[0].mxu0
      %1360 = vmatprep.mubr.bf16.mxu0 0
      %1361 = vmatmul.mubr.bf16.gmra.mrb[0].mxu0 %v1274
      %v1362 = vpop.f32.mrb[0].mxu0
      %v1363 = vadd.f32 0.0, %v1362
      %v1364 = vpop.f32.mrb[0].mxu0
      %v1365 = vpop.f32.mrb[0].mxu0
      %v1366 = vadd.f32 0.0, %v1365
      %v1367 = vpop.f32.mrb[0].mxu0
      %1368 = vmatprep.mubr.bf16.mxu0 0
      %1369 = vmatmul.mubr.bf16.gmra.mrb[0].mxu0 %v1277
      %v1370 = vpop.f32.mrb[0].mxu0
      %v1371 = vadd.f32 0.0, %v1370
      %v1372 = vpop.f32.mrb[0].mxu0
      %v1373 = vpop.f32.mrb[0].mxu0
      %v1374 = vadd.f32 0.0, %v1373
      %v1375 = vpop.f32.mrb[0].mxu0
      %1376 = vmatprep.mubr.bf16.mxu0 0
      %1377 = vmatmul.mubr.bf16.gmra.mrb[0].mxu0 %v1280
      %v1378 = vpop.f32.mrb[0].mxu0
      %v1379 = vadd.f32 0.0, %v1378
      %v1380 = vpop.f32.mrb[0].mxu0
      %v1381 = vpop.f32.mrb[0].mxu0
      %v1382 = vadd.f32 0.0, %v1381
      %v1383 = vpop.f32.mrb[0].mxu0
      %1384 = vmatprep.mubr.bf16.mxu0 0
      %1385 = vmatmul.mubr.bf16.gmra.mrb[0].mxu0 %v1283
      %v1386 = vpop.f32.mrb[0].mxu0
      %v1387 = vadd.f32 0.0, %v1386
      %v1388 = vpop.f32.mrb[0].mxu0
      %v1389 = vpop.f32.mrb[0].mxu0
      %v1390 = vadd.f32 0.0, %v1389
      %v1391 = vpop.f32.mrb[0].mxu0
      %1392 = vdwg.mxu0
      %v1393 = vadd.f32 %v1218, %v1323
      %v1394 = vadd.f32 %v1219, %v1326
      %v1395 = vadd.f32 %v1220, %v1331
      %v1396 = vadd.f32 %v1221, %v1334
      %v1397 = vadd.f32 %v1222, %v1339
      %v1398 = vadd.f32 %v1223, %v1342
      %v1399 = vadd.f32 %v1224, %v1347
      %v1400 = vadd.f32 %v1225, %v1350
      %v1401 = vadd.f32 %v1226, %v1355
      %v1402 = vadd.f32 %v1227, %v1358
      %v1403 = vadd.f32 %v1228, %v1363
      %v1404 = vadd.f32 %v1229, %v1366
      %v1405 = vadd.f32 %v1230, %v1371
      %v1406 = vadd.f32 %v1231, %v1374
      %v1407 = vadd.f32 %v1232, %v1379
      %v1408 = vadd.f32 %v1233, %v1382
      %v1409 = vadd.f32 %v1234, %v1387
      %v1410 = vadd.f32 %v1235, %v1390
      %s1411 = scalar_lea.vmem %s2, 12
      %v1412 = vld [vmem:[%s1411] sm:$0x3]
      %v1413 = vrot.slane %v382, 2
      %v1414 = vsel %vm1238, %v1256, %v1413
      %v1416 = vsel %vm463, %v1414, 0
      %v1419 = vsel %vm491, %v1412, 0
      %1421 = vmatprep.subr.bf16.mxu0 0
      %1422 = vmatpush1.bf16.msra.mxu0 %v1419
      %1423 = vmatprep.subr.bf16.mxu0 0
      %1424 = vmatpush1.bf16.msra.mxu0 0
      %1425 = vmatprep.subr.bf16.mxu0 0
      %1426 = vmatpush1.bf16.msra.mxu0 0
      %1427 = vmatprep.subr.bf16.mxu0 0
      %1428 = vmatpush1.bf16.msra.mxu0 0
      %1429 = vmatprep.subr.bf16.mxu0 0
      %1430 = vmatpush1.bf16.msra.mxu0 0
      %1431 = vmatprep.subr.bf16.mxu0 0
      %1432 = vmatpush1.bf16.msra.mxu0 0
      %1433 = vmatprep.subr.bf16.mxu0 0
      %1434 = vmatpush1.bf16.msra.mxu0 0
      %1435 = vmatprep.subr.bf16.mxu0 0
      %1436 = vmatpush1.bf16.msra.mxu0 0
      %1437 = vmatprep.subr.bf16.mxu0 0
      %1438 = vmatpush1.bf16.msra.mxu0 0
      %1439 = vmatprep.subr.bf16.mxu0 0
      %1440 = vmatpush1.bf16.msra.mxu0 0
      %1441 = vmatprep.subr.bf16.mxu0 0
      %1442 = vmatpush1.bf16.msra.mxu0 0
      %1443 = vmatprep.subr.bf16.mxu0 0
      %1444 = vmatpush1.bf16.msra.mxu0 0
      %1445 = vmatprep.subr.bf16.mxu0 0
      %1446 = vmatpush1.bf16.msra.mxu0 0
      %1447 = vmatprep.subr.bf16.mxu0 0
      %1448 = vmatpush1.bf16.msra.mxu0 0
      %1449 = vmatprep.subr.bf16.mxu0 0
      %1450 = vmatpush1.bf16.msra.mxu0 0
      %1451 = vmatprep.subr.bf16.mxu0 0
      %1452 = vmatpush1.bf16.msra.mxu0 0
      %1453 = vmatprep.mubr.bf16.mxu0 0
      %1454 = vmatmul.mubr.bf16.gmra.mrb[0].mxu0 %v1262
      %v1455 = vpop.f32.mrb[0].mxu0
      %v1456 = vadd.f32 0.0, %v1455
      %v1457 = vpop.f32.mrb[0].mxu0
      %v1458 = vpop.f32.mrb[0].mxu0
      %v1459 = vadd.f32 0.0, %v1458
      %v1460 = vpop.f32.mrb[0].mxu0
      %1461 = vmatprep.mubr.bf16.mxu0 0
      %1462 = vmatmul.mubr.bf16.gmra.mrb[0].mxu0 %v1265
      %v1463 = vpop.f32.mrb[0].mxu0
      %v1464 = vadd.f32 0.0, %v1463
      %v1465 = vpop.f32.mrb[0].mxu0
      %v1466 = vpop.f32.mrb[0].mxu0
      %v1467 = vadd.f32 0.0, %v1466
      %v1468 = vpop.f32.mrb[0].mxu0
      %1469 = vmatprep.mubr.bf16.mxu0 0
      %1470 = vmatmul.mubr.bf16.gmra.mrb[0].mxu0 %v1268
      %v1471 = vpop.f32.mrb[0].mxu0
      %v1472 = vadd.f32 0.0, %v1471
      %v1473 = vpop.f32.mrb[0].mxu0
      %v1474 = vpop.f32.mrb[0].mxu0
      %v1475 = vadd.f32 0.0, %v1474
      %v1476 = vpop.f32.mrb[0].mxu0
      %1477 = vmatprep.mubr.bf16.mxu0 0
      %1478 = vmatmul.mubr.bf16.gmra.mrb[0].mxu0 %v1271
      %v1479 = vpop.f32.mrb[0].mxu0
      %v1480 = vadd.f32 0.0, %v1479
      %v1481 = vpop.f32.mrb[0].mxu0
      %v1482 = vpop.f32.mrb[0].mxu0
      %v1483 = vadd.f32 0.0, %v1482
      %v1484 = vpop.f32.mrb[0].mxu0
      %1485 = vmatprep.mubr.bf16.mxu0 0
      %1486 = vmatmul.mubr.bf16.gmra.mrb[0].mxu0 %v1274
      %v1487 = vpop.f32.mrb[0].mxu0
      %v1488 = vadd.f32 0.0, %v1487
      %v1489 = vpop.f32.mrb[0].mxu0
      %v1490 = vpop.f32.mrb[0].mxu0
      %v1491 = vadd.f32 0.0, %v1490
      %v1492 = vpop.f32.mrb[0].mxu0
      %1493 = vmatprep.mubr.bf16.mxu0 0
      %1494 = vmatmul.mubr.bf16.gmra.mrb[0].mxu0 %v1277
      %v1495 = vpop.f32.mrb[0].mxu0
      %v1496 = vadd.f32 0.0, %v1495
      %v1497 = vpop.f32.mrb[0].mxu0
      %v1498 = vpop.f32.mrb[0].mxu0
      %v1499 = vadd.f32 0.0, %v1498
      %v1500 = vpop.f32.mrb[0].mxu0
      %1501 = vmatprep.mubr.bf16.mxu0 0
      %1502 = vmatmul.mubr.bf16.gmra.mrb[0].mxu0 %v1280
      %v1503 = vpop.f32.mrb[0].mxu0
      %v1504 = vadd.f32 0.0, %v1503
      %v1505 = vpop.f32.mrb[0].mxu0
      %v1506 = vpop.f32.mrb[0].mxu0
      %v1507 = vadd.f32 0.0, %v1506
      %v1508 = vpop.f32.mrb[0].mxu0
      %1509 = vmatprep.mubr.bf16.mxu0 0
      %1510 = vmatmul.mubr.bf16.gmra.mrb[0].mxu0 %v1283
      %v1511 = vpop.f32.mrb[0].mxu0
      %v1512 = vadd.f32 0.0, %v1511
      %v1513 = vpop.f32.mrb[0].mxu0
      %v1514 = vpop.f32.mrb[0].mxu0
      %v1515 = vadd.f32 0.0, %v1514
      %v1516 = vpop.f32.mrb[0].mxu0
      %1517 = vmatprep.mubr.bf16.mxu0 0
      %1518 = vmatmul.mubr.bf16.gmra.mrb[0].mxu0 %v1416
      %v1519 = vpop.f32.mrb[0].mxu0
      %v1520 = vadd.f32 0.0, %v1519
      %v1521 = vpop.f32.mrb[0].mxu0
      %v1522 = vpop.f32.mrb[0].mxu0
      %v1523 = vadd.f32 0.0, %v1522
      %v1524 = vpop.f32.mrb[0].mxu0
      %1525 = vdwg.mxu0
      %v1526 = vadd.f32 %v1393, %v1456
      %v1527 = vadd.f32 %v1394, %v1459
      %v1528 = vadd.f32 %v1395, %v1464
      %v1529 = vadd.f32 %v1396, %v1467
      %v1530 = vadd.f32 %v1397, %v1472
      %v1531 = vadd.f32 %v1398, %v1475
      %v1532 = vadd.f32 %v1399, %v1480
      %v1533 = vadd.f32 %v1400, %v1483
      %v1534 = vadd.f32 %v1401, %v1488
      %v1535 = vadd.f32 %v1402, %v1491
      %v1536 = vadd.f32 %v1403, %v1496
      %v1537 = vadd.f32 %v1404, %v1499
      %v1538 = vadd.f32 %v1405, %v1504
      %v1539 = vadd.f32 %v1406, %v1507
      %v1540 = vadd.f32 %v1407, %v1512
      %v1541 = vadd.f32 %v1408, %v1515
      %v1542 = vadd.f32 %v1409, %v1520
      %v1543 = vadd.f32 %v1410, %v1523
      %s1544 = scalar_lea.vmem %s2, 14
      %v1545 = vld [vmem:[%s1544] sm:$0x3]
      %vm1546 = vsmask.f32 5376
      %v1547 = vrot.slane %v407, 2
      %v1548 = vrot.slane %v403, 3
      %v1549 = vor.u32 %v1547, %v1548
      %v1550 = vrot.slane %v415, 2
      %v1551 = vrot.slane %v411, 3
      %v1552 = vor.u32 %v1550, %v1551
      %v1553 = vsel %vm1546, %v1549, %v1552
      %v1554 = vrot.slane %v423, 2
      %v1555 = vrot.slane %v419, 3
      %v1556 = vor.u32 %v1554, %v1555
      %v1557 = vsel %vm1546, %v1552, %v1556
      %v1558 = vrot.slane %v431, 2
      %v1559 = vrot.slane %v427, 3
      %v1560 = vor.u32 %v1558, %v1559
      %v1561 = vsel %vm1546, %v1556, %v1560
      %v1562 = vrot.slane %v439, 2
      %v1563 = vrot.slane %v435, 3
      %v1564 = vor.u32 %v1562, %v1563
      %v1565 = vsel %vm1546, %v1560, %v1564
      %v1566 = vrot.slane %v447, 2
      %v1567 = vrot.slane %v443, 3
      %v1568 = vor.u32 %v1566, %v1567
      %v1569 = vsel %vm1546, %v1564, %v1568
      %v1570 = vrot.slane %v455, 2
      %v1571 = vrot.slane %v451, 3
      %v1572 = vor.u32 %v1570, %v1571
      %v1573 = vsel %vm1546, %v1568, %v1572
      %v1574 = vrot.slane %v1068, 2
      %v1575 = vrot.slane %v459, 3
      %v1576 = vor.u32 %v1574, %v1575
      %v1577 = vsel %vm1546, %v1572, %v1576
      %v1578 = vrot.slane %v1075, 2
      %v1579 = vrot.slane %v1078, 3
      %v1580 = vor.u32 %v1578, %v1579
      %v1581 = vsel %vm1546, %v1576, %v1580
      %v1583 = vshrl.u32 %v382, 16
      %v1585 = vrot.slane %v1583, 2
      %v1586 = vshll.u32 %v382, 16
      %v1588 = vrot.slane %v1586, 3
      %v1589 = vor.u32 %v1585, %v1588
      %v1590 = vsel %vm1546, %v1580, %v1589
      %v1592 = vsel %vm463, %v1553, 0
      %v1595 = vsel %vm463, %v1557, 0
      %v1598 = vsel %vm463, %v1561, 0
      %v1601 = vsel %vm463, %v1565, 0
      %v1604 = vsel %vm463, %v1569, 0
      %v1607 = vsel %vm463, %v1573, 0
      %v1610 = vsel %vm463, %v1577, 0
      %v1613 = vsel %vm463, %v1581, 0
      %v1616 = vsel %vm463, %v1590, 0
      %v1619 = vsel %vm491, %v1545, 0
      %1621 = vmatprep.subr.bf16.mxu0 0
      %1622 = vmatpush1.bf16.msra.mxu0 %v1619
      %1623 = vmatprep.subr.bf16.mxu0 0
      %1624 = vmatpush1.bf16.msra.mxu0 0
      %1625 = vmatprep.subr.bf16.mxu0 0
      %1626 = vmatpush1.bf16.msra.mxu0 0
      %1627 = vmatprep.subr.bf16.mxu0 0
      %1628 = vmatpush1.bf16.msra.mxu0 0
      %1629 = vmatprep.subr.bf16.mxu0 0
      %1630 = vmatpush1.bf16.msra.mxu0 0
      %1631 = vmatprep.subr.bf16.mxu0 0
      %1632 = vmatpush1.bf16.msra.mxu0 0
      %1633 = vmatprep.subr.bf16.mxu0 0
      %1634 = vmatpush1.bf16.msra.mxu0 0
      %1635 = vmatprep.subr.bf16.mxu0 0
      %1636 = vmatpush1.bf16.msra.mxu0 0
      %1637 = vmatprep.subr.bf16.mxu0 0
      %1638 = vmatpush1.bf16.msra.mxu0 0
      %1639 = vmatprep.subr.bf16.mxu0 0
      %1640 = vmatpush1.bf16.msra.mxu0 0
      %1641 = vmatprep.subr.bf16.mxu0 0
      %1642 = vmatpush1.bf16.msra.mxu0 0
      %1643 = vmatprep.subr.bf16.mxu0 0
      %1644 = vmatpush1.bf16.msra.mxu0 0
      %1645 = vmatprep.subr.bf16.mxu0 0
      %1646 = vmatpush1.bf16.msra.mxu0 0
      %1647 = vmatprep.subr.bf16.mxu0 0
      %1648 = vmatpush1.bf16.msra.mxu0 0
      %1649 = vmatprep.subr.bf16.mxu0 0
      %1650 = vmatpush1.bf16.msra.mxu0 0
      %1651 = vmatprep.subr.bf16.mxu0 0
      %1652 = vmatpush1.bf16.msra.mxu0 0
      %1653 = vmatprep.mubr.bf16.mxu0 0
      %1654 = vmatmul.mubr.bf16.gmra.mrb[0].mxu0 %v1592
      %v1655 = vpop.f32.mrb[0].mxu0
      %v1656 = vadd.f32 0.0, %v1655
      %v1657 = vpop.f32.mrb[0].mxu0
      %v1658 = vpop.f32.mrb[0].mxu0
      %v1659 = vadd.f32 0.0, %v1658
      %v1660 = vpop.f32.mrb[0].mxu0
      %1661 = vmatprep.mubr.bf16.mxu0 0
      %1662 = vmatmul.mubr.bf16.gmra.mrb[0].mxu0 %v1595
      %v1663 = vpop.f32.mrb[0].mxu0
      %v1664 = vadd.f32 0.0, %v1663
      %v1665 = vpop.f32.mrb[0].mxu0
      %v1666 = vpop.f32.mrb[0].mxu0
      %v1667 = vadd.f32 0.0, %v1666
      %v1668 = vpop.f32.mrb[0].mxu0
      %1669 = vmatprep.mubr.bf16.mxu0 0
      %1670 = vmatmul.mubr.bf16.gmra.mrb[0].mxu0 %v1598
      %v1671 = vpop.f32.mrb[0].mxu0
      %v1672 = vadd.f32 0.0, %v1671
      %v1673 = vpop.f32.mrb[0].mxu0
      %v1674 = vpop.f32.mrb[0].mxu0
      %v1675 = vadd.f32 0.0, %v1674
      %v1676 = vpop.f32.mrb[0].mxu0
      %1677 = vmatprep.mubr.bf16.mxu0 0
      %1678 = vmatmul.mubr.bf16.gmra.mrb[0].mxu0 %v1601
      %v1679 = vpop.f32.mrb[0].mxu0
      %v1680 = vadd.f32 0.0, %v1679
      %v1681 = vpop.f32.mrb[0].mxu0
      %v1682 = vpop.f32.mrb[0].mxu0
      %v1683 = vadd.f32 0.0, %v1682
      %v1684 = vpop.f32.mrb[0].mxu0
      %1685 = vmatprep.mubr.bf16.mxu0 0
      %1686 = vmatmul.mubr.bf16.gmra.mrb[0].mxu0 %v1604
      %v1687 = vpop.f32.mrb[0].mxu0
      %v1688 = vadd.f32 0.0, %v1687
      %v1689 = vpop.f32.mrb[0].mxu0
      %v1690 = vpop.f32.mrb[0].mxu0
      %v1691 = vadd.f32 0.0, %v1690
      %v1692 = vpop.f32.mrb[0].mxu0
      %1693 = vmatprep.mubr.bf16.mxu0 0
      %1694 = vmatmul.mubr.bf16.gmra.mrb[0].mxu0 %v1607
      %v1695 = vpop.f32.mrb[0].mxu0
      %v1696 = vadd.f32 0.0, %v1695
      %v1697 = vpop.f32.mrb[0].mxu0
      %v1698 = vpop.f32.mrb[0].mxu0
      %v1699 = vadd.f32 0.0, %v1698
      %v1700 = vpop.f32.mrb[0].mxu0
      %1701 = vmatprep.mubr.bf16.mxu0 0
      %1702 = vmatmul.mubr.bf16.gmra.mrb[0].mxu0 %v1610
      %v1703 = vpop.f32.mrb[0].mxu0
      %v1704 = vadd.f32 0.0, %v1703
      %v1705 = vpop.f32.mrb[0].mxu0
      %v1706 = vpop.f32.mrb[0].mxu0
      %v1707 = vadd.f32 0.0, %v1706
      %v1708 = vpop.f32.mrb[0].mxu0
      %1709 = vmatprep.mubr.bf16.mxu0 0
      %1710 = vmatmul.mubr.bf16.gmra.mrb[0].mxu0 %v1613
      %v1711 = vpop.f32.mrb[0].mxu0
      %v1712 = vadd.f32 0.0, %v1711
      %v1713 = vpop.f32.mrb[0].mxu0
      %v1714 = vpop.f32.mrb[0].mxu0
      %v1715 = vadd.f32 0.0, %v1714
      %v1716 = vpop.f32.mrb[0].mxu0
      %1717 = vmatprep.mubr.bf16.mxu0 0
      %1718 = vmatmul.mubr.bf16.gmra.mrb[0].mxu0 %v1616
      %v1719 = vpop.f32.mrb[0].mxu0
      %v1720 = vadd.f32 0.0, %v1719
      %v1721 = vpop.f32.mrb[0].mxu0
      %v1722 = vpop.f32.mrb[0].mxu0
      %v1723 = vadd.f32 0.0, %v1722
      %v1724 = vpop.f32.mrb[0].mxu0
      %1725 = vdwg.mxu0
      %v1726 = vadd.f32 %v1526, %v1656
      %v1727 = vadd.f32 %v1527, %v1659
      %v1728 = vadd.f32 %v1528, %v1664
      %v1729 = vadd.f32 %v1529, %v1667
      %v1730 = vadd.f32 %v1530, %v1672
      %v1731 = vadd.f32 %v1531, %v1675
      %v1732 = vadd.f32 %v1532, %v1680
      %v1733 = vadd.f32 %v1533, %v1683
      %v1734 = vadd.f32 %v1534, %v1688
      %v1735 = vadd.f32 %v1535, %v1691
      %v1736 = vadd.f32 %v1536, %v1696
      %v1737 = vadd.f32 %v1537, %v1699
      %v1738 = vadd.f32 %v1538, %v1704
      %v1739 = vadd.f32 %v1539, %v1707
      %v1740 = vadd.f32 %v1540, %v1712
      %v1741 = vadd.f32 %v1541, %v1715
      %v1742 = vadd.f32 %v1542, %v1720
      %v1743 = vadd.f32 %v1543, %v1723
      %s1744 = scalar_lea.vmem %s2, 16
      %v1745 = vld [vmem:[%s1744] sm:$0x3]
      %vm1746 = vcmask 1044480
      %v1747 = vrot.slane %v361, 3
      %v1748 = vrot.slane %v362, 3
      %v1749 = vsel %vm1746, %v1747, %v1748
      %v1750 = vrot.slane %v363, 3
      %v1751 = vsel %vm1746, %v1748, %v1750
      %v1752 = vrot.slane %v364, 3
      %v1753 = vsel %vm1746, %v1750, %v1752
      %v1754 = vrot.slane %v365, 3
      %v1755 = vsel %vm1746, %v1752, %v1754
      %v1756 = vrot.slane %v366, 3
      %v1757 = vsel %vm1746, %v1754, %v1756
      %v1758 = vrot.slane %v367, 3
      %v1759 = vsel %vm1746, %v1756, %v1758
      %v1760 = vrot.slane %v380, 3
      %v1761 = vsel %vm1746, %v1758, %v1760
      %v1762 = vrot.slane %v381, 3
      %v1763 = vsel %vm1746, %v1760, %v1762
      %v1764 = vrot.slane %v382, 3
      %v1765 = vsel %vm1746, %v1762, %v1764
      %v1767 = vsel %vm463, %v1749, 0
      %v1770 = vsel %vm463, %v1751, 0
      %v1773 = vsel %vm463, %v1753, 0
      %v1776 = vsel %vm463, %v1755, 0
      %v1779 = vsel %vm463, %v1757, 0
      %v1782 = vsel %vm463, %v1759, 0
      %v1785 = vsel %vm463, %v1761, 0
      %v1788 = vsel %vm463, %v1763, 0
      %v1791 = vsel %vm463, %v1765, 0
      %v1794 = vsel %vm491, %v1745, 0
      %1796 = vmatprep.subr.bf16.mxu0 0
      %1797 = vmatpush1.bf16.msra.mxu0 %v1794
      %1798 = vmatprep.subr.bf16.mxu0 0
      %1799 = vmatpush1.bf16.msra.mxu0 0
      %1800 = vmatprep.subr.bf16.mxu0 0
      %1801 = vmatpush1.bf16.msra.mxu0 0
      %1802 = vmatprep.subr.bf16.mxu0 0
      %1803 = vmatpush1.bf16.msra.mxu0 0
      %1804 = vmatprep.subr.bf16.mxu0 0
      %1805 = vmatpush1.bf16.msra.mxu0 0
      %1806 = vmatprep.subr.bf16.mxu0 0
      %1807 = vmatpush1.bf16.msra.mxu0 0
      %1808 = vmatprep.subr.bf16.mxu0 0
      %1809 = vmatpush1.bf16.msra.mxu0 0
      %1810 = vmatprep.subr.bf16.mxu0 0
      %1811 = vmatpush1.bf16.msra.mxu0 0
      %1812 = vmatprep.subr.bf16.mxu0 0
      %1813 = vmatpush1.bf16.msra.mxu0 0
      %1814 = vmatprep.subr.bf16.mxu0 0
      %1815 = vmatpush1.bf16.msra.mxu0 0
      %1816 = vmatprep.subr.bf16.mxu0 0
      %1817 = vmatpush1.bf16.msra.mxu0 0
      %1818 = vmatprep.subr.bf16.mxu0 0
      %1819 = vmatpush1.bf16.msra.mxu0 0
      %1820 = vmatprep.subr.bf16.mxu0 0
      %1821 = vmatpush1.bf16.msra.mxu0 0
      %1822 = vmatprep.subr.bf16.mxu0 0
      %1823 = vmatpush1.bf16.msra.mxu0 0
      %1824 = vmatprep.subr.bf16.mxu0 0
      %1825 = vmatpush1.bf16.msra.mxu0 0
      %1826 = vmatprep.subr.bf16.mxu0 0
      %1827 = vmatpush1.bf16.msra.mxu0 0
      %1828 = vmatprep.mubr.bf16.mxu0 0
      %1829 = vmatmul.mubr.bf16.gmra.mrb[0].mxu0 %v1767
      %v1830 = vpop.f32.mrb[0].mxu0
      %v1831 = vadd.f32 0.0, %v1830
      %v1832 = vpop.f32.mrb[0].mxu0
      %v1833 = vpop.f32.mrb[0].mxu0
      %v1834 = vadd.f32 0.0, %v1833
      %v1835 = vpop.f32.mrb[0].mxu0
      %1836 = vmatprep.mubr.bf16.mxu0 0
      %1837 = vmatmul.mubr.bf16.gmra.mrb[0].mxu0 %v1770
      %v1838 = vpop.f32.mrb[0].mxu0
      %v1839 = vadd.f32 0.0, %v1838
      %v1840 = vpop.f32.mrb[0].mxu0
      %v1841 = vpop.f32.mrb[0].mxu0
      %v1842 = vadd.f32 0.0, %v1841
      %v1843 = vpop.f32.mrb[0].mxu0
      %1844 = vmatprep.mubr.bf16.mxu0 0
      %1845 = vmatmul.mubr.bf16.gmra.mrb[0].mxu0 %v1773
      %v1846 = vpop.f32.mrb[0].mxu0
      %v1847 = vadd.f32 0.0, %v1846
      %v1848 = vpop.f32.mrb[0].mxu0
      %v1849 = vpop.f32.mrb[0].mxu0
      %v1850 = vadd.f32 0.0, %v1849
      %v1851 = vpop.f32.mrb[0].mxu0
      %1852 = vmatprep.mubr.bf16.mxu0 0
      %1853 = vmatmul.mubr.bf16.gmra.mrb[0].mxu0 %v1776
      %v1854 = vpop.f32.mrb[0].mxu0
      %v1855 = vadd.f32 0.0, %v1854
      %v1856 = vpop.f32.mrb[0].mxu0
      %v1857 = vpop.f32.mrb[0].mxu0
      %v1858 = vadd.f32 0.0, %v1857
      %v1859 = vpop.f32.mrb[0].mxu0
      %1860 = vmatprep.mubr.bf16.mxu0 0
      %1861 = vmatmul.mubr.bf16.gmra.mrb[0].mxu0 %v1779
      %v1862 = vpop.f32.mrb[0].mxu0
      %v1863 = vadd.f32 0.0, %v1862
      %v1864 = vpop.f32.mrb[0].mxu0
      %v1865 = vpop.f32.mrb[0].mxu0
      %v1866 = vadd.f32 0.0, %v1865
      %v1867 = vpop.f32.mrb[0].mxu0
      %1868 = vmatprep.mubr.bf16.mxu0 0
      %1869 = vmatmul.mubr.bf16.gmra.mrb[0].mxu0 %v1782
      %v1870 = vpop.f32.mrb[0].mxu0
      %v1871 = vadd.f32 0.0, %v1870
      %v1872 = vpop.f32.mrb[0].mxu0
      %v1873 = vpop.f32.mrb[0].mxu0
      %v1874 = vadd.f32 0.0, %v1873
      %v1875 = vpop.f32.mrb[0].mxu0
      %1876 = vmatprep.mubr.bf16.mxu0 0
      %1877 = vmatmul.mubr.bf16.gmra.mrb[0].mxu0 %v1785
      %v1878 = vpop.f32.mrb[0].mxu0
      %v1879 = vadd.f32 0.0, %v1878
      %v1880 = vpop.f32.mrb[0].mxu0
      %v1881 = vpop.f32.mrb[0].mxu0
      %v1882 = vadd.f32 0.0, %v1881
      %v1883 = vpop.f32.mrb[0].mxu0
      %1884 = vmatprep.mubr.bf16.mxu0 0
      %1885 = vmatmul.mubr.bf16.gmra.mrb[0].mxu0 %v1788
      %v1886 = vpop.f32.mrb[0].mxu0
      %v1887 = vadd.f32 0.0, %v1886
      %v1888 = vpop.f32.mrb[0].mxu0
      %v1889 = vpop.f32.mrb[0].mxu0
      %v1890 = vadd.f32 0.0, %v1889
      %v1891 = vpop.f32.mrb[0].mxu0
      %1892 = vmatprep.mubr.bf16.mxu0 0
      %1893 = vmatmul.mubr.bf16.gmra.mrb[0].mxu0 %v1791
      %v1894 = vpop.f32.mrb[0].mxu0
      %v1895 = vadd.f32 0.0, %v1894
      %v1896 = vpop.f32.mrb[0].mxu0
      %v1897 = vpop.f32.mrb[0].mxu0
      %v1898 = vadd.f32 0.0, %v1897
      %v1899 = vpop.f32.mrb[0].mxu0
      %1900 = vdwg.mxu0
      %v1901 = vadd.f32 %v1726, %v1831
      %v1902 = vadd.f32 %v1727, %v1834
      %v1903 = vadd.f32 %v1728, %v1839
      %v1904 = vadd.f32 %v1729, %v1842
      %v1905 = vadd.f32 %v1730, %v1847
      %v1906 = vadd.f32 %v1731, %v1850
      %v1907 = vadd.f32 %v1732, %v1855
      %v1908 = vadd.f32 %v1733, %v1858
      %v1909 = vadd.f32 %v1734, %v1863
      %v1910 = vadd.f32 %v1735, %v1866
      %v1911 = vadd.f32 %v1736, %v1871
      %v1912 = vadd.f32 %v1737, %v1874
      %v1913 = vadd.f32 %v1738, %v1879
      %v1914 = vadd.f32 %v1739, %v1882
      %v1915 = vadd.f32 %v1740, %v1887
      %v1916 = vadd.f32 %v1741, %v1890
      %v1917 = vadd.f32 %v1742, %v1895
      %v1918 = vadd.f32 %v1743, %v1898
      %v1919 = vld [vmem:[%s3] sm:$0x1]
      %v1921 = vlaneseq
      %v1922 = vshrl.u32 %v1921, 7
      %v1923 = vsub.s32 0, %v1922
      %v1924 = vrot.slane %v1919, %v1923
      %v1926 = vmul.f32 %v1901, %v1924
      %v1927 = vmul.f32 %v1902, %v1924
      %v1928 = vmul.f32 %v1903, %v1924
      %v1929 = vmul.f32 %v1904, %v1924
      %v1930 = vmul.f32 %v1905, %v1924
      %v1931 = vmul.f32 %v1906, %v1924
      %v1932 = vmul.f32 %v1907, %v1924
      %v1933 = vmul.f32 %v1908, %v1924
      %v1934 = vmul.f32 %v1909, %v1924
      %v1935 = vmul.f32 %v1910, %v1924
      %v1936 = vmul.f32 %v1911, %v1924
      %v1937 = vmul.f32 %v1912, %v1924
      %v1938 = vmul.f32 %v1913, %v1924
      %v1939 = vmul.f32 %v1914, %v1924
      %v1940 = vmul.f32 %v1915, %v1924
      %v1941 = vmul.f32 %v1916, %v1924
      %v1942 = vmul.f32 %v1917, %v1924
      %v1943 = vmul.f32 %v1918, %v1924
      %v1944 = vld [vmem:[%s4] sm:$0x1]
      %v1946 = vlaneseq
      %v1947 = vshrl.u32 %v1946, 7
      %v1948 = vsub.s32 0, %v1947
      %v1949 = vrot.slane %v1944, %v1948
      %v1951 = vadd.f32 %v1926, %v1949
      %v1952 = vadd.f32 %v1927, %v1949
      %v1953 = vadd.f32 %v1928, %v1949
      %v1954 = vadd.f32 %v1929, %v1949
      %v1955 = vadd.f32 %v1930, %v1949
      %v1956 = vadd.f32 %v1931, %v1949
      %v1957 = vadd.f32 %v1932, %v1949
      %v1958 = vadd.f32 %v1933, %v1949
      %v1959 = vadd.f32 %v1934, %v1949
      %v1960 = vadd.f32 %v1935, %v1949
      %v1961 = vadd.f32 %v1936, %v1949
      %v1962 = vadd.f32 %v1937, %v1949
      %v1963 = vadd.f32 %v1938, %v1949
      %v1964 = vadd.f32 %v1939, %v1949
      %v1965 = vadd.f32 %v1940, %v1949
      %v1966 = vadd.f32 %v1941, %v1949
      %v1967 = vadd.f32 %v1942, %v1949
      %v1968 = vadd.f32 %v1943, %v1949
      %v1969 = vmax.f32 %v1951, 0.0
      %v1970 = vmax.f32 %v1952, 0.0
      %v1971 = vmax.f32 %v1953, 0.0
      %v1972 = vmax.f32 %v1954, 0.0
      %v1973 = vmax.f32 %v1955, 0.0
      %v1974 = vmax.f32 %v1956, 0.0
      %v1975 = vmax.f32 %v1957, 0.0
      %v1976 = vmax.f32 %v1958, 0.0
      %v1977 = vmax.f32 %v1959, 0.0
      %v1978 = vmax.f32 %v1960, 0.0
      %v1979 = vmax.f32 %v1961, 0.0
      %v1980 = vmax.f32 %v1962, 0.0
      %v1981 = vmax.f32 %v1963, 0.0
      %v1982 = vmax.f32 %v1964, 0.0
      %v1983 = vmax.f32 %v1965, 0.0
      %v1984 = vmax.f32 %v1966, 0.0
      %v1985 = vmax.f32 %v1967, 0.0
      %v1986 = vmax.f32 %v1968, 0.0
      %1987 = vst.msk [vmem:[%s296] sm:$0xff] %vm463, %v1969
      %1988 = vst.msk [vmem:[%s296 + $0x8] sm:$0xff] %vm463, %v1970
      %1989 = vst.msk [vmem:[%s296 + $0x10] sm:$0xff] %vm463, %v1971
      %1990 = vst.msk [vmem:[%s296 + $0x18] sm:$0xff] %vm463, %v1972
      %1991 = vst.msk [vmem:[%s296 + $0x20] sm:$0xff] %vm463, %v1973
      %1992 = vst.msk [vmem:[%s296 + $0x28] sm:$0xff] %vm463, %v1974
      %1993 = vst.msk [vmem:[%s296 + $0x30] sm:$0xff] %vm463, %v1975
      %1994 = vst.msk [vmem:[%s296 + $0x38] sm:$0xff] %vm463, %v1976
      %1995 = vst.msk [vmem:[%s296 + $0x40] sm:$0xff] %vm463, %v1977
      %1996 = vst.msk [vmem:[%s296 + $0x48] sm:$0xff] %vm463, %v1978
      %1997 = vst.msk [vmem:[%s296 + $0x50] sm:$0xff] %vm463, %v1979
      %1998 = vst.msk [vmem:[%s296 + $0x58] sm:$0xff] %vm463, %v1980
      %1999 = vst.msk [vmem:[%s296 + $0x60] sm:$0xff] %vm463, %v1981
      %2000 = vst.msk [vmem:[%s296 + $0x68] sm:$0xff] %vm463, %v1982
      %2001 = vst.msk [vmem:[%s296 + $0x70] sm:$0xff] %vm463, %v1983
      %2002 = vst.msk [vmem:[%s296 + $0x78] sm:$0xff] %vm463, %v1984
      %2003 = vst.msk [vmem:[%s296 + $0x80] sm:$0xff] %vm463, %v1985
      %2004 = vst.msk [vmem:[%s296 + $0x88] sm:$0xff] %vm463, %v1986
      %s2005 = smul.u32 18, %s21
      %p2006 = scmp.lt.s32.totalorder %s20, 1
      %s2007 = scalar_select %p2006, %s20, 1
      %p2008 = scmp.lt.s32.totalorder %s2005, 35
      %s2009 = scalar_select %p2008, %s2005, 35
      %s2010 = smul.addr %s2007, 36
      %s2011 = sadd.s32 %s2009, %s2010
      %s2012 = smul.addr %s2011, 8
      %s2013 = scalar_lea.vmem %s5, %s2012
      // Predicated region
      $region41: #{up_forward.5} parent=39 // pred_check
        %p2014 = pneg %p167
      $region42: #{up_forward.5} parent=39 // pred_check_branch
        %2016 = sbr.rel (%p2014) target = $region44
      $region43: #{up_forward.5} parent=39 // pred_region
        %s2017 = smul.u32 18, %s21
      $region44: #{up_forward.5} parent=39 // pred_fallthru
        _
    $region40: #{up_forward.5} parent=5 // pred_fallthru
      _
    %p2018 = scmp.le.s32.totalorder 2, %s11
    // Predicated region
    $region45: #{up_forward.5} parent=5 // pred_check
      %p2019 = pneg %p2018
    $region46: #{up_forward.5} parent=5 // pred_check_branch
      %2021 = sbr.rel (%p2019) target = $region48
    $region47: #{up_forward.5} parent=5 // pred_region
      %s2022 = ssub.s32 %s11, 2
      // Predicated region
      $region49: #{up_forward.5} parent=47 // pred_check
        %p2023 = pneg %p173
      $region50: #{up_forward.5} parent=47 // pred_check_branch
        %2025 = sbr.rel (%p2023) target = $region52
      $region51: #{up_forward.5} parent=47 // pred_region
        %s2026 = smul.u32 18, %s23
        %p2027 = scmp.lt.s32.totalorder %s22, 1
        %s2028 = scalar_select %p2027, %s22, 1
        %p2029 = scmp.lt.s32.totalorder %s2026, 35
        %s2030 = scalar_select %p2029, %s2026, 35
        %s2031 = smul.addr %s2028, 36
        %s2032 = sadd.s32 %s2030, %s2031
        %s2033 = smul.addr %s2032, 8
        %s2034 = scalar_lea.vmem %s5, %s2033
      $region52: #{up_forward.5} parent=47 // pred_fallthru
        _
    $region48: #{up_forward.5} parent=5 // pred_fallthru
      _
  $region6: #{up_forward.5} parent=0 // loop_footer
    %s15 = sadd.s32 1, %s11
  $region7: #{up_forward.5} parent=0 // loop_footer_branch
    %10 = sbr.rel target = $region3
  $region8: #{up_forward.5} parent=0 // loop_exit
    _

// kernel: up_forward.4
$region0: #{up_forward.4}
  #allocation0 [shape = 'u32[]', space=smem, size = 0x4, offset = 0x4, fixed_abs, tag = 'smem constant byte address 0x4 - core index']
  #allocation1 [shape = 'u32[144,128]{1,0:T(1,128)}', space=vmem, size = 0x12000, scoped, tag = 'internal scratch']
  %s0 = inlined_call_operand.vmem [shape: bf16[2,432,4], index: 0, kind: input, shape index: {}]
  %s1 = inlined_call_operand.vmem [shape: bf16[2,432,4], index: 1, kind: input, shape index: {}]
  %s2 = inlined_call_operand.vmem [shape: bf16[2,2,54,4], index: 2, kind: input, shape index: {}]
  %s3 = inlined_call_operand.vmem [shape: bf16[2,2,54,4], index: 3, kind: input, shape index: {}]
  %s4 = inlined_call_operand.vmem [shape: bf16[9,4,4], index: 4, kind: input, shape index: {}]
  %s5 = inlined_call_operand.vmem [shape: bf16[9,4,4], index: 5, kind: input, shape index: {}]
  %s6 = inlined_call_operand.vmem [shape: f32[1,4], index: 6, kind: input, shape index: {}]
  %s7 = inlined_call_operand.vmem [shape: f32[1,4], index: 7, kind: input, shape index: {}]
  %s8 = inlined_call_operand.vmem [shape: bf16[2,288,4], index: 8, kind: output, shape index: {}]
  %s9 = sld [smem:[#allocation0]]
  $region65: #{up_forward.4} parent=0
    _
  %s11 = ssub.s32 1, %s9
  %s12 = scalar_select 0, %s11, %s9
  loop: start=0, step=1, limit=6
  $region2: #{up_forward.4} parent=0 // loop_pre_header
    _
  $region3: #{up_forward.4} parent=0 // loop_header
    %s14 = sphi 0, %s18
    %p15 = scmp.ge.s32.totalorder %s14, 6
    %s21 = sphi 0, %s33
    %s22 = sphi 0, %s29
    %s23 = sphi 0, %s21
    %s24 = sphi 0, %s22
    %s25 = sphi 0, %s23
    %s26 = sphi 0, %s24
    %s38 = sphi 0, %s40
    %s41 = sphi 0, %s38
    %s42 = sphi 0, %s41
    %s58 = sphi 0, %s42
    %s66 = sphi 0, %s68
    %s69 = sphi 0, %s66
    %s70 = sphi 0, %s69
    %s86 = sphi 0, %s70
    %s94 = sphi 0, %s96
    %s97 = sphi 0, %s94
    %s98 = sphi 0, %s97
    %s114 = sphi 0, %s98
    %s122 = sphi 0, %s124
    %s125 = sphi 0, %s122
    %s126 = sphi 0, %s125
    %s142 = sphi 0, %s126
    %s146 = sphi 0, %s146
    %s148 = sphi 0, %s146
    %s149 = sphi 0, %s148
    %s163 = sphi 0, %s149
    %s167 = sphi 0, %s167
    %s169 = sphi 0, %s167
    %s170 = sphi 0, %s169
    %s184 = sphi 0, %s170
    %s188 = sphi 0, %s188
    %s190 = sphi 0, %s188
    %s191 = sphi 0, %s190
    %s205 = sphi 0, %s191
    %s209 = sphi 0, %s209
    %s211 = sphi 0, %s209
    %s212 = sphi 0, %s211
    %s226 = sphi 0, %s212
    %s234 = sphi 0, %s236
    %s237 = sphi 0, %s234
    %s238 = sphi 0, %s237
    %s254 = sphi 0, %s238
  $region4: #{up_forward.4} parent=0 // loop_header_branch
    %17 = sbr.rel (%p15) target = $region8
  $region5: #{up_forward.4} parent=0 // loop_body
    %s19 = ssub.s32 %s14, 1
    %s20 = ssub.s32 %s14, 2
    %s27 = sadd.s32 1, %s22
    %p28 = scmp.ge.s32.totalorder %s27, 2
    %s29 = scalar_select %p28, 0, %s27
    %s30 = sadd.s32 1, %s21
    %s31 = scalar_select %p28, %s30, %s21
    %p32 = scmp.ge.s32.totalorder %s31, 2
    %s33 = scalar_select %p32, 0, %s31
    %s34 = ssub.s32 %s21, %s33
    %s35 = ssub.s32 %s22, %s29
    %s36 = sor.u32 %s34, %s35
    %p37 = scmp.eq.s32.totalorder %s36, 0
    %s39 = sadd.s32 %s38, 1
    %s40 = scalar_select %p37, %s38, %s39
    %p43 = pneg %p37
    %p44 = scmp.eq.s32.totalorder %s14, 3
    %p45 = por %p43, %p44
    %p46 = scmp.ne.s32.totalorder %s38, %s41
    %p47 = scmp.eq.s32.totalorder %s14, 0
    %p48 = por %p46, %p47
    %p49 = scmp.ne.s32.totalorder %s38, %s41
    %p50 = scmp.eq.s32.totalorder %s19, 3
    %p51 = por %p49, %p50
    %p52 = scmp.ne.s32.totalorder %s41, %s42
    %p53 = scmp.eq.s32.totalorder %s19, 0
    %p54 = por %p52, %p53
    %p55 = scmp.ne.s32.totalorder %s41, %s42
    %p56 = scmp.eq.s32.totalorder %s20, 3
    %p57 = por %p55, %p56
    %p59 = scmp.ne.s32.totalorder %s42, %s58
    %p60 = scmp.eq.s32.totalorder %s20, 0
    %p61 = por %p59, %p60
    %s62 = ssub.s32 %s21, %s33
    %s63 = ssub.s32 %s22, %s29
    %s64 = sor.u32 %s62, %s63
    %p65 = scmp.eq.s32.totalorder %s64, 0
    %s67 = sadd.s32 %s66, 1
    %s68 = scalar_select %p65, %s66, %s67
    %p71 = pneg %p65
    %p72 = scmp.eq.s32.totalorder %s14, 3
    %p73 = por %p71, %p72
    %p74 = scmp.ne.s32.totalorder %s66, %s69
    %p75 = scmp.eq.s32.totalorder %s14, 0
    %p76 = por %p74, %p75
    %p77 = scmp.ne.s32.totalorder %s66, %s69
    %p78 = scmp.eq.s32.totalorder %s19, 3
    %p79 = por %p77, %p78
    %p80 = scmp.ne.s32.totalorder %s69, %s70
    %p81 = scmp.eq.s32.totalorder %s19, 0
    %p82 = por %p80, %p81
    %p83 = scmp.ne.s32.totalorder %s69, %s70
    %p84 = scmp.eq.s32.totalorder %s20, 3
    %p85 = por %p83, %p84
    %p87 = scmp.ne.s32.totalorder %s70, %s86
    %p88 = scmp.eq.s32.totalorder %s20, 0
    %p89 = por %p87, %p88
    %s90 = ssub.s32 %s21, %s33
    %s91 = ssub.s32 %s22, %s29
    %s92 = sor.u32 %s90, %s91
    %p93 = scmp.eq.s32.totalorder %s92, 0
    %s95 = sadd.s32 %s94, 1
    %s96 = scalar_select %p93, %s94, %s95
    %p99 = pneg %p93
    %p100 = scmp.eq.s32.totalorder %s14, 3
    %p101 = por %p99, %p100
    %p102 = scmp.ne.s32.totalorder %s94, %s97
    %p103 = scmp.eq.s32.totalorder %s14, 0
    %p104 = por %p102, %p103
    %p105 = scmp.ne.s32.totalorder %s94, %s97
    %p106 = scmp.eq.s32.totalorder %s19, 3
    %p107 = por %p105, %p106
    %p108 = scmp.ne.s32.totalorder %s97, %s98
    %p109 = scmp.eq.s32.totalorder %s19, 0
    %p110 = por %p108, %p109
    %p111 = scmp.ne.s32.totalorder %s97, %s98
    %p112 = scmp.eq.s32.totalorder %s20, 3
    %p113 = por %p111, %p112
    %p115 = scmp.ne.s32.totalorder %s98, %s114
    %p116 = scmp.eq.s32.totalorder %s20, 0
    %p117 = por %p115, %p116
    %s118 = ssub.s32 %s21, %s33
    %s119 = ssub.s32 %s22, %s29
    %s120 = sor.u32 %s118, %s119
    %p121 = scmp.eq.s32.totalorder %s120, 0
    %s123 = sadd.s32 %s122, 1
    %s124 = scalar_select %p121, %s122, %s123
    %p127 = pneg %p121
    %p128 = scmp.eq.s32.totalorder %s14, 3
    %p129 = por %p127, %p128
    %p130 = scmp.ne.s32.totalorder %s122, %s125
    %p131 = scmp.eq.s32.totalorder %s14, 0
    %p132 = por %p130, %p131
    %p133 = scmp.ne.s32.totalorder %s122, %s125
    %p134 = scmp.eq.s32.totalorder %s19, 3
    %p135 = por %p133, %p134
    %p136 = scmp.ne.s32.totalorder %s125, %s126
    %p137 = scmp.eq.s32.totalorder %s19, 0
    %p138 = por %p136, %p137
    %p139 = scmp.ne.s32.totalorder %s125, %s126
    %p140 = scmp.eq.s32.totalorder %s20, 3
    %p141 = por %p139, %p140
    %p143 = scmp.ne.s32.totalorder %s126, %s142
    %p144 = scmp.eq.s32.totalorder %s20, 0
    %p145 = por %p143, %p144
    %s147 = sadd.s32 %s146, 1
    %p150 = scmp.eq.s32.totalorder %s14, 3
    %p151 = scmp.ne.s32.totalorder %s146, %s148
    %p152 = scmp.eq.s32.totalorder %s14, 0
    %p153 = por %p151, %p152
    %p154 = scmp.ne.s32.totalorder %s146, %s148
    %p155 = scmp.eq.s32.totalorder %s19, 3
    %p156 = por %p154, %p155
    %p157 = scmp.ne.s32.totalorder %s148, %s149
    %p158 = scmp.eq.s32.totalorder %s19, 0
    %p159 = por %p157, %p158
    %p160 = scmp.ne.s32.totalorder %s148, %s149
    %p161 = scmp.eq.s32.totalorder %s20, 3
    %p162 = por %p160, %p161
    %p164 = scmp.ne.s32.totalorder %s149, %s163
    %p165 = scmp.eq.s32.totalorder %s20, 0
    %p166 = por %p164, %p165
    %s168 = sadd.s32 %s167, 1
    %p171 = scmp.eq.s32.totalorder %s14, 3
    %p172 = scmp.ne.s32.totalorder %s167, %s169
    %p173 = scmp.eq.s32.totalorder %s14, 0
    %p174 = por %p172, %p173
    %p175 = scmp.ne.s32.totalorder %s167, %s169
    %p176 = scmp.eq.s32.totalorder %s19, 3
    %p177 = por %p175, %p176
    %p178 = scmp.ne.s32.totalorder %s169, %s170
    %p179 = scmp.eq.s32.totalorder %s19, 0
    %p180 = por %p178, %p179
    %p181 = scmp.ne.s32.totalorder %s169, %s170
    %p182 = scmp.eq.s32.totalorder %s20, 3
    %p183 = por %p181, %p182
    %p185 = scmp.ne.s32.totalorder %s170, %s184
    %p186 = scmp.eq.s32.totalorder %s20, 0
    %p187 = por %p185, %p186
    %s189 = sadd.s32 %s188, 1
    %p192 = scmp.eq.s32.totalorder %s14, 3
    %p193 = scmp.ne.s32.totalorder %s188, %s190
    %p194 = scmp.eq.s32.totalorder %s14, 0
    %p195 = por %p193, %p194
    %p196 = scmp.ne.s32.totalorder %s188, %s190
    %p197 = scmp.eq.s32.totalorder %s19, 3
    %p198 = por %p196, %p197
    %p199 = scmp.ne.s32.totalorder %s190, %s191
    %p200 = scmp.eq.s32.totalorder %s19, 0
    %p201 = por %p199, %p200
    %p202 = scmp.ne.s32.totalorder %s190, %s191
    %p203 = scmp.eq.s32.totalorder %s20, 3
    %p204 = por %p202, %p203
    %p206 = scmp.ne.s32.totalorder %s191, %s205
    %p207 = scmp.eq.s32.totalorder %s20, 0
    %p208 = por %p206, %p207
    %s210 = sadd.s32 %s209, 1
    %p213 = scmp.eq.s32.totalorder %s14, 3
    %p214 = scmp.ne.s32.totalorder %s209, %s211
    %p215 = scmp.eq.s32.totalorder %s14, 0
    %p216 = por %p214, %p215
    %p217 = scmp.ne.s32.totalorder %s209, %s211
    %p218 = scmp.eq.s32.totalorder %s19, 3
    %p219 = por %p217, %p218
    %p220 = scmp.ne.s32.totalorder %s211, %s212
    %p221 = scmp.eq.s32.totalorder %s19, 0
    %p222 = por %p220, %p221
    %p223 = scmp.ne.s32.totalorder %s211, %s212
    %p224 = scmp.eq.s32.totalorder %s20, 3
    %p225 = por %p223, %p224
    %p227 = scmp.ne.s32.totalorder %s212, %s226
    %p228 = scmp.eq.s32.totalorder %s20, 0
    %p229 = por %p227, %p228
    %s230 = ssub.s32 %s21, %s33
    %s231 = ssub.s32 %s22, %s29
    %s232 = sor.u32 %s230, %s231
    %p233 = scmp.eq.s32.totalorder %s232, 0
    %s235 = sadd.s32 %s234, 1
    %s236 = scalar_select %p233, %s234, %s235
    %p239 = pneg %p233
    %p240 = scmp.eq.s32.totalorder %s14, 3
    %p241 = por %p239, %p240
    %p242 = scmp.ne.s32.totalorder %s234, %s237
    %p243 = scmp.eq.s32.totalorder %s14, 0
    %p244 = por %p242, %p243
    %p245 = scmp.ne.s32.totalorder %s234, %s237
    %p246 = scmp.eq.s32.totalorder %s19, 3
    %p247 = por %p245, %p246
    %p248 = scmp.ne.s32.totalorder %s237, %s238
    %p249 = scmp.eq.s32.totalorder %s19, 0
    %p250 = por %p248, %p249
    %p251 = scmp.ne.s32.totalorder %s237, %s238
    %p252 = scmp.eq.s32.totalorder %s20, 3
    %p253 = por %p251, %p252
    %p255 = scmp.ne.s32.totalorder %s238, %s254
    %p256 = scmp.eq.s32.totalorder %s20, 0
    %p257 = por %p255, %p256
    %p258 = scmp.le.s32.totalorder 1, %s14
    %p259 = scmp.lt.s32.totalorder %s14, 5
    %p260 = pnand %p258, %p259
    %p261 = pneg %p260
    // Predicated region
    $region9: #{up_forward.4} parent=5 // pred_check
      _
    $region10: #{up_forward.4} parent=5 // pred_check_branch
      %263 = sbr.rel (%p260) target = $region12
    $region11: #{up_forward.4} parent=5 // pred_region
      %s264 = ssub.s32 %s14, 1
      // Predicated region
      $region13: #{up_forward.4} parent=11 // pred_check
        %p265 = pneg %p159
      $region14: #{up_forward.4} parent=11 // pred_check_branch
        %267 = sbr.rel (%p265) target = $region16
      $region15: #{up_forward.4} parent=11 // pred_region
        _
      $region16: #{up_forward.4} parent=11 // pred_fallthru
        _
      // Predicated region
      $region17: #{up_forward.4} parent=11 // pred_check
        %p268 = pneg %p180
      $region18: #{up_forward.4} parent=11 // pred_check_branch
        %270 = sbr.rel (%p268) target = $region20
      $region19: #{up_forward.4} parent=11 // pred_region
        _
      $region20: #{up_forward.4} parent=11 // pred_fallthru
        _
      // Predicated region
      $region21: #{up_forward.4} parent=11 // pred_check
        %p271 = pneg %p201
      $region22: #{up_forward.4} parent=11 // pred_check_branch
        %273 = sbr.rel (%p271) target = $region24
      $region23: #{up_forward.4} parent=11 // pred_region
        _
      $region24: #{up_forward.4} parent=11 // pred_fallthru
        _
      // Predicated region
      $region25: #{up_forward.4} parent=11 // pred_check
        %p274 = pneg %p222
      $region26: #{up_forward.4} parent=11 // pred_check_branch
        %276 = sbr.rel (%p274) target = $region28
      $region27: #{up_forward.4} parent=11 // pred_region
        _
      $region28: #{up_forward.4} parent=11 // pred_fallthru
        _
    $region12: #{up_forward.4} parent=5 // pred_fallthru
      _
    %p277 = scmp.lt.s32.totalorder %s14, 4
    // Predicated region
    $region29: #{up_forward.4} parent=5 // pred_check
      %p278 = pneg %p277
    $region30: #{up_forward.4} parent=5 // pred_check_branch
      %280 = sbr.rel (%p278) target = $region32
    $region31: #{up_forward.4} parent=5 // pred_region
      // Predicated region
      $region33: #{up_forward.4} parent=31 // pred_check
        %p281 = pneg %p48
      $region34: #{up_forward.4} parent=31 // pred_check_branch
        %283 = sbr.rel (%p281) target = $region36
      $region35: #{up_forward.4} parent=31 // pred_region
        %s284 = smul.u32 18, %s22
        %p285 = scmp.lt.s32.totalorder %s21, 1
        %s286 = scalar_select %p285, %s21, 1
        %p287 = scmp.lt.s32.totalorder %s284, 53
        %s288 = scalar_select %p287, %s284, 53
        %s289 = smul.addr %s286, 54
        %s290 = sadd.s32 %s288, %s289
        %s291 = smul.addr %s290, 4
        %s292 = scalar_lea.vmem %s0, %s291
        %s293 = smul.u32 18, %s22
      $region36: #{up_forward.4} parent=31 // pred_fallthru
        _
      // Predicated region
      $region37: #{up_forward.4} parent=31 // pred_check
        %p294 = pneg %p76
      $region38: #{up_forward.4} parent=31 // pred_check_branch
        %296 = sbr.rel (%p294) target = $region40
      $region39: #{up_forward.4} parent=31 // pred_region
        %s297 = smul.u32 18, %s22
        %p298 = scmp.lt.s32.totalorder %s21, 1
        %s299 = scalar_select %p298, %s21, 1
        %p300 = scmp.lt.s32.totalorder %s297, 53
        %s301 = scalar_select %p300, %s297, 53
        %s302 = smul.addr %s299, 54
        %s303 = sadd.s32 %s301, %s302
        %s304 = smul.addr %s303, 4
        %s305 = scalar_lea.vmem %s1, %s304
        %s306 = smul.u32 18, %s22
      $region40: #{up_forward.4} parent=31 // pred_fallthru
        _
      // Predicated region
      $region41: #{up_forward.4} parent=31 // pred_check
        %p307 = pneg %p104
      $region42: #{up_forward.4} parent=31 // pred_check_branch
        %309 = sbr.rel (%p307) target = $region44
      $region43: #{up_forward.4} parent=31 // pred_region
        %p310 = scmp.lt.s32.totalorder %s21, 1
        %s311 = scalar_select %p310, %s21, 1
        %p312 = scmp.lt.s32.totalorder %s22, 1
        %s313 = scalar_select %p312, %s22, 1
        %s314 = smul.addr %s313, 7
        %s315 = smul.addr %s311, 14
        %s316 = sadd.s32 %s314, %s315
        %s317 = smul.addr %s316, 4
        %s318 = scalar_lea.vmem %s2, %s317
      $region44: #{up_forward.4} parent=31 // pred_fallthru
        _
      // Predicated region
      $region45: #{up_forward.4} parent=31 // pred_check
        %p319 = pneg %p132
      $region46: #{up_forward.4} parent=31 // pred_check_branch
        %321 = sbr.rel (%p319) target = $region48
      $region47: #{up_forward.4} parent=31 // pred_region
        %p322 = scmp.lt.s32.totalorder %s21, 1
        %s323 = scalar_select %p322, %s21, 1
        %p324 = scmp.lt.s32.totalorder %s22, 1
        %s325 = scalar_select %p324, %s22, 1
        %s326 = smul.addr %s325, 7
        %s327 = smul.addr %s323, 14
        %s328 = sadd.s32 %s326, %s327
        %s329 = smul.addr %s328, 4
        %s330 = scalar_lea.vmem %s3, %s329
      $region48: #{up_forward.4} parent=31 // pred_fallthru
        _
    $region32: #{up_forward.4} parent=5 // pred_fallthru
      _
    %p331 = scmp.le.s32.totalorder 1, %s14
    %p332 = scmp.lt.s32.totalorder %s14, 5
    %p333 = pnand %p331, %p332
    %p334 = pneg %p333
    // Predicated region
    $region49: #{up_forward.4} parent=5 // pred_check
      _
    $region50: #{up_forward.4} parent=5 // pred_check_branch
      %336 = sbr.rel (%p333) target = $region52
    $region51: #{up_forward.4} parent=5 // pred_region
      %s337 = ssub.s32 %s14, 1
      %s338 = smul.u32 18, %s24
      %p339 = scmp.lt.s32.totalorder %s23, 1
      %s340 = scalar_select %p339, %s23, 1
      %p341 = scmp.lt.s32.totalorder %s338, 53
      %s342 = scalar_select %p341, %s338, 53
      %s343 = smul.addr %s340, 54
      %s344 = sadd.s32 %s342, %s343
      %s345 = smul.addr %s344, 4
      %s346 = scalar_lea.vmem %s0, %s345
      %p347 = pneg %p54
      %p348 = pneg %p51
      %s349 = smul.u32 18, %s24
      %p350 = scmp.lt.s32.totalorder %s23, 1
      %s351 = scalar_select %p350, %s23, 1
      %p352 = scmp.lt.s32.totalorder %s349, 53
      %s353 = scalar_select %p352, %s349, 53
      %s354 = smul.addr %s351, 54
      %s355 = sadd.s32 %s353, %s354
      %s356 = smul.addr %s355, 4
      %s357 = scalar_lea.vmem %s1, %s356
      %p358 = pneg %p82
      %p359 = pneg %p79
      %p360 = scmp.lt.s32.totalorder %s23, 1
      %s361 = scalar_select %p360, %s23, 1
      %p362 = scmp.lt.s32.totalorder %s24, 1
      %s363 = scalar_select %p362, %s24, 1
      %s364 = smul.addr %s363, 7
      %s365 = smul.addr %s361, 14
      %s366 = sadd.s32 %s364, %s365
      %s367 = smul.addr %s366, 4
      %s368 = scalar_lea.vmem %s2, %s367
      %p369 = pneg %p110
      %p370 = pneg %p107
      %p371 = scmp.lt.s32.totalorder %s23, 1
      %s372 = scalar_select %p371, %s23, 1
      %p373 = scmp.lt.s32.totalorder %s24, 1
      %s374 = scalar_select %p373, %s24, 1
      %s375 = smul.addr %s374, 7
      %s376 = smul.addr %s372, 14
      %s377 = sadd.s32 %s375, %s376
      %s378 = smul.addr %s377, 4
      %s379 = scalar_lea.vmem %s3, %s378
      %p380 = pneg %p138
      %p381 = pneg %p135
      %p382 = pneg %p159
      %p383 = pneg %p156
      %p384 = pneg %p180
      %p385 = pneg %p177
      %p386 = pneg %p201
      %p387 = pneg %p198
      %p388 = pneg %p222
      %p389 = pneg %p219
      %p390 = pneg %p250
      %p391 = pneg %p247
      %s392 = smul.u32 18, %s24
      %p393 = scmp.lt.s32.totalorder %s23, 1
      %s394 = scalar_select %p393, %s23, 1
      %p395 = scmp.lt.s32.totalorder %s392, 35
      %s396 = scalar_select %p395, %s392, 35
      %s397 = smul.addr %s394, 36
      %s398 = sadd.s32 %s396, %s397
      %s399 = smul.addr %s398, 4
      %s400 = scalar_lea.vmem %s8, %s399
      %s401 = smul.u32 18, %s24
      %p402 = scmp.lt.s32.totalorder %s23, 1
      %s403 = scalar_select %p402, %s23, 1
      %p404 = scmp.lt.s32.totalorder %s401, 53
      %s405 = scalar_select %p404, %s401, 53
      %s406 = smul.addr %s403, 54
      %s407 = sadd.s32 %s405, %s406
      %s408 = smul.addr %s407, 4
      %s409 = scalar_lea.vmem %s0, %s408
      %s410 = smul.u32 18, %s24
      %s411 = smul.u32 18, %s24
      %p412 = scmp.lt.s32.totalorder %s23, 1
      %s413 = scalar_select %p412, %s23, 1
      %p414 = scmp.lt.s32.totalorder %s411, 53
      %s415 = scalar_select %p414, %s411, 53
      %s416 = smul.addr %s413, 54
      %s417 = sadd.s32 %s415, %s416
      %s418 = smul.addr %s417, 4
      %s419 = scalar_lea.vmem %s1, %s418
      %s420 = smul.u32 18, %s24
      %p421 = scmp.lt.s32.totalorder %s23, 1
      %s422 = scalar_select %p421, %s23, 1
      %p423 = scmp.lt.s32.totalorder %s24, 1
      %s424 = scalar_select %p423, %s24, 1
      %s425 = smul.addr %s424, 7
      %s426 = smul.addr %s422, 14
      %s427 = sadd.s32 %s425, %s426
      %s428 = smul.addr %s427, 4
      %s429 = scalar_lea.vmem %s2, %s428
      %p430 = scmp.lt.s32.totalorder %s23, 1
      %s431 = scalar_select %p430, %s23, 1
      %p432 = scmp.lt.s32.totalorder %s24, 1
      %s433 = scalar_select %p432, %s24, 1
      %s434 = smul.addr %s433, 7
      %s435 = smul.addr %s431, 14
      %s436 = sadd.s32 %s434, %s435
      %s437 = smul.addr %s436, 4
      %s438 = scalar_lea.vmem %s3, %s437
      %s439 = smul.u32 18, %s24
      %p440 = scmp.lt.s32.totalorder %s23, 1
      %s441 = scalar_select %p440, %s23, 1
      %p442 = scmp.lt.s32.totalorder %s439, 35
      %s443 = scalar_select %p442, %s439, 35
      %s444 = smul.addr %s441, 36
      %s445 = sadd.s32 %s443, %s444
      %s446 = smul.addr %s445, 4
      %s447 = scalar_lea.vmem %s8, %s446
      %s448 = smul.u32 18, %s24
      %v450 = vld [vmem:[%s409] sm:$0xf]
      %v451 = vld [vmem:[%s409 + $0x4] sm:$0xf]
      %v452 = vld [vmem:[%s409 + $0x8] sm:$0xf]
      %v453 = vld [vmem:[%s409 + $0xc] sm:$0xf]
      %v454 = vld [vmem:[%s409 + $0x10] sm:$0xf]
      %v455 = vld [vmem:[%s409 + $0x14] sm:$0xf]
      %v456 = vld [vmem:[%s409 + $0x18] sm:$0xf]
      %v457 = vld [vmem:[%s409 + $0x1c] sm:$0xf]
      %v458 = vld [vmem:[%s409 + $0x20] sm:$0xf]
      %v459 = vld [vmem:[%s409 + $0x24] sm:$0xf]
      %v460 = vld [vmem:[%s409 + $0x28] sm:$0xf]
      %v461 = vld [vmem:[%s409 + $0x2c] sm:$0xf]
      %v462 = vld [vmem:[%s409 + $0x30] sm:$0xf]
      %v463 = vld [vmem:[%s409 + $0x34] sm:$0xf]
      %v464 = vld [vmem:[%s409 + $0x38] sm:$0xf]
      %v465 = vld [vmem:[%s409 + $0x3c] sm:$0xf]
      %v466 = vld [vmem:[%s409 + $0x40] sm:$0xf]
      %v467 = vld [vmem:[%s409 + $0x44] sm:$0xf]
      %v468 = vld [vmem:[%s429] sm:$0xf]
      %v469 = vld [vmem:[%s429 + $0x4] sm:$0xf]
      %v470 = vld [vmem:[%s429 + $0x8] sm:$0xf]
      %v471 = vld [vmem:[%s429 + $0xc] sm:$0xf]
      %v472 = vld [vmem:[%s429 + $0x10] sm:$0xf]
      %v473 = vld [vmem:[%s429 + $0x14] sm:$0xf]
      %v492 = vunpack.c.l.b16 %v450
      %v493 = vunpack.c.l.b16 %v451
      %v494 = vunpack.c.l.b16 %v452
      %v495 = vunpack.c.l.b16 %v453
      %v496 = vunpack.c.l.b16 %v454
      %v497 = vunpack.c.l.b16 %v455
      %v498 = vunpack.c.l.b16 %v456
      %v499 = vunpack.c.l.b16 %v457
      %v500 = vunpack.c.l.b16 %v458
      %v501 = vunpack.c.l.b16 %v459
      %v502 = vunpack.c.l.b16 %v460
      %v503 = vunpack.c.l.b16 %v461
      %v504 = vunpack.c.l.b16 %v462
      %v505 = vunpack.c.l.b16 %v463
      %v506 = vunpack.c.l.b16 %v464
      %v507 = vunpack.c.l.b16 %v465
      %v508 = vunpack.c.l.b16 %v466
      %v509 = vunpack.c.l.b16 %v467
      %v510 = vpack.c.b16 %v493, %v492
      %v511 = vpack.c.b16 %v495, %v494
      %v512 = vpack.c.b16 %v497, %v496
      %v513 = vpack.c.b16 %v499, %v498
      %v514 = vpack.c.b16 %v501, %v500
      %v515 = vpack.c.b16 %v503, %v502
      %v516 = vpack.c.b16 %v505, %v504
      %v517 = vpack.c.b16 %v507, %v506
      %v518 = vpack.c.b16 %v509, %v508
      %v525 = vunpack.c.l.b16 %v468
      %v526 = vunpack.c.l.b16 %v469
      %v527 = vunpack.c.l.b16 %v470
      %v528 = vunpack.c.l.b16 %v471
      %v529 = vunpack.c.l.b16 %v472
      %v530 = vunpack.c.l.b16 %v473
      %v531 = vpack.c.b16 %v526, %v525
      %v532 = vpack.c.b16 %v528, %v527
      %v533 = vpack.c.b16 %v530, %v529
      %v534 = vld [vmem:[%s4] sm:$0x3]
      %s535 = scalar_lea.vmem %s4, 2
      %v536 = vld [vmem:[%s535] sm:$0x3]
      %vm537 = vsmask.f32 7424
      %v539 = vshrl.u32 %v510, 16
      %v541 = vshll.u32 %v510, 16
      %v543 = vrot.slane %v541, 1
      %v544 = vor.u32 %v539, %v543
      %v546 = vshll.u32 %v511, 16
      %v548 = vrot.slane %v546, 1
      %v549 = vsel %vm537, %v544, %v548
      %v550 = vshrl.u32 %v511, 16
      %v552 = vor.u32 %v550, %v548
      %v554 = vshll.u32 %v512, 16
      %v556 = vrot.slane %v554, 1
      %v557 = vsel %vm537, %v552, %v556
      %v558 = vshrl.u32 %v512, 16
      %v560 = vor.u32 %v558, %v556
      %v562 = vshll.u32 %v513, 16
      %v564 = vrot.slane %v562, 1
      %v565 = vsel %vm537, %v560, %v564
      %v566 = vshrl.u32 %v513, 16
      %v568 = vor.u32 %v566, %v564
      %v570 = vshll.u32 %v514, 16
      %v572 = vrot.slane %v570, 1
      %v573 = vsel %vm537, %v568, %v572
      %v574 = vshrl.u32 %v514, 16
      %v576 = vor.u32 %v574, %v572
      %v578 = vshll.u32 %v515, 16
      %v580 = vrot.slane %v578, 1
      %v581 = vsel %vm537, %v576, %v580
      %v582 = vshrl.u32 %v515, 16
      %v584 = vor.u32 %v582, %v580
      %v586 = vshll.u32 %v516, 16
      %v588 = vrot.slane %v586, 1
      %v589 = vsel %vm537, %v584, %v588
      %v590 = vshrl.u32 %v516, 16
      %v592 = vor.u32 %v590, %v588
      %v594 = vshll.u32 %v517, 16
      %v596 = vrot.slane %v594, 1
      %v597 = vsel %vm537, %v592, %v596
      %v598 = vshrl.u32 %v517, 16
      %v600 = vor.u32 %v598, %v596
      %v602 = vshll.u32 %v518, 16
      %v604 = vrot.slane %v602, 1
      %v605 = vsel %vm537, %v600, %v604
      %v606 = vshrl.u32 %v518, 16
      %v608 = vor.u32 %v606, %v604
      %v610 = vshll.u32 %v531, 16
      %v612 = vrot.slane %v610, 1
      %v613 = vsel %vm537, %v608, %v612
      %vm614 = vcmask 31744
      %v616 = vsel %vm614, %v549, 0
      %v619 = vsel %vm614, %v557, 0
      %v622 = vsel %vm614, %v565, 0
      %v625 = vsel %vm614, %v573, 0
      %v628 = vsel %vm614, %v581, 0
      %v631 = vsel %vm614, %v589, 0
      %v634 = vsel %vm614, %v597, 0
      %v637 = vsel %vm614, %v605, 0
      %v640 = vsel %vm614, %v613, 0
      %vm642 = vcmask 1041408
      %v644 = vsel %vm642, %v536, 0
      %646 = vmatprep.subr.bf16.mxu0 0
      %647 = vmatpush1.bf16.msra.mxu0 %v644
      %648 = vmatprep.subr.bf16.mxu0 0
      %649 = vmatpush1.bf16.msra.mxu0 0
      %650 = vmatprep.subr.bf16.mxu0 0
      %651 = vmatpush1.bf16.msra.mxu0 0
      %652 = vmatprep.subr.bf16.mxu0 0
      %653 = vmatpush1.bf16.msra.mxu0 0
      %654 = vmatprep.subr.bf16.mxu0 0
      %655 = vmatpush1.bf16.msra.mxu0 0
      %656 = vmatprep.subr.bf16.mxu0 0
      %657 = vmatpush1.bf16.msra.mxu0 0
      %658 = vmatprep.subr.bf16.mxu0 0
      %659 = vmatpush1.bf16.msra.mxu0 0
      %660 = vmatprep.subr.bf16.mxu0 0
      %661 = vmatpush1.bf16.msra.mxu0 0
      %662 = vmatprep.subr.bf16.mxu0 0
      %663 = vmatpush1.bf16.msra.mxu0 0
      %664 = vmatprep.subr.bf16.mxu0 0
      %665 = vmatpush1.bf16.msra.mxu0 0
      %666 = vmatprep.subr.bf16.mxu0 0
      %667 = vmatpush1.bf16.msra.mxu0 0
      %668 = vmatprep.subr.bf16.mxu0 0
      %669 = vmatpush1.bf16.msra.mxu0 0
      %670 = vmatprep.subr.bf16.mxu0 0
      %671 = vmatpush1.bf16.msra.mxu0 0
      %672 = vmatprep.subr.bf16.mxu0 0
      %673 = vmatpush1.bf16.msra.mxu0 0
      %674 = vmatprep.subr.bf16.mxu0 0
      %675 = vmatpush1.bf16.msra.mxu0 0
      %676 = vmatprep.subr.bf16.mxu0 0
      %677 = vmatpush1.bf16.msra.mxu0 0
      %678 = vmatprep.mubr.bf16.mxu0 0
      %679 = vmatmul.mubr.bf16.gmra.mrb[0].mxu0 %v616
      %v680 = vpop.f32.mrb[0].mxu0
      %v681 = vadd.f32 0.0, %v680
      %v682 = vpop.f32.mrb[0].mxu0
      %v683 = vpop.f32.mrb[0].mxu0
      %v684 = vadd.f32 0.0, %v683
      %v685 = vpop.f32.mrb[0].mxu0
      %686 = vmatprep.mubr.bf16.mxu0 0
      %687 = vmatmul.mubr.bf16.gmra.mrb[0].mxu0 %v619
      %v688 = vpop.f32.mrb[0].mxu0
      %v689 = vadd.f32 0.0, %v688
      %v690 = vpop.f32.mrb[0].mxu0
      %v691 = vpop.f32.mrb[0].mxu0
      %v692 = vadd.f32 0.0, %v691
      %v693 = vpop.f32.mrb[0].mxu0
      %694 = vmatprep.mubr.bf16.mxu0 0
      %695 = vmatmul.mubr.bf16.gmra.mrb[0].mxu0 %v622
      %v696 = vpop.f32.mrb[0].mxu0
      %v697 = vadd.f32 0.0, %v696
      %v698 = vpop.f32.mrb[0].mxu0
      %v699 = vpop.f32.mrb[0].mxu0
      %v700 = vadd.f32 0.0, %v699
      %v701 = vpop.f32.mrb[0].mxu0
      %702 = vmatprep.mubr.bf16.mxu0 0
      %703 = vmatmul.mubr.bf16.gmra.mrb[0].mxu0 %v625
      %v704 = vpop.f32.mrb[0].mxu0
      %v705 = vadd.f32 0.0, %v704
      %v706 = vpop.f32.mrb[0].mxu0
      %v707 = vpop.f32.mrb[0].mxu0
      %v708 = vadd.f32 0.0, %v707
      %v709 = vpop.f32.mrb[0].mxu0
      %710 = vmatprep.mubr.bf16.mxu0 0
      %711 = vmatmul.mubr.bf16.gmra.mrb[0].mxu0 %v628
      %v712 = vpop.f32.mrb[0].mxu0
      %v713 = vadd.f32 0.0, %v712
      %v714 = vpop.f32.mrb[0].mxu0
      %v715 = vpop.f32.mrb[0].mxu0
      %v716 = vadd.f32 0.0, %v715
      %v717 = vpop.f32.mrb[0].mxu0
      %718 = vmatprep.mubr.bf16.mxu0 0
      %719 = vmatmul.mubr.bf16.gmra.mrb[0].mxu0 %v631
      %v720 = vpop.f32.mrb[0].mxu0
      %v721 = vadd.f32 0.0, %v720
      %v722 = vpop.f32.mrb[0].mxu0
      %v723 = vpop.f32.mrb[0].mxu0
      %v724 = vadd.f32 0.0, %v723
      %v725 = vpop.f32.mrb[0].mxu0
      %726 = vmatprep.mubr.bf16.mxu0 0
      %727 = vmatmul.mubr.bf16.gmra.mrb[0].mxu0 %v634
      %v728 = vpop.f32.mrb[0].mxu0
      %v729 = vadd.f32 0.0, %v728
      %v730 = vpop.f32.mrb[0].mxu0
      %v731 = vpop.f32.mrb[0].mxu0
      %v732 = vadd.f32 0.0, %v731
      %v733 = vpop.f32.mrb[0].mxu0
      %734 = vmatprep.mubr.bf16.mxu0 0
      %735 = vmatmul.mubr.bf16.gmra.mrb[0].mxu0 %v637
      %v736 = vpop.f32.mrb[0].mxu0
      %v737 = vadd.f32 0.0, %v736
      %v738 = vpop.f32.mrb[0].mxu0
      %v739 = vpop.f32.mrb[0].mxu0
      %v740 = vadd.f32 0.0, %v739
      %v741 = vpop.f32.mrb[0].mxu0
      %742 = vmatprep.mubr.bf16.mxu0 0
      %743 = vmatmul.mubr.bf16.gmra.mrb[0].mxu0 %v640
      %v744 = vpop.f32.mrb[0].mxu0
      %v745 = vadd.f32 0.0, %v744
      %v746 = vpop.f32.mrb[0].mxu0
      %v747 = vpop.f32.mrb[0].mxu0
      %v748 = vadd.f32 0.0, %v747
      %v749 = vpop.f32.mrb[0].mxu0
      %750 = vdwg.mxu0
      %v751 = vsel %vm614, %v510, 0
      %v753 = vsel %vm614, %v511, 0
      %v755 = vsel %vm614, %v512, 0
      %v757 = vsel %vm614, %v513, 0
      %v759 = vsel %vm614, %v514, 0
      %v761 = vsel %vm614, %v515, 0
      %v763 = vsel %vm614, %v516, 0
      %v765 = vsel %vm614, %v517, 0
      %v767 = vsel %vm614, %v518, 0
      %v770 = vsel %vm642, %v534, 0
      %772 = vmatprep.subr.bf16.mxu0 0
      %773 = vmatpush1.bf16.msra.mxu0 %v770
      %774 = vmatprep.subr.bf16.mxu0 0
      %775 = vmatpush1.bf16.msra.mxu0 0
      %776 = vmatprep.subr.bf16.mxu0 0
      %777 = vmatpush1.bf16.msra.mxu0 0
      %778 = vmatprep.subr.bf16.mxu0 0
      %779 = vmatpush1.bf16.msra.mxu0 0
      %780 = vmatprep.subr.bf16.mxu0 0
      %781 = vmatpush1.bf16.msra.mxu0 0
      %782 = vmatprep.subr.bf16.mxu0 0
      %783 = vmatpush1.bf16.msra.mxu0 0
      %784 = vmatprep.subr.bf16.mxu0 0
      %785 = vmatpush1.bf16.msra.mxu0 0
      %786 = vmatprep.subr.bf16.mxu0 0
      %787 = vmatpush1.bf16.msra.mxu0 0
      %788 = vmatprep.subr.bf16.mxu0 0
      %789 = vmatpush1.bf16.msra.mxu0 0
      %790 = vmatprep.subr.bf16.mxu0 0
      %791 = vmatpush1.bf16.msra.mxu0 0
      %792 = vmatprep.subr.bf16.mxu0 0
      %793 = vmatpush1.bf16.msra.mxu0 0
      %794 = vmatprep.subr.bf16.mxu0 0
      %795 = vmatpush1.bf16.msra.mxu0 0
      %796 = vmatprep.subr.bf16.mxu0 0
      %797 = vmatpush1.bf16.msra.mxu0 0
      %798 = vmatprep.subr.bf16.mxu0 0
      %799 = vmatpush1.bf16.msra.mxu0 0
      %800 = vmatprep.subr.bf16.mxu0 0
      %801 = vmatpush1.bf16.msra.mxu0 0
      %802 = vmatprep.subr.bf16.mxu0 0
      %803 = vmatpush1.bf16.msra.mxu0 0
      %804 = vmatprep.mubr.bf16.mxu0 0
      %805 = vmatmul.mubr.bf16.gmra.mrb[0].mxu0 %v751
      %v806 = vpop.f32.mrb[0].mxu0
      %v807 = vadd.f32 %v681, %v806
      %v808 = vpop.f32.mrb[0].mxu0
      %v809 = vpop.f32.mrb[0].mxu0
      %v810 = vadd.f32 %v684, %v809
      %v811 = vpop.f32.mrb[0].mxu0
      %812 = vmatprep.mubr.bf16.mxu0 0
      %813 = vmatmul.mubr.bf16.gmra.mrb[0].mxu0 %v753
      %v814 = vpop.f32.mrb[0].mxu0
      %v815 = vadd.f32 %v689, %v814
      %v816 = vpop.f32.mrb[0].mxu0
      %v817 = vpop.f32.mrb[0].mxu0
      %v818 = vadd.f32 %v692, %v817
      %v819 = vpop.f32.mrb[0].mxu0
      %820 = vmatprep.mubr.bf16.mxu0 0
      %821 = vmatmul.mubr.bf16.gmra.mrb[0].mxu0 %v755
      %v822 = vpop.f32.mrb[0].mxu0
      %v823 = vadd.f32 %v697, %v822
      %v824 = vpop.f32.mrb[0].mxu0
      %v825 = vpop.f32.mrb[0].mxu0
      %v826 = vadd.f32 %v700, %v825
      %v827 = vpop.f32.mrb[0].mxu0
      %828 = vmatprep.mubr.bf16.mxu0 0
      %829 = vmatmul.mubr.bf16.gmra.mrb[0].mxu0 %v757
      %v830 = vpop.f32.mrb[0].mxu0
      %v831 = vadd.f32 %v705, %v830
      %v832 = vpop.f32.mrb[0].mxu0
      %v833 = vpop.f32.mrb[0].mxu0
      %v834 = vadd.f32 %v708, %v833
      %v835 = vpop.f32.mrb[0].mxu0
      %836 = vmatprep.mubr.bf16.mxu0 0
      %837 = vmatmul.mubr.bf16.gmra.mrb[0].mxu0 %v759
      %v838 = vpop.f32.mrb[0].mxu0
      %v839 = vadd.f32 %v713, %v838
      %v840 = vpop.f32.mrb[0].mxu0
      %v841 = vpop.f32.mrb[0].mxu0
      %v842 = vadd.f32 %v716, %v841
      %v843 = vpop.f32.mrb[0].mxu0
      %844 = vmatprep.mubr.bf16.mxu0 0
      %845 = vmatmul.mubr.bf16.gmra.mrb[0].mxu0 %v761
      %v846 = vpop.f32.mrb[0].mxu0
      %v847 = vadd.f32 %v721, %v846
      %v848 = vpop.f32.mrb[0].mxu0
      %v849 = vpop.f32.mrb[0].mxu0
      %v850 = vadd.f32 %v724, %v849
      %v851 = vpop.f32.mrb[0].mxu0
      %852 = vmatprep.mubr.bf16.mxu0 0
      %853 = vmatmul.mubr.bf16.gmra.mrb[0].mxu0 %v763
      %v854 = vpop.f32.mrb[0].mxu0
      %v855 = vadd.f32 %v729, %v854
      %v856 = vpop.f32.mrb[0].mxu0
      %v857 = vpop.f32.mrb[0].mxu0
      %v858 = vadd.f32 %v732, %v857
      %v859 = vpop.f32.mrb[0].mxu0
      %860 = vmatprep.mubr.bf16.mxu0 0
      %861 = vmatmul.mubr.bf16.gmra.mrb[0].mxu0 %v765
      %v862 = vpop.f32.mrb[0].mxu0
      %v863 = vadd.f32 %v737, %v862
      %v864 = vpop.f32.mrb[0].mxu0
      %v865 = vpop.f32.mrb[0].mxu0
      %v866 = vadd.f32 %v740, %v865
      %v867 = vpop.f32.mrb[0].mxu0
      %868 = vmatprep.mubr.bf16.mxu0 0
      %869 = vmatmul.mubr.bf16.gmra.mrb[0].mxu0 %v767
      %v870 = vpop.f32.mrb[0].mxu0
      %v871 = vadd.f32 %v745, %v870
      %v872 = vpop.f32.mrb[0].mxu0
      %v873 = vpop.f32.mrb[0].mxu0
      %v874 = vadd.f32 %v748, %v873
      %v875 = vpop.f32.mrb[0].mxu0
      %876 = vdwg.mxu0
      %s877 = scalar_lea.vmem %s4, 4
      %v878 = vld [vmem:[%s877] sm:$0x3]
      %vm879 = vcmask 1046528
      %v880 = vrot.slane %v510, 1
      %v881 = vrot.slane %v511, 1
      %v882 = vsel %vm879, %v880, %v881
      %v883 = vrot.slane %v512, 1
      %v884 = vsel %vm879, %v881, %v883
      %v885 = vrot.slane %v513, 1
      %v886 = vsel %vm879, %v883, %v885
      %v887 = vrot.slane %v514, 1
      %v888 = vsel %vm879, %v885, %v887
      %v889 = vrot.slane %v515, 1
      %v890 = vsel %vm879, %v887, %v889
      %v891 = vrot.slane %v516, 1
      %v892 = vsel %vm879, %v889, %v891
      %v893 = vrot.slane %v517, 1
      %v894 = vsel %vm879, %v891, %v893
      %v895 = vrot.slane %v518, 1
      %v896 = vsel %vm879, %v893, %v895
      %v897 = vrot.slane %v531, 1
      %v898 = vsel %vm879, %v895, %v897
      %v900 = vsel %vm614, %v882, 0
      %v903 = vsel %vm614, %v884, 0
      %v906 = vsel %vm614, %v886, 0
      %v909 = vsel %vm614, %v888, 0
      %v912 = vsel %vm614, %v890, 0
      %v915 = vsel %vm614, %v892, 0
      %v918 = vsel %vm614, %v894, 0
      %v921 = vsel %vm614, %v896, 0
      %v924 = vsel %vm614, %v898, 0
      %v927 = vsel %vm642, %v878, 0
      %929 = vmatprep.subr.bf16.mxu0 0
      %930 = vmatpush1.bf16.msra.mxu0 %v927
      %931 = vmatprep.subr.bf16.mxu0 0
      %932 = vmatpush1.bf16.msra.mxu0 0
      %933 = vmatprep.subr.bf16.mxu0 0
      %934 = vmatpush1.bf16.msra.mxu0 0
      %935 = vmatprep.subr.bf16.mxu0 0
      %936 = vmatpush1.bf16.msra.mxu0 0
      %937 = vmatprep.subr.bf16.mxu0 0
      %938 = vmatpush1.bf16.msra.mxu0 0
      %939 = vmatprep.subr.bf16.mxu0 0
      %940 = vmatpush1.bf16.msra.mxu0 0
      %941 = vmatprep.subr.bf16.mxu0 0
      %942 = vmatpush1.bf16.msra.mxu0 0
      %943 = vmatprep.subr.bf16.mxu0 0
      %944 = vmatpush1.bf16.msra.mxu0 0
      %945 = vmatprep.subr.bf16.mxu0 0
      %946 = vmatpush1.bf16.msra.mxu0 0
      %947 = vmatprep.subr.bf16.mxu0 0
      %948 = vmatpush1.bf16.msra.mxu0 0
      %949 = vmatprep.subr.bf16.mxu0 0
      %950 = vmatpush1.bf16.msra.mxu0 0
      %951 = vmatprep.subr.bf16.mxu0 0
      %952 = vmatpush1.bf16.msra.mxu0 0
      %953 = vmatprep.subr.bf16.mxu0 0
      %954 = vmatpush1.bf16.msra.mxu0 0
      %955 = vmatprep.subr.bf16.mxu0 0
      %956 = vmatpush1.bf16.msra.mxu0 0
      %957 = vmatprep.subr.bf16.mxu0 0
      %958 = vmatpush1.bf16.msra.mxu0 0
      %959 = vmatprep.subr.bf16.mxu0 0
      %960 = vmatpush1.bf16.msra.mxu0 0
      %961 = vmatprep.mubr.bf16.mxu0 0
      %962 = vmatmul.mubr.bf16.gmra.mrb[0].mxu0 %v900
      %v963 = vpop.f32.mrb[0].mxu0
      %v964 = vadd.f32 0.0, %v963
      %v965 = vpop.f32.mrb[0].mxu0
      %v966 = vpop.f32.mrb[0].mxu0
      %v967 = vadd.f32 0.0, %v966
      %v968 = vpop.f32.mrb[0].mxu0
      %969 = vmatprep.mubr.bf16.mxu0 0
      %970 = vmatmul.mubr.bf16.gmra.mrb[0].mxu0 %v903
      %v971 = vpop.f32.mrb[0].mxu0
      %v972 = vadd.f32 0.0, %v971
      %v973 = vpop.f32.mrb[0].mxu0
      %v974 = vpop.f32.mrb[0].mxu0
      %v975 = vadd.f32 0.0, %v974
      %v976 = vpop.f32.mrb[0].mxu0
      %977 = vmatprep.mubr.bf16.mxu0 0
      %978 = vmatmul.mubr.bf16.gmra.mrb[0].mxu0 %v906
      %v979 = vpop.f32.mrb[0].mxu0
      %v980 = vadd.f32 0.0, %v979
      %v981 = vpop.f32.mrb[0].mxu0
      %v982 = vpop.f32.mrb[0].mxu0
      %v983 = vadd.f32 0.0, %v982
      %v984 = vpop.f32.mrb[0].mxu0
      %985 = vmatprep.mubr.bf16.mxu0 0
      %986 = vmatmul.mubr.bf16.gmra.mrb[0].mxu0 %v909
      %v987 = vpop.f32.mrb[0].mxu0
      %v988 = vadd.f32 0.0, %v987
      %v989 = vpop.f32.mrb[0].mxu0
      %v990 = vpop.f32.mrb[0].mxu0
      %v991 = vadd.f32 0.0, %v990
      %v992 = vpop.f32.mrb[0].mxu0
      %993 = vmatprep.mubr.bf16.mxu0 0
      %994 = vmatmul.mubr.bf16.gmra.mrb[0].mxu0 %v912
      %v995 = vpop.f32.mrb[0].mxu0
      %v996 = vadd.f32 0.0, %v995
      %v997 = vpop.f32.mrb[0].mxu0
      %v998 = vpop.f32.mrb[0].mxu0
      %v999 = vadd.f32 0.0, %v998
      %v1000 = vpop.f32.mrb[0].mxu0
      %1001 = vmatprep.mubr.bf16.mxu0 0
      %1002 = vmatmul.mubr.bf16.gmra.mrb[0].mxu0 %v915
      %v1003 = vpop.f32.mrb[0].mxu0
      %v1004 = vadd.f32 0.0, %v1003
      %v1005 = vpop.f32.mrb[0].mxu0
      %v1006 = vpop.f32.mrb[0].mxu0
      %v1007 = vadd.f32 0.0, %v1006
      %v1008 = vpop.f32.mrb[0].mxu0
      %1009 = vmatprep.mubr.bf16.mxu0 0
      %1010 = vmatmul.mubr.bf16.gmra.mrb[0].mxu0 %v918
      %v1011 = vpop.f32.mrb[0].mxu0
      %v1012 = vadd.f32 0.0, %v1011
      %v1013 = vpop.f32.mrb[0].mxu0
      %v1014 = vpop.f32.mrb[0].mxu0
      %v1015 = vadd.f32 0.0, %v1014
      %v1016 = vpop.f32.mrb[0].mxu0
      %1017 = vmatprep.mubr.bf16.mxu0 0
      %1018 = vmatmul.mubr.bf16.gmra.mrb[0].mxu0 %v921
      %v1019 = vpop.f32.mrb[0].mxu0
      %v1020 = vadd.f32 0.0, %v1019
      %v1021 = vpop.f32.mrb[0].mxu0
      %v1022 = vpop.f32.mrb[0].mxu0
      %v1023 = vadd.f32 0.0, %v1022
      %v1024 = vpop.f32.mrb[0].mxu0
      %1025 = vmatprep.mubr.bf16.mxu0 0
      %1026 = vmatmul.mubr.bf16.gmra.mrb[0].mxu0 %v924
      %v1027 = vpop.f32.mrb[0].mxu0
      %v1028 = vadd.f32 0.0, %v1027
      %v1029 = vpop.f32.mrb[0].mxu0
      %v1030 = vpop.f32.mrb[0].mxu0
      %v1031 = vadd.f32 0.0, %v1030
      %v1032 = vpop.f32.mrb[0].mxu0
      %1033 = vdwg.mxu0
      %v1034 = vadd.f32 %v807, %v964
      %v1035 = vadd.f32 %v810, %v967
      %v1036 = vadd.f32 %v815, %v972
      %v1037 = vadd.f32 %v818, %v975
      %v1038 = vadd.f32 %v823, %v980
      %v1039 = vadd.f32 %v826, %v983
      %v1040 = vadd.f32 %v831, %v988
      %v1041 = vadd.f32 %v834, %v991
      %v1042 = vadd.f32 %v839, %v996
      %v1043 = vadd.f32 %v842, %v999
      %v1044 = vadd.f32 %v847, %v1004
      %v1045 = vadd.f32 %v850, %v1007
      %v1046 = vadd.f32 %v855, %v1012
      %v1047 = vadd.f32 %v858, %v1015
      %v1048 = vadd.f32 %v863, %v1020
      %v1049 = vadd.f32 %v866, %v1023
      %v1050 = vadd.f32 %v871, %v1028
      %v1051 = vadd.f32 %v874, %v1031
      %s1052 = scalar_lea.vmem %s4, 6
      %v1053 = vld [vmem:[%s1052] sm:$0x3]
      %v1054 = vrot.slane %v532, 1
      %v1055 = vsel %vm879, %v897, %v1054
      %v1057 = vsel %vm614, %v1055, 0
      %v1060 = vsel %vm642, %v1053, 0
      %1062 = vmatprep.subr.bf16.mxu0 0
      %1063 = vmatpush1.bf16.msra.mxu0 %v1060
      %1064 = vmatprep.subr.bf16.mxu0 0
      %1065 = vmatpush1.bf16.msra.mxu0 0
      %1066 = vmatprep.subr.bf16.mxu0 0
      %1067 = vmatpush1.bf16.msra.mxu0 0
      %1068 = vmatprep.subr.bf16.mxu0 0
      %1069 = vmatpush1.bf16.msra.mxu0 0
      %1070 = vmatprep.subr.bf16.mxu0 0
      %1071 = vmatpush1.bf16.msra.mxu0 0
      %1072 = vmatprep.subr.bf16.mxu0 0
      %1073 = vmatpush1.bf16.msra.mxu0 0
      %1074 = vmatprep.subr.bf16.mxu0 0
      %1075 = vmatpush1.bf16.msra.mxu0 0
      %1076 = vmatprep.subr.bf16.mxu0 0
      %1077 = vmatpush1.bf16.msra.mxu0 0
      %1078 = vmatprep.subr.bf16.mxu0 0
      %1079 = vmatpush1.bf16.msra.mxu0 0
      %1080 = vmatprep.subr.bf16.mxu0 0
      %1081 = vmatpush1.bf16.msra.mxu0 0
      %1082 = vmatprep.subr.bf16.mxu0 0
      %1083 = vmatpush1.bf16.msra.mxu0 0
      %1084 = vmatprep.subr.bf16.mxu0 0
      %1085 = vmatpush1.bf16.msra.mxu0 0
      %1086 = vmatprep.subr.bf16.mxu0 0
      %1087 = vmatpush1.bf16.msra.mxu0 0
      %1088 = vmatprep.subr.bf16.mxu0 0
      %1089 = vmatpush1.bf16.msra.mxu0 0
      %1090 = vmatprep.subr.bf16.mxu0 0
      %1091 = vmatpush1.bf16.msra.mxu0 0
      %1092 = vmatprep.subr.bf16.mxu0 0
      %1093 = vmatpush1.bf16.msra.mxu0 0
      %1094 = vmatprep.mubr.bf16.mxu0 0
      %1095 = vmatmul.mubr.bf16.gmra.mrb[0].mxu0 %v903
      %v1096 = vpop.f32.mrb[0].mxu0
      %v1097 = vadd.f32 0.0, %v1096
      %v1098 = vpop.f32.mrb[0].mxu0
      %v1099 = vpop.f32.mrb[0].mxu0
      %v1100 = vadd.f32 0.0, %v1099
      %v1101 = vpop.f32.mrb[0].mxu0
      %1102 = vmatprep.mubr.bf16.mxu0 0
      %1103 = vmatmul.mubr.bf16.gmra.mrb[0].mxu0 %v906
      %v1104 = vpop.f32.mrb[0].mxu0
      %v1105 = vadd.f32 0.0, %v1104
      %v1106 = vpop.f32.mrb[0].mxu0
      %v1107 = vpop.f32.mrb[0].mxu0
      %v1108 = vadd.f32 0.0, %v1107
      %v1109 = vpop.f32.mrb[0].mxu0
      %1110 = vmatprep.mubr.bf16.mxu0 0
      %1111 = vmatmul.mubr.bf16.gmra.mrb[0].mxu0 %v909
      %v1112 = vpop.f32.mrb[0].mxu0
      %v1113 = vadd.f32 0.0, %v1112
      %v1114 = vpop.f32.mrb[0].mxu0
      %v1115 = vpop.f32.mrb[0].mxu0
      %v1116 = vadd.f32 0.0, %v1115
      %v1117 = vpop.f32.mrb[0].mxu0
      %1118 = vmatprep.mubr.bf16.mxu0 0
      %1119 = vmatmul.mubr.bf16.gmra.mrb[0].mxu0 %v912
      %v1120 = vpop.f32.mrb[0].mxu0
      %v1121 = vadd.f32 0.0, %v1120
      %v1122 = vpop.f32.mrb[0].mxu0
      %v1123 = vpop.f32.mrb[0].mxu0
      %v1124 = vadd.f32 0.0, %v1123
      %v1125 = vpop.f32.mrb[0].mxu0
      %1126 = vmatprep.mubr.bf16.mxu0 0
      %1127 = vmatmul.mubr.bf16.gmra.mrb[0].mxu0 %v915
      %v1128 = vpop.f32.mrb[0].mxu0
      %v1129 = vadd.f32 0.0, %v1128
      %v1130 = vpop.f32.mrb[0].mxu0
      %v1131 = vpop.f32.mrb[0].mxu0
      %v1132 = vadd.f32 0.0, %v1131
      %v1133 = vpop.f32.mrb[0].mxu0
      %1134 = vmatprep.mubr.bf16.mxu0 0
      %1135 = vmatmul.mubr.bf16.gmra.mrb[0].mxu0 %v918
      %v1136 = vpop.f32.mrb[0].mxu0
      %v1137 = vadd.f32 0.0, %v1136
      %v1138 = vpop.f32.mrb[0].mxu0
      %v1139 = vpop.f32.mrb[0].mxu0
      %v1140 = vadd.f32 0.0, %v1139
      %v1141 = vpop.f32.mrb[0].mxu0
      %1142 = vmatprep.mubr.bf16.mxu0 0
      %1143 = vmatmul.mubr.bf16.gmra.mrb[0].mxu0 %v921
      %v1144 = vpop.f32.mrb[0].mxu0
      %v1145 = vadd.f32 0.0, %v1144
      %v1146 = vpop.f32.mrb[0].mxu0
      %v1147 = vpop.f32.mrb[0].mxu0
      %v1148 = vadd.f32 0.0, %v1147
      %v1149 = vpop.f32.mrb[0].mxu0
      %1150 = vmatprep.mubr.bf16.mxu0 0
      %1151 = vmatmul.mubr.bf16.gmra.mrb[0].mxu0 %v924
      %v1152 = vpop.f32.mrb[0].mxu0
      %v1153 = vadd.f32 0.0, %v1152
      %v1154 = vpop.f32.mrb[0].mxu0
      %v1155 = vpop.f32.mrb[0].mxu0
      %v1156 = vadd.f32 0.0, %v1155
      %v1157 = vpop.f32.mrb[0].mxu0
      %1158 = vmatprep.mubr.bf16.mxu0 0
      %1159 = vmatmul.mubr.bf16.gmra.mrb[0].mxu0 %v1057
      %v1160 = vpop.f32.mrb[0].mxu0
      %v1161 = vadd.f32 0.0, %v1160
      %v1162 = vpop.f32.mrb[0].mxu0
      %v1163 = vpop.f32.mrb[0].mxu0
      %v1164 = vadd.f32 0.0, %v1163
      %v1165 = vpop.f32.mrb[0].mxu0
      %1166 = vdwg.mxu0
      %v1167 = vadd.f32 %v1034, %v1097
      %v1168 = vadd.f32 %v1035, %v1100
      %v1169 = vadd.f32 %v1036, %v1105
      %v1170 = vadd.f32 %v1037, %v1108
      %v1171 = vadd.f32 %v1038, %v1113
      %v1172 = vadd.f32 %v1039, %v1116
      %v1173 = vadd.f32 %v1040, %v1121
      %v1174 = vadd.f32 %v1041, %v1124
      %v1175 = vadd.f32 %v1042, %v1129
      %v1176 = vadd.f32 %v1043, %v1132
      %v1177 = vadd.f32 %v1044, %v1137
      %v1178 = vadd.f32 %v1045, %v1140
      %v1179 = vadd.f32 %v1046, %v1145
      %v1180 = vadd.f32 %v1047, %v1148
      %v1181 = vadd.f32 %v1048, %v1153
      %v1182 = vadd.f32 %v1049, %v1156
      %v1183 = vadd.f32 %v1050, %v1161
      %v1184 = vadd.f32 %v1051, %v1164
      %s1185 = scalar_lea.vmem %s4, 8
      %v1186 = vld [vmem:[%s1185] sm:$0x3]
      %vm1187 = vsmask.f32 6400
      %v1188 = vrot.slane %v550, 1
      %v1189 = vrot.slane %v546, 2
      %v1190 = vor.u32 %v1188, %v1189
      %v1191 = vrot.slane %v558, 1
      %v1192 = vrot.slane %v554, 2
      %v1193 = vor.u32 %v1191, %v1192
      %v1194 = vsel %vm1187, %v1190, %v1193
      %v1195 = vrot.slane %v566, 1
      %v1196 = vrot.slane %v562, 2
      %v1197 = vor.u32 %v1195, %v1196
      %v1198 = vsel %vm1187, %v1193, %v1197
      %v1199 = vrot.slane %v574, 1
      %v1200 = vrot.slane %v570, 2
      %v1201 = vor.u32 %v1199, %v1200
      %v1202 = vsel %vm1187, %v1197, %v1201
      %v1203 = vrot.slane %v582, 1
      %v1204 = vrot.slane %v578, 2
      %v1205 = vor.u32 %v1203, %v1204
      %v1206 = vsel %vm1187, %v1201, %v1205
      %v1207 = vrot.slane %v590, 1
      %v1208 = vrot.slane %v586, 2
      %v1209 = vor.u32 %v1207, %v1208
      %v1210 = vsel %vm1187, %v1205, %v1209
      %v1211 = vrot.slane %v598, 1
      %v1212 = vrot.slane %v594, 2
      %v1213 = vor.u32 %v1211, %v1212
      %v1214 = vsel %vm1187, %v1209, %v1213
      %v1215 = vrot.slane %v606, 1
      %v1216 = vrot.slane %v602, 2
      %v1217 = vor.u32 %v1215, %v1216
      %v1218 = vsel %vm1187, %v1213, %v1217
      %v1219 = vshrl.u32 %v531, 16
      %v1221 = vrot.slane %v1219, 1
      %v1222 = vrot.slane %v610, 2
      %v1223 = vor.u32 %v1221, %v1222
      %v1224 = vsel %vm1187, %v1217, %v1223
      %v1226 = vshrl.u32 %v532, 16
      %v1228 = vrot.slane %v1226, 1
      %v1229 = vshll.u32 %v532, 16
      %v1231 = vrot.slane %v1229, 2
      %v1232 = vor.u32 %v1228, %v1231
      %v1233 = vsel %vm1187, %v1223, %v1232
      %v1235 = vsel %vm614, %v1194, 0
      %v1238 = vsel %vm614, %v1198, 0
      %v1241 = vsel %vm614, %v1202, 0
      %v1244 = vsel %vm614, %v1206, 0
      %v1247 = vsel %vm614, %v1210, 0
      %v1250 = vsel %vm614, %v1214, 0
      %v1253 = vsel %vm614, %v1218, 0
      %v1256 = vsel %vm614, %v1224, 0
      %v1259 = vsel %vm614, %v1233, 0
      %v1262 = vsel %vm642, %v1186, 0
      %1264 = vmatprep.subr.bf16.mxu0 0
      %1265 = vmatpush1.bf16.msra.mxu0 %v1262
      %1266 = vmatprep.subr.bf16.mxu0 0
      %1267 = vmatpush1.bf16.msra.mxu0 0
      %1268 = vmatprep.subr.bf16.mxu0 0
      %1269 = vmatpush1.bf16.msra.mxu0 0
      %1270 = vmatprep.subr.bf16.mxu0 0
      %1271 = vmatpush1.bf16.msra.mxu0 0
      %1272 = vmatprep.subr.bf16.mxu0 0
      %1273 = vmatpush1.bf16.msra.mxu0 0
      %1274 = vmatprep.subr.bf16.mxu0 0
      %1275 = vmatpush1.bf16.msra.mxu0 0
      %1276 = vmatprep.subr.bf16.mxu0 0
      %1277 = vmatpush1.bf16.msra.mxu0 0
      %1278 = vmatprep.subr.bf16.mxu0 0
      %1279 = vmatpush1.bf16.msra.mxu0 0
      %1280 = vmatprep.subr.bf16.mxu0 0
      %1281 = vmatpush1.bf16.msra.mxu0 0
      %1282 = vmatprep.subr.bf16.mxu0 0
      %1283 = vmatpush1.bf16.msra.mxu0 0
      %1284 = vmatprep.subr.bf16.mxu0 0
      %1285 = vmatpush1.bf16.msra.mxu0 0
      %1286 = vmatprep.subr.bf16.mxu0 0
      %1287 = vmatpush1.bf16.msra.mxu0 0
      %1288 = vmatprep.subr.bf16.mxu0 0
      %1289 = vmatpush1.bf16.msra.mxu0 0
      %1290 = vmatprep.subr.bf16.mxu0 0
      %1291 = vmatpush1.bf16.msra.mxu0 0
      %1292 = vmatprep.subr.bf16.mxu0 0
      %1293 = vmatpush1.bf16.msra.mxu0 0
      %1294 = vmatprep.subr.bf16.mxu0 0
      %1295 = vmatpush1.bf16.msra.mxu0 0
      %1296 = vmatprep.mubr.bf16.mxu0 0
      %1297 = vmatmul.mubr.bf16.gmra.mrb[0].mxu0 %v1235
      %v1298 = vpop.f32.mrb[0].mxu0
      %v1299 = vadd.f32 0.0, %v1298
      %v1300 = vpop.f32.mrb[0].mxu0
      %v1301 = vpop.f32.mrb[0].mxu0
      %v1302 = vadd.f32 0.0, %v1301
      %v1303 = vpop.f32.mrb[0].mxu0
      %1304 = vmatprep.mubr.bf16.mxu0 0
      %1305 = vmatmul.mubr.bf16.gmra.mrb[0].mxu0 %v1238
      %v1306 = vpop.f32.mrb[0].mxu0
      %v1307 = vadd.f32 0.0, %v1306
      %v1308 = vpop.f32.mrb[0].mxu0
      %v1309 = vpop.f32.mrb[0].mxu0
      %v1310 = vadd.f32 0.0, %v1309
      %v1311 = vpop.f32.mrb[0].mxu0
      %1312 = vmatprep.mubr.bf16.mxu0 0
      %1313 = vmatmul.mubr.bf16.gmra.mrb[0].mxu0 %v1241
      %v1314 = vpop.f32.mrb[0].mxu0
      %v1315 = vadd.f32 0.0, %v1314
      %v1316 = vpop.f32.mrb[0].mxu0
      %v1317 = vpop.f32.mrb[0].mxu0
      %v1318 = vadd.f32 0.0, %v1317
      %v1319 = vpop.f32.mrb[0].mxu0
      %1320 = vmatprep.mubr.bf16.mxu0 0
      %1321 = vmatmul.mubr.bf16.gmra.mrb[0].mxu0 %v1244
      %v1322 = vpop.f32.mrb[0].mxu0
      %v1323 = vadd.f32 0.0, %v1322
      %v1324 = vpop.f32.mrb[0].mxu0
      %v1325 = vpop.f32.mrb[0].mxu0
      %v1326 = vadd.f32 0.0, %v1325
      %v1327 = vpop.f32.mrb[0].mxu0
      %1328 = vmatprep.mubr.bf16.mxu0 0
      %1329 = vmatmul.mubr.bf16.gmra.mrb[0].mxu0 %v1247
      %v1330 = vpop.f32.mrb[0].mxu0
      %v1331 = vadd.f32 0.0, %v1330
      %v1332 = vpop.f32.mrb[0].mxu0
      %v1333 = vpop.f32.mrb[0].mxu0
      %v1334 = vadd.f32 0.0, %v1333
      %v1335 = vpop.f32.mrb[0].mxu0
      %1336 = vmatprep.mubr.bf16.mxu0 0
      %1337 = vmatmul.mubr.bf16.gmra.mrb[0].mxu0 %v1250
      %v1338 = vpop.f32.mrb[0].mxu0
      %v1339 = vadd.f32 0.0, %v1338
      %v1340 = vpop.f32.mrb[0].mxu0
      %v1341 = vpop.f32.mrb[0].mxu0
      %v1342 = vadd.f32 0.0, %v1341
      %v1343 = vpop.f32.mrb[0].mxu0
      %1344 = vmatprep.mubr.bf16.mxu0 0
      %1345 = vmatmul.mubr.bf16.gmra.mrb[0].mxu0 %v1253
      %v1346 = vpop.f32.mrb[0].mxu0
      %v1347 = vadd.f32 0.0, %v1346
      %v1348 = vpop.f32.mrb[0].mxu0
      %v1349 = vpop.f32.mrb[0].mxu0
      %v1350 = vadd.f32 0.0, %v1349
      %v1351 = vpop.f32.mrb[0].mxu0
      %1352 = vmatprep.mubr.bf16.mxu0 0
      %1353 = vmatmul.mubr.bf16.gmra.mrb[0].mxu0 %v1256
      %v1354 = vpop.f32.mrb[0].mxu0
      %v1355 = vadd.f32 0.0, %v1354
      %v1356 = vpop.f32.mrb[0].mxu0
      %v1357 = vpop.f32.mrb[0].mxu0
      %v1358 = vadd.f32 0.0, %v1357
      %v1359 = vpop.f32.mrb[0].mxu0
      %1360 = vmatprep.mubr.bf16.mxu0 0
      %1361 = vmatmul.mubr.bf16.gmra.mrb[0].mxu0 %v1259
      %v1362 = vpop.f32.mrb[0].mxu0
      %v1363 = vadd.f32 0.0, %v1362
      %v1364 = vpop.f32.mrb[0].mxu0
      %v1365 = vpop.f32.mrb[0].mxu0
      %v1366 = vadd.f32 0.0, %v1365
      %v1367 = vpop.f32.mrb[0].mxu0
      %1368 = vdwg.mxu0
      %v1369 = vadd.f32 %v1167, %v1299
      %v1370 = vadd.f32 %v1168, %v1302
      %v1371 = vadd.f32 %v1169, %v1307
      %v1372 = vadd.f32 %v1170, %v1310
      %v1373 = vadd.f32 %v1171, %v1315
      %v1374 = vadd.f32 %v1172, %v1318
      %v1375 = vadd.f32 %v1173, %v1323
      %v1376 = vadd.f32 %v1174, %v1326
      %v1377 = vadd.f32 %v1175, %v1331
      %v1378 = vadd.f32 %v1176, %v1334
      %v1379 = vadd.f32 %v1177, %v1339
      %v1380 = vadd.f32 %v1178, %v1342
      %v1381 = vadd.f32 %v1179, %v1347
      %v1382 = vadd.f32 %v1180, %v1350
      %v1383 = vadd.f32 %v1181, %v1355
      %v1384 = vadd.f32 %v1182, %v1358
      %v1385 = vadd.f32 %v1183, %v1363
      %v1386 = vadd.f32 %v1184, %v1366
      %s1387 = scalar_lea.vmem %s4, 10
      %v1388 = vld [vmem:[%s1387] sm:$0x3]
      %vm1389 = vcmask 1045504
      %v1390 = vrot.slane %v511, 2
      %v1391 = vrot.slane %v512, 2
      %v1392 = vsel %vm1389, %v1390, %v1391
      %v1393 = vrot.slane %v513, 2
      %v1394 = vsel %vm1389, %v1391, %v1393
      %v1395 = vrot.slane %v514, 2
      %v1396 = vsel %vm1389, %v1393, %v1395
      %v1397 = vrot.slane %v515, 2
      %v1398 = vsel %vm1389, %v1395, %v1397
      %v1399 = vrot.slane %v516, 2
      %v1400 = vsel %vm1389, %v1397, %v1399
      %v1401 = vrot.slane %v517, 2
      %v1402 = vsel %vm1389, %v1399, %v1401
      %v1403 = vrot.slane %v518, 2
      %v1404 = vsel %vm1389, %v1401, %v1403
      %v1405 = vrot.slane %v531, 2
      %v1406 = vsel %vm1389, %v1403, %v1405
      %v1407 = vrot.slane %v532, 2
      %v1408 = vsel %vm1389, %v1405, %v1407
      %v1410 = vsel %vm614, %v1392, 0
      %v1413 = vsel %vm614, %v1394, 0
      %v1416 = vsel %vm614, %v1396, 0
      %v1419 = vsel %vm614, %v1398, 0
      %v1422 = vsel %vm614, %v1400, 0
      %v1425 = vsel %vm614, %v1402, 0
      %v1428 = vsel %vm614, %v1404, 0
      %v1431 = vsel %vm614, %v1406, 0
      %v1434 = vsel %vm614, %v1408, 0
      %v1437 = vsel %vm642, %v1388, 0
      %1439 = vmatprep.subr.bf16.mxu0 0
      %1440 = vmatpush1.bf16.msra.mxu0 %v1437
      %1441 = vmatprep.subr.bf16.mxu0 0
      %1442 = vmatpush1.bf16.msra.mxu0 0
      %1443 = vmatprep.subr.bf16.mxu0 0
      %1444 = vmatpush1.bf16.msra.mxu0 0
      %1445 = vmatprep.subr.bf16.mxu0 0
      %1446 = vmatpush1.bf16.msra.mxu0 0
      %1447 = vmatprep.subr.bf16.mxu0 0
      %1448 = vmatpush1.bf16.msra.mxu0 0
      %1449 = vmatprep.subr.bf16.mxu0 0
      %1450 = vmatpush1.bf16.msra.mxu0 0
      %1451 = vmatprep.subr.bf16.mxu0 0
      %1452 = vmatpush1.bf16.msra.mxu0 0
      %1453 = vmatprep.subr.bf16.mxu0 0
      %1454 = vmatpush1.bf16.msra.mxu0 0
      %1455 = vmatprep.subr.bf16.mxu0 0
      %1456 = vmatpush1.bf16.msra.mxu0 0
      %1457 = vmatprep.subr.bf16.mxu0 0
      %1458 = vmatpush1.bf16.msra.mxu0 0
      %1459 = vmatprep.subr.bf16.mxu0 0
      %1460 = vmatpush1.bf16.msra.mxu0 0
      %1461 = vmatprep.subr.bf16.mxu0 0
      %1462 = vmatpush1.bf16.msra.mxu0 0
      %1463 = vmatprep.subr.bf16.mxu0 0
      %1464 = vmatpush1.bf16.msra.mxu0 0
      %1465 = vmatprep.subr.bf16.mxu0 0
      %1466 = vmatpush1.bf16.msra.mxu0 0
      %1467 = vmatprep.subr.bf16.mxu0 0
      %1468 = vmatpush1.bf16.msra.mxu0 0
      %1469 = vmatprep.subr.bf16.mxu0 0
      %1470 = vmatpush1.bf16.msra.mxu0 0
      %1471 = vmatprep.mubr.bf16.mxu0 0
      %1472 = vmatmul.mubr.bf16.gmra.mrb[0].mxu0 %v1410
      %v1473 = vpop.f32.mrb[0].mxu0
      %v1474 = vadd.f32 0.0, %v1473
      %v1475 = vpop.f32.mrb[0].mxu0
      %v1476 = vpop.f32.mrb[0].mxu0
      %v1477 = vadd.f32 0.0, %v1476
      %v1478 = vpop.f32.mrb[0].mxu0
      %1479 = vmatprep.mubr.bf16.mxu0 0
      %1480 = vmatmul.mubr.bf16.gmra.mrb[0].mxu0 %v1413
      %v1481 = vpop.f32.mrb[0].mxu0
      %v1482 = vadd.f32 0.0, %v1481
      %v1483 = vpop.f32.mrb[0].mxu0
      %v1484 = vpop.f32.mrb[0].mxu0
      %v1485 = vadd.f32 0.0, %v1484
      %v1486 = vpop.f32.mrb[0].mxu0
      %1487 = vmatprep.mubr.bf16.mxu0 0
      %1488 = vmatmul.mubr.bf16.gmra.mrb[0].mxu0 %v1416
      %v1489 = vpop.f32.mrb[0].mxu0
      %v1490 = vadd.f32 0.0, %v1489
      %v1491 = vpop.f32.mrb[0].mxu0
      %v1492 = vpop.f32.mrb[0].mxu0
      %v1493 = vadd.f32 0.0, %v1492
      %v1494 = vpop.f32.mrb[0].mxu0
      %1495 = vmatprep.mubr.bf16.mxu0 0
      %1496 = vmatmul.mubr.bf16.gmra.mrb[0].mxu0 %v1419
      %v1497 = vpop.f32.mrb[0].mxu0
      %v1498 = vadd.f32 0.0, %v1497
      %v1499 = vpop.f32.mrb[0].mxu0
      %v1500 = vpop.f32.mrb[0].mxu0
      %v1501 = vadd.f32 0.0, %v1500
      %v1502 = vpop.f32.mrb[0].mxu0
      %1503 = vmatprep.mubr.bf16.mxu0 0
      %1504 = vmatmul.mubr.bf16.gmra.mrb[0].mxu0 %v1422
      %v1505 = vpop.f32.mrb[0].mxu0
      %v1506 = vadd.f32 0.0, %v1505
      %v1507 = vpop.f32.mrb[0].mxu0
      %v1508 = vpop.f32.mrb[0].mxu0
      %v1509 = vadd.f32 0.0, %v1508
      %v1510 = vpop.f32.mrb[0].mxu0
      %1511 = vmatprep.mubr.bf16.mxu0 0
      %1512 = vmatmul.mubr.bf16.gmra.mrb[0].mxu0 %v1425
      %v1513 = vpop.f32.mrb[0].mxu0
      %v1514 = vadd.f32 0.0, %v1513
      %v1515 = vpop.f32.mrb[0].mxu0
      %v1516 = vpop.f32.mrb[0].mxu0
      %v1517 = vadd.f32 0.0, %v1516
      %v1518 = vpop.f32.mrb[0].mxu0
      %1519 = vmatprep.mubr.bf16.mxu0 0
      %1520 = vmatmul.mubr.bf16.gmra.mrb[0].mxu0 %v1428
      %v1521 = vpop.f32.mrb[0].mxu0
      %v1522 = vadd.f32 0.0, %v1521
      %v1523 = vpop.f32.mrb[0].mxu0
      %v1524 = vpop.f32.mrb[0].mxu0
      %v1525 = vadd.f32 0.0, %v1524
      %v1526 = vpop.f32.mrb[0].mxu0
      %1527 = vmatprep.mubr.bf16.mxu0 0
      %1528 = vmatmul.mubr.bf16.gmra.mrb[0].mxu0 %v1431
      %v1529 = vpop.f32.mrb[0].mxu0
      %v1530 = vadd.f32 0.0, %v1529
      %v1531 = vpop.f32.mrb[0].mxu0
      %v1532 = vpop.f32.mrb[0].mxu0
      %v1533 = vadd.f32 0.0, %v1532
      %v1534 = vpop.f32.mrb[0].mxu0
      %1535 = vmatprep.mubr.bf16.mxu0 0
      %1536 = vmatmul.mubr.bf16.gmra.mrb[0].mxu0 %v1434
      %v1537 = vpop.f32.mrb[0].mxu0
      %v1538 = vadd.f32 0.0, %v1537
      %v1539 = vpop.f32.mrb[0].mxu0
      %v1540 = vpop.f32.mrb[0].mxu0
      %v1541 = vadd.f32 0.0, %v1540
      %v1542 = vpop.f32.mrb[0].mxu0
      %1543 = vdwg.mxu0
      %v1544 = vadd.f32 %v1369, %v1474
      %v1545 = vadd.f32 %v1370, %v1477
      %v1546 = vadd.f32 %v1371, %v1482
      %v1547 = vadd.f32 %v1372, %v1485
      %v1548 = vadd.f32 %v1373, %v1490
      %v1549 = vadd.f32 %v1374, %v1493
      %v1550 = vadd.f32 %v1375, %v1498
      %v1551 = vadd.f32 %v1376, %v1501
      %v1552 = vadd.f32 %v1377, %v1506
      %v1553 = vadd.f32 %v1378, %v1509
      %v1554 = vadd.f32 %v1379, %v1514
      %v1555 = vadd.f32 %v1380, %v1517
      %v1556 = vadd.f32 %v1381, %v1522
      %v1557 = vadd.f32 %v1382, %v1525
      %v1558 = vadd.f32 %v1383, %v1530
      %v1559 = vadd.f32 %v1384, %v1533
      %v1560 = vadd.f32 %v1385, %v1538
      %v1561 = vadd.f32 %v1386, %v1541
      %s1562 = scalar_lea.vmem %s4, 12
      %v1563 = vld [vmem:[%s1562] sm:$0x3]
      %v1564 = vrot.slane %v533, 2
      %v1565 = vsel %vm1389, %v1407, %v1564
      %v1567 = vsel %vm614, %v1565, 0
      %v1570 = vsel %vm642, %v1563, 0
      %1572 = vmatprep.subr.bf16.mxu0 0
      %1573 = vmatpush1.bf16.msra.mxu0 %v1570
      %1574 = vmatprep.subr.bf16.mxu0 0
      %1575 = vmatpush1.bf16.msra.mxu0 0
      %1576 = vmatprep.subr.bf16.mxu0 0
      %1577 = vmatpush1.bf16.msra.mxu0 0
      %1578 = vmatprep.subr.bf16.mxu0 0
      %1579 = vmatpush1.bf16.msra.mxu0 0
      %1580 = vmatprep.subr.bf16.mxu0 0
      %1581 = vmatpush1.bf16.msra.mxu0 0
      %1582 = vmatprep.subr.bf16.mxu0 0
      %1583 = vmatpush1.bf16.msra.mxu0 0
      %1584 = vmatprep.subr.bf16.mxu0 0
      %1585 = vmatpush1.bf16.msra.mxu0 0
      %1586 = vmatprep.subr.bf16.mxu0 0
      %1587 = vmatpush1.bf16.msra.mxu0 0
      %1588 = vmatprep.subr.bf16.mxu0 0
      %1589 = vmatpush1.bf16.msra.mxu0 0
      %1590 = vmatprep.subr.bf16.mxu0 0
      %1591 = vmatpush1.bf16.msra.mxu0 0
      %1592 = vmatprep.subr.bf16.mxu0 0
      %1593 = vmatpush1.bf16.msra.mxu0 0
      %1594 = vmatprep.subr.bf16.mxu0 0
      %1595 = vmatpush1.bf16.msra.mxu0 0
      %1596 = vmatprep.subr.bf16.mxu0 0
      %1597 = vmatpush1.bf16.msra.mxu0 0
      %1598 = vmatprep.subr.bf16.mxu0 0
      %1599 = vmatpush1.bf16.msra.mxu0 0
      %1600 = vmatprep.subr.bf16.mxu0 0
      %1601 = vmatpush1.bf16.msra.mxu0 0
      %1602 = vmatprep.subr.bf16.mxu0 0
      %1603 = vmatpush1.bf16.msra.mxu0 0
      %1604 = vmatprep.mubr.bf16.mxu0 0
      %1605 = vmatmul.mubr.bf16.gmra.mrb[0].mxu0 %v1413
      %v1606 = vpop.f32.mrb[0].mxu0
      %v1607 = vadd.f32 0.0, %v1606
      %v1608 = vpop.f32.mrb[0].mxu0
      %v1609 = vpop.f32.mrb[0].mxu0
      %v1610 = vadd.f32 0.0, %v1609
      %v1611 = vpop.f32.mrb[0].mxu0
      %1612 = vmatprep.mubr.bf16.mxu0 0
      %1613 = vmatmul.mubr.bf16.gmra.mrb[0].mxu0 %v1416
      %v1614 = vpop.f32.mrb[0].mxu0
      %v1615 = vadd.f32 0.0, %v1614
      %v1616 = vpop.f32.mrb[0].mxu0
      %v1617 = vpop.f32.mrb[0].mxu0
      %v1618 = vadd.f32 0.0, %v1617
      %v1619 = vpop.f32.mrb[0].mxu0
      %1620 = vmatprep.mubr.bf16.mxu0 0
      %1621 = vmatmul.mubr.bf16.gmra.mrb[0].mxu0 %v1419
      %v1622 = vpop.f32.mrb[0].mxu0
      %v1623 = vadd.f32 0.0, %v1622
      %v1624 = vpop.f32.mrb[0].mxu0
      %v1625 = vpop.f32.mrb[0].mxu0
      %v1626 = vadd.f32 0.0, %v1625
      %v1627 = vpop.f32.mrb[0].mxu0
      %1628 = vmatprep.mubr.bf16.mxu0 0
      %1629 = vmatmul.mubr.bf16.gmra.mrb[0].mxu0 %v1422
      %v1630 = vpop.f32.mrb[0].mxu0
      %v1631 = vadd.f32 0.0, %v1630
      %v1632 = vpop.f32.mrb[0].mxu0
      %v1633 = vpop.f32.mrb[0].mxu0
      %v1634 = vadd.f32 0.0, %v1633
      %v1635 = vpop.f32.mrb[0].mxu0
      %1636 = vmatprep.mubr.bf16.mxu0 0
      %1637 = vmatmul.mubr.bf16.gmra.mrb[0].mxu0 %v1425
      %v1638 = vpop.f32.mrb[0].mxu0
      %v1639 = vadd.f32 0.0, %v1638
      %v1640 = vpop.f32.mrb[0].mxu0
      %v1641 = vpop.f32.mrb[0].mxu0
      %v1642 = vadd.f32 0.0, %v1641
      %v1643 = vpop.f32.mrb[0].mxu0
      %1644 = vmatprep.mubr.bf16.mxu0 0
      %1645 = vmatmul.mubr.bf16.gmra.mrb[0].mxu0 %v1428
      %v1646 = vpop.f32.mrb[0].mxu0
      %v1647 = vadd.f32 0.0, %v1646
      %v1648 = vpop.f32.mrb[0].mxu0
      %v1649 = vpop.f32.mrb[0].mxu0
      %v1650 = vadd.f32 0.0, %v1649
      %v1651 = vpop.f32.mrb[0].mxu0
      %1652 = vmatprep.mubr.bf16.mxu0 0
      %1653 = vmatmul.mubr.bf16.gmra.mrb[0].mxu0 %v1431
      %v1654 = vpop.f32.mrb[0].mxu0
      %v1655 = vadd.f32 0.0, %v1654
      %v1656 = vpop.f32.mrb[0].mxu0
      %v1657 = vpop.f32.mrb[0].mxu0
      %v1658 = vadd.f32 0.0, %v1657
      %v1659 = vpop.f32.mrb[0].mxu0
      %1660 = vmatprep.mubr.bf16.mxu0 0
      %1661 = vmatmul.mubr.bf16.gmra.mrb[0].mxu0 %v1434
      %v1662 = vpop.f32.mrb[0].mxu0
      %v1663 = vadd.f32 0.0, %v1662
      %v1664 = vpop.f32.mrb[0].mxu0
      %v1665 = vpop.f32.mrb[0].mxu0
      %v1666 = vadd.f32 0.0, %v1665
      %v1667 = vpop.f32.mrb[0].mxu0
      %1668 = vmatprep.mubr.bf16.mxu0 0
      %1669 = vmatmul.mubr.bf16.gmra.mrb[0].mxu0 %v1567
      %v1670 = vpop.f32.mrb[0].mxu0
      %v1671 = vadd.f32 0.0, %v1670
      %v1672 = vpop.f32.mrb[0].mxu0
      %v1673 = vpop.f32.mrb[0].mxu0
      %v1674 = vadd.f32 0.0, %v1673
      %v1675 = vpop.f32.mrb[0].mxu0
      %1676 = vdwg.mxu0
      %v1677 = vadd.f32 %v1544, %v1607
      %v1678 = vadd.f32 %v1545, %v1610
      %v1679 = vadd.f32 %v1546, %v1615
      %v1680 = vadd.f32 %v1547, %v1618
      %v1681 = vadd.f32 %v1548, %v1623
      %v1682 = vadd.f32 %v1549, %v1626
      %v1683 = vadd.f32 %v1550, %v1631
      %v1684 = vadd.f32 %v1551, %v1634
      %v1685 = vadd.f32 %v1552, %v1639
      %v1686 = vadd.f32 %v1553, %v1642
      %v1687 = vadd.f32 %v1554, %v1647
      %v1688 = vadd.f32 %v1555, %v1650
      %v1689 = vadd.f32 %v1556, %v1655
      %v1690 = vadd.f32 %v1557, %v1658
      %v1691 = vadd.f32 %v1558, %v1663
      %v1692 = vadd.f32 %v1559, %v1666
      %v1693 = vadd.f32 %v1560, %v1671
      %v1694 = vadd.f32 %v1561, %v1674
      %s1695 = scalar_lea.vmem %s4, 14
      %v1696 = vld [vmem:[%s1695] sm:$0x3]
      %vm1697 = vsmask.f32 5376
      %v1698 = vrot.slane %v558, 2
      %v1699 = vrot.slane %v554, 3
      %v1700 = vor.u32 %v1698, %v1699
      %v1701 = vrot.slane %v566, 2
      %v1702 = vrot.slane %v562, 3
      %v1703 = vor.u32 %v1701, %v1702
      %v1704 = vsel %vm1697, %v1700, %v1703
      %v1705 = vrot.slane %v574, 2
      %v1706 = vrot.slane %v570, 3
      %v1707 = vor.u32 %v1705, %v1706
      %v1708 = vsel %vm1697, %v1703, %v1707
      %v1709 = vrot.slane %v582, 2
      %v1710 = vrot.slane %v578, 3
      %v1711 = vor.u32 %v1709, %v1710
      %v1712 = vsel %vm1697, %v1707, %v1711
      %v1713 = vrot.slane %v590, 2
      %v1714 = vrot.slane %v586, 3
      %v1715 = vor.u32 %v1713, %v1714
      %v1716 = vsel %vm1697, %v1711, %v1715
      %v1717 = vrot.slane %v598, 2
      %v1718 = vrot.slane %v594, 3
      %v1719 = vor.u32 %v1717, %v1718
      %v1720 = vsel %vm1697, %v1715, %v1719
      %v1721 = vrot.slane %v606, 2
      %v1722 = vrot.slane %v602, 3
      %v1723 = vor.u32 %v1721, %v1722
      %v1724 = vsel %vm1697, %v1719, %v1723
      %v1725 = vrot.slane %v1219, 2
      %v1726 = vrot.slane %v610, 3
      %v1727 = vor.u32 %v1725, %v1726
      %v1728 = vsel %vm1697, %v1723, %v1727
      %v1729 = vrot.slane %v1226, 2
      %v1730 = vrot.slane %v1229, 3
      %v1731 = vor.u32 %v1729, %v1730
      %v1732 = vsel %vm1697, %v1727, %v1731
      %v1734 = vshrl.u32 %v533, 16
      %v1736 = vrot.slane %v1734, 2
      %v1737 = vshll.u32 %v533, 16
      %v1739 = vrot.slane %v1737, 3
      %v1740 = vor.u32 %v1736, %v1739
      %v1741 = vsel %vm1697, %v1731, %v1740
      %v1743 = vsel %vm614, %v1704, 0
      %v1746 = vsel %vm614, %v1708, 0
      %v1749 = vsel %vm614, %v1712, 0
      %v1752 = vsel %vm614, %v1716, 0
      %v1755 = vsel %vm614, %v1720, 0
      %v1758 = vsel %vm614, %v1724, 0
      %v1761 = vsel %vm614, %v1728, 0
      %v1764 = vsel %vm614, %v1732, 0
      %v1767 = vsel %vm614, %v1741, 0
      %v1770 = vsel %vm642, %v1696, 0
      %1772 = vmatprep.subr.bf16.mxu0 0
      %1773 = vmatpush1.bf16.msra.mxu0 %v1770
      %1774 = vmatprep.subr.bf16.mxu0 0
      %1775 = vmatpush1.bf16.msra.mxu0 0
      %1776 = vmatprep.subr.bf16.mxu0 0
      %1777 = vmatpush1.bf16.msra.mxu0 0
      %1778 = vmatprep.subr.bf16.mxu0 0
      %1779 = vmatpush1.bf16.msra.mxu0 0
      %1780 = vmatprep.subr.bf16.mxu0 0
      %1781 = vmatpush1.bf16.msra.mxu0 0
      %1782 = vmatprep.subr.bf16.mxu0 0
      %1783 = vmatpush1.bf16.msra.mxu0 0
      %1784 = vmatprep.subr.bf16.mxu0 0
      %1785 = vmatpush1.bf16.msra.mxu0 0
      %1786 = vmatprep.subr.bf16.mxu0 0
      %1787 = vmatpush1.bf16.msra.mxu0 0
      %1788 = vmatprep.subr.bf16.mxu0 0
      %1789 = vmatpush1.bf16.msra.mxu0 0
      %1790 = vmatprep.subr.bf16.mxu0 0
      %1791 = vmatpush1.bf16.msra.mxu0 0
      %1792 = vmatprep.subr.bf16.mxu0 0
      %1793 = vmatpush1.bf16.msra.mxu0 0
      %1794 = vmatprep.subr.bf16.mxu0 0
      %1795 = vmatpush1.bf16.msra.mxu0 0
      %1796 = vmatprep.subr.bf16.mxu0 0
      %1797 = vmatpush1.bf16.msra.mxu0 0
      %1798 = vmatprep.subr.bf16.mxu0 0
      %1799 = vmatpush1.bf16.msra.mxu0 0
      %1800 = vmatprep.subr.bf16.mxu0 0
      %1801 = vmatpush1.bf16.msra.mxu0 0
      %1802 = vmatprep.subr.bf16.mxu0 0
      %1803 = vmatpush1.bf16.msra.mxu0 0
      %1804 = vmatprep.mubr.bf16.mxu0 0
      %1805 = vmatmul.mubr.bf16.gmra.mrb[0].mxu0 %v1743
      %v1806 = vpop.f32.mrb[0].mxu0
      %v1807 = vadd.f32 0.0, %v1806
      %v1808 = vpop.f32.mrb[0].mxu0
      %v1809 = vpop.f32.mrb[0].mxu0
      %v1810 = vadd.f32 0.0, %v1809
      %v1811 = vpop.f32.mrb[0].mxu0
      %1812 = vmatprep.mubr.bf16.mxu0 0
      %1813 = vmatmul.mubr.bf16.gmra.mrb[0].mxu0 %v1746
      %v1814 = vpop.f32.mrb[0].mxu0
      %v1815 = vadd.f32 0.0, %v1814
      %v1816 = vpop.f32.mrb[0].mxu0
      %v1817 = vpop.f32.mrb[0].mxu0
      %v1818 = vadd.f32 0.0, %v1817
      %v1819 = vpop.f32.mrb[0].mxu0
      %1820 = vmatprep.mubr.bf16.mxu0 0
      %1821 = vmatmul.mubr.bf16.gmra.mrb[0].mxu0 %v1749
      %v1822 = vpop.f32.mrb[0].mxu0
      %v1823 = vadd.f32 0.0, %v1822
      %v1824 = vpop.f32.mrb[0].mxu0
      %v1825 = vpop.f32.mrb[0].mxu0
      %v1826 = vadd.f32 0.0, %v1825
      %v1827 = vpop.f32.mrb[0].mxu0
      %1828 = vmatprep.mubr.bf16.mxu0 0
      %1829 = vmatmul.mubr.bf16.gmra.mrb[0].mxu0 %v1752
      %v1830 = vpop.f32.mrb[0].mxu0
      %v1831 = vadd.f32 0.0, %v1830
      %v1832 = vpop.f32.mrb[0].mxu0
      %v1833 = vpop.f32.mrb[0].mxu0
      %v1834 = vadd.f32 0.0, %v1833
      %v1835 = vpop.f32.mrb[0].mxu0
      %1836 = vmatprep.mubr.bf16.mxu0 0
      %1837 = vmatmul.mubr.bf16.gmra.mrb[0].mxu0 %v1755
      %v1838 = vpop.f32.mrb[0].mxu0
      %v1839 = vadd.f32 0.0, %v1838
      %v1840 = vpop.f32.mrb[0].mxu0
      %v1841 = vpop.f32.mrb[0].mxu0
      %v1842 = vadd.f32 0.0, %v1841
      %v1843 = vpop.f32.mrb[0].mxu0
      %1844 = vmatprep.mubr.bf16.mxu0 0
      %1845 = vmatmul.mubr.bf16.gmra.mrb[0].mxu0 %v1758
      %v1846 = vpop.f32.mrb[0].mxu0
      %v1847 = vadd.f32 0.0, %v1846
      %v1848 = vpop.f32.mrb[0].mxu0
      %v1849 = vpop.f32.mrb[0].mxu0
      %v1850 = vadd.f32 0.0, %v1849
      %v1851 = vpop.f32.mrb[0].mxu0
      %1852 = vmatprep.mubr.bf16.mxu0 0
      %1853 = vmatmul.mubr.bf16.gmra.mrb[0].mxu0 %v1761
      %v1854 = vpop.f32.mrb[0].mxu0
      %v1855 = vadd.f32 0.0, %v1854
      %v1856 = vpop.f32.mrb[0].mxu0
      %v1857 = vpop.f32.mrb[0].mxu0
      %v1858 = vadd.f32 0.0, %v1857
      %v1859 = vpop.f32.mrb[0].mxu0
      %1860 = vmatprep.mubr.bf16.mxu0 0
      %1861 = vmatmul.mubr.bf16.gmra.mrb[0].mxu0 %v1764
      %v1862 = vpop.f32.mrb[0].mxu0
      %v1863 = vadd.f32 0.0, %v1862
      %v1864 = vpop.f32.mrb[0].mxu0
      %v1865 = vpop.f32.mrb[0].mxu0
      %v1866 = vadd.f32 0.0, %v1865
      %v1867 = vpop.f32.mrb[0].mxu0
      %1868 = vmatprep.mubr.bf16.mxu0 0
      %1869 = vmatmul.mubr.bf16.gmra.mrb[0].mxu0 %v1767
      %v1870 = vpop.f32.mrb[0].mxu0
      %v1871 = vadd.f32 0.0, %v1870
      %v1872 = vpop.f32.mrb[0].mxu0
      %v1873 = vpop.f32.mrb[0].mxu0
      %v1874 = vadd.f32 0.0, %v1873
      %v1875 = vpop.f32.mrb[0].mxu0
      %1876 = vdwg.mxu0
      %v1877 = vadd.f32 %v1677, %v1807
      %v1878 = vadd.f32 %v1678, %v1810
      %v1879 = vadd.f32 %v1679, %v1815
      %v1880 = vadd.f32 %v1680, %v1818
      %v1881 = vadd.f32 %v1681, %v1823
      %v1882 = vadd.f32 %v1682, %v1826
      %v1883 = vadd.f32 %v1683, %v1831
      %v1884 = vadd.f32 %v1684, %v1834
      %v1885 = vadd.f32 %v1685, %v1839
      %v1886 = vadd.f32 %v1686, %v1842
      %v1887 = vadd.f32 %v1687, %v1847
      %v1888 = vadd.f32 %v1688, %v1850
      %v1889 = vadd.f32 %v1689, %v1855
      %v1890 = vadd.f32 %v1690, %v1858
      %v1891 = vadd.f32 %v1691, %v1863
      %v1892 = vadd.f32 %v1692, %v1866
      %v1893 = vadd.f32 %v1693, %v1871
      %v1894 = vadd.f32 %v1694, %v1874
      %s1895 = scalar_lea.vmem %s4, 16
      %v1896 = vld [vmem:[%s1895] sm:$0x3]
      %vm1897 = vcmask 1044480
      %v1898 = vrot.slane %v512, 3
      %v1899 = vrot.slane %v513, 3
      %v1900 = vsel %vm1897, %v1898, %v1899
      %v1901 = vrot.slane %v514, 3
      %v1902 = vsel %vm1897, %v1899, %v1901
      %v1903 = vrot.slane %v515, 3
      %v1904 = vsel %vm1897, %v1901, %v1903
      %v1905 = vrot.slane %v516, 3
      %v1906 = vsel %vm1897, %v1903, %v1905
      %v1907 = vrot.slane %v517, 3
      %v1908 = vsel %vm1897, %v1905, %v1907
      %v1909 = vrot.slane %v518, 3
      %v1910 = vsel %vm1897, %v1907, %v1909
      %v1911 = vrot.slane %v531, 3
      %v1912 = vsel %vm1897, %v1909, %v1911
      %v1913 = vrot.slane %v532, 3
      %v1914 = vsel %vm1897, %v1911, %v1913
      %v1915 = vrot.slane %v533, 3
      %v1916 = vsel %vm1897, %v1913, %v1915
      %v1918 = vsel %vm614, %v1900, 0
      %v1921 = vsel %vm614, %v1902, 0
      %v1924 = vsel %vm614, %v1904, 0
      %v1927 = vsel %vm614, %v1906, 0
      %v1930 = vsel %vm614, %v1908, 0
      %v1933 = vsel %vm614, %v1910, 0
      %v1936 = vsel %vm614, %v1912, 0
      %v1939 = vsel %vm614, %v1914, 0
      %v1942 = vsel %vm614, %v1916, 0
      %v1945 = vsel %vm642, %v1896, 0
      %1947 = vmatprep.subr.bf16.mxu0 0
      %1948 = vmatpush1.bf16.msra.mxu0 %v1945
      %1949 = vmatprep.subr.bf16.mxu0 0
      %1950 = vmatpush1.bf16.msra.mxu0 0
      %1951 = vmatprep.subr.bf16.mxu0 0
      %1952 = vmatpush1.bf16.msra.mxu0 0
      %1953 = vmatprep.subr.bf16.mxu0 0
      %1954 = vmatpush1.bf16.msra.mxu0 0
      %1955 = vmatprep.subr.bf16.mxu0 0
      %1956 = vmatpush1.bf16.msra.mxu0 0
      %1957 = vmatprep.subr.bf16.mxu0 0
      %1958 = vmatpush1.bf16.msra.mxu0 0
      %1959 = vmatprep.subr.bf16.mxu0 0
      %1960 = vmatpush1.bf16.msra.mxu0 0
      %1961 = vmatprep.subr.bf16.mxu0 0
      %1962 = vmatpush1.bf16.msra.mxu0 0
      %1963 = vmatprep.subr.bf16.mxu0 0
      %1964 = vmatpush1.bf16.msra.mxu0 0
      %1965 = vmatprep.subr.bf16.mxu0 0
      %1966 = vmatpush1.bf16.msra.mxu0 0
      %1967 = vmatprep.subr.bf16.mxu0 0
      %1968 = vmatpush1.bf16.msra.mxu0 0
      %1969 = vmatprep.subr.bf16.mxu0 0
      %1970 = vmatpush1.bf16.msra.mxu0 0
      %1971 = vmatprep.subr.bf16.mxu0 0
      %1972 = vmatpush1.bf16.msra.mxu0 0
      %1973 = vmatprep.subr.bf16.mxu0 0
      %1974 = vmatpush1.bf16.msra.mxu0 0
      %1975 = vmatprep.subr.bf16.mxu0 0
      %1976 = vmatpush1.bf16.msra.mxu0 0
      %1977 = vmatprep.subr.bf16.mxu0 0
      %1978 = vmatpush1.bf16.msra.mxu0 0
      %1979 = vmatprep.mubr.bf16.mxu0 0
      %1980 = vmatmul.mubr.bf16.gmra.mrb[0].mxu0 %v1918
      %v1981 = vpop.f32.mrb[0].mxu0
      %v1982 = vadd.f32 0.0, %v1981
      %v1983 = vpop.f32.mrb[0].mxu0
      %v1984 = vpop.f32.mrb[0].mxu0
      %v1985 = vadd.f32 0.0, %v1984
      %v1986 = vpop.f32.mrb[0].mxu0
      %1987 = vmatprep.mubr.bf16.mxu0 0
      %1988 = vmatmul.mubr.bf16.gmra.mrb[0].mxu0 %v1921
      %v1989 = vpop.f32.mrb[0].mxu0
      %v1990 = vadd.f32 0.0, %v1989
      %v1991 = vpop.f32.mrb[0].mxu0
      %v1992 = vpop.f32.mrb[0].mxu0
      %v1993 = vadd.f32 0.0, %v1992
      %v1994 = vpop.f32.mrb[0].mxu0
      %1995 = vmatprep.mubr.bf16.mxu0 0
      %1996 = vmatmul.mubr.bf16.gmra.mrb[0].mxu0 %v1924
      %v1997 = vpop.f32.mrb[0].mxu0
      %v1998 = vadd.f32 0.0, %v1997
      %v1999 = vpop.f32.mrb[0].mxu0
      %v2000 = vpop.f32.mrb[0].mxu0
      %v2001 = vadd.f32 0.0, %v2000
      %v2002 = vpop.f32.mrb[0].mxu0
      %2003 = vmatprep.mubr.bf16.mxu0 0
      %2004 = vmatmul.mubr.bf16.gmra.mrb[0].mxu0 %v1927
      %v2005 = vpop.f32.mrb[0].mxu0
      %v2006 = vadd.f32 0.0, %v2005
      %v2007 = vpop.f32.mrb[0].mxu0
      %v2008 = vpop.f32.mrb[0].mxu0
      %v2009 = vadd.f32 0.0, %v2008
      %v2010 = vpop.f32.mrb[0].mxu0
      %2011 = vmatprep.mubr.bf16.mxu0 0
      %2012 = vmatmul.mubr.bf16.gmra.mrb[0].mxu0 %v1930
      %v2013 = vpop.f32.mrb[0].mxu0
      %v2014 = vadd.f32 0.0, %v2013
      %v2015 = vpop.f32.mrb[0].mxu0
      %v2016 = vpop.f32.mrb[0].mxu0
      %v2017 = vadd.f32 0.0, %v2016
      %v2018 = vpop.f32.mrb[0].mxu0
      %2019 = vmatprep.mubr.bf16.mxu0 0
      %2020 = vmatmul.mubr.bf16.gmra.mrb[0].mxu0 %v1933
      %v2021 = vpop.f32.mrb[0].mxu0
      %v2022 = vadd.f32 0.0, %v2021
      %v2023 = vpop.f32.mrb[0].mxu0
      %v2024 = vpop.f32.mrb[0].mxu0
      %v2025 = vadd.f32 0.0, %v2024
      %v2026 = vpop.f32.mrb[0].mxu0
      %2027 = vmatprep.mubr.bf16.mxu0 0
      %2028 = vmatmul.mubr.bf16.gmra.mrb[0].mxu0 %v1936
      %v2029 = vpop.f32.mrb[0].mxu0
      %v2030 = vadd.f32 0.0, %v2029
      %v2031 = vpop.f32.mrb[0].mxu0
      %v2032 = vpop.f32.mrb[0].mxu0
      %v2033 = vadd.f32 0.0, %v2032
      %v2034 = vpop.f32.mrb[0].mxu0
      %2035 = vmatprep.mubr.bf16.mxu0 0
      %2036 = vmatmul.mubr.bf16.gmra.mrb[0].mxu0 %v1939
      %v2037 = vpop.f32.mrb[0].mxu0
      %v2038 = vadd.f32 0.0, %v2037
      %v2039 = vpop.f32.mrb[0].mxu0
      %v2040 = vpop.f32.mrb[0].mxu0
      %v2041 = vadd.f32 0.0, %v2040
      %v2042 = vpop.f32.mrb[0].mxu0
      %2043 = vmatprep.mubr.bf16.mxu0 0
      %2044 = vmatmul.mubr.bf16.gmra.mrb[0].mxu0 %v1942
      %v2045 = vpop.f32.mrb[0].mxu0
      %v2046 = vadd.f32 0.0, %v2045
      %v2047 = vpop.f32.mrb[0].mxu0
      %v2048 = vpop.f32.mrb[0].mxu0
      %v2049 = vadd.f32 0.0, %v2048
      %v2050 = vpop.f32.mrb[0].mxu0
      %2051 = vdwg.mxu0
      %v2052 = vadd.f32 %v1877, %v1982
      %v2053 = vadd.f32 %v1878, %v1985
      %v2054 = vadd.f32 %v1879, %v1990
      %v2055 = vadd.f32 %v1880, %v1993
      %v2056 = vadd.f32 %v1881, %v1998
      %v2057 = vadd.f32 %v1882, %v2001
      %v2058 = vadd.f32 %v1883, %v2006
      %v2059 = vadd.f32 %v1884, %v2009
      %v2060 = vadd.f32 %v1885, %v2014
      %v2061 = vadd.f32 %v1886, %v2017
      %v2062 = vadd.f32 %v1887, %v2022
      %v2063 = vadd.f32 %v1888, %v2025
      %v2064 = vadd.f32 %v1889, %v2030
      %v2065 = vadd.f32 %v1890, %v2033
      %v2066 = vadd.f32 %v1891, %v2038
      %v2067 = vadd.f32 %v1892, %v2041
      %v2068 = vadd.f32 %v1893, %v2046
      %v2069 = vadd.f32 %v1894, %v2049
      %v2070 = vld [vmem:[%s419] sm:$0xf]
      %v2071 = vld [vmem:[%s419 + $0x4] sm:$0xf]
      %v2072 = vld [vmem:[%s419 + $0x8] sm:$0xf]
      %v2073 = vld [vmem:[%s419 + $0xc] sm:$0xf]
      %v2074 = vld [vmem:[%s419 + $0x10] sm:$0xf]
      %v2075 = vld [vmem:[%s419 + $0x14] sm:$0xf]
      %v2076 = vld [vmem:[%s419 + $0x18] sm:$0xf]
      %v2077 = vld [vmem:[%s419 + $0x1c] sm:$0xf]
      %v2078 = vld [vmem:[%s419 + $0x20] sm:$0xf]
      %v2079 = vld [vmem:[%s419 + $0x24] sm:$0xf]
      %v2080 = vld [vmem:[%s419 + $0x28] sm:$0xf]
      %v2081 = vld [vmem:[%s419 + $0x2c] sm:$0xf]
      %v2082 = vld [vmem:[%s419 + $0x30] sm:$0xf]
      %v2083 = vld [vmem:[%s419 + $0x34] sm:$0xf]
      %v2084 = vld [vmem:[%s419 + $0x38] sm:$0xf]
      %v2085 = vld [vmem:[%s419 + $0x3c] sm:$0xf]
      %v2086 = vld [vmem:[%s419 + $0x40] sm:$0xf]
      %v2087 = vld [vmem:[%s419 + $0x44] sm:$0xf]
      %v2088 = vld [vmem:[%s438] sm:$0xf]
      %v2089 = vld [vmem:[%s438 + $0x4] sm:$0xf]
      %v2090 = vld [vmem:[%s438 + $0x8] sm:$0xf]
      %v2091 = vld [vmem:[%s438 + $0xc] sm:$0xf]
      %v2092 = vld [vmem:[%s438 + $0x10] sm:$0xf]
      %v2093 = vld [vmem:[%s438 + $0x14] sm:$0xf]
      %v2112 = vunpack.c.l.b16 %v2070
      %v2113 = vunpack.c.l.b16 %v2071
      %v2114 = vunpack.c.l.b16 %v2072
      %v2115 = vunpack.c.l.b16 %v2073
      %v2116 = vunpack.c.l.b16 %v2074
      %v2117 = vunpack.c.l.b16 %v2075
      %v2118 = vunpack.c.l.b16 %v2076
      %v2119 = vunpack.c.l.b16 %v2077
      %v2120 = vunpack.c.l.b16 %v2078
      %v2121 = vunpack.c.l.b16 %v2079
      %v2122 = vunpack.c.l.b16 %v2080
      %v2123 = vunpack.c.l.b16 %v2081
      %v2124 = vunpack.c.l.b16 %v2082
      %v2125 = vunpack.c.l.b16 %v2083
      %v2126 = vunpack.c.l.b16 %v2084
      %v2127 = vunpack.c.l.b16 %v2085
      %v2128 = vunpack.c.l.b16 %v2086
      %v2129 = vunpack.c.l.b16 %v2087
      %v2130 = vpack.c.b16 %v2113, %v2112
      %v2131 = vpack.c.b16 %v2115, %v2114
      %v2132 = vpack.c.b16 %v2117, %v2116
      %v2133 = vpack.c.b16 %v2119, %v2118
      %v2134 = vpack.c.b16 %v2121, %v2120
      %v2135 = vpack.c.b16 %v2123, %v2122
      %v2136 = vpack.c.b16 %v2125, %v2124
      %v2137 = vpack.c.b16 %v2127, %v2126
      %v2138 = vpack.c.b16 %v2129, %v2128
      %v2145 = vunpack.c.l.b16 %v2088
      %v2146 = vunpack.c.l.b16 %v2089
      %v2147 = vunpack.c.l.b16 %v2090
      %v2148 = vunpack.c.l.b16 %v2091
      %v2149 = vunpack.c.l.b16 %v2092
      %v2150 = vunpack.c.l.b16 %v2093
      %v2151 = vpack.c.b16 %v2146, %v2145
      %v2152 = vpack.c.b16 %v2148, %v2147
      %v2153 = vpack.c.b16 %v2150, %v2149
      %v2154 = vld [vmem:[%s5] sm:$0x3]
      %v2156 = vsel %vm614, %v2130, 0
      %v2159 = vsel %vm614, %v2131, 0
      %v2162 = vsel %vm614, %v2132, 0
      %v2165 = vsel %vm614, %v2133, 0
      %v2168 = vsel %vm614, %v2134, 0
      %v2171 = vsel %vm614, %v2135, 0
      %v2174 = vsel %vm614, %v2136, 0
      %v2177 = vsel %vm614, %v2137, 0
      %v2180 = vsel %vm614, %v2138, 0
      %v2183 = vsel %vm642, %v2154, 0
      %2185 = vmatprep.subr.bf16.mxu0 0
      %2186 = vmatpush1.bf16.msra.mxu0 %v2183
      %2187 = vmatprep.subr.bf16.mxu0 0
      %2188 = vmatpush1.bf16.msra.mxu0 0
      %2189 = vmatprep.subr.bf16.mxu0 0
      %2190 = vmatpush1.bf16.msra.mxu0 0
      %2191 = vmatprep.subr.bf16.mxu0 0
      %2192 = vmatpush1.bf16.msra.mxu0 0
      %2193 = vmatprep.subr.bf16.mxu0 0
      %2194 = vmatpush1.bf16.msra.mxu0 0
      %2195 = vmatprep.subr.bf16.mxu0 0
      %2196 = vmatpush1.bf16.msra.mxu0 0
      %2197 = vmatprep.subr.bf16.mxu0 0
      %2198 = vmatpush1.bf16.msra.mxu0 0
      %2199 = vmatprep.subr.bf16.mxu0 0
      %2200 = vmatpush1.bf16.msra.mxu0 0
      %2201 = vmatprep.subr.bf16.mxu0 0
      %2202 = vmatpush1.bf16.msra.mxu0 0
      %2203 = vmatprep.subr.bf16.mxu0 0
      %2204 = vmatpush1.bf16.msra.mxu0 0
      %2205 = vmatprep.subr.bf16.mxu0 0
      %2206 = vmatpush1.bf16.msra.mxu0 0
      %2207 = vmatprep.subr.bf16.mxu0 0
      %2208 = vmatpush1.bf16.msra.mxu0 0
      %2209 = vmatprep.subr.bf16.mxu0 0
      %2210 = vmatpush1.bf16.msra.mxu0 0
      %2211 = vmatprep.subr.bf16.mxu0 0
      %2212 = vmatpush1.bf16.msra.mxu0 0
      %2213 = vmatprep.subr.bf16.mxu0 0
      %2214 = vmatpush1.bf16.msra.mxu0 0
      %2215 = vmatprep.subr.bf16.mxu0 0
      %2216 = vmatpush1.bf16.msra.mxu0 0
      %2217 = vmatprep.mubr.bf16.mxu0 0
      %2218 = vmatmul.mubr.bf16.gmra.mrb[0].mxu0 %v2156
      %v2219 = vpop.f32.mrb[0].mxu0
      %v2220 = vadd.f32 0.0, %v2219
      %v2221 = vpop.f32.mrb[0].mxu0
      %v2222 = vpop.f32.mrb[0].mxu0
      %v2223 = vadd.f32 0.0, %v2222
      %v2224 = vpop.f32.mrb[0].mxu0
      %2225 = vmatprep.mubr.bf16.mxu0 0
      %2226 = vmatmul.mubr.bf16.gmra.mrb[0].mxu0 %v2159
      %v2227 = vpop.f32.mrb[0].mxu0
      %v2228 = vadd.f32 0.0, %v2227
      %v2229 = vpop.f32.mrb[0].mxu0
      %v2230 = vpop.f32.mrb[0].mxu0
      %v2231 = vadd.f32 0.0, %v2230
      %v2232 = vpop.f32.mrb[0].mxu0
      %2233 = vmatprep.mubr.bf16.mxu0 0
      %2234 = vmatmul.mubr.bf16.gmra.mrb[0].mxu0 %v2162
      %v2235 = vpop.f32.mrb[0].mxu0
      %v2236 = vadd.f32 0.0, %v2235
      %v2237 = vpop.f32.mrb[0].mxu0
      %v2238 = vpop.f32.mrb[0].mxu0
      %v2239 = vadd.f32 0.0, %v2238
      %v2240 = vpop.f32.mrb[0].mxu0
      %2241 = vmatprep.mubr.bf16.mxu0 0
      %2242 = vmatmul.mubr.bf16.gmra.mrb[0].mxu0 %v2165
      %v2243 = vpop.f32.mrb[0].mxu0
      %v2244 = vadd.f32 0.0, %v2243
      %v2245 = vpop.f32.mrb[0].mxu0
      %v2246 = vpop.f32.mrb[0].mxu0
      %v2247 = vadd.f32 0.0, %v2246
      %v2248 = vpop.f32.mrb[0].mxu0
      %2249 = vmatprep.mubr.bf16.mxu0 0
      %2250 = vmatmul.mubr.bf16.gmra.mrb[0].mxu0 %v2168
      %v2251 = vpop.f32.mrb[0].mxu0
      %v2252 = vadd.f32 0.0, %v2251
      %v2253 = vpop.f32.mrb[0].mxu0
      %v2254 = vpop.f32.mrb[0].mxu0
      %v2255 = vadd.f32 0.0, %v2254
      %v2256 = vpop.f32.mrb[0].mxu0
      %2257 = vmatprep.mubr.bf16.mxu0 0
      %2258 = vmatmul.mubr.bf16.gmra.mrb[0].mxu0 %v2171
      %v2259 = vpop.f32.mrb[0].mxu0
      %v2260 = vadd.f32 0.0, %v2259
      %v2261 = vpop.f32.mrb[0].mxu0
      %v2262 = vpop.f32.mrb[0].mxu0
      %v2263 = vadd.f32 0.0, %v2262
      %v2264 = vpop.f32.mrb[0].mxu0
      %2265 = vmatprep.mubr.bf16.mxu0 0
      %2266 = vmatmul.mubr.bf16.gmra.mrb[0].mxu0 %v2174
      %v2267 = vpop.f32.mrb[0].mxu0
      %v2268 = vadd.f32 0.0, %v2267
      %v2269 = vpop.f32.mrb[0].mxu0
      %v2270 = vpop.f32.mrb[0].mxu0
      %v2271 = vadd.f32 0.0, %v2270
      %v2272 = vpop.f32.mrb[0].mxu0
      %2273 = vmatprep.mubr.bf16.mxu0 0
      %2274 = vmatmul.mubr.bf16.gmra.mrb[0].mxu0 %v2177
      %v2275 = vpop.f32.mrb[0].mxu0
      %v2276 = vadd.f32 0.0, %v2275
      %v2277 = vpop.f32.mrb[0].mxu0
      %v2278 = vpop.f32.mrb[0].mxu0
      %v2279 = vadd.f32 0.0, %v2278
      %v2280 = vpop.f32.mrb[0].mxu0
      %2281 = vmatprep.mubr.bf16.mxu0 0
      %2282 = vmatmul.mubr.bf16.gmra.mrb[0].mxu0 %v2180
      %v2283 = vpop.f32.mrb[0].mxu0
      %v2284 = vadd.f32 0.0, %v2283
      %v2285 = vpop.f32.mrb[0].mxu0
      %v2286 = vpop.f32.mrb[0].mxu0
      %v2287 = vadd.f32 0.0, %v2286
      %v2288 = vpop.f32.mrb[0].mxu0
      %2289 = vdwg.mxu0
      %v2290 = vadd.f32 %v2052, %v2220
      %v2291 = vadd.f32 %v2053, %v2223
      %v2292 = vadd.f32 %v2054, %v2228
      %v2293 = vadd.f32 %v2055, %v2231
      %v2294 = vadd.f32 %v2056, %v2236
      %v2295 = vadd.f32 %v2057, %v2239
      %v2296 = vadd.f32 %v2058, %v2244
      %v2297 = vadd.f32 %v2059, %v2247
      %v2298 = vadd.f32 %v2060, %v2252
      %v2299 = vadd.f32 %v2061, %v2255
      %v2300 = vadd.f32 %v2062, %v2260
      %v2301 = vadd.f32 %v2063, %v2263
      %v2302 = vadd.f32 %v2064, %v2268
      %v2303 = vadd.f32 %v2065, %v2271
      %v2304 = vadd.f32 %v2066, %v2276
      %v2305 = vadd.f32 %v2067, %v2279
      %v2306 = vadd.f32 %v2068, %v2284
      %v2307 = vadd.f32 %v2069, %v2287
      %s2308 = scalar_lea.vmem %s5, 2
      %v2309 = vld [vmem:[%s2308] sm:$0x3]
      %v2310 = vshrl.u32 %v2130, 16
      %v2312 = vshll.u32 %v2130, 16
      %v2314 = vrot.slane %v2312, 1
      %v2315 = vor.u32 %v2310, %v2314
      %v2316 = vshll.u32 %v2131, 16
      %v2318 = vrot.slane %v2316, 1
      %v2319 = vsel %vm537, %v2315, %v2318
      %v2320 = vshrl.u32 %v2131, 16
      %v2322 = vor.u32 %v2320, %v2318
      %v2323 = vshll.u32 %v2132, 16
      %v2325 = vrot.slane %v2323, 1
      %v2326 = vsel %vm537, %v2322, %v2325
      %v2327 = vshrl.u32 %v2132, 16
      %v2329 = vor.u32 %v2327, %v2325
      %v2330 = vshll.u32 %v2133, 16
      %v2332 = vrot.slane %v2330, 1
      %v2333 = vsel %vm537, %v2329, %v2332
      %v2334 = vshrl.u32 %v2133, 16
      %v2336 = vor.u32 %v2334, %v2332
      %v2337 = vshll.u32 %v2134, 16
      %v2339 = vrot.slane %v2337, 1
      %v2340 = vsel %vm537, %v2336, %v2339
      %v2341 = vshrl.u32 %v2134, 16
      %v2343 = vor.u32 %v2341, %v2339
      %v2344 = vshll.u32 %v2135, 16
      %v2346 = vrot.slane %v2344, 1
      %v2347 = vsel %vm537, %v2343, %v2346
      %v2348 = vshrl.u32 %v2135, 16
      %v2350 = vor.u32 %v2348, %v2346
      %v2351 = vshll.u32 %v2136, 16
      %v2353 = vrot.slane %v2351, 1
      %v2354 = vsel %vm537, %v2350, %v2353
      %v2355 = vshrl.u32 %v2136, 16
      %v2357 = vor.u32 %v2355, %v2353
      %v2358 = vshll.u32 %v2137, 16
      %v2360 = vrot.slane %v2358, 1
      %v2361 = vsel %vm537, %v2357, %v2360
      %v2362 = vshrl.u32 %v2137, 16
      %v2364 = vor.u32 %v2362, %v2360
      %v2365 = vshll.u32 %v2138, 16
      %v2367 = vrot.slane %v2365, 1
      %v2368 = vsel %vm537, %v2364, %v2367
      %v2369 = vshrl.u32 %v2138, 16
      %v2371 = vor.u32 %v2369, %v2367
      %v2373 = vshll.u32 %v2151, 16
      %v2375 = vrot.slane %v2373, 1
      %v2376 = vsel %vm537, %v2371, %v2375
      %v2378 = vsel %vm614, %v2319, 0
      %v2381 = vsel %vm614, %v2326, 0
      %v2384 = vsel %vm614, %v2333, 0
      %v2387 = vsel %vm614, %v2340, 0
      %v2390 = vsel %vm614, %v2347, 0
      %v2393 = vsel %vm614, %v2354, 0
      %v2396 = vsel %vm614, %v2361, 0
      %v2399 = vsel %vm614, %v2368, 0
      %v2402 = vsel %vm614, %v2376, 0
      %v2405 = vsel %vm642, %v2309, 0
      %2407 = vmatprep.subr.bf16.mxu0 0
      %2408 = vmatpush1.bf16.msra.mxu0 %v2405
      %2409 = vmatprep.subr.bf16.mxu0 0
      %2410 = vmatpush1.bf16.msra.mxu0 0
      %2411 = vmatprep.subr.bf16.mxu0 0
      %2412 = vmatpush1.bf16.msra.mxu0 0
      %2413 = vmatprep.subr.bf16.mxu0 0
      %2414 = vmatpush1.bf16.msra.mxu0 0
      %2415 = vmatprep.subr.bf16.mxu0 0
      %2416 = vmatpush1.bf16.msra.mxu0 0
      %2417 = vmatprep.subr.bf16.mxu0 0
      %2418 = vmatpush1.bf16.msra.mxu0 0
      %2419 = vmatprep.subr.bf16.mxu0 0
      %2420 = vmatpush1.bf16.msra.mxu0 0
      %2421 = vmatprep.subr.bf16.mxu0 0
      %2422 = vmatpush1.bf16.msra.mxu0 0
      %2423 = vmatprep.subr.bf16.mxu0 0
      %2424 = vmatpush1.bf16.msra.mxu0 0
      %2425 = vmatprep.subr.bf16.mxu0 0
      %2426 = vmatpush1.bf16.msra.mxu0 0
      %2427 = vmatprep.subr.bf16.mxu0 0
      %2428 = vmatpush1.bf16.msra.mxu0 0
      %2429 = vmatprep.subr.bf16.mxu0 0
      %2430 = vmatpush1.bf16.msra.mxu0 0
      %2431 = vmatprep.subr.bf16.mxu0 0
      %2432 = vmatpush1.bf16.msra.mxu0 0
      %2433 = vmatprep.subr.bf16.mxu0 0
      %2434 = vmatpush1.bf16.msra.mxu0 0
      %2435 = vmatprep.subr.bf16.mxu0 0
      %2436 = vmatpush1.bf16.msra.mxu0 0
      %2437 = vmatprep.subr.bf16.mxu0 0
      %2438 = vmatpush1.bf16.msra.mxu0 0
      %2439 = vmatprep.mubr.bf16.mxu0 0
      %2440 = vmatmul.mubr.bf16.gmra.mrb[0].mxu0 %v2378
      %v2441 = vpop.f32.mrb[0].mxu0
      %v2442 = vadd.f32 0.0, %v2441
      %v2443 = vpop.f32.mrb[0].mxu0
      %v2444 = vpop.f32.mrb[0].mxu0
      %v2445 = vadd.f32 0.0, %v2444
      %v2446 = vpop.f32.mrb[0].mxu0
      %2447 = vmatprep.mubr.bf16.mxu0 0
      %2448 = vmatmul.mubr.bf16.gmra.mrb[0].mxu0 %v2381
      %v2449 = vpop.f32.mrb[0].mxu0
      %v2450 = vadd.f32 0.0, %v2449
      %v2451 = vpop.f32.mrb[0].mxu0
      %v2452 = vpop.f32.mrb[0].mxu0
      %v2453 = vadd.f32 0.0, %v2452
      %v2454 = vpop.f32.mrb[0].mxu0
      %2455 = vmatprep.mubr.bf16.mxu0 0
      %2456 = vmatmul.mubr.bf16.gmra.mrb[0].mxu0 %v2384
      %v2457 = vpop.f32.mrb[0].mxu0
      %v2458 = vadd.f32 0.0, %v2457
      %v2459 = vpop.f32.mrb[0].mxu0
      %v2460 = vpop.f32.mrb[0].mxu0
      %v2461 = vadd.f32 0.0, %v2460
      %v2462 = vpop.f32.mrb[0].mxu0
      %2463 = vmatprep.mubr.bf16.mxu0 0
      %2464 = vmatmul.mubr.bf16.gmra.mrb[0].mxu0 %v2387
      %v2465 = vpop.f32.mrb[0].mxu0
      %v2466 = vadd.f32 0.0, %v2465
      %v2467 = vpop.f32.mrb[0].mxu0
      %v2468 = vpop.f32.mrb[0].mxu0
      %v2469 = vadd.f32 0.0, %v2468
      %v2470 = vpop.f32.mrb[0].mxu0
      %2471 = vmatprep.mubr.bf16.mxu0 0
      %2472 = vmatmul.mubr.bf16.gmra.mrb[0].mxu0 %v2390
      %v2473 = vpop.f32.mrb[0].mxu0
      %v2474 = vadd.f32 0.0, %v2473
      %v2475 = vpop.f32.mrb[0].mxu0
      %v2476 = vpop.f32.mrb[0].mxu0
      %v2477 = vadd.f32 0.0, %v2476
      %v2478 = vpop.f32.mrb[0].mxu0
      %2479 = vmatprep.mubr.bf16.mxu0 0
      %2480 = vmatmul.mubr.bf16.gmra.mrb[0].mxu0 %v2393
      %v2481 = vpop.f32.mrb[0].mxu0
      %v2482 = vadd.f32 0.0, %v2481
      %v2483 = vpop.f32.mrb[0].mxu0
      %v2484 = vpop.f32.mrb[0].mxu0
      %v2485 = vadd.f32 0.0, %v2484
      %v2486 = vpop.f32.mrb[0].mxu0
      %2487 = vmatprep.mubr.bf16.mxu0 0
      %2488 = vmatmul.mubr.bf16.gmra.mrb[0].mxu0 %v2396
      %v2489 = vpop.f32.mrb[0].mxu0
      %v2490 = vadd.f32 0.0, %v2489
      %v2491 = vpop.f32.mrb[0].mxu0
      %v2492 = vpop.f32.mrb[0].mxu0
      %v2493 = vadd.f32 0.0, %v2492
      %v2494 = vpop.f32.mrb[0].mxu0
      %2495 = vmatprep.mubr.bf16.mxu0 0
      %2496 = vmatmul.mubr.bf16.gmra.mrb[0].mxu0 %v2399
      %v2497 = vpop.f32.mrb[0].mxu0
      %v2498 = vadd.f32 0.0, %v2497
      %v2499 = vpop.f32.mrb[0].mxu0
      %v2500 = vpop.f32.mrb[0].mxu0
      %v2501 = vadd.f32 0.0, %v2500
      %v2502 = vpop.f32.mrb[0].mxu0
      %2503 = vmatprep.mubr.bf16.mxu0 0
      %2504 = vmatmul.mubr.bf16.gmra.mrb[0].mxu0 %v2402
      %v2505 = vpop.f32.mrb[0].mxu0
      %v2506 = vadd.f32 0.0, %v2505
      %v2507 = vpop.f32.mrb[0].mxu0
      %v2508 = vpop.f32.mrb[0].mxu0
      %v2509 = vadd.f32 0.0, %v2508
      %v2510 = vpop.f32.mrb[0].mxu0
      %2511 = vdwg.mxu0
      %v2512 = vadd.f32 %v2290, %v2442
      %v2513 = vadd.f32 %v2291, %v2445
      %v2514 = vadd.f32 %v2292, %v2450
      %v2515 = vadd.f32 %v2293, %v2453
      %v2516 = vadd.f32 %v2294, %v2458
      %v2517 = vadd.f32 %v2295, %v2461
      %v2518 = vadd.f32 %v2296, %v2466
      %v2519 = vadd.f32 %v2297, %v2469
      %v2520 = vadd.f32 %v2298, %v2474
      %v2521 = vadd.f32 %v2299, %v2477
      %v2522 = vadd.f32 %v2300, %v2482
      %v2523 = vadd.f32 %v2301, %v2485
      %v2524 = vadd.f32 %v2302, %v2490
      %v2525 = vadd.f32 %v2303, %v2493
      %v2526 = vadd.f32 %v2304, %v2498
      %v2527 = vadd.f32 %v2305, %v2501
      %v2528 = vadd.f32 %v2306, %v2506
      %v2529 = vadd.f32 %v2307, %v2509
      %s2530 = scalar_lea.vmem %s5, 4
      %v2531 = vld [vmem:[%s2530] sm:$0x3]
      %v2532 = vrot.slane %v2130, 1
      %v2533 = vrot.slane %v2131, 1
      %v2534 = vsel %vm879, %v2532, %v2533
      %v2535 = vrot.slane %v2132, 1
      %v2536 = vsel %vm879, %v2533, %v2535
      %v2537 = vrot.slane %v2133, 1
      %v2538 = vsel %vm879, %v2535, %v2537
      %v2539 = vrot.slane %v2134, 1
      %v2540 = vsel %vm879, %v2537, %v2539
      %v2541 = vrot.slane %v2135, 1
      %v2542 = vsel %vm879, %v2539, %v2541
      %v2543 = vrot.slane %v2136, 1
      %v2544 = vsel %vm879, %v2541, %v2543
      %v2545 = vrot.slane %v2137, 1
      %v2546 = vsel %vm879, %v2543, %v2545
      %v2547 = vrot.slane %v2138, 1
      %v2548 = vsel %vm879, %v2545, %v2547
      %v2549 = vrot.slane %v2151, 1
      %v2550 = vsel %vm879, %v2547, %v2549
      %v2552 = vsel %vm614, %v2534, 0
      %v2555 = vsel %vm614, %v2536, 0
      %v2558 = vsel %vm614, %v2538, 0
      %v2561 = vsel %vm614, %v2540, 0
      %v2564 = vsel %vm614, %v2542, 0
      %v2567 = vsel %vm614, %v2544, 0
      %v2570 = vsel %vm614, %v2546, 0
      %v2573 = vsel %vm614, %v2548, 0
      %v2576 = vsel %vm614, %v2550, 0
      %v2579 = vsel %vm642, %v2531, 0
      %2581 = vmatprep.subr.bf16.mxu0 0
      %2582 = vmatpush1.bf16.msra.mxu0 %v2579
      %2583 = vmatprep.subr.bf16.mxu0 0
      %2584 = vmatpush1.bf16.msra.mxu0 0
      %2585 = vmatprep.subr.bf16.mxu0 0
      %2586 = vmatpush1.bf16.msra.mxu0 0
      %2587 = vmatprep.subr.bf16.mxu0 0
      %2588 = vmatpush1.bf16.msra.mxu0 0
      %2589 = vmatprep.subr.bf16.mxu0 0
      %2590 = vmatpush1.bf16.msra.mxu0 0
      %2591 = vmatprep.subr.bf16.mxu0 0
      %2592 = vmatpush1.bf16.msra.mxu0 0
      %2593 = vmatprep.subr.bf16.mxu0 0
      %2594 = vmatpush1.bf16.msra.mxu0 0
      %2595 = vmatprep.subr.bf16.mxu0 0
      %2596 = vmatpush1.bf16.msra.mxu0 0
      %2597 = vmatprep.subr.bf16.mxu0 0
      %2598 = vmatpush1.bf16.msra.mxu0 0
      %2599 = vmatprep.subr.bf16.mxu0 0
      %2600 = vmatpush1.bf16.msra.mxu0 0
      %2601 = vmatprep.subr.bf16.mxu0 0
      %2602 = vmatpush1.bf16.msra.mxu0 0
      %2603 = vmatprep.subr.bf16.mxu0 0
      %2604 = vmatpush1.bf16.msra.mxu0 0
      %2605 = vmatprep.subr.bf16.mxu0 0
      %2606 = vmatpush1.bf16.msra.mxu0 0
      %2607 = vmatprep.subr.bf16.mxu0 0
      %2608 = vmatpush1.bf16.msra.mxu0 0
      %2609 = vmatprep.subr.bf16.mxu0 0
      %2610 = vmatpush1.bf16.msra.mxu0 0
      %2611 = vmatprep.subr.bf16.mxu0 0
      %2612 = vmatpush1.bf16.msra.mxu0 0
      %2613 = vmatprep.mubr.bf16.mxu0 0
      %2614 = vmatmul.mubr.bf16.gmra.mrb[0].mxu0 %v2552
      %v2615 = vpop.f32.mrb[0].mxu0
      %v2616 = vadd.f32 0.0, %v2615
      %v2617 = vpop.f32.mrb[0].mxu0
      %v2618 = vpop.f32.mrb[0].mxu0
      %v2619 = vadd.f32 0.0, %v2618
      %v2620 = vpop.f32.mrb[0].mxu0
      %2621 = vmatprep.mubr.bf16.mxu0 0
      %2622 = vmatmul.mubr.bf16.gmra.mrb[0].mxu0 %v2555
      %v2623 = vpop.f32.mrb[0].mxu0
      %v2624 = vadd.f32 0.0, %v2623
      %v2625 = vpop.f32.mrb[0].mxu0
      %v2626 = vpop.f32.mrb[0].mxu0
      %v2627 = vadd.f32 0.0, %v2626
      %v2628 = vpop.f32.mrb[0].mxu0
      %2629 = vmatprep.mubr.bf16.mxu0 0
      %2630 = vmatmul.mubr.bf16.gmra.mrb[0].mxu0 %v2558
      %v2631 = vpop.f32.mrb[0].mxu0
      %v2632 = vadd.f32 0.0, %v2631
      %v2633 = vpop.f32.mrb[0].mxu0
      %v2634 = vpop.f32.mrb[0].mxu0
      %v2635 = vadd.f32 0.0, %v2634
      %v2636 = vpop.f32.mrb[0].mxu0
      %2637 = vmatprep.mubr.bf16.mxu0 0
      %2638 = vmatmul.mubr.bf16.gmra.mrb[0].mxu0 %v2561
      %v2639 = vpop.f32.mrb[0].mxu0
      %v2640 = vadd.f32 0.0, %v2639
      %v2641 = vpop.f32.mrb[0].mxu0
      %v2642 = vpop.f32.mrb[0].mxu0
      %v2643 = vadd.f32 0.0, %v2642
      %v2644 = vpop.f32.mrb[0].mxu0
      %2645 = vmatprep.mubr.bf16.mxu0 0
      %2646 = vmatmul.mubr.bf16.gmra.mrb[0].mxu0 %v2564
      %v2647 = vpop.f32.mrb[0].mxu0
      %v2648 = vadd.f32 0.0, %v2647
      %v2649 = vpop.f32.mrb[0].mxu0
      %v2650 = vpop.f32.mrb[0].mxu0
      %v2651 = vadd.f32 0.0, %v2650
      %v2652 = vpop.f32.mrb[0].mxu0
      %2653 = vmatprep.mubr.bf16.mxu0 0
      %2654 = vmatmul.mubr.bf16.gmra.mrb[0].mxu0 %v2567
      %v2655 = vpop.f32.mrb[0].mxu0
      %v2656 = vadd.f32 0.0, %v2655
      %v2657 = vpop.f32.mrb[0].mxu0
      %v2658 = vpop.f32.mrb[0].mxu0
      %v2659 = vadd.f32 0.0, %v2658
      %v2660 = vpop.f32.mrb[0].mxu0
      %2661 = vmatprep.mubr.bf16.mxu0 0
      %2662 = vmatmul.mubr.bf16.gmra.mrb[0].mxu0 %v2570
      %v2663 = vpop.f32.mrb[0].mxu0
      %v2664 = vadd.f32 0.0, %v2663
      %v2665 = vpop.f32.mrb[0].mxu0
      %v2666 = vpop.f32.mrb[0].mxu0
      %v2667 = vadd.f32 0.0, %v2666
      %v2668 = vpop.f32.mrb[0].mxu0
      %2669 = vmatprep.mubr.bf16.mxu0 0
      %2670 = vmatmul.mubr.bf16.gmra.mrb[0].mxu0 %v2573
      %v2671 = vpop.f32.mrb[0].mxu0
      %v2672 = vadd.f32 0.0, %v2671
      %v2673 = vpop.f32.mrb[0].mxu0
      %v2674 = vpop.f32.mrb[0].mxu0
      %v2675 = vadd.f32 0.0, %v2674
      %v2676 = vpop.f32.mrb[0].mxu0
      %2677 = vmatprep.mubr.bf16.mxu0 0
      %2678 = vmatmul.mubr.bf16.gmra.mrb[0].mxu0 %v2576
      %v2679 = vpop.f32.mrb[0].mxu0
      %v2680 = vadd.f32 0.0, %v2679
      %v2681 = vpop.f32.mrb[0].mxu0
      %v2682 = vpop.f32.mrb[0].mxu0
      %v2683 = vadd.f32 0.0, %v2682
      %v2684 = vpop.f32.mrb[0].mxu0
      %2685 = vdwg.mxu0
      %v2686 = vadd.f32 %v2512, %v2616
      %v2687 = vadd.f32 %v2513, %v2619
      %v2688 = vadd.f32 %v2514, %v2624
      %v2689 = vadd.f32 %v2515, %v2627
      %v2690 = vadd.f32 %v2516, %v2632
      %v2691 = vadd.f32 %v2517, %v2635
      %v2692 = vadd.f32 %v2518, %v2640
      %v2693 = vadd.f32 %v2519, %v2643
      %v2694 = vadd.f32 %v2520, %v2648
      %v2695 = vadd.f32 %v2521, %v2651
      %v2696 = vadd.f32 %v2522, %v2656
      %v2697 = vadd.f32 %v2523, %v2659
      %v2698 = vadd.f32 %v2524, %v2664
      %v2699 = vadd.f32 %v2525, %v2667
      %v2700 = vadd.f32 %v2526, %v2672
      %v2701 = vadd.f32 %v2527, %v2675
      %v2702 = vadd.f32 %v2528, %v2680
      %v2703 = vadd.f32 %v2529, %v2683
      %s2704 = scalar_lea.vmem %s5, 6
      %v2705 = vld [vmem:[%s2704] sm:$0x3]
      %v2706 = vrot.slane %v2152, 1
      %v2707 = vsel %vm879, %v2549, %v2706
      %v2709 = vsel %vm614, %v2707, 0
      %v2712 = vsel %vm642, %v2705, 0
      %2714 = vmatprep.subr.bf16.mxu0 0
      %2715 = vmatpush1.bf16.msra.mxu0 %v2712
      %2716 = vmatprep.subr.bf16.mxu0 0
      %2717 = vmatpush1.bf16.msra.mxu0 0
      %2718 = vmatprep.subr.bf16.mxu0 0
      %2719 = vmatpush1.bf16.msra.mxu0 0
      %2720 = vmatprep.subr.bf16.mxu0 0
      %2721 = vmatpush1.bf16.msra.mxu0 0
      %2722 = vmatprep.subr.bf16.mxu0 0
      %2723 = vmatpush1.bf16.msra.mxu0 0
      %2724 = vmatprep.subr.bf16.mxu0 0
      %2725 = vmatpush1.bf16.msra.mxu0 0
      %2726 = vmatprep.subr.bf16.mxu0 0
      %2727 = vmatpush1.bf16.msra.mxu0 0
      %2728 = vmatprep.subr.bf16.mxu0 0
      %2729 = vmatpush1.bf16.msra.mxu0 0
      %2730 = vmatprep.subr.bf16.mxu0 0
      %2731 = vmatpush1.bf16.msra.mxu0 0
      %2732 = vmatprep.subr.bf16.mxu0 0
      %2733 = vmatpush1.bf16.msra.mxu0 0
      %2734 = vmatprep.subr.bf16.mxu0 0
      %2735 = vmatpush1.bf16.msra.mxu0 0
      %2736 = vmatprep.subr.bf16.mxu0 0
      %2737 = vmatpush1.bf16.msra.mxu0 0
      %2738 = vmatprep.subr.bf16.mxu0 0
      %2739 = vmatpush1.bf16.msra.mxu0 0
      %2740 = vmatprep.subr.bf16.mxu0 0
      %2741 = vmatpush1.bf16.msra.mxu0 0
      %2742 = vmatprep.subr.bf16.mxu0 0
      %2743 = vmatpush1.bf16.msra.mxu0 0
      %2744 = vmatprep.subr.bf16.mxu0 0
      %2745 = vmatpush1.bf16.msra.mxu0 0
      %2746 = vmatprep.mubr.bf16.mxu0 0
      %2747 = vmatmul.mubr.bf16.gmra.mrb[0].mxu0 %v2555
      %v2748 = vpop.f32.mrb[0].mxu0
      %v2749 = vadd.f32 0.0, %v2748
      %v2750 = vpop.f32.mrb[0].mxu0
      %v2751 = vpop.f32.mrb[0].mxu0
      %v2752 = vadd.f32 0.0, %v2751
      %v2753 = vpop.f32.mrb[0].mxu0
      %2754 = vmatprep.mubr.bf16.mxu0 0
      %2755 = vmatmul.mubr.bf16.gmra.mrb[0].mxu0 %v2558
      %v2756 = vpop.f32.mrb[0].mxu0
      %v2757 = vadd.f32 0.0, %v2756
      %v2758 = vpop.f32.mrb[0].mxu0
      %v2759 = vpop.f32.mrb[0].mxu0
      %v2760 = vadd.f32 0.0, %v2759
      %v2761 = vpop.f32.mrb[0].mxu0
      %2762 = vmatprep.mubr.bf16.mxu0 0
      %2763 = vmatmul.mubr.bf16.gmra.mrb[0].mxu0 %v2561
      %v2764 = vpop.f32.mrb[0].mxu0
      %v2765 = vadd.f32 0.0, %v2764
      %v2766 = vpop.f32.mrb[0].mxu0
      %v2767 = vpop.f32.mrb[0].mxu0
      %v2768 = vadd.f32 0.0, %v2767
      %v2769 = vpop.f32.mrb[0].mxu0
      %2770 = vmatprep.mubr.bf16.mxu0 0
      %2771 = vmatmul.mubr.bf16.gmra.mrb[0].mxu0 %v2564
      %v2772 = vpop.f32.mrb[0].mxu0
      %v2773 = vadd.f32 0.0, %v2772
      %v2774 = vpop.f32.mrb[0].mxu0
      %v2775 = vpop.f32.mrb[0].mxu0
      %v2776 = vadd.f32 0.0, %v2775
      %v2777 = vpop.f32.mrb[0].mxu0
      %2778 = vmatprep.mubr.bf16.mxu0 0
      %2779 = vmatmul.mubr.bf16.gmra.mrb[0].mxu0 %v2567
      %v2780 = vpop.f32.mrb[0].mxu0
      %v2781 = vadd.f32 0.0, %v2780
      %v2782 = vpop.f32.mrb[0].mxu0
      %v2783 = vpop.f32.mrb[0].mxu0
      %v2784 = vadd.f32 0.0, %v2783
      %v2785 = vpop.f32.mrb[0].mxu0
      %2786 = vmatprep.mubr.bf16.mxu0 0
      %2787 = vmatmul.mubr.bf16.gmra.mrb[0].mxu0 %v2570
      %v2788 = vpop.f32.mrb[0].mxu0
      %v2789 = vadd.f32 0.0, %v2788
      %v2790 = vpop.f32.mrb[0].mxu0
      %v2791 = vpop.f32.mrb[0].mxu0
      %v2792 = vadd.f32 0.0, %v2791
      %v2793 = vpop.f32.mrb[0].mxu0
      %2794 = vmatprep.mubr.bf16.mxu0 0
      %2795 = vmatmul.mubr.bf16.gmra.mrb[0].mxu0 %v2573
      %v2796 = vpop.f32.mrb[0].mxu0
      %v2797 = vadd.f32 0.0, %v2796
      %v2798 = vpop.f32.mrb[0].mxu0
      %v2799 = vpop.f32.mrb[0].mxu0
      %v2800 = vadd.f32 0.0, %v2799
      %v2801 = vpop.f32.mrb[0].mxu0
      %2802 = vmatprep.mubr.bf16.mxu0 0
      %2803 = vmatmul.mubr.bf16.gmra.mrb[0].mxu0 %v2576
      %v2804 = vpop.f32.mrb[0].mxu0
      %v2805 = vadd.f32 0.0, %v2804
      %v2806 = vpop.f32.mrb[0].mxu0
      %v2807 = vpop.f32.mrb[0].mxu0
      %v2808 = vadd.f32 0.0, %v2807
      %v2809 = vpop.f32.mrb[0].mxu0
      %2810 = vmatprep.mubr.bf16.mxu0 0
      %2811 = vmatmul.mubr.bf16.gmra.mrb[0].mxu0 %v2709
      %v2812 = vpop.f32.mrb[0].mxu0
      %v2813 = vadd.f32 0.0, %v2812
      %v2814 = vpop.f32.mrb[0].mxu0
      %v2815 = vpop.f32.mrb[0].mxu0
      %v2816 = vadd.f32 0.0, %v2815
      %v2817 = vpop.f32.mrb[0].mxu0
      %2818 = vdwg.mxu0
      %v2819 = vadd.f32 %v2686, %v2749
      %v2820 = vadd.f32 %v2687, %v2752
      %v2821 = vadd.f32 %v2688, %v2757
      %v2822 = vadd.f32 %v2689, %v2760
      %v2823 = vadd.f32 %v2690, %v2765
      %v2824 = vadd.f32 %v2691, %v2768
      %v2825 = vadd.f32 %v2692, %v2773
      %v2826 = vadd.f32 %v2693, %v2776
      %v2827 = vadd.f32 %v2694, %v2781
      %v2828 = vadd.f32 %v2695, %v2784
      %v2829 = vadd.f32 %v2696, %v2789
      %v2830 = vadd.f32 %v2697, %v2792
      %v2831 = vadd.f32 %v2698, %v2797
      %v2832 = vadd.f32 %v2699, %v2800
      %v2833 = vadd.f32 %v2700, %v2805
      %v2834 = vadd.f32 %v2701, %v2808
      %v2835 = vadd.f32 %v2702, %v2813
      %v2836 = vadd.f32 %v2703, %v2816
      %s2837 = scalar_lea.vmem %s5, 8
      %v2838 = vld [vmem:[%s2837] sm:$0x3]
      %v2839 = vrot.slane %v2320, 1
      %v2840 = vrot.slane %v2316, 2
      %v2841 = vor.u32 %v2839, %v2840
      %v2842 = vrot.slane %v2327, 1
      %v2843 = vrot.slane %v2323, 2
      %v2844 = vor.u32 %v2842, %v2843
      %v2845 = vsel %vm1187, %v2841, %v2844
      %v2846 = vrot.slane %v2334, 1
      %v2847 = vrot.slane %v2330, 2
      %v2848 = vor.u32 %v2846, %v2847
      %v2849 = vsel %vm1187, %v2844, %v2848
      %v2850 = vrot.slane %v2341, 1
      %v2851 = vrot.slane %v2337, 2
      %v2852 = vor.u32 %v2850, %v2851
      %v2853 = vsel %vm1187, %v2848, %v2852
      %v2854 = vrot.slane %v2348, 1
      %v2855 = vrot.slane %v2344, 2
      %v2856 = vor.u32 %v2854, %v2855
      %v2857 = vsel %vm1187, %v2852, %v2856
      %v2858 = vrot.slane %v2355, 1
      %v2859 = vrot.slane %v2351, 2
      %v2860 = vor.u32 %v2858, %v2859
      %v2861 = vsel %vm1187, %v2856, %v2860
      %v2862 = vrot.slane %v2362, 1
      %v2863 = vrot.slane %v2358, 2
      %v2864 = vor.u32 %v2862, %v2863
      %v2865 = vsel %vm1187, %v2860, %v2864
      %v2866 = vrot.slane %v2369, 1
      %v2867 = vrot.slane %v2365, 2
      %v2868 = vor.u32 %v2866, %v2867
      %v2869 = vsel %vm1187, %v2864, %v2868
      %v2870 = vshrl.u32 %v2151, 16
      %v2872 = vrot.slane %v2870, 1
      %v2873 = vrot.slane %v2373, 2
      %v2874 = vor.u32 %v2872, %v2873
      %v2875 = vsel %vm1187, %v2868, %v2874
      %v2877 = vshrl.u32 %v2152, 16
      %v2879 = vrot.slane %v2877, 1
      %v2880 = vshll.u32 %v2152, 16
      %v2882 = vrot.slane %v2880, 2
      %v2883 = vor.u32 %v2879, %v2882
      %v2884 = vsel %vm1187, %v2874, %v2883
      %v2886 = vsel %vm614, %v2845, 0
      %v2889 = vsel %vm614, %v2849, 0
      %v2892 = vsel %vm614, %v2853, 0
      %v2895 = vsel %vm614, %v2857, 0
      %v2898 = vsel %vm614, %v2861, 0
      %v2901 = vsel %vm614, %v2865, 0
      %v2904 = vsel %vm614, %v2869, 0
      %v2907 = vsel %vm614, %v2875, 0
      %v2910 = vsel %vm614, %v2884, 0
      %v2913 = vsel %vm642, %v2838, 0
      %2915 = vmatprep.subr.bf16.mxu0 0
      %2916 = vmatpush1.bf16.msra.mxu0 %v2913
      %2917 = vmatprep.subr.bf16.mxu0 0
      %2918 = vmatpush1.bf16.msra.mxu0 0
      %2919 = vmatprep.subr.bf16.mxu0 0
      %2920 = vmatpush1.bf16.msra.mxu0 0
      %2921 = vmatprep.subr.bf16.mxu0 0
      %2922 = vmatpush1.bf16.msra.mxu0 0
      %2923 = vmatprep.subr.bf16.mxu0 0
      %2924 = vmatpush1.bf16.msra.mxu0 0
      %2925 = vmatprep.subr.bf16.mxu0 0
      %2926 = vmatpush1.bf16.msra.mxu0 0
      %2927 = vmatprep.subr.bf16.mxu0 0
      %2928 = vmatpush1.bf16.msra.mxu0 0
      %2929 = vmatprep.subr.bf16.mxu0 0
      %2930 = vmatpush1.bf16.msra.mxu0 0
      %2931 = vmatprep.subr.bf16.mxu0 0
      %2932 = vmatpush1.bf16.msra.mxu0 0
      %2933 = vmatprep.subr.bf16.mxu0 0
      %2934 = vmatpush1.bf16.msra.mxu0 0
      %2935 = vmatprep.subr.bf16.mxu0 0
      %2936 = vmatpush1.bf16.msra.mxu0 0
      %2937 = vmatprep.subr.bf16.mxu0 0
      %2938 = vmatpush1.bf16.msra.mxu0 0
      %2939 = vmatprep.subr.bf16.mxu0 0
      %2940 = vmatpush1.bf16.msra.mxu0 0
      %2941 = vmatprep.subr.bf16.mxu0 0
      %2942 = vmatpush1.bf16.msra.mxu0 0
      %2943 = vmatprep.subr.bf16.mxu0 0
      %2944 = vmatpush1.bf16.msra.mxu0 0
      %2945 = vmatprep.subr.bf16.mxu0 0
      %2946 = vmatpush1.bf16.msra.mxu0 0
      %2947 = vmatprep.mubr.bf16.mxu0 0
      %2948 = vmatmul.mubr.bf16.gmra.mrb[0].mxu0 %v2886
      %v2949 = vpop.f32.mrb[0].mxu0
      %v2950 = vadd.f32 0.0, %v2949
      %v2951 = vpop.f32.mrb[0].mxu0
      %v2952 = vpop.f32.mrb[0].mxu0
      %v2953 = vadd.f32 0.0, %v2952
      %v2954 = vpop.f32.mrb[0].mxu0
      %2955 = vmatprep.mubr.bf16.mxu0 0
      %2956 = vmatmul.mubr.bf16.gmra.mrb[0].mxu0 %v2889
      %v2957 = vpop.f32.mrb[0].mxu0
      %v2958 = vadd.f32 0.0, %v2957
      %v2959 = vpop.f32.mrb[0].mxu0
      %v2960 = vpop.f32.mrb[0].mxu0
      %v2961 = vadd.f32 0.0, %v2960
      %v2962 = vpop.f32.mrb[0].mxu0
      %2963 = vmatprep.mubr.bf16.mxu0 0
      %2964 = vmatmul.mubr.bf16.gmra.mrb[0].mxu0 %v2892
      %v2965 = vpop.f32.mrb[0].mxu0
      %v2966 = vadd.f32 0.0, %v2965
      %v2967 = vpop.f32.mrb[0].mxu0
      %v2968 = vpop.f32.mrb[0].mxu0
      %v2969 = vadd.f32 0.0, %v2968
      %v2970 = vpop.f32.mrb[0].mxu0
      %2971 = vmatprep.mubr.bf16.mxu0 0
      %2972 = vmatmul.mubr.bf16.gmra.mrb[0].mxu0 %v2895
      %v2973 = vpop.f32.mrb[0].mxu0
      %v2974 = vadd.f32 0.0, %v2973
      %v2975 = vpop.f32.mrb[0].mxu0
      %v2976 = vpop.f32.mrb[0].mxu0
      %v2977 = vadd.f32 0.0, %v2976
      %v2978 = vpop.f32.mrb[0].mxu0
      %2979 = vmatprep.mubr.bf16.mxu0 0
      %2980 = vmatmul.mubr.bf16.gmra.mrb[0].mxu0 %v2898
      %v2981 = vpop.f32.mrb[0].mxu0
      %v2982 = vadd.f32 0.0, %v2981
      %v2983 = vpop.f32.mrb[0].mxu0
      %v2984 = vpop.f32.mrb[0].mxu0
      %v2985 = vadd.f32 0.0, %v2984
      %v2986 = vpop.f32.mrb[0].mxu0
      %2987 = vmatprep.mubr.bf16.mxu0 0
      %2988 = vmatmul.mubr.bf16.gmra.mrb[0].mxu0 %v2901
      %v2989 = vpop.f32.mrb[0].mxu0
      %v2990 = vadd.f32 0.0, %v2989
      %v2991 = vpop.f32.mrb[0].mxu0
      %v2992 = vpop.f32.mrb[0].mxu0
      %v2993 = vadd.f32 0.0, %v2992
      %v2994 = vpop.f32.mrb[0].mxu0
      %2995 = vmatprep.mubr.bf16.mxu0 0
      %2996 = vmatmul.mubr.bf16.gmra.mrb[0].mxu0 %v2904
      %v2997 = vpop.f32.mrb[0].mxu0
      %v2998 = vadd.f32 0.0, %v2997
      %v2999 = vpop.f32.mrb[0].mxu0
      %v3000 = vpop.f32.mrb[0].mxu0
      %v3001 = vadd.f32 0.0, %v3000
      %v3002 = vpop.f32.mrb[0].mxu0
      %3003 = vmatprep.mubr.bf16.mxu0 0
      %3004 = vmatmul.mubr.bf16.gmra.mrb[0].mxu0 %v2907
      %v3005 = vpop.f32.mrb[0].mxu0
      %v3006 = vadd.f32 0.0, %v3005
      %v3007 = vpop.f32.mrb[0].mxu0
      %v3008 = vpop.f32.mrb[0].mxu0
      %v3009 = vadd.f32 0.0, %v3008
      %v3010 = vpop.f32.mrb[0].mxu0
      %3011 = vmatprep.mubr.bf16.mxu0 0
      %3012 = vmatmul.mubr.bf16.gmra.mrb[0].mxu0 %v2910
      %v3013 = vpop.f32.mrb[0].mxu0
      %v3014 = vadd.f32 0.0, %v3013
      %v3015 = vpop.f32.mrb[0].mxu0
      %v3016 = vpop.f32.mrb[0].mxu0
      %v3017 = vadd.f32 0.0, %v3016
      %v3018 = vpop.f32.mrb[0].mxu0
      %3019 = vdwg.mxu0
      %v3020 = vadd.f32 %v2819, %v2950
      %v3021 = vadd.f32 %v2820, %v2953
      %v3022 = vadd.f32 %v2821, %v2958
      %v3023 = vadd.f32 %v2822, %v2961
      %v3024 = vadd.f32 %v2823, %v2966
      %v3025 = vadd.f32 %v2824, %v2969
      %v3026 = vadd.f32 %v2825, %v2974
      %v3027 = vadd.f32 %v2826, %v2977
      %v3028 = vadd.f32 %v2827, %v2982
      %v3029 = vadd.f32 %v2828, %v2985
      %v3030 = vadd.f32 %v2829, %v2990
      %v3031 = vadd.f32 %v2830, %v2993
      %v3032 = vadd.f32 %v2831, %v2998
      %v3033 = vadd.f32 %v2832, %v3001
      %v3034 = vadd.f32 %v2833, %v3006
      %v3035 = vadd.f32 %v2834, %v3009
      %v3036 = vadd.f32 %v2835, %v3014
      %v3037 = vadd.f32 %v2836, %v3017
      %s3038 = scalar_lea.vmem %s5, 10
      %v3039 = vld [vmem:[%s3038] sm:$0x3]
      %v3040 = vrot.slane %v2131, 2
      %v3041 = vrot.slane %v2132, 2
      %v3042 = vsel %vm1389, %v3040, %v3041
      %v3043 = vrot.slane %v2133, 2
      %v3044 = vsel %vm1389, %v3041, %v3043
      %v3045 = vrot.slane %v2134, 2
      %v3046 = vsel %vm1389, %v3043, %v3045
      %v3047 = vrot.slane %v2135, 2
      %v3048 = vsel %vm1389, %v3045, %v3047
      %v3049 = vrot.slane %v2136, 2
      %v3050 = vsel %vm1389, %v3047, %v3049
      %v3051 = vrot.slane %v2137, 2
      %v3052 = vsel %vm1389, %v3049, %v3051
      %v3053 = vrot.slane %v2138, 2
      %v3054 = vsel %vm1389, %v3051, %v3053
      %v3055 = vrot.slane %v2151, 2
      %v3056 = vsel %vm1389, %v3053, %v3055
      %v3057 = vrot.slane %v2152, 2
      %v3058 = vsel %vm1389, %v3055, %v3057
      %v3060 = vsel %vm614, %v3042, 0
      %v3063 = vsel %vm614, %v3044, 0
      %v3066 = vsel %vm614, %v3046, 0
      %v3069 = vsel %vm614, %v3048, 0
      %v3072 = vsel %vm614, %v3050, 0
      %v3075 = vsel %vm614, %v3052, 0
      %v3078 = vsel %vm614, %v3054, 0
      %v3081 = vsel %vm614, %v3056, 0
      %v3084 = vsel %vm614, %v3058, 0
      %v3087 = vsel %vm642, %v3039, 0
      %3089 = vmatprep.subr.bf16.mxu0 0
      %3090 = vmatpush1.bf16.msra.mxu0 %v3087
      %3091 = vmatprep.subr.bf16.mxu0 0
      %3092 = vmatpush1.bf16.msra.mxu0 0
      %3093 = vmatprep.subr.bf16.mxu0 0
      %3094 = vmatpush1.bf16.msra.mxu0 0
      %3095 = vmatprep.subr.bf16.mxu0 0
      %3096 = vmatpush1.bf16.msra.mxu0 0
      %3097 = vmatprep.subr.bf16.mxu0 0
      %3098 = vmatpush1.bf16.msra.mxu0 0
      %3099 = vmatprep.subr.bf16.mxu0 0
      %3100 = vmatpush1.bf16.msra.mxu0 0
      %3101 = vmatprep.subr.bf16.mxu0 0
      %3102 = vmatpush1.bf16.msra.mxu0 0
      %3103 = vmatprep.subr.bf16.mxu0 0
      %3104 = vmatpush1.bf16.msra.mxu0 0
      %3105 = vmatprep.subr.bf16.mxu0 0
      %3106 = vmatpush1.bf16.msra.mxu0 0
      %3107 = vmatprep.subr.bf16.mxu0 0
      %3108 = vmatpush1.bf16.msra.mxu0 0
      %3109 = vmatprep.subr.bf16.mxu0 0
      %3110 = vmatpush1.bf16.msra.mxu0 0
      %3111 = vmatprep.subr.bf16.mxu0 0
      %3112 = vmatpush1.bf16.msra.mxu0 0
      %3113 = vmatprep.subr.bf16.mxu0 0
      %3114 = vmatpush1.bf16.msra.mxu0 0
      %3115 = vmatprep.subr.bf16.mxu0 0
      %3116 = vmatpush1.bf16.msra.mxu0 0
      %3117 = vmatprep.subr.bf16.mxu0 0
      %3118 = vmatpush1.bf16.msra.mxu0 0
      %3119 = vmatprep.subr.bf16.mxu0 0
      %3120 = vmatpush1.bf16.msra.mxu0 0
      %3121 = vmatprep.mubr.bf16.mxu0 0
      %3122 = vmatmul.mubr.bf16.gmra.mrb[0].mxu0 %v3060
      %v3123 = vpop.f32.mrb[0].mxu0
      %v3124 = vadd.f32 0.0, %v3123
      %v3125 = vpop.f32.mrb[0].mxu0
      %v3126 = vpop.f32.mrb[0].mxu0
      %v3127 = vadd.f32 0.0, %v3126
      %v3128 = vpop.f32.mrb[0].mxu0
      %3129 = vmatprep.mubr.bf16.mxu0 0
      %3130 = vmatmul.mubr.bf16.gmra.mrb[0].mxu0 %v3063
      %v3131 = vpop.f32.mrb[0].mxu0
      %v3132 = vadd.f32 0.0, %v3131
      %v3133 = vpop.f32.mrb[0].mxu0
      %v3134 = vpop.f32.mrb[0].mxu0
      %v3135 = vadd.f32 0.0, %v3134
      %v3136 = vpop.f32.mrb[0].mxu0
      %3137 = vmatprep.mubr.bf16.mxu0 0
      %3138 = vmatmul.mubr.bf16.gmra.mrb[0].mxu0 %v3066
      %v3139 = vpop.f32.mrb[0].mxu0
      %v3140 = vadd.f32 0.0, %v3139
      %v3141 = vpop.f32.mrb[0].mxu0
      %v3142 = vpop.f32.mrb[0].mxu0
      %v3143 = vadd.f32 0.0, %v3142
      %v3144 = vpop.f32.mrb[0].mxu0
      %3145 = vmatprep.mubr.bf16.mxu0 0
      %3146 = vmatmul.mubr.bf16.gmra.mrb[0].mxu0 %v3069
      %v3147 = vpop.f32.mrb[0].mxu0
      %v3148 = vadd.f32 0.0, %v3147
      %v3149 = vpop.f32.mrb[0].mxu0
      %v3150 = vpop.f32.mrb[0].mxu0
      %v3151 = vadd.f32 0.0, %v3150
      %v3152 = vpop.f32.mrb[0].mxu0
      %3153 = vmatprep.mubr.bf16.mxu0 0
      %3154 = vmatmul.mubr.bf16.gmra.mrb[0].mxu0 %v3072
      %v3155 = vpop.f32.mrb[0].mxu0
      %v3156 = vadd.f32 0.0, %v3155
      %v3157 = vpop.f32.mrb[0].mxu0
      %v3158 = vpop.f32.mrb[0].mxu0
      %v3159 = vadd.f32 0.0, %v3158
      %v3160 = vpop.f32.mrb[0].mxu0
      %3161 = vmatprep.mubr.bf16.mxu0 0
      %3162 = vmatmul.mubr.bf16.gmra.mrb[0].mxu0 %v3075
      %v3163 = vpop.f32.mrb[0].mxu0
      %v3164 = vadd.f32 0.0, %v3163
      %v3165 = vpop.f32.mrb[0].mxu0
      %v3166 = vpop.f32.mrb[0].mxu0
      %v3167 = vadd.f32 0.0, %v3166
      %v3168 = vpop.f32.mrb[0].mxu0
      %3169 = vmatprep.mubr.bf16.mxu0 0
      %3170 = vmatmul.mubr.bf16.gmra.mrb[0].mxu0 %v3078
      %v3171 = vpop.f32.mrb[0].mxu0
      %v3172 = vadd.f32 0.0, %v3171
      %v3173 = vpop.f32.mrb[0].mxu0
      %v3174 = vpop.f32.mrb[0].mxu0
      %v3175 = vadd.f32 0.0, %v3174
      %v3176 = vpop.f32.mrb[0].mxu0
      %3177 = vmatprep.mubr.bf16.mxu0 0
      %3178 = vmatmul.mubr.bf16.gmra.mrb[0].mxu0 %v3081
      %v3179 = vpop.f32.mrb[0].mxu0
      %v3180 = vadd.f32 0.0, %v3179
      %v3181 = vpop.f32.mrb[0].mxu0
      %v3182 = vpop.f32.mrb[0].mxu0
      %v3183 = vadd.f32 0.0, %v3182
      %v3184 = vpop.f32.mrb[0].mxu0
      %3185 = vmatprep.mubr.bf16.mxu0 0
      %3186 = vmatmul.mubr.bf16.gmra.mrb[0].mxu0 %v3084
      %v3187 = vpop.f32.mrb[0].mxu0
      %v3188 = vadd.f32 0.0, %v3187
      %v3189 = vpop.f32.mrb[0].mxu0
      %v3190 = vpop.f32.mrb[0].mxu0
      %v3191 = vadd.f32 0.0, %v3190
      %v3192 = vpop.f32.mrb[0].mxu0
      %3193 = vdwg.mxu0
      %v3194 = vadd.f32 %v3020, %v3124
      %v3195 = vadd.f32 %v3021, %v3127
      %v3196 = vadd.f32 %v3022, %v3132
      %v3197 = vadd.f32 %v3023, %v3135
      %v3198 = vadd.f32 %v3024, %v3140
      %v3199 = vadd.f32 %v3025, %v3143
      %v3200 = vadd.f32 %v3026, %v3148
      %v3201 = vadd.f32 %v3027, %v3151
      %v3202 = vadd.f32 %v3028, %v3156
      %v3203 = vadd.f32 %v3029, %v3159
      %v3204 = vadd.f32 %v3030, %v3164
      %v3205 = vadd.f32 %v3031, %v3167
      %v3206 = vadd.f32 %v3032, %v3172
      %v3207 = vadd.f32 %v3033, %v3175
      %v3208 = vadd.f32 %v3034, %v3180
      %v3209 = vadd.f32 %v3035, %v3183
      %v3210 = vadd.f32 %v3036, %v3188
      %v3211 = vadd.f32 %v3037, %v3191
      %s3212 = scalar_lea.vmem %s5, 12
      %v3213 = vld [vmem:[%s3212] sm:$0x3]
      %v3214 = vrot.slane %v2153, 2
      %v3215 = vsel %vm1389, %v3057, %v3214
      %v3217 = vsel %vm614, %v3215, 0
      %v3220 = vsel %vm642, %v3213, 0
      %3222 = vmatprep.subr.bf16.mxu0 0
      %3223 = vmatpush1.bf16.msra.mxu0 %v3220
      %3224 = vmatprep.subr.bf16.mxu0 0
      %3225 = vmatpush1.bf16.msra.mxu0 0
      %3226 = vmatprep.subr.bf16.mxu0 0
      %3227 = vmatpush1.bf16.msra.mxu0 0
      %3228 = vmatprep.subr.bf16.mxu0 0
      %3229 = vmatpush1.bf16.msra.mxu0 0
      %3230 = vmatprep.subr.bf16.mxu0 0
      %3231 = vmatpush1.bf16.msra.mxu0 0
      %3232 = vmatprep.subr.bf16.mxu0 0
      %3233 = vmatpush1.bf16.msra.mxu0 0
      %3234 = vmatprep.subr.bf16.mxu0 0
      %3235 = vmatpush1.bf16.msra.mxu0 0
      %3236 = vmatprep.subr.bf16.mxu0 0
      %3237 = vmatpush1.bf16.msra.mxu0 0
      %3238 = vmatprep.subr.bf16.mxu0 0
      %3239 = vmatpush1.bf16.msra.mxu0 0
      %3240 = vmatprep.subr.bf16.mxu0 0
      %3241 = vmatpush1.bf16.msra.mxu0 0
      %3242 = vmatprep.subr.bf16.mxu0 0
      %3243 = vmatpush1.bf16.msra.mxu0 0
      %3244 = vmatprep.subr.bf16.mxu0 0
      %3245 = vmatpush1.bf16.msra.mxu0 0
      %3246 = vmatprep.subr.bf16.mxu0 0
      %3247 = vmatpush1.bf16.msra.mxu0 0
      %3248 = vmatprep.subr.bf16.mxu0 0
      %3249 = vmatpush1.bf16.msra.mxu0 0
      %3250 = vmatprep.subr.bf16.mxu0 0
      %3251 = vmatpush1.bf16.msra.mxu0 0
      %3252 = vmatprep.subr.bf16.mxu0 0
      %3253 = vmatpush1.bf16.msra.mxu0 0
      %3254 = vmatprep.mubr.bf16.mxu0 0
      %3255 = vmatmul.mubr.bf16.gmra.mrb[0].mxu0 %v3063
      %v3256 = vpop.f32.mrb[0].mxu0
      %v3257 = vadd.f32 0.0, %v3256
      %v3258 = vpop.f32.mrb[0].mxu0
      %v3259 = vpop.f32.mrb[0].mxu0
      %v3260 = vadd.f32 0.0, %v3259
      %v3261 = vpop.f32.mrb[0].mxu0
      %3262 = vmatprep.mubr.bf16.mxu0 0
      %3263 = vmatmul.mubr.bf16.gmra.mrb[0].mxu0 %v3066
      %v3264 = vpop.f32.mrb[0].mxu0
      %v3265 = vadd.f32 0.0, %v3264
      %v3266 = vpop.f32.mrb[0].mxu0
      %v3267 = vpop.f32.mrb[0].mxu0
      %v3268 = vadd.f32 0.0, %v3267
      %v3269 = vpop.f32.mrb[0].mxu0
      %3270 = vmatprep.mubr.bf16.mxu0 0
      %3271 = vmatmul.mubr.bf16.gmra.mrb[0].mxu0 %v3069
      %v3272 = vpop.f32.mrb[0].mxu0
      %v3273 = vadd.f32 0.0, %v3272
      %v3274 = vpop.f32.mrb[0].mxu0
      %v3275 = vpop.f32.mrb[0].mxu0
      %v3276 = vadd.f32 0.0, %v3275
      %v3277 = vpop.f32.mrb[0].mxu0
      %3278 = vmatprep.mubr.bf16.mxu0 0
      %3279 = vmatmul.mubr.bf16.gmra.mrb[0].mxu0 %v3072
      %v3280 = vpop.f32.mrb[0].mxu0
      %v3281 = vadd.f32 0.0, %v3280
      %v3282 = vpop.f32.mrb[0].mxu0
      %v3283 = vpop.f32.mrb[0].mxu0
      %v3284 = vadd.f32 0.0, %v3283
      %v3285 = vpop.f32.mrb[0].mxu0
      %3286 = vmatprep.mubr.bf16.mxu0 0
      %3287 = vmatmul.mubr.bf16.gmra.mrb[0].mxu0 %v3075
      %v3288 = vpop.f32.mrb[0].mxu0
      %v3289 = vadd.f32 0.0, %v3288
      %v3290 = vpop.f32.mrb[0].mxu0
      %v3291 = vpop.f32.mrb[0].mxu0
      %v3292 = vadd.f32 0.0, %v3291
      %v3293 = vpop.f32.mrb[0].mxu0
      %3294 = vmatprep.mubr.bf16.mxu0 0
      %3295 = vmatmul.mubr.bf16.gmra.mrb[0].mxu0 %v3078
      %v3296 = vpop.f32.mrb[0].mxu0
      %v3297 = vadd.f32 0.0, %v3296
      %v3298 = vpop.f32.mrb[0].mxu0
      %v3299 = vpop.f32.mrb[0].mxu0
      %v3300 = vadd.f32 0.0, %v3299
      %v3301 = vpop.f32.mrb[0].mxu0
      %3302 = vmatprep.mubr.bf16.mxu0 0
      %3303 = vmatmul.mubr.bf16.gmra.mrb[0].mxu0 %v3081
      %v3304 = vpop.f32.mrb[0].mxu0
      %v3305 = vadd.f32 0.0, %v3304
      %v3306 = vpop.f32.mrb[0].mxu0
      %v3307 = vpop.f32.mrb[0].mxu0
      %v3308 = vadd.f32 0.0, %v3307
      %v3309 = vpop.f32.mrb[0].mxu0
      %3310 = vmatprep.mubr.bf16.mxu0 0
      %3311 = vmatmul.mubr.bf16.gmra.mrb[0].mxu0 %v3084
      %v3312 = vpop.f32.mrb[0].mxu0
      %v3313 = vadd.f32 0.0, %v3312
      %v3314 = vpop.f32.mrb[0].mxu0
      %v3315 = vpop.f32.mrb[0].mxu0
      %v3316 = vadd.f32 0.0, %v3315
      %v3317 = vpop.f32.mrb[0].mxu0
      %3318 = vmatprep.mubr.bf16.mxu0 0
      %3319 = vmatmul.mubr.bf16.gmra.mrb[0].mxu0 %v3217
      %v3320 = vpop.f32.mrb[0].mxu0
      %v3321 = vadd.f32 0.0, %v3320
      %v3322 = vpop.f32.mrb[0].mxu0
      %v3323 = vpop.f32.mrb[0].mxu0
      %v3324 = vadd.f32 0.0, %v3323
      %v3325 = vpop.f32.mrb[0].mxu0
      %3326 = vdwg.mxu0
      %v3327 = vadd.f32 %v3194, %v3257
      %v3328 = vadd.f32 %v3195, %v3260
      %v3329 = vadd.f32 %v3196, %v3265
      %v3330 = vadd.f32 %v3197, %v3268
      %v3331 = vadd.f32 %v3198, %v3273
      %v3332 = vadd.f32 %v3199, %v3276
      %v3333 = vadd.f32 %v3200, %v3281
      %v3334 = vadd.f32 %v3201, %v3284
      %v3335 = vadd.f32 %v3202, %v3289
      %v3336 = vadd.f32 %v3203, %v3292
      %v3337 = vadd.f32 %v3204, %v3297
      %v3338 = vadd.f32 %v3205, %v3300
      %v3339 = vadd.f32 %v3206, %v3305
      %v3340 = vadd.f32 %v3207, %v3308
      %v3341 = vadd.f32 %v3208, %v3313
      %v3342 = vadd.f32 %v3209, %v3316
      %v3343 = vadd.f32 %v3210, %v3321
      %v3344 = vadd.f32 %v3211, %v3324
      %s3345 = scalar_lea.vmem %s5, 14
      %v3346 = vld [vmem:[%s3345] sm:$0x3]
      %v3347 = vrot.slane %v2327, 2
      %v3348 = vrot.slane %v2323, 3
      %v3349 = vor.u32 %v3347, %v3348
      %v3350 = vrot.slane %v2334, 2
      %v3351 = vrot.slane %v2330, 3
      %v3352 = vor.u32 %v3350, %v3351
      %v3353 = vsel %vm1697, %v3349, %v3352
      %v3354 = vrot.slane %v2341, 2
      %v3355 = vrot.slane %v2337, 3
      %v3356 = vor.u32 %v3354, %v3355
      %v3357 = vsel %vm1697, %v3352, %v3356
      %v3358 = vrot.slane %v2348, 2
      %v3359 = vrot.slane %v2344, 3
      %v3360 = vor.u32 %v3358, %v3359
      %v3361 = vsel %vm1697, %v3356, %v3360
      %v3362 = vrot.slane %v2355, 2
      %v3363 = vrot.slane %v2351, 3
      %v3364 = vor.u32 %v3362, %v3363
      %v3365 = vsel %vm1697, %v3360, %v3364
      %v3366 = vrot.slane %v2362, 2
      %v3367 = vrot.slane %v2358, 3
      %v3368 = vor.u32 %v3366, %v3367
      %v3369 = vsel %vm1697, %v3364, %v3368
      %v3370 = vrot.slane %v2369, 2
      %v3371 = vrot.slane %v2365, 3
      %v3372 = vor.u32 %v3370, %v3371
      %v3373 = vsel %vm1697, %v3368, %v3372
      %v3374 = vrot.slane %v2870, 2
      %v3375 = vrot.slane %v2373, 3
      %v3376 = vor.u32 %v3374, %v3375
      %v3377 = vsel %vm1697, %v3372, %v3376
      %v3378 = vrot.slane %v2877, 2
      %v3379 = vrot.slane %v2880, 3
      %v3380 = vor.u32 %v3378, %v3379
      %v3381 = vsel %vm1697, %v3376, %v3380
      %v3383 = vshrl.u32 %v2153, 16
      %v3385 = vrot.slane %v3383, 2
      %v3386 = vshll.u32 %v2153, 16
      %v3388 = vrot.slane %v3386, 3
      %v3389 = vor.u32 %v3385, %v3388
      %v3390 = vsel %vm1697, %v3380, %v3389
      %v3392 = vsel %vm614, %v3353, 0
      %v3395 = vsel %vm614, %v3357, 0
      %v3398 = vsel %vm614, %v3361, 0
      %v3401 = vsel %vm614, %v3365, 0
      %v3404 = vsel %vm614, %v3369, 0
      %v3407 = vsel %vm614, %v3373, 0
      %v3410 = vsel %vm614, %v3377, 0
      %v3413 = vsel %vm614, %v3381, 0
      %v3416 = vsel %vm614, %v3390, 0
      %v3419 = vsel %vm642, %v3346, 0
      %3421 = vmatprep.subr.bf16.mxu0 0
      %3422 = vmatpush1.bf16.msra.mxu0 %v3419
      %3423 = vmatprep.subr.bf16.mxu0 0
      %3424 = vmatpush1.bf16.msra.mxu0 0
      %3425 = vmatprep.subr.bf16.mxu0 0
      %3426 = vmatpush1.bf16.msra.mxu0 0
      %3427 = vmatprep.subr.bf16.mxu0 0
      %3428 = vmatpush1.bf16.msra.mxu0 0
      %3429 = vmatprep.subr.bf16.mxu0 0
      %3430 = vmatpush1.bf16.msra.mxu0 0
      %3431 = vmatprep.subr.bf16.mxu0 0
      %3432 = vmatpush1.bf16.msra.mxu0 0
      %3433 = vmatprep.subr.bf16.mxu0 0
      %3434 = vmatpush1.bf16.msra.mxu0 0
      %3435 = vmatprep.subr.bf16.mxu0 0
      %3436 = vmatpush1.bf16.msra.mxu0 0
      %3437 = vmatprep.subr.bf16.mxu0 0
      %3438 = vmatpush1.bf16.msra.mxu0 0
      %3439 = vmatprep.subr.bf16.mxu0 0
      %3440 = vmatpush1.bf16.msra.mxu0 0
      %3441 = vmatprep.subr.bf16.mxu0 0
      %3442 = vmatpush1.bf16.msra.mxu0 0
      %3443 = vmatprep.subr.bf16.mxu0 0
      %3444 = vmatpush1.bf16.msra.mxu0 0
      %3445 = vmatprep.subr.bf16.mxu0 0
      %3446 = vmatpush1.bf16.msra.mxu0 0
      %3447 = vmatprep.subr.bf16.mxu0 0
      %3448 = vmatpush1.bf16.msra.mxu0 0
      %3449 = vmatprep.subr.bf16.mxu0 0
      %3450 = vmatpush1.bf16.msra.mxu0 0
      %3451 = vmatprep.subr.bf16.mxu0 0
      %3452 = vmatpush1.bf16.msra.mxu0 0
      %3453 = vmatprep.mubr.bf16.mxu0 0
      %3454 = vmatmul.mubr.bf16.gmra.mrb[0].mxu0 %v3392
      %v3455 = vpop.f32.mrb[0].mxu0
      %v3456 = vadd.f32 0.0, %v3455
      %v3457 = vpop.f32.mrb[0].mxu0
      %v3458 = vpop.f32.mrb[0].mxu0
      %v3459 = vadd.f32 0.0, %v3458
      %v3460 = vpop.f32.mrb[0].mxu0
      %3461 = vmatprep.mubr.bf16.mxu0 0
      %3462 = vmatmul.mubr.bf16.gmra.mrb[0].mxu0 %v3395
      %v3463 = vpop.f32.mrb[0].mxu0
      %v3464 = vadd.f32 0.0, %v3463
      %v3465 = vpop.f32.mrb[0].mxu0
      %v3466 = vpop.f32.mrb[0].mxu0
      %v3467 = vadd.f32 0.0, %v3466
      %v3468 = vpop.f32.mrb[0].mxu0
      %3469 = vmatprep.mubr.bf16.mxu0 0
      %3470 = vmatmul.mubr.bf16.gmra.mrb[0].mxu0 %v3398
      %v3471 = vpop.f32.mrb[0].mxu0
      %v3472 = vadd.f32 0.0, %v3471
      %v3473 = vpop.f32.mrb[0].mxu0
      %v3474 = vpop.f32.mrb[0].mxu0
      %v3475 = vadd.f32 0.0, %v3474
      %v3476 = vpop.f32.mrb[0].mxu0
      %3477 = vmatprep.mubr.bf16.mxu0 0
      %3478 = vmatmul.mubr.bf16.gmra.mrb[0].mxu0 %v3401
      %v3479 = vpop.f32.mrb[0].mxu0
      %v3480 = vadd.f32 0.0, %v3479
      %v3481 = vpop.f32.mrb[0].mxu0
      %v3482 = vpop.f32.mrb[0].mxu0
      %v3483 = vadd.f32 0.0, %v3482
      %v3484 = vpop.f32.mrb[0].mxu0
      %3485 = vmatprep.mubr.bf16.mxu0 0
      %3486 = vmatmul.mubr.bf16.gmra.mrb[0].mxu0 %v3404
      %v3487 = vpop.f32.mrb[0].mxu0
      %v3488 = vadd.f32 0.0, %v3487
      %v3489 = vpop.f32.mrb[0].mxu0
      %v3490 = vpop.f32.mrb[0].mxu0
      %v3491 = vadd.f32 0.0, %v3490
      %v3492 = vpop.f32.mrb[0].mxu0
      %3493 = vmatprep.mubr.bf16.mxu0 0
      %3494 = vmatmul.mubr.bf16.gmra.mrb[0].mxu0 %v3407
      %v3495 = vpop.f32.mrb[0].mxu0
      %v3496 = vadd.f32 0.0, %v3495
      %v3497 = vpop.f32.mrb[0].mxu0
      %v3498 = vpop.f32.mrb[0].mxu0
      %v3499 = vadd.f32 0.0, %v3498
      %v3500 = vpop.f32.mrb[0].mxu0
      %3501 = vmatprep.mubr.bf16.mxu0 0
      %3502 = vmatmul.mubr.bf16.gmra.mrb[0].mxu0 %v3410
      %v3503 = vpop.f32.mrb[0].mxu0
      %v3504 = vadd.f32 0.0, %v3503
      %v3505 = vpop.f32.mrb[0].mxu0
      %v3506 = vpop.f32.mrb[0].mxu0
      %v3507 = vadd.f32 0.0, %v3506
      %v3508 = vpop.f32.mrb[0].mxu0
      %3509 = vmatprep.mubr.bf16.mxu0 0
      %3510 = vmatmul.mubr.bf16.gmra.mrb[0].mxu0 %v3413
      %v3511 = vpop.f32.mrb[0].mxu0
      %v3512 = vadd.f32 0.0, %v3511
      %v3513 = vpop.f32.mrb[0].mxu0
      %v3514 = vpop.f32.mrb[0].mxu0
      %v3515 = vadd.f32 0.0, %v3514
      %v3516 = vpop.f32.mrb[0].mxu0
      %3517 = vmatprep.mubr.bf16.mxu0 0
      %3518 = vmatmul.mubr.bf16.gmra.mrb[0].mxu0 %v3416
      %v3519 = vpop.f32.mrb[0].mxu0
      %v3520 = vadd.f32 0.0, %v3519
      %v3521 = vpop.f32.mrb[0].mxu0
      %v3522 = vpop.f32.mrb[0].mxu0
      %v3523 = vadd.f32 0.0, %v3522
      %v3524 = vpop.f32.mrb[0].mxu0
      %3525 = vdwg.mxu0
      %v3526 = vadd.f32 %v3327, %v3456
      %v3527 = vadd.f32 %v3328, %v3459
      %v3528 = vadd.f32 %v3329, %v3464
      %v3529 = vadd.f32 %v3330, %v3467
      %v3530 = vadd.f32 %v3331, %v3472
      %v3531 = vadd.f32 %v3332, %v3475
      %v3532 = vadd.f32 %v3333, %v3480
      %v3533 = vadd.f32 %v3334, %v3483
      %v3534 = vadd.f32 %v3335, %v3488
      %v3535 = vadd.f32 %v3336, %v3491
      %v3536 = vadd.f32 %v3337, %v3496
      %v3537 = vadd.f32 %v3338, %v3499
      %v3538 = vadd.f32 %v3339, %v3504
      %v3539 = vadd.f32 %v3340, %v3507
      %v3540 = vadd.f32 %v3341, %v3512
      %v3541 = vadd.f32 %v3342, %v3515
      %v3542 = vadd.f32 %v3343, %v3520
      %v3543 = vadd.f32 %v3344, %v3523
      %s3544 = scalar_lea.vmem %s5, 16
      %v3545 = vld [vmem:[%s3544] sm:$0x3]
      %v3546 = vrot.slane %v2132, 3
      %v3547 = vrot.slane %v2133, 3
      %v3548 = vsel %vm1897, %v3546, %v3547
      %v3549 = vrot.slane %v2134, 3
      %v3550 = vsel %vm1897, %v3547, %v3549
      %v3551 = vrot.slane %v2135, 3
      %v3552 = vsel %vm1897, %v3549, %v3551
      %v3553 = vrot.slane %v2136, 3
      %v3554 = vsel %vm1897, %v3551, %v3553
      %v3555 = vrot.slane %v2137, 3
      %v3556 = vsel %vm1897, %v3553, %v3555
      %v3557 = vrot.slane %v2138, 3
      %v3558 = vsel %vm1897, %v3555, %v3557
      %v3559 = vrot.slane %v2151, 3
      %v3560 = vsel %vm1897, %v3557, %v3559
      %v3561 = vrot.slane %v2152, 3
      %v3562 = vsel %vm1897, %v3559, %v3561
      %v3563 = vrot.slane %v2153, 3
      %v3564 = vsel %vm1897, %v3561, %v3563
      %v3566 = vsel %vm614, %v3548, 0
      %v3569 = vsel %vm614, %v3550, 0
      %v3572 = vsel %vm614, %v3552, 0
      %v3575 = vsel %vm614, %v3554, 0
      %v3578 = vsel %vm614, %v3556, 0
      %v3581 = vsel %vm614, %v3558, 0
      %v3584 = vsel %vm614, %v3560, 0
      %v3587 = vsel %vm614, %v3562, 0
      %v3590 = vsel %vm614, %v3564, 0
      %v3593 = vsel %vm642, %v3545, 0
      %3595 = vmatprep.subr.bf16.mxu0 0
      %3596 = vmatpush1.bf16.msra.mxu0 %v3593
      %3597 = vmatprep.subr.bf16.mxu0 0
      %3598 = vmatpush1.bf16.msra.mxu0 0
      %3599 = vmatprep.subr.bf16.mxu0 0
      %3600 = vmatpush1.bf16.msra.mxu0 0
      %3601 = vmatprep.subr.bf16.mxu0 0
      %3602 = vmatpush1.bf16.msra.mxu0 0
      %3603 = vmatprep.subr.bf16.mxu0 0
      %3604 = vmatpush1.bf16.msra.mxu0 0
      %3605 = vmatprep.subr.bf16.mxu0 0
      %3606 = vmatpush1.bf16.msra.mxu0 0
      %3607 = vmatprep.subr.bf16.mxu0 0
      %3608 = vmatpush1.bf16.msra.mxu0 0
      %3609 = vmatprep.subr.bf16.mxu0 0
      %3610 = vmatpush1.bf16.msra.mxu0 0
      %3611 = vmatprep.subr.bf16.mxu0 0
      %3612 = vmatpush1.bf16.msra.mxu0 0
      %3613 = vmatprep.subr.bf16.mxu0 0
      %3614 = vmatpush1.bf16.msra.mxu0 0
      %3615 = vmatprep.subr.bf16.mxu0 0
      %3616 = vmatpush1.bf16.msra.mxu0 0
      %3617 = vmatprep.subr.bf16.mxu0 0
      %3618 = vmatpush1.bf16.msra.mxu0 0
      %3619 = vmatprep.subr.bf16.mxu0 0
      %3620 = vmatpush1.bf16.msra.mxu0 0
      %3621 = vmatprep.subr.bf16.mxu0 0
      %3622 = vmatpush1.bf16.msra.mxu0 0
      %3623 = vmatprep.subr.bf16.mxu0 0
      %3624 = vmatpush1.bf16.msra.mxu0 0
      %3625 = vmatprep.subr.bf16.mxu0 0
      %3626 = vmatpush1.bf16.msra.mxu0 0
      %3627 = vmatprep.mubr.bf16.mxu0 0
      %3628 = vmatmul.mubr.bf16.gmra.mrb[0].mxu0 %v3566
      %v3629 = vpop.f32.mrb[0].mxu0
      %v3630 = vadd.f32 0.0, %v3629
      %v3631 = vpop.f32.mrb[0].mxu0
      %v3632 = vpop.f32.mrb[0].mxu0
      %v3633 = vadd.f32 0.0, %v3632
      %v3634 = vpop.f32.mrb[0].mxu0
      %3635 = vmatprep.mubr.bf16.mxu0 0
      %3636 = vmatmul.mubr.bf16.gmra.mrb[0].mxu0 %v3569
      %v3637 = vpop.f32.mrb[0].mxu0
      %v3638 = vadd.f32 0.0, %v3637
      %v3639 = vpop.f32.mrb[0].mxu0
      %v3640 = vpop.f32.mrb[0].mxu0
      %v3641 = vadd.f32 0.0, %v3640
      %v3642 = vpop.f32.mrb[0].mxu0
      %3643 = vmatprep.mubr.bf16.mxu0 0
      %3644 = vmatmul.mubr.bf16.gmra.mrb[0].mxu0 %v3572
      %v3645 = vpop.f32.mrb[0].mxu0
      %v3646 = vadd.f32 0.0, %v3645
      %v3647 = vpop.f32.mrb[0].mxu0
      %v3648 = vpop.f32.mrb[0].mxu0
      %v3649 = vadd.f32 0.0, %v3648
      %v3650 = vpop.f32.mrb[0].mxu0
      %3651 = vmatprep.mubr.bf16.mxu0 0
      %3652 = vmatmul.mubr.bf16.gmra.mrb[0].mxu0 %v3575
      %v3653 = vpop.f32.mrb[0].mxu0
      %v3654 = vadd.f32 0.0, %v3653
      %v3655 = vpop.f32.mrb[0].mxu0
      %v3656 = vpop.f32.mrb[0].mxu0
      %v3657 = vadd.f32 0.0, %v3656
      %v3658 = vpop.f32.mrb[0].mxu0
      %3659 = vmatprep.mubr.bf16.mxu0 0
      %3660 = vmatmul.mubr.bf16.gmra.mrb[0].mxu0 %v3578
      %v3661 = vpop.f32.mrb[0].mxu0
      %v3662 = vadd.f32 0.0, %v3661
      %v3663 = vpop.f32.mrb[0].mxu0
      %v3664 = vpop.f32.mrb[0].mxu0
      %v3665 = vadd.f32 0.0, %v3664
      %v3666 = vpop.f32.mrb[0].mxu0
      %3667 = vmatprep.mubr.bf16.mxu0 0
      %3668 = vmatmul.mubr.bf16.gmra.mrb[0].mxu0 %v3581
      %v3669 = vpop.f32.mrb[0].mxu0
      %v3670 = vadd.f32 0.0, %v3669
      %v3671 = vpop.f32.mrb[0].mxu0
      %v3672 = vpop.f32.mrb[0].mxu0
      %v3673 = vadd.f32 0.0, %v3672
      %v3674 = vpop.f32.mrb[0].mxu0
      %3675 = vmatprep.mubr.bf16.mxu0 0
      %3676 = vmatmul.mubr.bf16.gmra.mrb[0].mxu0 %v3584
      %v3677 = vpop.f32.mrb[0].mxu0
      %v3678 = vadd.f32 0.0, %v3677
      %v3679 = vpop.f32.mrb[0].mxu0
      %v3680 = vpop.f32.mrb[0].mxu0
      %v3681 = vadd.f32 0.0, %v3680
      %v3682 = vpop.f32.mrb[0].mxu0
      %3683 = vmatprep.mubr.bf16.mxu0 0
      %3684 = vmatmul.mubr.bf16.gmra.mrb[0].mxu0 %v3587
      %v3685 = vpop.f32.mrb[0].mxu0
      %v3686 = vadd.f32 0.0, %v3685
      %v3687 = vpop.f32.mrb[0].mxu0
      %v3688 = vpop.f32.mrb[0].mxu0
      %v3689 = vadd.f32 0.0, %v3688
      %v3690 = vpop.f32.mrb[0].mxu0
      %3691 = vmatprep.mubr.bf16.mxu0 0
      %3692 = vmatmul.mubr.bf16.gmra.mrb[0].mxu0 %v3590
      %v3693 = vpop.f32.mrb[0].mxu0
      %v3694 = vadd.f32 0.0, %v3693
      %v3695 = vpop.f32.mrb[0].mxu0
      %v3696 = vpop.f32.mrb[0].mxu0
      %v3697 = vadd.f32 0.0, %v3696
      %v3698 = vpop.f32.mrb[0].mxu0
      %3699 = vdwg.mxu0
      %v3700 = vadd.f32 %v3526, %v3630
      %v3701 = vadd.f32 %v3527, %v3633
      %v3702 = vadd.f32 %v3528, %v3638
      %v3703 = vadd.f32 %v3529, %v3641
      %v3704 = vadd.f32 %v3530, %v3646
      %v3705 = vadd.f32 %v3531, %v3649
      %v3706 = vadd.f32 %v3532, %v3654
      %v3707 = vadd.f32 %v3533, %v3657
      %v3708 = vadd.f32 %v3534, %v3662
      %v3709 = vadd.f32 %v3535, %v3665
      %v3710 = vadd.f32 %v3536, %v3670
      %v3711 = vadd.f32 %v3537, %v3673
      %v3712 = vadd.f32 %v3538, %v3678
      %v3713 = vadd.f32 %v3539, %v3681
      %v3714 = vadd.f32 %v3540, %v3686
      %v3715 = vadd.f32 %v3541, %v3689
      %v3716 = vadd.f32 %v3542, %v3694
      %v3717 = vadd.f32 %v3543, %v3697
      %v3718 = vld [vmem:[%s6] sm:$0x1]
      %v3720 = vlaneseq
      %v3721 = vshrl.u32 %v3720, 7
      %v3722 = vsub.s32 0, %v3721
      %v3723 = vrot.slane %v3718, %v3722
      %v3725 = vmul.f32 %v3700, %v3723
      %v3726 = vmul.f32 %v3701, %v3723
      %v3727 = vmul.f32 %v3702, %v3723
      %v3728 = vmul.f32 %v3703, %v3723
      %v3729 = vmul.f32 %v3704, %v3723
      %v3730 = vmul.f32 %v3705, %v3723
      %v3731 = vmul.f32 %v3706, %v3723
      %v3732 = vmul.f32 %v3707, %v3723
      %v3733 = vmul.f32 %v3708, %v3723
      %v3734 = vmul.f32 %v3709, %v3723
      %v3735 = vmul.f32 %v3710, %v3723
      %v3736 = vmul.f32 %v3711, %v3723
      %v3737 = vmul.f32 %v3712, %v3723
      %v3738 = vmul.f32 %v3713, %v3723
      %v3739 = vmul.f32 %v3714, %v3723
      %v3740 = vmul.f32 %v3715, %v3723
      %v3741 = vmul.f32 %v3716, %v3723
      %v3742 = vmul.f32 %v3717, %v3723
      %v3743 = vld [vmem:[%s7] sm:$0x1]
      %v3745 = vlaneseq
      %v3746 = vshrl.u32 %v3745, 7
      %v3747 = vsub.s32 0, %v3746
      %v3748 = vrot.slane %v3743, %v3747
      %v3750 = vadd.f32 %v3725, %v3748
      %v3751 = vadd.f32 %v3726, %v3748
      %v3752 = vadd.f32 %v3727, %v3748
      %v3753 = vadd.f32 %v3728, %v3748
      %v3754 = vadd.f32 %v3729, %v3748
      %v3755 = vadd.f32 %v3730, %v3748
      %v3756 = vadd.f32 %v3731, %v3748
      %v3757 = vadd.f32 %v3732, %v3748
      %v3758 = vadd.f32 %v3733, %v3748
      %v3759 = vadd.f32 %v3734, %v3748
      %v3760 = vadd.f32 %v3735, %v3748
      %v3761 = vadd.f32 %v3736, %v3748
      %v3762 = vadd.f32 %v3737, %v3748
      %v3763 = vadd.f32 %v3738, %v3748
      %v3764 = vadd.f32 %v3739, %v3748
      %v3765 = vadd.f32 %v3740, %v3748
      %v3766 = vadd.f32 %v3741, %v3748
      %v3767 = vadd.f32 %v3742, %v3748
      %v3768 = vmax.f32 %v3750, 0.0
      %v3769 = vmax.f32 %v3751, 0.0
      %v3770 = vmax.f32 %v3752, 0.0
      %v3771 = vmax.f32 %v3753, 0.0
      %v3772 = vmax.f32 %v3754, 0.0
      %v3773 = vmax.f32 %v3755, 0.0
      %v3774 = vmax.f32 %v3756, 0.0
      %v3775 = vmax.f32 %v3757, 0.0
      %v3776 = vmax.f32 %v3758, 0.0
      %v3777 = vmax.f32 %v3759, 0.0
      %v3778 = vmax.f32 %v3760, 0.0
      %v3779 = vmax.f32 %v3761, 0.0
      %v3780 = vmax.f32 %v3762, 0.0
      %v3781 = vmax.f32 %v3763, 0.0
      %v3782 = vmax.f32 %v3764, 0.0
      %v3783 = vmax.f32 %v3765, 0.0
      %v3784 = vmax.f32 %v3766, 0.0
      %v3785 = vmax.f32 %v3767, 0.0
      %v3786 = vpack.c.bf16 %v3769, %v3768
      %v3787 = vpack.c.bf16 %v3771, %v3770
      %v3788 = vpack.c.bf16 %v3773, %v3772
      %v3789 = vpack.c.bf16 %v3775, %v3774
      %v3790 = vpack.c.bf16 %v3777, %v3776
      %v3791 = vpack.c.bf16 %v3779, %v3778
      %v3792 = vpack.c.bf16 %v3781, %v3780
      %v3793 = vpack.c.bf16 %v3783, %v3782
      %v3794 = vpack.c.bf16 %v3785, %v3784
      %v3804 = vunpack.c.l.b16 %v3786
      %v3805 = vunpack.c.h.b16 %v3786
      %v3806 = vunpack.c.l.b16 %v3787
      %v3807 = vunpack.c.h.b16 %v3787
      %v3808 = vunpack.c.l.b16 %v3788
      %v3809 = vunpack.c.h.b16 %v3788
      %v3810 = vunpack.c.l.b16 %v3789
      %v3811 = vunpack.c.h.b16 %v3789
      %v3812 = vunpack.c.l.b16 %v3790
      %v3813 = vunpack.c.h.b16 %v3790
      %v3814 = vunpack.c.l.b16 %v3791
      %v3815 = vunpack.c.h.b16 %v3791
      %v3816 = vunpack.c.l.b16 %v3792
      %v3817 = vunpack.c.h.b16 %v3792
      %v3818 = vunpack.c.l.b16 %v3793
      %v3819 = vunpack.c.h.b16 %v3793
      %v3820 = vunpack.c.l.b16 %v3794
      %v3821 = vunpack.c.h.b16 %v3794
      %v3822 = vpack.c.b16 %v3804, %v3804
      %v3823 = vpack.c.b16 %v3805, %v3805
      %v3824 = vpack.c.b16 %v3806, %v3806
      %v3825 = vpack.c.b16 %v3807, %v3807
      %v3826 = vpack.c.b16 %v3808, %v3808
      %v3827 = vpack.c.b16 %v3809, %v3809
      %v3828 = vpack.c.b16 %v3810, %v3810
      %v3829 = vpack.c.b16 %v3811, %v3811
      %v3830 = vpack.c.b16 %v3812, %v3812
      %v3831 = vpack.c.b16 %v3813, %v3813
      %v3832 = vpack.c.b16 %v3814, %v3814
      %v3833 = vpack.c.b16 %v3815, %v3815
      %v3834 = vpack.c.b16 %v3816, %v3816
      %v3835 = vpack.c.b16 %v3817, %v3817
      %v3836 = vpack.c.b16 %v3818, %v3818
      %v3837 = vpack.c.b16 %v3819, %v3819
      %v3838 = vpack.c.b16 %v3820, %v3820
      %v3839 = vpack.c.b16 %v3821, %v3821
      %vm3858 = vcmask 27648
      %3859 = vst.msk [vmem:[%s447] sm:$0xf] %vm3858, %v3822
      %3860 = vst.msk [vmem:[%s447 + $0x4] sm:$0xf] %vm3858, %v3823
      %3861 = vst.msk [vmem:[%s447 + $0x8] sm:$0xf] %vm3858, %v3824
      %3862 = vst.msk [vmem:[%s447 + $0xc] sm:$0xf] %vm3858, %v3825
      %3863 = vst.msk [vmem:[%s447 + $0x10] sm:$0xf] %vm3858, %v3826
      %3864 = vst.msk [vmem:[%s447 + $0x14] sm:$0xf] %vm3858, %v3827
      %3865 = vst.msk [vmem:[%s447 + $0x18] sm:$0xf] %vm3858, %v3828
      %3866 = vst.msk [vmem:[%s447 + $0x1c] sm:$0xf] %vm3858, %v3829
      %3867 = vst.msk [vmem:[%s447 + $0x20] sm:$0xf] %vm3858, %v3830
      %3868 = vst.msk [vmem:[%s447 + $0x24] sm:$0xf] %vm3858, %v3831
      %3869 = vst.msk [vmem:[%s447 + $0x28] sm:$0xf] %vm3858, %v3832
      %3870 = vst.msk [vmem:[%s447 + $0x2c] sm:$0xf] %vm3858, %v3833
      %3871 = vst.msk [vmem:[%s447 + $0x30] sm:$0xf] %vm3858, %v3834
      %3872 = vst.msk [vmem:[%s447 + $0x34] sm:$0xf] %vm3858, %v3835
      %3873 = vst.msk [vmem:[%s447 + $0x38] sm:$0xf] %vm3858, %v3836
      %3874 = vst.msk [vmem:[%s447 + $0x3c] sm:$0xf] %vm3858, %v3837
      %3875 = vst.msk [vmem:[%s447 + $0x40] sm:$0xf] %vm3858, %v3838
      %3876 = vst.msk [vmem:[%s447 + $0x44] sm:$0xf] %vm3858, %v3839
      %s3877 = smul.u32 18, %s24
      %p3878 = scmp.lt.s32.totalorder %s23, 1
      %s3879 = scalar_select %p3878, %s23, 1
      %p3880 = scmp.lt.s32.totalorder %s3877, 35
      %s3881 = scalar_select %p3880, %s3877, 35
      %s3882 = smul.addr %s3879, 36
      %s3883 = sadd.s32 %s3881, %s3882
      %s3884 = smul.addr %s3883, 4
      %s3885 = scalar_lea.vmem %s8, %s3884
      // Predicated region
      $region53: #{up_forward.4} parent=51 // pred_check
        %p3886 = pneg %p247
      $region54: #{up_forward.4} parent=51 // pred_check_branch
        %3888 = sbr.rel (%p3886) target = $region56
      $region55: #{up_forward.4} parent=51 // pred_region
        %s3889 = smul.u32 18, %s24
      $region56: #{up_forward.4} parent=51 // pred_fallthru
        _
    $region52: #{up_forward.4} parent=5 // pred_fallthru
      _
    %p3890 = scmp.le.s32.totalorder 2, %s14
    // Predicated region
    $region57: #{up_forward.4} parent=5 // pred_check
      %p3891 = pneg %p3890
    $region58: #{up_forward.4} parent=5 // pred_check_branch
      %3893 = sbr.rel (%p3891) target = $region60
    $region59: #{up_forward.4} parent=5 // pred_region
      %s3894 = ssub.s32 %s14, 2
      // Predicated region
      $region61: #{up_forward.4} parent=59 // pred_check
        %p3895 = pneg %p253
      $region62: #{up_forward.4} parent=59 // pred_check_branch
        %3897 = sbr.rel (%p3895) target = $region64
      $region63: #{up_forward.4} parent=59 // pred_region
        %s3898 = smul.u32 18, %s26
        %p3899 = scmp.lt.s32.totalorder %s25, 1
        %s3900 = scalar_select %p3899, %s25, 1
        %p3901 = scmp.lt.s32.totalorder %s3898, 35
        %s3902 = scalar_select %p3901, %s3898, 35
        %s3903 = smul.addr %s3900, 36
        %s3904 = sadd.s32 %s3902, %s3903
        %s3905 = smul.addr %s3904, 4
        %s3906 = scalar_lea.vmem %s8, %s3905
      $region64: #{up_forward.4} parent=59 // pred_fallthru
        _
    $region60: #{up_forward.4} parent=5 // pred_fallthru
      _
  $region6: #{up_forward.4} parent=0 // loop_footer
    %s18 = sadd.s32 1, %s14
  $region7: #{up_forward.4} parent=0 // loop_footer_branch
    %13 = sbr.rel target = $region3
  $region8: #{up_forward.4} parent=0 // loop_exit
    _

</llo_original>
